<compile_context>
chip_gen: v7x
topology: tpu7x:2x2x1
jax: 0.10.0
libtpu: 0.0.40
codegen_flags: <defaults>
</compile_context>

<pallas_src>
import math
from functools import partial

import jax
import jax.numpy as jnp
from jax.experimental import pallas as pl
from jax.experimental.pallas import tpu as pltpu


_INV_SQRT2 = 0.7071067811865476
_LN_EPS = 1e-5


def _gelu_exact(y):
    # exact (erf-based) GELU, matching PyTorch F.gelu(approximate='none')
    return 0.5 * y * (1.0 + jax.lax.erf(y * _INV_SQRT2))


def _layernorm(h, g, b, eps):
    mean = jnp.mean(h, axis=-1, keepdims=True)
    var = jnp.mean(jnp.square(h - mean), axis=-1, keepdims=True)
    return (h - mean) * jax.lax.rsqrt(var + eps) * g + b


def _default_vmem_limit():
    # Generation-aware scoped-VMEM limit (v7x: 64 MiB total, v5e/v6e: 128 MiB).
    try:
        cap = int(pltpu.get_tpu_info().vmem_capacity_bytes)
        return max(16 * 1024 * 1024, min(cap // 2, 96 * 1024 * 1024))
    except Exception:
        return 32 * 1024 * 1024


# ----------------------------------------------------------------------------
# Fused full-stack kernel: one grid step = one batch element, all layers.
# ----------------------------------------------------------------------------

def _stack_kernel(x_ref, wqkv_ref, bqkv_ref, wout_ref, bout_ref,
                  ln1g_ref, ln1b_ref, wff1_ref, bff1_ref,
                  wff2_ref, bff2_ref, ln2g_ref, ln2b_ref, o_ref,
                  *, num_layers, nhead, eps):
    x = x_ref[0]                                          # (S, D) f32
    S, D = x.shape
    dh = D // nhead

    for l in range(num_layers):                           # static unroll (L small)
        # ---------------- self-attention block ----------------
        # QKV projection (bf16 operands, f32 accumulation). 1/sqrt(dh) is
        # already folded into the Q slice of wqkv/bqkv.
        qkv = jnp.dot(x.astype(jnp.bfloat16), wqkv_ref[l],
                      preferred_element_type=jnp.float32) + bqkv_ref[l]   # (S,3D) f32
        qkvb = qkv.astype(jnp.bfloat16)

        ctx_heads = []
        for h in range(nhead):
            lo = h * dh
            qh = qkvb[:, lo:lo + dh]                      # (S, dh) bf16
            kh = qkvb[:, D + lo:D + lo + dh]
            vh = qkvb[:, 2 * D + lo:2 * D + lo + dh]
            # q @ k^T without materializing a transpose (contract last dims).
            s = jax.lax.dot_general(qh, kh, (((1,), (1,)), ((), ())),
                                    preferred_element_type=jnp.float32)   # (S,S) f32
            s = s - jnp.max(s, axis=-1, keepdims=True)
            p = jnp.exp(s)
            p = p / jnp.sum(p, axis=-1, keepdims=True)    # exact softmax in f32
            ctx_heads.append(jnp.dot(p.astype(jnp.bfloat16), vh,
                                     preferred_element_type=jnp.float32))
        ctx = jnp.concatenate(ctx_heads, axis=-1)         # (S, D) f32, lane-dense

        attn = jnp.dot(ctx.astype(jnp.bfloat16), wout_ref[l],
                       preferred_element_type=jnp.float32) + bout_ref[l]
        y1 = _layernorm(x + attn, ln1g_ref[l], ln1b_ref[l], eps)          # (S, D) f32

        # ---------------- feed-forward block ----------------
        hmid = jnp.dot(y1.astype(jnp.bfloat16), wff1_ref[l],
                       preferred_element_type=jnp.float32) + bff1_ref[l]  # (S, FF) f32
        hmid = _gelu_exact(hmid)
        y2 = jnp.dot(hmid.astype(jnp.bfloat16), wff2_ref[l],
                     preferred_element_type=jnp.float32) + bff2_ref[l]
        x = _layernorm(y1 + y2, ln2g_ref[l], ln2b_ref[l], eps)

    o_ref[0] = x.astype(o_ref.dtype)


# ----------------------------------------------------------------------------
# One-time parameter preparation (stack layers, fold softmax scale, cast bf16)
# ----------------------------------------------------------------------------

def prepare_params(params, nhead):
    D = params[0]["w_in"].shape[0]
    assert D % nhead == 0, "d_model must be divisible by nhead"
    dh = D // nhead
    scale = 1.0 / math.sqrt(dh)

    def stack(key):
        return jnp.stack([p[key] for p in params])

    w_in = stack("w_in")                                   # (L, D, 3D)
    b_in = stack("b_in")                                   # (L, 3D)
    # fold 1/sqrt(dh) into the Q projection (exactly equivalent math).
    qscale = jnp.concatenate([jnp.full((D,), scale, jnp.float32),
                              jnp.ones((2 * D,), jnp.float32)])
    w_in = w_in * qscale[None, None, :]
    b_in = b_in * qscale[None, :]

    return dict(
        w_in=w_in.astype(jnp.bfloat16),                    # (L, D, 3D) bf16
        b_in=b_in[:, None, :],                             # (L, 1, 3D) f32
        w_out=stack("w_out").astype(jnp.bfloat16),         # (L, D, D) bf16
        b_out=stack("b_out")[:, None, :],
        ln1_g=stack("ln1_g")[:, None, :],
        ln1_b=stack("ln1_b")[:, None, :],
        w_ff1=stack("w_ff1").astype(jnp.bfloat16),         # (L, D, FF) bf16
        b_ff1=stack("b_ff1")[:, None, :],
        w_ff2=stack("w_ff2").astype(jnp.bfloat16),         # (L, FF, D) bf16
        b_ff2=stack("b_ff2")[:, None, :],
        ln2_g=stack("ln2_g")[:, None, :],
        ln2_b=stack("ln2_b")[:, None, :],
    )


# ----------------------------------------------------------------------------
# Transformer encoder forward (single pallas_call for the whole stack)
# ----------------------------------------------------------------------------

def transformer_forward(x_sbd, prep, num_layers, nhead, eps=_LN_EPS):
    S, B, D = x_sbd.shape
    FF = prep["w_ff1"].shape[2]
    L = num_layers
    x = jnp.transpose(x_sbd, (1, 0, 2))                    # (B, S, D) batch-major

    xspec = pl.BlockSpec((1, S, D), lambda b: (b, 0, 0))

    def const_spec(shape):
        return pl.BlockSpec(shape, lambda b, _s=shape: (0,) * len(_s))

    out = pl.pallas_call(
        partial(_stack_kernel, num_layers=L, nhead=nhead, eps=eps),
        out_shape=jax.ShapeDtypeStruct((B, S, D), x.dtype),
        grid=(B,),
        in_specs=[
            xspec,
            const_spec((L, D, 3 * D)), const_spec((L, 1, 3 * D)),
            const_spec((L, D, D)),     const_spec((L, 1, D)),
            const_spec((L, 1, D)),     const_spec((L, 1, D)),
            const_spec((L, D, FF)),    const_spec((L, 1, FF)),
            const_spec((L, FF, D)),    const_spec((L, 1, D)),
            const_spec((L, 1, D)),     const_spec((L, 1, D)),
        ],
        out_specs=xspec,
        compiler_params=pltpu.CompilerParams(
            dimension_semantics=("parallel",),
            vmem_limit_bytes=_default_vmem_limit(),
        ),
    )(x,
      prep["w_in"], prep["b_in"], prep["w_out"], prep["b_out"],
      prep["ln1_g"], prep["ln1_b"],
      prep["w_ff1"], prep["b_ff1"], prep["w_ff2"], prep["b_ff2"],
      prep["ln2_g"], prep["ln2_b"])

    return jnp.transpose(out, (1, 0, 2))                   # back to (S, B, D)


# ----------------------------------------------------------------------------
# Pure-JAX f32 reference (mirrors PyTorch math) for a sanity check
# ----------------------------------------------------------------------------

def _ln_ref(h, g, b, eps=_LN_EPS):
    mean = jnp.mean(h, axis=-1, keepdims=True)
    var = jnp.mean(jnp.square(h - mean), axis=-1, keepdims=True)
    return (h - mean) * jax.lax.rsqrt(var + eps) * g + b


def transformer_ref(x, params, nhead):
    S, B, D = x.shape
    dh = D // nhead
    for p in params:
        x2 = x.reshape(S * B, D)
        qkv = x2 @ p["w_in"] + p["b_in"]
        q, k, v = jnp.split(qkv, 3, axis=-1)
        th = lambda t: (t.reshape(S, B, nhead, dh)
                         .transpose(1, 2, 0, 3).reshape(B * nhead, S, dh))
        qh, kh, vh = th(q), th(k), th(v)
        s = jnp.einsum("bqd,bkd->bqk", qh, kh) / math.sqrt(dh)
        pmat = jax.nn.softmax(s, axis=-1)
        oh = jnp.einsum("bqk,bkd->bqd", pmat, vh)
        attn = (oh.reshape(B, nhead, S, dh).transpose(2, 0, 1, 3).reshape(S * B, D))
        attn = attn @ p["w_out"] + p["b_out"]
        x2 = _ln_ref(x2 + attn, p["ln1_g"], p["ln1_b"])
        h = _gelu_exact(x2 @ p["w_ff1"] + p["b_ff1"])
        h = h @ p["w_ff2"] + p["b_ff2"]
        x2 = _ln_ref(x2 + h, p["ln2_g"], p["ln2_b"])
        x = x2.reshape(S, B, D)
    return x


# ----------------------------------------------------------------------------
# Deterministic parameter init (shapes mirror nn.TransformerEncoderLayer;
# weights stored pre-transposed as (Din, Dout) for direct x @ W matmuls)
# ----------------------------------------------------------------------------

def init_params(key, D, FF, layers):
    params = []
    s = 0.02
    for l in range(layers):
        ks = jax.random.split(jax.random.fold_in(key, l), 12)
        params.append(dict(
            w_in=jax.random.normal(ks[0], (D, 3 * D), jnp.float32) * s,
            b_in=jax.random.normal(ks[1], (3 * D,), jnp.float32) * s,
            w_out=jax.random.normal(ks[2], (D, D), jnp.float32) * s,
            b_out=jax.random.normal(ks[3], (D,), jnp.float32) * s,
            ln1_g=jnp.ones((D,), jnp.float32) + 0.01 * jax.random.normal(ks[4], (D,), jnp.float32),
            ln1_b=0.01 * jax.random.normal(ks[5], (D,), jnp.float32),
            w_ff1=jax.random.normal(ks[6], (D, FF), jnp.float32) * s,
            b_ff1=jax.random.normal(ks[7], (FF,), jnp.float32) * s,
            w_ff2=jax.random.normal(ks[8], (FF, D), jnp.float32) * s,
            b_ff2=jax.random.normal(ks[9], (D,), jnp.float32) * s,
            ln2_g=jnp.ones((D,), jnp.float32) + 0.01 * jax.random.normal(ks[10], (D,), jnp.float32),
            ln2_b=0.01 * jax.random.normal(ks[11], (D,), jnp.float32),
        ))
    return params


if __name__ == "__main__":
    # Small instantiation of Transformer(dim_emb=128, head=8, layers=2, actv='gelu')
    S, B, D, H, L = 8, 2, 128, 8, 2
    FF = 2048  # PyTorch TransformerEncoderLayer default dim_feedforward

    key = jax.random.PRNGKey(0)
    params = init_params(key, D, FF, L)
    x = jax.random.normal(jax.random.fold_in(key, 999), (S, B, D), dtype=jnp.float32)

    prep = prepare_params(params, H)
    fwd = jax.jit(partial(transformer_forward, num_layers=L, nhead=H))
    out = fwd(x, prep)
    out = jax.block_until_ready(out)

    ref = transformer_ref(x, params, H)
    assert out.shape == (S, B, D)
    err = float(jnp.max(jnp.abs(out - ref)))
    # bf16 MXU operands (f32 accumulation, f32 LN/GELU/softmax stats) -> small drift
    assert jnp.allclose(out, ref, atol=2e-2, rtol=2e-2), err

    print("KERNEL_OK")
</pallas_src>

<mosaic_0001>
module attributes {stable_mosaic.version = 11 : i64} {
  func.func @_stack_kernel(%arg0: i32, %arg1: memref<1x8x128xf32, #tpu.memory_space<vmem>>, %arg2: memref<2x128x384xbf16, #tpu.memory_space<vmem>>, %arg3: memref<2x1x384xf32, #tpu.memory_space<vmem>>, %arg4: memref<2x128x128xbf16, #tpu.memory_space<vmem>>, %arg5: memref<2x1x128xf32, #tpu.memory_space<vmem>>, %arg6: memref<2x1x128xf32, #tpu.memory_space<vmem>>, %arg7: memref<2x1x128xf32, #tpu.memory_space<vmem>>, %arg8: memref<2x128x2048xbf16, #tpu.memory_space<vmem>>, %arg9: memref<2x1x2048xf32, #tpu.memory_space<vmem>>, %arg10: memref<2x2048x128xbf16, #tpu.memory_space<vmem>>, %arg11: memref<2x1x128xf32, #tpu.memory_space<vmem>>, %arg12: memref<2x1x128xf32, #tpu.memory_space<vmem>>, %arg13: memref<2x1x128xf32, #tpu.memory_space<vmem>>, %arg14: memref<1x8x128xf32, #tpu.memory_space<vmem>>) attributes {dimension_semantics = [#tpu.dimension_semantics<parallel>], iteration_bounds = array<i64: 2>, scalar_prefetch = 0 : i64, scratch_operands = 0 : i64, tpu.core_type = #tpu.core_type<tc>, window_params = [{transform_indices = @transform_0, window_bounds = array<i64: 1, 8, 128>}, {pipeline_mode = #tpu.pipeline_mode<synchronous>, transform_indices = @transform_1, window_bounds = array<i64: 2, 128, 384>}, {pipeline_mode = #tpu.pipeline_mode<synchronous>, transform_indices = @transform_2, window_bounds = array<i64: 2, 1, 384>}, {pipeline_mode = #tpu.pipeline_mode<synchronous>, transform_indices = @transform_3, window_bounds = array<i64: 2, 128, 128>}, {pipeline_mode = #tpu.pipeline_mode<synchronous>, transform_indices = @transform_4, window_bounds = array<i64: 2, 1, 128>}, {pipeline_mode = #tpu.pipeline_mode<synchronous>, transform_indices = @transform_5, window_bounds = array<i64: 2, 1, 128>}, {pipeline_mode = #tpu.pipeline_mode<synchronous>, transform_indices = @transform_6, window_bounds = array<i64: 2, 1, 128>}, {pipeline_mode = #tpu.pipeline_mode<synchronous>, transform_indices = @transform_7, window_bounds = array<i64: 2, 128, 2048>}, {pipeline_mode = #tpu.pipeline_mode<synchronous>, transform_indices = @transform_8, window_bounds = array<i64: 2, 1, 2048>}, {pipeline_mode = #tpu.pipeline_mode<synchronous>, transform_indices = @transform_9, window_bounds = array<i64: 2, 2048, 128>}, {pipeline_mode = #tpu.pipeline_mode<synchronous>, transform_indices = @transform_10, window_bounds = array<i64: 2, 1, 128>}, {pipeline_mode = #tpu.pipeline_mode<synchronous>, transform_indices = @transform_11, window_bounds = array<i64: 2, 1, 128>}, {pipeline_mode = #tpu.pipeline_mode<synchronous>, transform_indices = @transform_12, window_bounds = array<i64: 2, 1, 128>}, {transform_indices = @transform_13, window_bounds = array<i64: 1, 8, 128>}]} {
    %c0 = arith.constant 0 : index
    %c0_0 = arith.constant 0 : index
    %c0_1 = arith.constant 0 : index
    %0 = vector.load %arg1[%c0, %c0_0, %c0_1] : memref<1x8x128xf32, #tpu.memory_space<vmem>>, vector<1x8x128xf32>
    %1 = vector.shape_cast %0 : vector<1x8x128xf32> to vector<8x128xf32>
    %2 = arith.truncf %1 : vector<8x128xf32> to vector<8x128xbf16>
    %c0_2 = arith.constant 0 : index
    %c0_3 = arith.constant 0 : index
    %c0_4 = arith.constant 0 : index
    %3 = vector.load %arg2[%c0_2, %c0_3, %c0_4] : memref<2x128x384xbf16, #tpu.memory_space<vmem>>, vector<1x128x384xbf16>
    %4 = vector.shape_cast %3 : vector<1x128x384xbf16> to vector<128x384xbf16>
    %cst = arith.constant dense<0.000000e+00> : vector<8x384xf32>
    %5 = tpu.matmul %2, %4, %cst {dimension_numbers = #tpu.dot_dimension_numbers<[1], [0], [0], [1], [0, 0, 1, 1], [], []>} : vector<8x128xbf16>, vector<128x384xbf16>, vector<8x384xf32> -> vector<8x384xf32>
    %c0_5 = arith.constant 0 : index
    %c0_6 = arith.constant 0 : index
    %c0_7 = arith.constant 0 : index
    %6 = vector.load %arg3[%c0_5, %c0_6, %c0_7] : memref<2x1x384xf32, #tpu.memory_space<vmem>>, vector<1x1x384xf32>
    %7 = vector.shape_cast %6 : vector<1x1x384xf32> to vector<1x384xf32>
    %8 = vector.broadcast %7 : vector<1x384xf32> to vector<8x384xf32>
    %9 = arith.addf %5, %8 : vector<8x384xf32>
    %10 = arith.truncf %9 : vector<8x384xf32> to vector<8x384xbf16>
    %11 = vector.extract_strided_slice %10 {offsets = [0, 0], sizes = [8, 16], strides = [1, 1]} : vector<8x384xbf16> to vector<8x16xbf16>
    %12 = vector.extract_strided_slice %10 {offsets = [0, 128], sizes = [8, 16], strides = [1, 1]} : vector<8x384xbf16> to vector<8x16xbf16>
    %13 = vector.extract_strided_slice %10 {offsets = [0, 256], sizes = [8, 16], strides = [1, 1]} : vector<8x384xbf16> to vector<8x16xbf16>
    %cst_8 = arith.constant dense<0.000000e+00> : vector<8x8xf32>
    %14 = tpu.matmul %11, %12, %cst_8 {dimension_numbers = #tpu.dot_dimension_numbers<[1], [1], [0], [0], [0, 0, 1, 0], [], []>} : vector<8x16xbf16>, vector<8x16xbf16>, vector<8x8xf32> -> vector<8x8xf32>
    %cst_9 = arith.constant dense<0xFF800000> : vector<8xf32>
    %15 = vector.multi_reduction <maximumf>, %14, %cst_9 [1] : vector<8x8xf32> to vector<8xf32>
    %16 = vector.shape_cast %15 : vector<8xf32> to vector<8x1xf32>
    %17 = vector.broadcast %16 : vector<8x1xf32> to vector<8x8xf32>
    %18 = arith.subf %14, %17 : vector<8x8xf32>
    %19 = math.exp %18 : vector<8x8xf32>
    %cst_10 = arith.constant dense<0.000000e+00> : vector<8xf32>
    %20 = vector.multi_reduction <add>, %19, %cst_10 [1] : vector<8x8xf32> to vector<8xf32>
    %21 = vector.shape_cast %20 : vector<8xf32> to vector<8x1xf32>
    %22 = vector.broadcast %21 : vector<8x1xf32> to vector<8x8xf32>
    %23 = arith.divf %19, %22 : vector<8x8xf32>
    %24 = arith.truncf %23 : vector<8x8xf32> to vector<8x8xbf16>
    %cst_11 = arith.constant dense<0.000000e+00> : vector<8x16xf32>
    %25 = tpu.matmul %24, %13, %cst_11 {dimension_numbers = #tpu.dot_dimension_numbers<[1], [0], [0], [1], [0, 0, 1, 1], [], []>} : vector<8x8xbf16>, vector<8x16xbf16>, vector<8x16xf32> -> vector<8x16xf32>
    %26 = vector.extract_strided_slice %10 {offsets = [0, 16], sizes = [8, 16], strides = [1, 1]} : vector<8x384xbf16> to vector<8x16xbf16>
    %27 = vector.extract_strided_slice %10 {offsets = [0, 144], sizes = [8, 16], strides = [1, 1]} : vector<8x384xbf16> to vector<8x16xbf16>
    %28 = vector.extract_strided_slice %10 {offsets = [0, 272], sizes = [8, 16], strides = [1, 1]} : vector<8x384xbf16> to vector<8x16xbf16>
    %cst_12 = arith.constant dense<0.000000e+00> : vector<8x8xf32>
    %29 = tpu.matmul %26, %27, %cst_12 {dimension_numbers = #tpu.dot_dimension_numbers<[1], [1], [0], [0], [0, 0, 1, 0], [], []>} : vector<8x16xbf16>, vector<8x16xbf16>, vector<8x8xf32> -> vector<8x8xf32>
    %cst_13 = arith.constant dense<0xFF800000> : vector<8xf32>
    %30 = vector.multi_reduction <maximumf>, %29, %cst_13 [1] : vector<8x8xf32> to vector<8xf32>
    %31 = vector.shape_cast %30 : vector<8xf32> to vector<8x1xf32>
    %32 = vector.broadcast %31 : vector<8x1xf32> to vector<8x8xf32>
    %33 = arith.subf %29, %32 : vector<8x8xf32>
    %34 = math.exp %33 : vector<8x8xf32>
    %cst_14 = arith.constant dense<0.000000e+00> : vector<8xf32>
    %35 = vector.multi_reduction <add>, %34, %cst_14 [1] : vector<8x8xf32> to vector<8xf32>
    %36 = vector.shape_cast %35 : vector<8xf32> to vector<8x1xf32>
    %37 = vector.broadcast %36 : vector<8x1xf32> to vector<8x8xf32>
    %38 = arith.divf %34, %37 : vector<8x8xf32>
    %39 = arith.truncf %38 : vector<8x8xf32> to vector<8x8xbf16>
    %cst_15 = arith.constant dense<0.000000e+00> : vector<8x16xf32>
    %40 = tpu.matmul %39, %28, %cst_15 {dimension_numbers = #tpu.dot_dimension_numbers<[1], [0], [0], [1], [0, 0, 1, 1], [], []>} : vector<8x8xbf16>, vector<8x16xbf16>, vector<8x16xf32> -> vector<8x16xf32>
    %41 = vector.extract_strided_slice %10 {offsets = [0, 32], sizes = [8, 16], strides = [1, 1]} : vector<8x384xbf16> to vector<8x16xbf16>
    %42 = vector.extract_strided_slice %10 {offsets = [0, 160], sizes = [8, 16], strides = [1, 1]} : vector<8x384xbf16> to vector<8x16xbf16>
    %43 = vector.extract_strided_slice %10 {offsets = [0, 288], sizes = [8, 16], strides = [1, 1]} : vector<8x384xbf16> to vector<8x16xbf16>
    %cst_16 = arith.constant dense<0.000000e+00> : vector<8x8xf32>
    %44 = tpu.matmul %41, %42, %cst_16 {dimension_numbers = #tpu.dot_dimension_numbers<[1], [1], [0], [0], [0, 0, 1, 0], [], []>} : vector<8x16xbf16>, vector<8x16xbf16>, vector<8x8xf32> -> vector<8x8xf32>
    %cst_17 = arith.constant dense<0xFF800000> : vector<8xf32>
    %45 = vector.multi_reduction <maximumf>, %44, %cst_17 [1] : vector<8x8xf32> to vector<8xf32>
    %46 = vector.shape_cast %45 : vector<8xf32> to vector<8x1xf32>
    %47 = vector.broadcast %46 : vector<8x1xf32> to vector<8x8xf32>
    %48 = arith.subf %44, %47 : vector<8x8xf32>
    %49 = math.exp %48 : vector<8x8xf32>
    %cst_18 = arith.constant dense<0.000000e+00> : vector<8xf32>
    %50 = vector.multi_reduction <add>, %49, %cst_18 [1] : vector<8x8xf32> to vector<8xf32>
    %51 = vector.shape_cast %50 : vector<8xf32> to vector<8x1xf32>
    %52 = vector.broadcast %51 : vector<8x1xf32> to vector<8x8xf32>
    %53 = arith.divf %49, %52 : vector<8x8xf32>
    %54 = arith.truncf %53 : vector<8x8xf32> to vector<8x8xbf16>
    %cst_19 = arith.constant dense<0.000000e+00> : vector<8x16xf32>
    %55 = tpu.matmul %54, %43, %cst_19 {dimension_numbers = #tpu.dot_dimension_numbers<[1], [0], [0], [1], [0, 0, 1, 1], [], []>} : vector<8x8xbf16>, vector<8x16xbf16>, vector<8x16xf32> -> vector<8x16xf32>
    %56 = vector.extract_strided_slice %10 {offsets = [0, 48], sizes = [8, 16], strides = [1, 1]} : vector<8x384xbf16> to vector<8x16xbf16>
    %57 = vector.extract_strided_slice %10 {offsets = [0, 176], sizes = [8, 16], strides = [1, 1]} : vector<8x384xbf16> to vector<8x16xbf16>
    %58 = vector.extract_strided_slice %10 {offsets = [0, 304], sizes = [8, 16], strides = [1, 1]} : vector<8x384xbf16> to vector<8x16xbf16>
    %cst_20 = arith.constant dense<0.000000e+00> : vector<8x8xf32>
    %59 = tpu.matmul %56, %57, %cst_20 {dimension_numbers = #tpu.dot_dimension_numbers<[1], [1], [0], [0], [0, 0, 1, 0], [], []>} : vector<8x16xbf16>, vector<8x16xbf16>, vector<8x8xf32> -> vector<8x8xf32>
    %cst_21 = arith.constant dense<0xFF800000> : vector<8xf32>
    %60 = vector.multi_reduction <maximumf>, %59, %cst_21 [1] : vector<8x8xf32> to vector<8xf32>
    %61 = vector.shape_cast %60 : vector<8xf32> to vector<8x1xf32>
    %62 = vector.broadcast %61 : vector<8x1xf32> to vector<8x8xf32>
    %63 = arith.subf %59, %62 : vector<8x8xf32>
    %64 = math.exp %63 : vector<8x8xf32>
    %cst_22 = arith.constant dense<0.000000e+00> : vector<8xf32>
    %65 = vector.multi_reduction <add>, %64, %cst_22 [1] : vector<8x8xf32> to vector<8xf32>
    %66 = vector.shape_cast %65 : vector<8xf32> to vector<8x1xf32>
    %67 = vector.broadcast %66 : vector<8x1xf32> to vector<8x8xf32>
    %68 = arith.divf %64, %67 : vector<8x8xf32>
    %69 = arith.truncf %68 : vector<8x8xf32> to vector<8x8xbf16>
    %cst_23 = arith.constant dense<0.000000e+00> : vector<8x16xf32>
    %70 = tpu.matmul %69, %58, %cst_23 {dimension_numbers = #tpu.dot_dimension_numbers<[1], [0], [0], [1], [0, 0, 1, 1], [], []>} : vector<8x8xbf16>, vector<8x16xbf16>, vector<8x16xf32> -> vector<8x16xf32>
    %71 = vector.extract_strided_slice %10 {offsets = [0, 64], sizes = [8, 16], strides = [1, 1]} : vector<8x384xbf16> to vector<8x16xbf16>
    %72 = vector.extract_strided_slice %10 {offsets = [0, 192], sizes = [8, 16], strides = [1, 1]} : vector<8x384xbf16> to vector<8x16xbf16>
    %73 = vector.extract_strided_slice %10 {offsets = [0, 320], sizes = [8, 16], strides = [1, 1]} : vector<8x384xbf16> to vector<8x16xbf16>
    %cst_24 = arith.constant dense<0.000000e+00> : vector<8x8xf32>
    %74 = tpu.matmul %71, %72, %cst_24 {dimension_numbers = #tpu.dot_dimension_numbers<[1], [1], [0], [0], [0, 0, 1, 0], [], []>} : vector<8x16xbf16>, vector<8x16xbf16>, vector<8x8xf32> -> vector<8x8xf32>
    %cst_25 = arith.constant dense<0xFF800000> : vector<8xf32>
    %75 = vector.multi_reduction <maximumf>, %74, %cst_25 [1] : vector<8x8xf32> to vector<8xf32>
    %76 = vector.shape_cast %75 : vector<8xf32> to vector<8x1xf32>
    %77 = vector.broadcast %76 : vector<8x1xf32> to vector<8x8xf32>
    %78 = arith.subf %74, %77 : vector<8x8xf32>
    %79 = math.exp %78 : vector<8x8xf32>
    %cst_26 = arith.constant dense<0.000000e+00> : vector<8xf32>
    %80 = vector.multi_reduction <add>, %79, %cst_26 [1] : vector<8x8xf32> to vector<8xf32>
    %81 = vector.shape_cast %80 : vector<8xf32> to vector<8x1xf32>
    %82 = vector.broadcast %81 : vector<8x1xf32> to vector<8x8xf32>
    %83 = arith.divf %79, %82 : vector<8x8xf32>
    %84 = arith.truncf %83 : vector<8x8xf32> to vector<8x8xbf16>
    %cst_27 = arith.constant dense<0.000000e+00> : vector<8x16xf32>
    %85 = tpu.matmul %84, %73, %cst_27 {dimension_numbers = #tpu.dot_dimension_numbers<[1], [0], [0], [1], [0, 0, 1, 1], [], []>} : vector<8x8xbf16>, vector<8x16xbf16>, vector<8x16xf32> -> vector<8x16xf32>
    %86 = vector.extract_strided_slice %10 {offsets = [0, 80], sizes = [8, 16], strides = [1, 1]} : vector<8x384xbf16> to vector<8x16xbf16>
    %87 = vector.extract_strided_slice %10 {offsets = [0, 208], sizes = [8, 16], strides = [1, 1]} : vector<8x384xbf16> to vector<8x16xbf16>
    %88 = vector.extract_strided_slice %10 {offsets = [0, 336], sizes = [8, 16], strides = [1, 1]} : vector<8x384xbf16> to vector<8x16xbf16>
    %cst_28 = arith.constant dense<0.000000e+00> : vector<8x8xf32>
    %89 = tpu.matmul %86, %87, %cst_28 {dimension_numbers = #tpu.dot_dimension_numbers<[1], [1], [0], [0], [0, 0, 1, 0], [], []>} : vector<8x16xbf16>, vector<8x16xbf16>, vector<8x8xf32> -> vector<8x8xf32>
    %cst_29 = arith.constant dense<0xFF800000> : vector<8xf32>
    %90 = vector.multi_reduction <maximumf>, %89, %cst_29 [1] : vector<8x8xf32> to vector<8xf32>
    %91 = vector.shape_cast %90 : vector<8xf32> to vector<8x1xf32>
    %92 = vector.broadcast %91 : vector<8x1xf32> to vector<8x8xf32>
    %93 = arith.subf %89, %92 : vector<8x8xf32>
    %94 = math.exp %93 : vector<8x8xf32>
    %cst_30 = arith.constant dense<0.000000e+00> : vector<8xf32>
    %95 = vector.multi_reduction <add>, %94, %cst_30 [1] : vector<8x8xf32> to vector<8xf32>
    %96 = vector.shape_cast %95 : vector<8xf32> to vector<8x1xf32>
    %97 = vector.broadcast %96 : vector<8x1xf32> to vector<8x8xf32>
    %98 = arith.divf %94, %97 : vector<8x8xf32>
    %99 = arith.truncf %98 : vector<8x8xf32> to vector<8x8xbf16>
    %cst_31 = arith.constant dense<0.000000e+00> : vector<8x16xf32>
    %100 = tpu.matmul %99, %88, %cst_31 {dimension_numbers = #tpu.dot_dimension_numbers<[1], [0], [0], [1], [0, 0, 1, 1], [], []>} : vector<8x8xbf16>, vector<8x16xbf16>, vector<8x16xf32> -> vector<8x16xf32>
    %101 = vector.extract_strided_slice %10 {offsets = [0, 96], sizes = [8, 16], strides = [1, 1]} : vector<8x384xbf16> to vector<8x16xbf16>
    %102 = vector.extract_strided_slice %10 {offsets = [0, 224], sizes = [8, 16], strides = [1, 1]} : vector<8x384xbf16> to vector<8x16xbf16>
    %103 = vector.extract_strided_slice %10 {offsets = [0, 352], sizes = [8, 16], strides = [1, 1]} : vector<8x384xbf16> to vector<8x16xbf16>
    %cst_32 = arith.constant dense<0.000000e+00> : vector<8x8xf32>
    %104 = tpu.matmul %101, %102, %cst_32 {dimension_numbers = #tpu.dot_dimension_numbers<[1], [1], [0], [0], [0, 0, 1, 0], [], []>} : vector<8x16xbf16>, vector<8x16xbf16>, vector<8x8xf32> -> vector<8x8xf32>
    %cst_33 = arith.constant dense<0xFF800000> : vector<8xf32>
    %105 = vector.multi_reduction <maximumf>, %104, %cst_33 [1] : vector<8x8xf32> to vector<8xf32>
    %106 = vector.shape_cast %105 : vector<8xf32> to vector<8x1xf32>
    %107 = vector.broadcast %106 : vector<8x1xf32> to vector<8x8xf32>
    %108 = arith.subf %104, %107 : vector<8x8xf32>
    %109 = math.exp %108 : vector<8x8xf32>
    %cst_34 = arith.constant dense<0.000000e+00> : vector<8xf32>
    %110 = vector.multi_reduction <add>, %109, %cst_34 [1] : vector<8x8xf32> to vector<8xf32>
    %111 = vector.shape_cast %110 : vector<8xf32> to vector<8x1xf32>
    %112 = vector.broadcast %111 : vector<8x1xf32> to vector<8x8xf32>
    %113 = arith.divf %109, %112 : vector<8x8xf32>
    %114 = arith.truncf %113 : vector<8x8xf32> to vector<8x8xbf16>
    %cst_35 = arith.constant dense<0.000000e+00> : vector<8x16xf32>
    %115 = tpu.matmul %114, %103, %cst_35 {dimension_numbers = #tpu.dot_dimension_numbers<[1], [0], [0], [1], [0, 0, 1, 1], [], []>} : vector<8x8xbf16>, vector<8x16xbf16>, vector<8x16xf32> -> vector<8x16xf32>
    %116 = vector.extract_strided_slice %10 {offsets = [0, 112], sizes = [8, 16], strides = [1, 1]} : vector<8x384xbf16> to vector<8x16xbf16>
    %117 = vector.extract_strided_slice %10 {offsets = [0, 240], sizes = [8, 16], strides = [1, 1]} : vector<8x384xbf16> to vector<8x16xbf16>
    %118 = vector.extract_strided_slice %10 {offsets = [0, 368], sizes = [8, 16], strides = [1, 1]} : vector<8x384xbf16> to vector<8x16xbf16>
    %cst_36 = arith.constant dense<0.000000e+00> : vector<8x8xf32>
    %119 = tpu.matmul %116, %117, %cst_36 {dimension_numbers = #tpu.dot_dimension_numbers<[1], [1], [0], [0], [0, 0, 1, 0], [], []>} : vector<8x16xbf16>, vector<8x16xbf16>, vector<8x8xf32> -> vector<8x8xf32>
    %cst_37 = arith.constant dense<0xFF800000> : vector<8xf32>
    %120 = vector.multi_reduction <maximumf>, %119, %cst_37 [1] : vector<8x8xf32> to vector<8xf32>
    %121 = vector.shape_cast %120 : vector<8xf32> to vector<8x1xf32>
    %122 = vector.broadcast %121 : vector<8x1xf32> to vector<8x8xf32>
    %123 = arith.subf %119, %122 : vector<8x8xf32>
    %124 = math.exp %123 : vector<8x8xf32>
    %cst_38 = arith.constant dense<0.000000e+00> : vector<8xf32>
    %125 = vector.multi_reduction <add>, %124, %cst_38 [1] : vector<8x8xf32> to vector<8xf32>
    %126 = vector.shape_cast %125 : vector<8xf32> to vector<8x1xf32>
    %127 = vector.broadcast %126 : vector<8x1xf32> to vector<8x8xf32>
    %128 = arith.divf %124, %127 : vector<8x8xf32>
    %129 = arith.truncf %128 : vector<8x8xf32> to vector<8x8xbf16>
    %cst_39 = arith.constant dense<0.000000e+00> : vector<8x16xf32>
    %130 = tpu.matmul %129, %118, %cst_39 {dimension_numbers = #tpu.dot_dimension_numbers<[1], [0], [0], [1], [0, 0, 1, 1], [], []>} : vector<8x8xbf16>, vector<8x16xbf16>, vector<8x16xf32> -> vector<8x16xf32>
    %131 = tpu.concatenate %25, %40, %55, %70, %85, %100, %115, %130 in 1 : vector<8x16xf32>, vector<8x16xf32>, vector<8x16xf32>, vector<8x16xf32>, vector<8x16xf32>, vector<8x16xf32>, vector<8x16xf32>, vector<8x16xf32> -> vector<8x128xf32>
    %132 = arith.truncf %131 : vector<8x128xf32> to vector<8x128xbf16>
    %c0_40 = arith.constant 0 : index
    %c0_41 = arith.constant 0 : index
    %c0_42 = arith.constant 0 : index
    %133 = vector.load %arg4[%c0_40, %c0_41, %c0_42] : memref<2x128x128xbf16, #tpu.memory_space<vmem>>, vector<1x128x128xbf16>
    %134 = vector.shape_cast %133 : vector<1x128x128xbf16> to vector<128x128xbf16>
    %cst_43 = arith.constant dense<0.000000e+00> : vector<8x128xf32>
    %135 = tpu.matmul %132, %134, %cst_43 {dimension_numbers = #tpu.dot_dimension_numbers<[1], [0], [0], [1], [0, 0, 1, 1], [], []>} : vector<8x128xbf16>, vector<128x128xbf16>, vector<8x128xf32> -> vector<8x128xf32>
    %c0_44 = arith.constant 0 : index
    %c0_45 = arith.constant 0 : index
    %c0_46 = arith.constant 0 : index
    %136 = vector.load %arg5[%c0_44, %c0_45, %c0_46] : memref<2x1x128xf32, #tpu.memory_space<vmem>>, vector<1x1x128xf32>
    %137 = vector.shape_cast %136 : vector<1x1x128xf32> to vector<1x128xf32>
    %138 = vector.broadcast %137 : vector<1x128xf32> to vector<8x128xf32>
    %139 = arith.addf %135, %138 : vector<8x128xf32>
    %140 = arith.addf %1, %139 : vector<8x128xf32>
    %c0_47 = arith.constant 0 : index
    %c0_48 = arith.constant 0 : index
    %c0_49 = arith.constant 0 : index
    %141 = vector.load %arg6[%c0_47, %c0_48, %c0_49] : memref<2x1x128xf32, #tpu.memory_space<vmem>>, vector<1x1x128xf32>
    %142 = vector.shape_cast %141 : vector<1x1x128xf32> to vector<1x128xf32>
    %c0_50 = arith.constant 0 : index
    %c0_51 = arith.constant 0 : index
    %c0_52 = arith.constant 0 : index
    %143 = vector.load %arg7[%c0_50, %c0_51, %c0_52] : memref<2x1x128xf32, #tpu.memory_space<vmem>>, vector<1x1x128xf32>
    %144 = vector.shape_cast %143 : vector<1x1x128xf32> to vector<1x128xf32>
    %cst_53 = arith.constant dense<0.000000e+00> : vector<8xf32>
    %145 = vector.multi_reduction <add>, %140, %cst_53 [1] : vector<8x128xf32> to vector<8xf32>
    %146 = vector.shape_cast %145 : vector<8xf32> to vector<8x1xf32>
    %cst_54 = arith.constant 1.280000e+02 : f32
    %147 = vector.broadcast %cst_54 : f32 to vector<8x1xf32>
    %148 = arith.divf %146, %147 : vector<8x1xf32>
    %149 = vector.broadcast %148 : vector<8x1xf32> to vector<8x128xf32>
    %150 = arith.subf %140, %149 : vector<8x128xf32>
    %151 = arith.mulf %150, %150 : vector<8x128xf32>
    %cst_55 = arith.constant dense<0.000000e+00> : vector<8xf32>
    %152 = vector.multi_reduction <add>, %151, %cst_55 [1] : vector<8x128xf32> to vector<8xf32>
    %153 = vector.shape_cast %152 : vector<8xf32> to vector<8x1xf32>
    %cst_56 = arith.constant 1.280000e+02 : f32
    %154 = vector.broadcast %cst_56 : f32 to vector<8x1xf32>
    %155 = arith.divf %153, %154 : vector<8x1xf32>
    %156 = vector.broadcast %148 : vector<8x1xf32> to vector<8x128xf32>
    %157 = arith.subf %140, %156 : vector<8x128xf32>
    %cst_57 = arith.constant 9.99999974E-6 : f32
    %158 = vector.broadcast %cst_57 : f32 to vector<8x1xf32>
    %159 = arith.addf %155, %158 : vector<8x1xf32>
    %160 = math.rsqrt %159 : vector<8x1xf32>
    %161 = vector.broadcast %160 : vector<8x1xf32> to vector<8x128xf32>
    %162 = arith.mulf %157, %161 : vector<8x128xf32>
    %163 = vector.broadcast %142 : vector<1x128xf32> to vector<8x128xf32>
    %164 = arith.mulf %162, %163 : vector<8x128xf32>
    %165 = vector.broadcast %144 : vector<1x128xf32> to vector<8x128xf32>
    %166 = arith.addf %164, %165 : vector<8x128xf32>
    %167 = arith.truncf %166 : vector<8x128xf32> to vector<8x128xbf16>
    %c0_58 = arith.constant 0 : index
    %c0_59 = arith.constant 0 : index
    %c0_60 = arith.constant 0 : index
    %168 = vector.load %arg8[%c0_58, %c0_59, %c0_60] : memref<2x128x2048xbf16, #tpu.memory_space<vmem>>, vector<1x128x2048xbf16>
    %169 = vector.shape_cast %168 : vector<1x128x2048xbf16> to vector<128x2048xbf16>
    %cst_61 = arith.constant dense<0.000000e+00> : vector<8x2048xf32>
    %170 = tpu.matmul %167, %169, %cst_61 {dimension_numbers = #tpu.dot_dimension_numbers<[1], [0], [0], [1], [0, 0, 1, 1], [], []>} : vector<8x128xbf16>, vector<128x2048xbf16>, vector<8x2048xf32> -> vector<8x2048xf32>
    %c0_62 = arith.constant 0 : index
    %c0_63 = arith.constant 0 : index
    %c0_64 = arith.constant 0 : index
    %171 = vector.load %arg9[%c0_62, %c0_63, %c0_64] : memref<2x1x2048xf32, #tpu.memory_space<vmem>>, vector<1x1x2048xf32>
    %172 = vector.shape_cast %171 : vector<1x1x2048xf32> to vector<1x2048xf32>
    %173 = vector.broadcast %172 : vector<1x2048xf32> to vector<8x2048xf32>
    %174 = arith.addf %170, %173 : vector<8x2048xf32>
    %cst_65 = arith.constant 5.000000e-01 : f32
    %175 = vector.broadcast %cst_65 : f32 to vector<8x2048xf32>
    %176 = arith.mulf %175, %174 : vector<8x2048xf32>
    %cst_66 = arith.constant 0.707106769 : f32
    %177 = vector.broadcast %cst_66 : f32 to vector<8x2048xf32>
    %178 = arith.mulf %174, %177 : vector<8x2048xf32>
    %179 = math.erf %178 : vector<8x2048xf32>
    %cst_67 = arith.constant 1.000000e+00 : f32
    %180 = vector.broadcast %cst_67 : f32 to vector<8x2048xf32>
    %181 = arith.addf %180, %179 : vector<8x2048xf32>
    %182 = arith.mulf %176, %181 : vector<8x2048xf32>
    %183 = arith.truncf %182 : vector<8x2048xf32> to vector<8x2048xbf16>
    %c0_68 = arith.constant 0 : index
    %c0_69 = arith.constant 0 : index
    %c0_70 = arith.constant 0 : index
    %184 = vector.load %arg10[%c0_68, %c0_69, %c0_70] : memref<2x2048x128xbf16, #tpu.memory_space<vmem>>, vector<1x2048x128xbf16>
    %185 = vector.shape_cast %184 : vector<1x2048x128xbf16> to vector<2048x128xbf16>
    %cst_71 = arith.constant dense<0.000000e+00> : vector<8x128xf32>
    %186 = tpu.matmul %183, %185, %cst_71 {dimension_numbers = #tpu.dot_dimension_numbers<[1], [0], [0], [1], [0, 0, 1, 1], [], []>} : vector<8x2048xbf16>, vector<2048x128xbf16>, vector<8x128xf32> -> vector<8x128xf32>
    %c0_72 = arith.constant 0 : index
    %c0_73 = arith.constant 0 : index
    %c0_74 = arith.constant 0 : index
    %187 = vector.load %arg11[%c0_72, %c0_73, %c0_74] : memref<2x1x128xf32, #tpu.memory_space<vmem>>, vector<1x1x128xf32>
    %188 = vector.shape_cast %187 : vector<1x1x128xf32> to vector<1x128xf32>
    %189 = vector.broadcast %188 : vector<1x128xf32> to vector<8x128xf32>
    %190 = arith.addf %186, %189 : vector<8x128xf32>
    %191 = arith.addf %166, %190 : vector<8x128xf32>
    %c0_75 = arith.constant 0 : index
    %c0_76 = arith.constant 0 : index
    %c0_77 = arith.constant 0 : index
    %192 = vector.load %arg12[%c0_75, %c0_76, %c0_77] : memref<2x1x128xf32, #tpu.memory_space<vmem>>, vector<1x1x128xf32>
    %193 = vector.shape_cast %192 : vector<1x1x128xf32> to vector<1x128xf32>
    %c0_78 = arith.constant 0 : index
    %c0_79 = arith.constant 0 : index
    %c0_80 = arith.constant 0 : index
    %194 = vector.load %arg13[%c0_78, %c0_79, %c0_80] : memref<2x1x128xf32, #tpu.memory_space<vmem>>, vector<1x1x128xf32>
    %195 = vector.shape_cast %194 : vector<1x1x128xf32> to vector<1x128xf32>
    %cst_81 = arith.constant dense<0.000000e+00> : vector<8xf32>
    %196 = vector.multi_reduction <add>, %191, %cst_81 [1] : vector<8x128xf32> to vector<8xf32>
    %197 = vector.shape_cast %196 : vector<8xf32> to vector<8x1xf32>
    %cst_82 = arith.constant 1.280000e+02 : f32
    %198 = vector.broadcast %cst_82 : f32 to vector<8x1xf32>
    %199 = arith.divf %197, %198 : vector<8x1xf32>
    %200 = vector.broadcast %199 : vector<8x1xf32> to vector<8x128xf32>
    %201 = arith.subf %191, %200 : vector<8x128xf32>
    %202 = arith.mulf %201, %201 : vector<8x128xf32>
    %cst_83 = arith.constant dense<0.000000e+00> : vector<8xf32>
    %203 = vector.multi_reduction <add>, %202, %cst_83 [1] : vector<8x128xf32> to vector<8xf32>
    %204 = vector.shape_cast %203 : vector<8xf32> to vector<8x1xf32>
    %cst_84 = arith.constant 1.280000e+02 : f32
    %205 = vector.broadcast %cst_84 : f32 to vector<8x1xf32>
    %206 = arith.divf %204, %205 : vector<8x1xf32>
    %207 = vector.broadcast %199 : vector<8x1xf32> to vector<8x128xf32>
    %208 = arith.subf %191, %207 : vector<8x128xf32>
    %cst_85 = arith.constant 9.99999974E-6 : f32
    %209 = vector.broadcast %cst_85 : f32 to vector<8x1xf32>
    %210 = arith.addf %206, %209 : vector<8x1xf32>
    %211 = math.rsqrt %210 : vector<8x1xf32>
    %212 = vector.broadcast %211 : vector<8x1xf32> to vector<8x128xf32>
    %213 = arith.mulf %208, %212 : vector<8x128xf32>
    %214 = vector.broadcast %193 : vector<1x128xf32> to vector<8x128xf32>
    %215 = arith.mulf %213, %214 : vector<8x128xf32>
    %216 = vector.broadcast %195 : vector<1x128xf32> to vector<8x128xf32>
    %217 = arith.addf %215, %216 : vector<8x128xf32>
    %218 = arith.truncf %217 : vector<8x128xf32> to vector<8x128xbf16>
    %c1 = arith.constant 1 : index
    %c0_86 = arith.constant 0 : index
    %c0_87 = arith.constant 0 : index
    %219 = vector.load %arg2[%c1, %c0_86, %c0_87] : memref<2x128x384xbf16, #tpu.memory_space<vmem>>, vector<1x128x384xbf16>
    %220 = vector.shape_cast %219 : vector<1x128x384xbf16> to vector<128x384xbf16>
    %cst_88 = arith.constant dense<0.000000e+00> : vector<8x384xf32>
    %221 = tpu.matmul %218, %220, %cst_88 {dimension_numbers = #tpu.dot_dimension_numbers<[1], [0], [0], [1], [0, 0, 1, 1], [], []>} : vector<8x128xbf16>, vector<128x384xbf16>, vector<8x384xf32> -> vector<8x384xf32>
    %c1_89 = arith.constant 1 : index
    %c0_90 = arith.constant 0 : index
    %c0_91 = arith.constant 0 : index
    %222 = vector.load %arg3[%c1_89, %c0_90, %c0_91] : memref<2x1x384xf32, #tpu.memory_space<vmem>>, vector<1x1x384xf32>
    %223 = vector.shape_cast %222 : vector<1x1x384xf32> to vector<1x384xf32>
    %224 = vector.broadcast %223 : vector<1x384xf32> to vector<8x384xf32>
    %225 = arith.addf %221, %224 : vector<8x384xf32>
    %226 = arith.truncf %225 : vector<8x384xf32> to vector<8x384xbf16>
    %227 = vector.extract_strided_slice %226 {offsets = [0, 0], sizes = [8, 16], strides = [1, 1]} : vector<8x384xbf16> to vector<8x16xbf16>
    %228 = vector.extract_strided_slice %226 {offsets = [0, 128], sizes = [8, 16], strides = [1, 1]} : vector<8x384xbf16> to vector<8x16xbf16>
    %229 = vector.extract_strided_slice %226 {offsets = [0, 256], sizes = [8, 16], strides = [1, 1]} : vector<8x384xbf16> to vector<8x16xbf16>
    %cst_92 = arith.constant dense<0.000000e+00> : vector<8x8xf32>
    %230 = tpu.matmul %227, %228, %cst_92 {dimension_numbers = #tpu.dot_dimension_numbers<[1], [1], [0], [0], [0, 0, 1, 0], [], []>} : vector<8x16xbf16>, vector<8x16xbf16>, vector<8x8xf32> -> vector<8x8xf32>
    %cst_93 = arith.constant dense<0xFF800000> : vector<8xf32>
    %231 = vector.multi_reduction <maximumf>, %230, %cst_93 [1] : vector<8x8xf32> to vector<8xf32>
    %232 = vector.shape_cast %231 : vector<8xf32> to vector<8x1xf32>
    %233 = vector.broadcast %232 : vector<8x1xf32> to vector<8x8xf32>
    %234 = arith.subf %230, %233 : vector<8x8xf32>
    %235 = math.exp %234 : vector<8x8xf32>
    %cst_94 = arith.constant dense<0.000000e+00> : vector<8xf32>
    %236 = vector.multi_reduction <add>, %235, %cst_94 [1] : vector<8x8xf32> to vector<8xf32>
    %237 = vector.shape_cast %236 : vector<8xf32> to vector<8x1xf32>
    %238 = vector.broadcast %237 : vector<8x1xf32> to vector<8x8xf32>
    %239 = arith.divf %235, %238 : vector<8x8xf32>
    %240 = arith.truncf %239 : vector<8x8xf32> to vector<8x8xbf16>
    %cst_95 = arith.constant dense<0.000000e+00> : vector<8x16xf32>
    %241 = tpu.matmul %240, %229, %cst_95 {dimension_numbers = #tpu.dot_dimension_numbers<[1], [0], [0], [1], [0, 0, 1, 1], [], []>} : vector<8x8xbf16>, vector<8x16xbf16>, vector<8x16xf32> -> vector<8x16xf32>
    %242 = vector.extract_strided_slice %226 {offsets = [0, 16], sizes = [8, 16], strides = [1, 1]} : vector<8x384xbf16> to vector<8x16xbf16>
    %243 = vector.extract_strided_slice %226 {offsets = [0, 144], sizes = [8, 16], strides = [1, 1]} : vector<8x384xbf16> to vector<8x16xbf16>
    %244 = vector.extract_strided_slice %226 {offsets = [0, 272], sizes = [8, 16], strides = [1, 1]} : vector<8x384xbf16> to vector<8x16xbf16>
    %cst_96 = arith.constant dense<0.000000e+00> : vector<8x8xf32>
    %245 = tpu.matmul %242, %243, %cst_96 {dimension_numbers = #tpu.dot_dimension_numbers<[1], [1], [0], [0], [0, 0, 1, 0], [], []>} : vector<8x16xbf16>, vector<8x16xbf16>, vector<8x8xf32> -> vector<8x8xf32>
    %cst_97 = arith.constant dense<0xFF800000> : vector<8xf32>
    %246 = vector.multi_reduction <maximumf>, %245, %cst_97 [1] : vector<8x8xf32> to vector<8xf32>
    %247 = vector.shape_cast %246 : vector<8xf32> to vector<8x1xf32>
    %248 = vector.broadcast %247 : vector<8x1xf32> to vector<8x8xf32>
    %249 = arith.subf %245, %248 : vector<8x8xf32>
    %250 = math.exp %249 : vector<8x8xf32>
    %cst_98 = arith.constant dense<0.000000e+00> : vector<8xf32>
    %251 = vector.multi_reduction <add>, %250, %cst_98 [1] : vector<8x8xf32> to vector<8xf32>
    %252 = vector.shape_cast %251 : vector<8xf32> to vector<8x1xf32>
    %253 = vector.broadcast %252 : vector<8x1xf32> to vector<8x8xf32>
    %254 = arith.divf %250, %253 : vector<8x8xf32>
    %255 = arith.truncf %254 : vector<8x8xf32> to vector<8x8xbf16>
    %cst_99 = arith.constant dense<0.000000e+00> : vector<8x16xf32>
    %256 = tpu.matmul %255, %244, %cst_99 {dimension_numbers = #tpu.dot_dimension_numbers<[1], [0], [0], [1], [0, 0, 1, 1], [], []>} : vector<8x8xbf16>, vector<8x16xbf16>, vector<8x16xf32> -> vector<8x16xf32>
    %257 = vector.extract_strided_slice %226 {offsets = [0, 32], sizes = [8, 16], strides = [1, 1]} : vector<8x384xbf16> to vector<8x16xbf16>
    %258 = vector.extract_strided_slice %226 {offsets = [0, 160], sizes = [8, 16], strides = [1, 1]} : vector<8x384xbf16> to vector<8x16xbf16>
    %259 = vector.extract_strided_slice %226 {offsets = [0, 288], sizes = [8, 16], strides = [1, 1]} : vector<8x384xbf16> to vector<8x16xbf16>
    %cst_100 = arith.constant dense<0.000000e+00> : vector<8x8xf32>
    %260 = tpu.matmul %257, %258, %cst_100 {dimension_numbers = #tpu.dot_dimension_numbers<[1], [1], [0], [0], [0, 0, 1, 0], [], []>} : vector<8x16xbf16>, vector<8x16xbf16>, vector<8x8xf32> -> vector<8x8xf32>
    %cst_101 = arith.constant dense<0xFF800000> : vector<8xf32>
    %261 = vector.multi_reduction <maximumf>, %260, %cst_101 [1] : vector<8x8xf32> to vector<8xf32>
    %262 = vector.shape_cast %261 : vector<8xf32> to vector<8x1xf32>
    %263 = vector.broadcast %262 : vector<8x1xf32> to vector<8x8xf32>
    %264 = arith.subf %260, %263 : vector<8x8xf32>
    %265 = math.exp %264 : vector<8x8xf32>
    %cst_102 = arith.constant dense<0.000000e+00> : vector<8xf32>
    %266 = vector.multi_reduction <add>, %265, %cst_102 [1] : vector<8x8xf32> to vector<8xf32>
    %267 = vector.shape_cast %266 : vector<8xf32> to vector<8x1xf32>
    %268 = vector.broadcast %267 : vector<8x1xf32> to vector<8x8xf32>
    %269 = arith.divf %265, %268 : vector<8x8xf32>
    %270 = arith.truncf %269 : vector<8x8xf32> to vector<8x8xbf16>
    %cst_103 = arith.constant dense<0.000000e+00> : vector<8x16xf32>
    %271 = tpu.matmul %270, %259, %cst_103 {dimension_numbers = #tpu.dot_dimension_numbers<[1], [0], [0], [1], [0, 0, 1, 1], [], []>} : vector<8x8xbf16>, vector<8x16xbf16>, vector<8x16xf32> -> vector<8x16xf32>
    %272 = vector.extract_strided_slice %226 {offsets = [0, 48], sizes = [8, 16], strides = [1, 1]} : vector<8x384xbf16> to vector<8x16xbf16>
    %273 = vector.extract_strided_slice %226 {offsets = [0, 176], sizes = [8, 16], strides = [1, 1]} : vector<8x384xbf16> to vector<8x16xbf16>
    %274 = vector.extract_strided_slice %226 {offsets = [0, 304], sizes = [8, 16], strides = [1, 1]} : vector<8x384xbf16> to vector<8x16xbf16>
    %cst_104 = arith.constant dense<0.000000e+00> : vector<8x8xf32>
    %275 = tpu.matmul %272, %273, %cst_104 {dimension_numbers = #tpu.dot_dimension_numbers<[1], [1], [0], [0], [0, 0, 1, 0], [], []>} : vector<8x16xbf16>, vector<8x16xbf16>, vector<8x8xf32> -> vector<8x8xf32>
    %cst_105 = arith.constant dense<0xFF800000> : vector<8xf32>
    %276 = vector.multi_reduction <maximumf>, %275, %cst_105 [1] : vector<8x8xf32> to vector<8xf32>
    %277 = vector.shape_cast %276 : vector<8xf32> to vector<8x1xf32>
    %278 = vector.broadcast %277 : vector<8x1xf32> to vector<8x8xf32>
    %279 = arith.subf %275, %278 : vector<8x8xf32>
    %280 = math.exp %279 : vector<8x8xf32>
    %cst_106 = arith.constant dense<0.000000e+00> : vector<8xf32>
    %281 = vector.multi_reduction <add>, %280, %cst_106 [1] : vector<8x8xf32> to vector<8xf32>
    %282 = vector.shape_cast %281 : vector<8xf32> to vector<8x1xf32>
    %283 = vector.broadcast %282 : vector<8x1xf32> to vector<8x8xf32>
    %284 = arith.divf %280, %283 : vector<8x8xf32>
    %285 = arith.truncf %284 : vector<8x8xf32> to vector<8x8xbf16>
    %cst_107 = arith.constant dense<0.000000e+00> : vector<8x16xf32>
    %286 = tpu.matmul %285, %274, %cst_107 {dimension_numbers = #tpu.dot_dimension_numbers<[1], [0], [0], [1], [0, 0, 1, 1], [], []>} : vector<8x8xbf16>, vector<8x16xbf16>, vector<8x16xf32> -> vector<8x16xf32>
    %287 = vector.extract_strided_slice %226 {offsets = [0, 64], sizes = [8, 16], strides = [1, 1]} : vector<8x384xbf16> to vector<8x16xbf16>
    %288 = vector.extract_strided_slice %226 {offsets = [0, 192], sizes = [8, 16], strides = [1, 1]} : vector<8x384xbf16> to vector<8x16xbf16>
    %289 = vector.extract_strided_slice %226 {offsets = [0, 320], sizes = [8, 16], strides = [1, 1]} : vector<8x384xbf16> to vector<8x16xbf16>
    %cst_108 = arith.constant dense<0.000000e+00> : vector<8x8xf32>
    %290 = tpu.matmul %287, %288, %cst_108 {dimension_numbers = #tpu.dot_dimension_numbers<[1], [1], [0], [0], [0, 0, 1, 0], [], []>} : vector<8x16xbf16>, vector<8x16xbf16>, vector<8x8xf32> -> vector<8x8xf32>
    %cst_109 = arith.constant dense<0xFF800000> : vector<8xf32>
    %291 = vector.multi_reduction <maximumf>, %290, %cst_109 [1] : vector<8x8xf32> to vector<8xf32>
    %292 = vector.shape_cast %291 : vector<8xf32> to vector<8x1xf32>
    %293 = vector.broadcast %292 : vector<8x1xf32> to vector<8x8xf32>
    %294 = arith.subf %290, %293 : vector<8x8xf32>
    %295 = math.exp %294 : vector<8x8xf32>
    %cst_110 = arith.constant dense<0.000000e+00> : vector<8xf32>
    %296 = vector.multi_reduction <add>, %295, %cst_110 [1] : vector<8x8xf32> to vector<8xf32>
    %297 = vector.shape_cast %296 : vector<8xf32> to vector<8x1xf32>
    %298 = vector.broadcast %297 : vector<8x1xf32> to vector<8x8xf32>
    %299 = arith.divf %295, %298 : vector<8x8xf32>
    %300 = arith.truncf %299 : vector<8x8xf32> to vector<8x8xbf16>
    %cst_111 = arith.constant dense<0.000000e+00> : vector<8x16xf32>
    %301 = tpu.matmul %300, %289, %cst_111 {dimension_numbers = #tpu.dot_dimension_numbers<[1], [0], [0], [1], [0, 0, 1, 1], [], []>} : vector<8x8xbf16>, vector<8x16xbf16>, vector<8x16xf32> -> vector<8x16xf32>
    %302 = vector.extract_strided_slice %226 {offsets = [0, 80], sizes = [8, 16], strides = [1, 1]} : vector<8x384xbf16> to vector<8x16xbf16>
    %303 = vector.extract_strided_slice %226 {offsets = [0, 208], sizes = [8, 16], strides = [1, 1]} : vector<8x384xbf16> to vector<8x16xbf16>
    %304 = vector.extract_strided_slice %226 {offsets = [0, 336], sizes = [8, 16], strides = [1, 1]} : vector<8x384xbf16> to vector<8x16xbf16>
    %cst_112 = arith.constant dense<0.000000e+00> : vector<8x8xf32>
    %305 = tpu.matmul %302, %303, %cst_112 {dimension_numbers = #tpu.dot_dimension_numbers<[1], [1], [0], [0], [0, 0, 1, 0], [], []>} : vector<8x16xbf16>, vector<8x16xbf16>, vector<8x8xf32> -> vector<8x8xf32>
    %cst_113 = arith.constant dense<0xFF800000> : vector<8xf32>
    %306 = vector.multi_reduction <maximumf>, %305, %cst_113 [1] : vector<8x8xf32> to vector<8xf32>
    %307 = vector.shape_cast %306 : vector<8xf32> to vector<8x1xf32>
    %308 = vector.broadcast %307 : vector<8x1xf32> to vector<8x8xf32>
    %309 = arith.subf %305, %308 : vector<8x8xf32>
    %310 = math.exp %309 : vector<8x8xf32>
    %cst_114 = arith.constant dense<0.000000e+00> : vector<8xf32>
    %311 = vector.multi_reduction <add>, %310, %cst_114 [1] : vector<8x8xf32> to vector<8xf32>
    %312 = vector.shape_cast %311 : vector<8xf32> to vector<8x1xf32>
    %313 = vector.broadcast %312 : vector<8x1xf32> to vector<8x8xf32>
    %314 = arith.divf %310, %313 : vector<8x8xf32>
    %315 = arith.truncf %314 : vector<8x8xf32> to vector<8x8xbf16>
    %cst_115 = arith.constant dense<0.000000e+00> : vector<8x16xf32>
    %316 = tpu.matmul %315, %304, %cst_115 {dimension_numbers = #tpu.dot_dimension_numbers<[1], [0], [0], [1], [0, 0, 1, 1], [], []>} : vector<8x8xbf16>, vector<8x16xbf16>, vector<8x16xf32> -> vector<8x16xf32>
    %317 = vector.extract_strided_slice %226 {offsets = [0, 96], sizes = [8, 16], strides = [1, 1]} : vector<8x384xbf16> to vector<8x16xbf16>
    %318 = vector.extract_strided_slice %226 {offsets = [0, 224], sizes = [8, 16], strides = [1, 1]} : vector<8x384xbf16> to vector<8x16xbf16>
    %319 = vector.extract_strided_slice %226 {offsets = [0, 352], sizes = [8, 16], strides = [1, 1]} : vector<8x384xbf16> to vector<8x16xbf16>
    %cst_116 = arith.constant dense<0.000000e+00> : vector<8x8xf32>
    %320 = tpu.matmul %317, %318, %cst_116 {dimension_numbers = #tpu.dot_dimension_numbers<[1], [1], [0], [0], [0, 0, 1, 0], [], []>} : vector<8x16xbf16>, vector<8x16xbf16>, vector<8x8xf32> -> vector<8x8xf32>
    %cst_117 = arith.constant dense<0xFF800000> : vector<8xf32>
    %321 = vector.multi_reduction <maximumf>, %320, %cst_117 [1] : vector<8x8xf32> to vector<8xf32>
    %322 = vector.shape_cast %321 : vector<8xf32> to vector<8x1xf32>
    %323 = vector.broadcast %322 : vector<8x1xf32> to vector<8x8xf32>
    %324 = arith.subf %320, %323 : vector<8x8xf32>
    %325 = math.exp %324 : vector<8x8xf32>
    %cst_118 = arith.constant dense<0.000000e+00> : vector<8xf32>
    %326 = vector.multi_reduction <add>, %325, %cst_118 [1] : vector<8x8xf32> to vector<8xf32>
    %327 = vector.shape_cast %326 : vector<8xf32> to vector<8x1xf32>
    %328 = vector.broadcast %327 : vector<8x1xf32> to vector<8x8xf32>
    %329 = arith.divf %325, %328 : vector<8x8xf32>
    %330 = arith.truncf %329 : vector<8x8xf32> to vector<8x8xbf16>
    %cst_119 = arith.constant dense<0.000000e+00> : vector<8x16xf32>
    %331 = tpu.matmul %330, %319, %cst_119 {dimension_numbers = #tpu.dot_dimension_numbers<[1], [0], [0], [1], [0, 0, 1, 1], [], []>} : vector<8x8xbf16>, vector<8x16xbf16>, vector<8x16xf32> -> vector<8x16xf32>
    %332 = vector.extract_strided_slice %226 {offsets = [0, 112], sizes = [8, 16], strides = [1, 1]} : vector<8x384xbf16> to vector<8x16xbf16>
    %333 = vector.extract_strided_slice %226 {offsets = [0, 240], sizes = [8, 16], strides = [1, 1]} : vector<8x384xbf16> to vector<8x16xbf16>
    %334 = vector.extract_strided_slice %226 {offsets = [0, 368], sizes = [8, 16], strides = [1, 1]} : vector<8x384xbf16> to vector<8x16xbf16>
    %cst_120 = arith.constant dense<0.000000e+00> : vector<8x8xf32>
    %335 = tpu.matmul %332, %333, %cst_120 {dimension_numbers = #tpu.dot_dimension_numbers<[1], [1], [0], [0], [0, 0, 1, 0], [], []>} : vector<8x16xbf16>, vector<8x16xbf16>, vector<8x8xf32> -> vector<8x8xf32>
    %cst_121 = arith.constant dense<0xFF800000> : vector<8xf32>
    %336 = vector.multi_reduction <maximumf>, %335, %cst_121 [1] : vector<8x8xf32> to vector<8xf32>
    %337 = vector.shape_cast %336 : vector<8xf32> to vector<8x1xf32>
    %338 = vector.broadcast %337 : vector<8x1xf32> to vector<8x8xf32>
    %339 = arith.subf %335, %338 : vector<8x8xf32>
    %340 = math.exp %339 : vector<8x8xf32>
    %cst_122 = arith.constant dense<0.000000e+00> : vector<8xf32>
    %341 = vector.multi_reduction <add>, %340, %cst_122 [1] : vector<8x8xf32> to vector<8xf32>
    %342 = vector.shape_cast %341 : vector<8xf32> to vector<8x1xf32>
    %343 = vector.broadcast %342 : vector<8x1xf32> to vector<8x8xf32>
    %344 = arith.divf %340, %343 : vector<8x8xf32>
    %345 = arith.truncf %344 : vector<8x8xf32> to vector<8x8xbf16>
    %cst_123 = arith.constant dense<0.000000e+00> : vector<8x16xf32>
    %346 = tpu.matmul %345, %334, %cst_123 {dimension_numbers = #tpu.dot_dimension_numbers<[1], [0], [0], [1], [0, 0, 1, 1], [], []>} : vector<8x8xbf16>, vector<8x16xbf16>, vector<8x16xf32> -> vector<8x16xf32>
    %347 = tpu.concatenate %241, %256, %271, %286, %301, %316, %331, %346 in 1 : vector<8x16xf32>, vector<8x16xf32>, vector<8x16xf32>, vector<8x16xf32>, vector<8x16xf32>, vector<8x16xf32>, vector<8x16xf32>, vector<8x16xf32> -> vector<8x128xf32>
    %348 = arith.truncf %347 : vector<8x128xf32> to vector<8x128xbf16>
    %c1_124 = arith.constant 1 : index
    %c0_125 = arith.constant 0 : index
    %c0_126 = arith.constant 0 : index
    %349 = vector.load %arg4[%c1_124, %c0_125, %c0_126] : memref<2x128x128xbf16, #tpu.memory_space<vmem>>, vector<1x128x128xbf16>
    %350 = vector.shape_cast %349 : vector<1x128x128xbf16> to vector<128x128xbf16>
    %cst_127 = arith.constant dense<0.000000e+00> : vector<8x128xf32>
    %351 = tpu.matmul %348, %350, %cst_127 {dimension_numbers = #tpu.dot_dimension_numbers<[1], [0], [0], [1], [0, 0, 1, 1], [], []>} : vector<8x128xbf16>, vector<128x128xbf16>, vector<8x128xf32> -> vector<8x128xf32>
    %c1_128 = arith.constant 1 : index
    %c0_129 = arith.constant 0 : index
    %c0_130 = arith.constant 0 : index
    %352 = vector.load %arg5[%c1_128, %c0_129, %c0_130] : memref<2x1x128xf32, #tpu.memory_space<vmem>>, vector<1x1x128xf32>
    %353 = vector.shape_cast %352 : vector<1x1x128xf32> to vector<1x128xf32>
    %354 = vector.broadcast %353 : vector<1x128xf32> to vector<8x128xf32>
    %355 = arith.addf %351, %354 : vector<8x128xf32>
    %356 = arith.addf %217, %355 : vector<8x128xf32>
    %c1_131 = arith.constant 1 : index
    %c0_132 = arith.constant 0 : index
    %c0_133 = arith.constant 0 : index
    %357 = vector.load %arg6[%c1_131, %c0_132, %c0_133] : memref<2x1x128xf32, #tpu.memory_space<vmem>>, vector<1x1x128xf32>
    %358 = vector.shape_cast %357 : vector<1x1x128xf32> to vector<1x128xf32>
    %c1_134 = arith.constant 1 : index
    %c0_135 = arith.constant 0 : index
    %c0_136 = arith.constant 0 : index
    %359 = vector.load %arg7[%c1_134, %c0_135, %c0_136] : memref<2x1x128xf32, #tpu.memory_space<vmem>>, vector<1x1x128xf32>
    %360 = vector.shape_cast %359 : vector<1x1x128xf32> to vector<1x128xf32>
    %cst_137 = arith.constant dense<0.000000e+00> : vector<8xf32>
    %361 = vector.multi_reduction <add>, %356, %cst_137 [1] : vector<8x128xf32> to vector<8xf32>
    %362 = vector.shape_cast %361 : vector<8xf32> to vector<8x1xf32>
    %cst_138 = arith.constant 1.280000e+02 : f32
    %363 = vector.broadcast %cst_138 : f32 to vector<8x1xf32>
    %364 = arith.divf %362, %363 : vector<8x1xf32>
    %365 = vector.broadcast %364 : vector<8x1xf32> to vector<8x128xf32>
    %366 = arith.subf %356, %365 : vector<8x128xf32>
    %367 = arith.mulf %366, %366 : vector<8x128xf32>
    %cst_139 = arith.constant dense<0.000000e+00> : vector<8xf32>
    %368 = vector.multi_reduction <add>, %367, %cst_139 [1] : vector<8x128xf32> to vector<8xf32>
    %369 = vector.shape_cast %368 : vector<8xf32> to vector<8x1xf32>
    %cst_140 = arith.constant 1.280000e+02 : f32
    %370 = vector.broadcast %cst_140 : f32 to vector<8x1xf32>
    %371 = arith.divf %369, %370 : vector<8x1xf32>
    %372 = vector.broadcast %364 : vector<8x1xf32> to vector<8x128xf32>
    %373 = arith.subf %356, %372 : vector<8x128xf32>
    %cst_141 = arith.constant 9.99999974E-6 : f32
    %374 = vector.broadcast %cst_141 : f32 to vector<8x1xf32>
    %375 = arith.addf %371, %374 : vector<8x1xf32>
    %376 = math.rsqrt %375 : vector<8x1xf32>
    %377 = vector.broadcast %376 : vector<8x1xf32> to vector<8x128xf32>
    %378 = arith.mulf %373, %377 : vector<8x128xf32>
    %379 = vector.broadcast %358 : vector<1x128xf32> to vector<8x128xf32>
    %380 = arith.mulf %378, %379 : vector<8x128xf32>
    %381 = vector.broadcast %360 : vector<1x128xf32> to vector<8x128xf32>
    %382 = arith.addf %380, %381 : vector<8x128xf32>
    %383 = arith.truncf %382 : vector<8x128xf32> to vector<8x128xbf16>
    %c1_142 = arith.constant 1 : index
    %c0_143 = arith.constant 0 : index
    %c0_144 = arith.constant 0 : index
    %384 = vector.load %arg8[%c1_142, %c0_143, %c0_144] : memref<2x128x2048xbf16, #tpu.memory_space<vmem>>, vector<1x128x2048xbf16>
    %385 = vector.shape_cast %384 : vector<1x128x2048xbf16> to vector<128x2048xbf16>
    %cst_145 = arith.constant dense<0.000000e+00> : vector<8x2048xf32>
    %386 = tpu.matmul %383, %385, %cst_145 {dimension_numbers = #tpu.dot_dimension_numbers<[1], [0], [0], [1], [0, 0, 1, 1], [], []>} : vector<8x128xbf16>, vector<128x2048xbf16>, vector<8x2048xf32> -> vector<8x2048xf32>
    %c1_146 = arith.constant 1 : index
    %c0_147 = arith.constant 0 : index
    %c0_148 = arith.constant 0 : index
    %387 = vector.load %arg9[%c1_146, %c0_147, %c0_148] : memref<2x1x2048xf32, #tpu.memory_space<vmem>>, vector<1x1x2048xf32>
    %388 = vector.shape_cast %387 : vector<1x1x2048xf32> to vector<1x2048xf32>
    %389 = vector.broadcast %388 : vector<1x2048xf32> to vector<8x2048xf32>
    %390 = arith.addf %386, %389 : vector<8x2048xf32>
    %cst_149 = arith.constant 5.000000e-01 : f32
    %391 = vector.broadcast %cst_149 : f32 to vector<8x2048xf32>
    %392 = arith.mulf %391, %390 : vector<8x2048xf32>
    %cst_150 = arith.constant 0.707106769 : f32
    %393 = vector.broadcast %cst_150 : f32 to vector<8x2048xf32>
    %394 = arith.mulf %390, %393 : vector<8x2048xf32>
    %395 = math.erf %394 : vector<8x2048xf32>
    %cst_151 = arith.constant 1.000000e+00 : f32
    %396 = vector.broadcast %cst_151 : f32 to vector<8x2048xf32>
    %397 = arith.addf %396, %395 : vector<8x2048xf32>
    %398 = arith.mulf %392, %397 : vector<8x2048xf32>
    %399 = arith.truncf %398 : vector<8x2048xf32> to vector<8x2048xbf16>
    %c1_152 = arith.constant 1 : index
    %c0_153 = arith.constant 0 : index
    %c0_154 = arith.constant 0 : index
    %400 = vector.load %arg10[%c1_152, %c0_153, %c0_154] : memref<2x2048x128xbf16, #tpu.memory_space<vmem>>, vector<1x2048x128xbf16>
    %401 = vector.shape_cast %400 : vector<1x2048x128xbf16> to vector<2048x128xbf16>
    %cst_155 = arith.constant dense<0.000000e+00> : vector<8x128xf32>
    %402 = tpu.matmul %399, %401, %cst_155 {dimension_numbers = #tpu.dot_dimension_numbers<[1], [0], [0], [1], [0, 0, 1, 1], [], []>} : vector<8x2048xbf16>, vector<2048x128xbf16>, vector<8x128xf32> -> vector<8x128xf32>
    %c1_156 = arith.constant 1 : index
    %c0_157 = arith.constant 0 : index
    %c0_158 = arith.constant 0 : index
    %403 = vector.load %arg11[%c1_156, %c0_157, %c0_158] : memref<2x1x128xf32, #tpu.memory_space<vmem>>, vector<1x1x128xf32>
    %404 = vector.shape_cast %403 : vector<1x1x128xf32> to vector<1x128xf32>
    %405 = vector.broadcast %404 : vector<1x128xf32> to vector<8x128xf32>
    %406 = arith.addf %402, %405 : vector<8x128xf32>
    %407 = arith.addf %382, %406 : vector<8x128xf32>
    %c1_159 = arith.constant 1 : index
    %c0_160 = arith.constant 0 : index
    %c0_161 = arith.constant 0 : index
    %408 = vector.load %arg12[%c1_159, %c0_160, %c0_161] : memref<2x1x128xf32, #tpu.memory_space<vmem>>, vector<1x1x128xf32>
    %409 = vector.shape_cast %408 : vector<1x1x128xf32> to vector<1x128xf32>
    %c1_162 = arith.constant 1 : index
    %c0_163 = arith.constant 0 : index
    %c0_164 = arith.constant 0 : index
    %410 = vector.load %arg13[%c1_162, %c0_163, %c0_164] : memref<2x1x128xf32, #tpu.memory_space<vmem>>, vector<1x1x128xf32>
    %411 = vector.shape_cast %410 : vector<1x1x128xf32> to vector<1x128xf32>
    %cst_165 = arith.constant dense<0.000000e+00> : vector<8xf32>
    %412 = vector.multi_reduction <add>, %407, %cst_165 [1] : vector<8x128xf32> to vector<8xf32>
    %413 = vector.shape_cast %412 : vector<8xf32> to vector<8x1xf32>
    %cst_166 = arith.constant 1.280000e+02 : f32
    %414 = vector.broadcast %cst_166 : f32 to vector<8x1xf32>
    %415 = arith.divf %413, %414 : vector<8x1xf32>
    %416 = vector.broadcast %415 : vector<8x1xf32> to vector<8x128xf32>
    %417 = arith.subf %407, %416 : vector<8x128xf32>
    %418 = arith.mulf %417, %417 : vector<8x128xf32>
    %cst_167 = arith.constant dense<0.000000e+00> : vector<8xf32>
    %419 = vector.multi_reduction <add>, %418, %cst_167 [1] : vector<8x128xf32> to vector<8xf32>
    %420 = vector.shape_cast %419 : vector<8xf32> to vector<8x1xf32>
    %cst_168 = arith.constant 1.280000e+02 : f32
    %421 = vector.broadcast %cst_168 : f32 to vector<8x1xf32>
    %422 = arith.divf %420, %421 : vector<8x1xf32>
    %423 = vector.broadcast %415 : vector<8x1xf32> to vector<8x128xf32>
    %424 = arith.subf %407, %423 : vector<8x128xf32>
    %cst_169 = arith.constant 9.99999974E-6 : f32
    %425 = vector.broadcast %cst_169 : f32 to vector<8x1xf32>
    %426 = arith.addf %422, %425 : vector<8x1xf32>
    %427 = math.rsqrt %426 : vector<8x1xf32>
    %428 = vector.broadcast %427 : vector<8x1xf32> to vector<8x128xf32>
    %429 = arith.mulf %424, %428 : vector<8x128xf32>
    %430 = vector.broadcast %409 : vector<1x128xf32> to vector<8x128xf32>
    %431 = arith.mulf %429, %430 : vector<8x128xf32>
    %432 = vector.broadcast %411 : vector<1x128xf32> to vector<8x128xf32>
    %433 = arith.addf %431, %432 : vector<8x128xf32>
    %c0_170 = arith.constant 0 : index
    %c0_171 = arith.constant 0 : index
    %c0_172 = arith.constant 0 : index
    %434 = vector.load %arg14[%c0_170, %c0_171, %c0_172] : memref<1x8x128xf32, #tpu.memory_space<vmem>>, vector<1x8x128xf32>
    %435 = vector.shape_cast %434 : vector<1x8x128xf32> to vector<8x128xf32>
    %436 = vector.shape_cast %433 : vector<8x128xf32> to vector<1x8x128xf32>
    tpu.vector_store %arg14[%c0_170, %c0_171, %c0_172], %436 {strides = array<i32>} : memref<1x8x128xf32, #tpu.memory_space<vmem>>, vector<1x8x128xf32>,
    return
  }
  func.func @transform_0(%arg0: i32) -> (i32, i32, i32) {
    %c0_i32 = arith.constant 0 : i32
    %c0_i32_0 = arith.constant 0 : i32
    %c0_i32_1 = arith.constant 0 : i32
    return %arg0, %c0_i32, %c0_i32_0 : i32, i32, i32
  }
  func.func @transform_1(%arg0: i32) -> (i32, i32, i32) {
    %c0_i32 = arith.constant 0 : i32
    %c0_i32_0 = arith.constant 0 : i32
    %c0_i32_1 = arith.constant 0 : i32
    %c0_i32_2 = arith.constant 0 : i32
    return %c0_i32, %c0_i32_0, %c0_i32_1 : i32, i32, i32
  }
  func.func @transform_2(%arg0: i32) -> (i32, i32, i32) {
    %c0_i32 = arith.constant 0 : i32
    %c0_i32_0 = arith.constant 0 : i32
    %c0_i32_1 = arith.constant 0 : i32
    %c0_i32_2 = arith.constant 0 : i32
    return %c0_i32, %c0_i32_0, %c0_i32_1 : i32, i32, i32
  }
  func.func @transform_3(%arg0: i32) -> (i32, i32, i32) {
    %c0_i32 = arith.constant 0 : i32
    %c0_i32_0 = arith.constant 0 : i32
    %c0_i32_1 = arith.constant 0 : i32
    %c0_i32_2 = arith.constant 0 : i32
    return %c0_i32, %c0_i32_0, %c0_i32_1 : i32, i32, i32
  }
  func.func @transform_4(%arg0: i32) -> (i32, i32, i32) {
    %c0_i32 = arith.constant 0 : i32
    %c0_i32_0 = arith.constant 0 : i32
    %c0_i32_1 = arith.constant 0 : i32
    %c0_i32_2 = arith.constant 0 : i32
    return %c0_i32, %c0_i32_0, %c0_i32_1 : i32, i32, i32
  }
  func.func @transform_5(%arg0: i32) -> (i32, i32, i32) {
    %c0_i32 = arith.constant 0 : i32
    %c0_i32_0 = arith.constant 0 : i32
    %c0_i32_1 = arith.constant 0 : i32
    %c0_i32_2 = arith.constant 0 : i32
    return %c0_i32, %c0_i32_0, %c0_i32_1 : i32, i32, i32
  }
  func.func @transform_6(%arg0: i32) -> (i32, i32, i32) {
    %c0_i32 = arith.constant 0 : i32
    %c0_i32_0 = arith.constant 0 : i32
    %c0_i32_1 = arith.constant 0 : i32
    %c0_i32_2 = arith.constant 0 : i32
    return %c0_i32, %c0_i32_0, %c0_i32_1 : i32, i32, i32
  }
  func.func @transform_7(%arg0: i32) -> (i32, i32, i32) {
    %c0_i32 = arith.constant 0 : i32
    %c0_i32_0 = arith.constant 0 : i32
    %c0_i32_1 = arith.constant 0 : i32
    %c0_i32_2 = arith.constant 0 : i32
    return %c0_i32, %c0_i32_0, %c0_i32_1 : i32, i32, i32
  }
  func.func @transform_8(%arg0: i32) -> (i32, i32, i32) {
    %c0_i32 = arith.constant 0 : i32
    %c0_i32_0 = arith.constant 0 : i32
    %c0_i32_1 = arith.constant 0 : i32
    %c0_i32_2 = arith.constant 0 : i32
    return %c0_i32, %c0_i32_0, %c0_i32_1 : i32, i32, i32
  }
  func.func @transform_9(%arg0: i32) -> (i32, i32, i32) {
    %c0_i32 = arith.constant 0 : i32
    %c0_i32_0 = arith.constant 0 : i32
    %c0_i32_1 = arith.constant 0 : i32
    %c0_i32_2 = arith.constant 0 : i32
    return %c0_i32, %c0_i32_0, %c0_i32_1 : i32, i32, i32
  }
  func.func @transform_10(%arg0: i32) -> (i32, i32, i32) {
    %c0_i32 = arith.constant 0 : i32
    %c0_i32_0 = arith.constant 0 : i32
    %c0_i32_1 = arith.constant 0 : i32
    %c0_i32_2 = arith.constant 0 : i32
    return %c0_i32, %c0_i32_0, %c0_i32_1 : i32, i32, i32
  }
  func.func @transform_11(%arg0: i32) -> (i32, i32, i32) {
    %c0_i32 = arith.constant 0 : i32
    %c0_i32_0 = arith.constant 0 : i32
    %c0_i32_1 = arith.constant 0 : i32
    %c0_i32_2 = arith.constant 0 : i32
    return %c0_i32, %c0_i32_0, %c0_i32_1 : i32, i32, i32
  }
  func.func @transform_12(%arg0: i32) -> (i32, i32, i32) {
    %c0_i32 = arith.constant 0 : i32
    %c0_i32_0 = arith.constant 0 : i32
    %c0_i32_1 = arith.constant 0 : i32
    %c0_i32_2 = arith.constant 0 : i32
    return %c0_i32, %c0_i32_0, %c0_i32_1 : i32, i32, i32
  }
  func.func @transform_13(%arg0: i32) -> (i32, i32, i32) {
    %c0_i32 = arith.constant 0 : i32
    %c0_i32_0 = arith.constant 0 : i32
    %c0_i32_1 = arith.constant 0 : i32
    return %arg0, %c0_i32, %c0_i32_0 : i32, i32, i32
  }
}

</mosaic_0001>

<llo_original>
// kernel: transformer_forward.1
$region0: #{transformer_forward.1}
  #allocation0 [shape = 'u32[]', space=smem, size = 0x4, offset = 0x4, fixed_abs, tag = 'smem constant byte address 0x4 - core index']
  #allocation1 [shape = 'u32[144,128]{1,0:T(1,128)}', space=vmem, size = 0x12000, scoped, tag = 'internal scratch']
  %s0 = inlined_call_operand.vmem [shape: f32[2,8,128], index: 0, kind: input, shape index: {}]
  %s1 = inlined_call_operand.hbm [shape: bf16[2,128,384], index: 1, kind: input, shape index: {}]
  %s2 = inlined_call_operand.vmem [shape: f32[2,1,384], index: 2, kind: input, shape index: {}]
  %s3 = inlined_call_operand.hbm [shape: bf16[2,128,128], index: 3, kind: input, shape index: {}]
  %s4 = inlined_call_operand.vmem [shape: f32[2,1,128], index: 4, kind: input, shape index: {}]
  %s5 = inlined_call_operand.vmem [shape: f32[2,1,128], index: 5, kind: input, shape index: {}]
  %s6 = inlined_call_operand.vmem [shape: f32[2,1,128], index: 6, kind: input, shape index: {}]
  %s7 = inlined_call_operand.hbm [shape: bf16[2,128,2048], index: 7, kind: input, shape index: {}]
  %s8 = inlined_call_operand.vmem [shape: f32[2,1,2048], index: 8, kind: input, shape index: {}]
  %s9 = inlined_call_operand.hbm [shape: bf16[2,2048,128], index: 9, kind: input, shape index: {}]
  %s10 = inlined_call_operand.hbm [shape: f32[2,1,128], index: 10, kind: input, shape index: {}]
  %s11 = inlined_call_operand.vmem [shape: f32[2,1,128], index: 11, kind: input, shape index: {}]
  %s12 = inlined_call_operand.vmem [shape: f32[2,1,128], index: 12, kind: input, shape index: {}]
  %s13 = inlined_call_operand.vmem [shape: f32[2,8,128], index: 13, kind: output, shape index: {}]
  %s14 = sld [smem:[#allocation0]]
  $region105: #{transformer_forward.1} parent=0
    _
  %s16 = ssub.s32 1, %s14
  %s17 = scalar_select 0, %s16, %s14
  $region1: #{transformer_forward.1} parent=0
    #allocation2 [shape = 'u8[196608]{0}', space=vmem, size = 0x30000, scoped, tag = 'input window, operand 1, single buffered']
    #allocation3 [shape = 's32[2]{0}', space=sflag, size = 0x8, scoped, tag = 'scoped memory for transformer_forward.1']
    #allocation4 [shape = 'u8[65536]{0}', space=vmem, size = 0x10000, scoped, tag = 'input window, operand 3, single buffered']
    #allocation5 [shape = 's32[1]{0}', space=sflag, size = 0x4, scoped, tag = 'scoped memory for transformer_forward.1']
    #allocation6 [shape = 'u8[1048576]{0}', space=vmem, size = 0x100000, scoped, tag = 'input window, operand 7, single buffered']
    #allocation7 [shape = 'u8[1048576]{0}', space=vmem, size = 0x100000, scoped, tag = 'input window, operand 9, single buffered']
    #allocation8 [shape = 's32[1]{0}', space=sflag, size = 0x4, scoped, tag = 'scoped memory for transformer_forward.1']
    #allocation9 [shape = 'u8[1024]{0}', space=vmem, size = 0x400, scoped, tag = 'input window, operand 10, single buffered']
    %18 = vsyncpa [#allocation3], 0
    %19 = vsyncpa [#allocation5], 0
    %20 = vsyncpa [#allocation8], 0
    loop: start=0, step=1, limit=4
    $region2: #{transformer_forward.1} parent=1 // loop_pre_header
      _
    $region3: #{transformer_forward.1} parent=1 // loop_header
      %s22 = sphi 0, %s26
      %p23 = scmp.ge.s32.totalorder %s22, 4
      %s32 = sphi 0, %s34
      %s35 = sphi 0, %s32
      %s36 = sphi 0, %s35
      %s52 = sphi 0, %s36
      %s56 = sphi 0, %s56
      %s58 = sphi 0, %s56
      %s59 = sphi 0, %s58
      %s73 = sphi 0, %s59
      %s77 = sphi 0, %s77
      %s79 = sphi 0, %s77
      %s80 = sphi 0, %s79
      %s94 = sphi 0, %s80
      %s98 = sphi 0, %s98
      %s100 = sphi 0, %s98
      %s101 = sphi 0, %s100
      %s115 = sphi 0, %s101
      %s119 = sphi 0, %s119
      %s121 = sphi 0, %s119
      %s122 = sphi 0, %s121
      %s136 = sphi 0, %s122
      %s140 = sphi 0, %s140
      %s142 = sphi 0, %s140
      %s143 = sphi 0, %s142
      %s157 = sphi 0, %s143
      %s161 = sphi 0, %s161
      %s163 = sphi 0, %s161
      %s164 = sphi 0, %s163
      %s178 = sphi 0, %s164
      %s182 = sphi 0, %s182
      %s184 = sphi 0, %s182
      %s185 = sphi 0, %s184
      %s199 = sphi 0, %s185
      %s203 = sphi 0, %s203
      %s205 = sphi 0, %s203
      %s206 = sphi 0, %s205
      %s220 = sphi 0, %s206
      %s224 = sphi 0, %s224
      %s226 = sphi 0, %s224
      %s227 = sphi 0, %s226
      %s241 = sphi 0, %s227
      %s245 = sphi 0, %s245
      %s247 = sphi 0, %s245
      %s248 = sphi 0, %s247
      %s262 = sphi 0, %s248
      %s266 = sphi 0, %s266
      %s268 = sphi 0, %s266
      %s269 = sphi 0, %s268
      %s283 = sphi 0, %s269
      %s287 = sphi 0, %s287
      %s289 = sphi 0, %s287
      %s290 = sphi 0, %s289
      %s304 = sphi 0, %s290
      %s310 = sphi 0, %s312
      %s313 = sphi 0, %s310
      %s314 = sphi 0, %s313
      %s330 = sphi 0, %s314
    $region4: #{transformer_forward.1} parent=1 // loop_header_branch
      %25 = sbr.rel (%p23) target = $region8
    $region5: #{transformer_forward.1} parent=1 // loop_body
      %s27 = ssub.s32 %s22, 1
      %s28 = ssub.s32 %s22, 2
      %s29 = sadd.s32 %s22, 1
      %s30 = ssub.s32 %s22, %s29
      %p31 = scmp.eq.s32.totalorder %s30, 0
      %s33 = sadd.s32 %s32, 1
      %s34 = scalar_select %p31, %s32, %s33
      %p37 = pneg %p31
      %p38 = scmp.eq.s32.totalorder %s22, 1
      %p39 = por %p37, %p38
      %p40 = scmp.ne.s32.totalorder %s32, %s35
      %p41 = scmp.eq.s32.totalorder %s22, 0
      %p42 = por %p40, %p41
      %p43 = scmp.ne.s32.totalorder %s32, %s35
      %p44 = scmp.eq.s32.totalorder %s27, 1
      %p45 = por %p43, %p44
      %p46 = scmp.ne.s32.totalorder %s35, %s36
      %p47 = scmp.eq.s32.totalorder %s27, 0
      %p48 = por %p46, %p47
      %p49 = scmp.ne.s32.totalorder %s35, %s36
      %p50 = scmp.eq.s32.totalorder %s28, 1
      %p51 = por %p49, %p50
      %p53 = scmp.ne.s32.totalorder %s36, %s52
      %p54 = scmp.eq.s32.totalorder %s28, 0
      %p55 = por %p53, %p54
      %s57 = sadd.s32 %s56, 1
      %p60 = scmp.eq.s32.totalorder %s22, 1
      %p61 = scmp.ne.s32.totalorder %s56, %s58
      %p62 = scmp.eq.s32.totalorder %s22, 0
      %p63 = por %p61, %p62
      %p64 = scmp.ne.s32.totalorder %s56, %s58
      %p65 = scmp.eq.s32.totalorder %s27, 1
      %p66 = por %p64, %p65
      %p67 = scmp.ne.s32.totalorder %s58, %s59
      %p68 = scmp.eq.s32.totalorder %s27, 0
      %p69 = por %p67, %p68
      %p70 = scmp.ne.s32.totalorder %s58, %s59
      %p71 = scmp.eq.s32.totalorder %s28, 1
      %p72 = por %p70, %p71
      %p74 = scmp.ne.s32.totalorder %s59, %s73
      %p75 = scmp.eq.s32.totalorder %s28, 0
      %p76 = por %p74, %p75
      %s78 = sadd.s32 %s77, 1
      %p81 = scmp.eq.s32.totalorder %s22, 1
      %p82 = scmp.ne.s32.totalorder %s77, %s79
      %p83 = scmp.eq.s32.totalorder %s22, 0
      %p84 = por %p82, %p83
      %p85 = scmp.ne.s32.totalorder %s77, %s79
      %p86 = scmp.eq.s32.totalorder %s27, 1
      %p87 = por %p85, %p86
      %p88 = scmp.ne.s32.totalorder %s79, %s80
      %p89 = scmp.eq.s32.totalorder %s27, 0
      %p90 = por %p88, %p89
      %p91 = scmp.ne.s32.totalorder %s79, %s80
      %p92 = scmp.eq.s32.totalorder %s28, 1
      %p93 = por %p91, %p92
      %p95 = scmp.ne.s32.totalorder %s80, %s94
      %p96 = scmp.eq.s32.totalorder %s28, 0
      %p97 = por %p95, %p96
      %s99 = sadd.s32 %s98, 1
      %p102 = scmp.eq.s32.totalorder %s22, 1
      %p103 = scmp.ne.s32.totalorder %s98, %s100
      %p104 = scmp.eq.s32.totalorder %s22, 0
      %p105 = por %p103, %p104
      %p106 = scmp.ne.s32.totalorder %s98, %s100
      %p107 = scmp.eq.s32.totalorder %s27, 1
      %p108 = por %p106, %p107
      %p109 = scmp.ne.s32.totalorder %s100, %s101
      %p110 = scmp.eq.s32.totalorder %s27, 0
      %p111 = por %p109, %p110
      %p112 = scmp.ne.s32.totalorder %s100, %s101
      %p113 = scmp.eq.s32.totalorder %s28, 1
      %p114 = por %p112, %p113
      %p116 = scmp.ne.s32.totalorder %s101, %s115
      %p117 = scmp.eq.s32.totalorder %s28, 0
      %p118 = por %p116, %p117
      %s120 = sadd.s32 %s119, 1
      %p123 = scmp.eq.s32.totalorder %s22, 1
      %p124 = scmp.ne.s32.totalorder %s119, %s121
      %p125 = scmp.eq.s32.totalorder %s22, 0
      %p126 = por %p124, %p125
      %p127 = scmp.ne.s32.totalorder %s119, %s121
      %p128 = scmp.eq.s32.totalorder %s27, 1
      %p129 = por %p127, %p128
      %p130 = scmp.ne.s32.totalorder %s121, %s122
      %p131 = scmp.eq.s32.totalorder %s27, 0
      %p132 = por %p130, %p131
      %p133 = scmp.ne.s32.totalorder %s121, %s122
      %p134 = scmp.eq.s32.totalorder %s28, 1
      %p135 = por %p133, %p134
      %p137 = scmp.ne.s32.totalorder %s122, %s136
      %p138 = scmp.eq.s32.totalorder %s28, 0
      %p139 = por %p137, %p138
      %s141 = sadd.s32 %s140, 1
      %p144 = scmp.eq.s32.totalorder %s22, 1
      %p145 = scmp.ne.s32.totalorder %s140, %s142
      %p146 = scmp.eq.s32.totalorder %s22, 0
      %p147 = por %p145, %p146
      %p148 = scmp.ne.s32.totalorder %s140, %s142
      %p149 = scmp.eq.s32.totalorder %s27, 1
      %p150 = por %p148, %p149
      %p151 = scmp.ne.s32.totalorder %s142, %s143
      %p152 = scmp.eq.s32.totalorder %s27, 0
      %p153 = por %p151, %p152
      %p154 = scmp.ne.s32.totalorder %s142, %s143
      %p155 = scmp.eq.s32.totalorder %s28, 1
      %p156 = por %p154, %p155
      %p158 = scmp.ne.s32.totalorder %s143, %s157
      %p159 = scmp.eq.s32.totalorder %s28, 0
      %p160 = por %p158, %p159
      %s162 = sadd.s32 %s161, 1
      %p165 = scmp.eq.s32.totalorder %s22, 1
      %p166 = scmp.ne.s32.totalorder %s161, %s163
      %p167 = scmp.eq.s32.totalorder %s22, 0
      %p168 = por %p166, %p167
      %p169 = scmp.ne.s32.totalorder %s161, %s163
      %p170 = scmp.eq.s32.totalorder %s27, 1
      %p171 = por %p169, %p170
      %p172 = scmp.ne.s32.totalorder %s163, %s164
      %p173 = scmp.eq.s32.totalorder %s27, 0
      %p174 = por %p172, %p173
      %p175 = scmp.ne.s32.totalorder %s163, %s164
      %p176 = scmp.eq.s32.totalorder %s28, 1
      %p177 = por %p175, %p176
      %p179 = scmp.ne.s32.totalorder %s164, %s178
      %p180 = scmp.eq.s32.totalorder %s28, 0
      %p181 = por %p179, %p180
      %s183 = sadd.s32 %s182, 1
      %p186 = scmp.eq.s32.totalorder %s22, 1
      %p187 = scmp.ne.s32.totalorder %s182, %s184
      %p188 = scmp.eq.s32.totalorder %s22, 0
      %p189 = por %p187, %p188
      %p190 = scmp.ne.s32.totalorder %s182, %s184
      %p191 = scmp.eq.s32.totalorder %s27, 1
      %p192 = por %p190, %p191
      %p193 = scmp.ne.s32.totalorder %s184, %s185
      %p194 = scmp.eq.s32.totalorder %s27, 0
      %p195 = por %p193, %p194
      %p196 = scmp.ne.s32.totalorder %s184, %s185
      %p197 = scmp.eq.s32.totalorder %s28, 1
      %p198 = por %p196, %p197
      %p200 = scmp.ne.s32.totalorder %s185, %s199
      %p201 = scmp.eq.s32.totalorder %s28, 0
      %p202 = por %p200, %p201
      %s204 = sadd.s32 %s203, 1
      %p207 = scmp.eq.s32.totalorder %s22, 1
      %p208 = scmp.ne.s32.totalorder %s203, %s205
      %p209 = scmp.eq.s32.totalorder %s22, 0
      %p210 = por %p208, %p209
      %p211 = scmp.ne.s32.totalorder %s203, %s205
      %p212 = scmp.eq.s32.totalorder %s27, 1
      %p213 = por %p211, %p212
      %p214 = scmp.ne.s32.totalorder %s205, %s206
      %p215 = scmp.eq.s32.totalorder %s27, 0
      %p216 = por %p214, %p215
      %p217 = scmp.ne.s32.totalorder %s205, %s206
      %p218 = scmp.eq.s32.totalorder %s28, 1
      %p219 = por %p217, %p218
      %p221 = scmp.ne.s32.totalorder %s206, %s220
      %p222 = scmp.eq.s32.totalorder %s28, 0
      %p223 = por %p221, %p222
      %s225 = sadd.s32 %s224, 1
      %p228 = scmp.eq.s32.totalorder %s22, 1
      %p229 = scmp.ne.s32.totalorder %s224, %s226
      %p230 = scmp.eq.s32.totalorder %s22, 0
      %p231 = por %p229, %p230
      %p232 = scmp.ne.s32.totalorder %s224, %s226
      %p233 = scmp.eq.s32.totalorder %s27, 1
      %p234 = por %p232, %p233
      %p235 = scmp.ne.s32.totalorder %s226, %s227
      %p236 = scmp.eq.s32.totalorder %s27, 0
      %p237 = por %p235, %p236
      %p238 = scmp.ne.s32.totalorder %s226, %s227
      %p239 = scmp.eq.s32.totalorder %s28, 1
      %p240 = por %p238, %p239
      %p242 = scmp.ne.s32.totalorder %s227, %s241
      %p243 = scmp.eq.s32.totalorder %s28, 0
      %p244 = por %p242, %p243
      %s246 = sadd.s32 %s245, 1
      %p249 = scmp.eq.s32.totalorder %s22, 1
      %p250 = scmp.ne.s32.totalorder %s245, %s247
      %p251 = scmp.eq.s32.totalorder %s22, 0
      %p252 = por %p250, %p251
      %p253 = scmp.ne.s32.totalorder %s245, %s247
      %p254 = scmp.eq.s32.totalorder %s27, 1
      %p255 = por %p253, %p254
      %p256 = scmp.ne.s32.totalorder %s247, %s248
      %p257 = scmp.eq.s32.totalorder %s27, 0
      %p258 = por %p256, %p257
      %p259 = scmp.ne.s32.totalorder %s247, %s248
      %p260 = scmp.eq.s32.totalorder %s28, 1
      %p261 = por %p259, %p260
      %p263 = scmp.ne.s32.totalorder %s248, %s262
      %p264 = scmp.eq.s32.totalorder %s28, 0
      %p265 = por %p263, %p264
      %s267 = sadd.s32 %s266, 1
      %p270 = scmp.eq.s32.totalorder %s22, 1
      %p271 = scmp.ne.s32.totalorder %s266, %s268
      %p272 = scmp.eq.s32.totalorder %s22, 0
      %p273 = por %p271, %p272
      %p274 = scmp.ne.s32.totalorder %s266, %s268
      %p275 = scmp.eq.s32.totalorder %s27, 1
      %p276 = por %p274, %p275
      %p277 = scmp.ne.s32.totalorder %s268, %s269
      %p278 = scmp.eq.s32.totalorder %s27, 0
      %p279 = por %p277, %p278
      %p280 = scmp.ne.s32.totalorder %s268, %s269
      %p281 = scmp.eq.s32.totalorder %s28, 1
      %p282 = por %p280, %p281
      %p284 = scmp.ne.s32.totalorder %s269, %s283
      %p285 = scmp.eq.s32.totalorder %s28, 0
      %p286 = por %p284, %p285
      %s288 = sadd.s32 %s287, 1
      %p291 = scmp.eq.s32.totalorder %s22, 1
      %p292 = scmp.ne.s32.totalorder %s287, %s289
      %p293 = scmp.eq.s32.totalorder %s22, 0
      %p294 = por %p292, %p293
      %p295 = scmp.ne.s32.totalorder %s287, %s289
      %p296 = scmp.eq.s32.totalorder %s27, 1
      %p297 = por %p295, %p296
      %p298 = scmp.ne.s32.totalorder %s289, %s290
      %p299 = scmp.eq.s32.totalorder %s27, 0
      %p300 = por %p298, %p299
      %p301 = scmp.ne.s32.totalorder %s289, %s290
      %p302 = scmp.eq.s32.totalorder %s28, 1
      %p303 = por %p301, %p302
      %p305 = scmp.ne.s32.totalorder %s290, %s304
      %p306 = scmp.eq.s32.totalorder %s28, 0
      %p307 = por %p305, %p306
      %s308 = ssub.s32 %s22, %s29
      %p309 = scmp.eq.s32.totalorder %s308, 0
      %s311 = sadd.s32 %s310, 1
      %s312 = scalar_select %p309, %s310, %s311
      %p315 = pneg %p309
      %p316 = scmp.eq.s32.totalorder %s22, 1
      %p317 = por %p315, %p316
      %p318 = scmp.ne.s32.totalorder %s310, %s313
      %p319 = scmp.eq.s32.totalorder %s22, 0
      %p320 = por %p318, %p319
      %p321 = scmp.ne.s32.totalorder %s310, %s313
      %p322 = scmp.eq.s32.totalorder %s27, 1
      %p323 = por %p321, %p322
      %p324 = scmp.ne.s32.totalorder %s313, %s314
      %p325 = scmp.eq.s32.totalorder %s27, 0
      %p326 = por %p324, %p325
      %p327 = scmp.ne.s32.totalorder %s313, %s314
      %p328 = scmp.eq.s32.totalorder %s28, 1
      %p329 = por %p327, %p328
      %p331 = scmp.ne.s32.totalorder %s314, %s330
      %p332 = scmp.eq.s32.totalorder %s28, 0
      %p333 = por %p331, %p332
      %p334 = scmp.le.s32.totalorder 1, %s22
      %p335 = scmp.lt.s32.totalorder %s22, 3
      %p336 = pnand %p334, %p335
      %p337 = pneg %p336
      // Predicated region
      $region9: #{transformer_forward.1} parent=5 // pred_check
        _
      $region10: #{transformer_forward.1} parent=5 // pred_check_branch
        %339 = sbr.rel (%p336) target = $region12
      $region11: #{transformer_forward.1} parent=5 // pred_region
        %s340 = ssub.s32 %s22, 1
        // Predicated region
        $region13: #{transformer_forward.1} parent=11 // pred_check
          %p341 = pneg %p69
        $region14: #{transformer_forward.1} parent=11 // pred_check_branch
          %343 = sbr.rel (%p341) target = $region16
        $region15: #{transformer_forward.1} parent=11 // pred_region
          %s345 = ssub.s32 6144, 6144
          %346 = vsyncadd [#allocation3], %s345
          %s347 = sshll.u32 [#allocation2], 4
          %s348 = int_to_ptr.vmem [resolvable:$true] %s347
          %353 = dma.hbm_to_vmem [thread:$0]  %s1, 6144, %s348, [#allocation3], 192, 192, 12
        $region16: #{transformer_forward.1} parent=11 // pred_fallthru
          _
        // Predicated region
        $region17: #{transformer_forward.1} parent=11 // pred_check
          %p354 = pneg %p90
        $region18: #{transformer_forward.1} parent=11 // pred_check_branch
          %356 = sbr.rel (%p354) target = $region20
        $region19: #{transformer_forward.1} parent=11 // pred_region
          _
        $region20: #{transformer_forward.1} parent=11 // pred_fallthru
          _
        // Predicated region
        $region21: #{transformer_forward.1} parent=11 // pred_check
          %p357 = pneg %p111
        $region22: #{transformer_forward.1} parent=11 // pred_check_branch
          %359 = sbr.rel (%p357) target = $region24
        $region23: #{transformer_forward.1} parent=11 // pred_region
          %s361 = ssub.s32 2048, 2048
          %362 = vsyncadd [#allocation5], %s361
          %s363 = sshll.u32 [#allocation4], 4
          %s364 = int_to_ptr.vmem [resolvable:$true] %s363
          %369 = dma.hbm_to_vmem [thread:$0]  %s3, 2048, %s364, [#allocation5], 64, 64, 4
        $region24: #{transformer_forward.1} parent=11 // pred_fallthru
          _
        // Predicated region
        $region25: #{transformer_forward.1} parent=11 // pred_check
          %p370 = pneg %p132
        $region26: #{transformer_forward.1} parent=11 // pred_check_branch
          %372 = sbr.rel (%p370) target = $region28
        $region27: #{transformer_forward.1} parent=11 // pred_region
          _
        $region28: #{transformer_forward.1} parent=11 // pred_fallthru
          _
        // Predicated region
        $region29: #{transformer_forward.1} parent=11 // pred_check
          %p373 = pneg %p153
        $region30: #{transformer_forward.1} parent=11 // pred_check_branch
          %375 = sbr.rel (%p373) target = $region32
        $region31: #{transformer_forward.1} parent=11 // pred_region
          _
        $region32: #{transformer_forward.1} parent=11 // pred_fallthru
          _
        // Predicated region
        $region33: #{transformer_forward.1} parent=11 // pred_check
          %p376 = pneg %p174
        $region34: #{transformer_forward.1} parent=11 // pred_check_branch
          %378 = sbr.rel (%p376) target = $region36
        $region35: #{transformer_forward.1} parent=11 // pred_region
          _
        $region36: #{transformer_forward.1} parent=11 // pred_fallthru
          _
        // Predicated region
        $region37: #{transformer_forward.1} parent=11 // pred_check
          %p379 = pneg %p195
        $region38: #{transformer_forward.1} parent=11 // pred_check_branch
          %381 = sbr.rel (%p379) target = $region40
        $region39: #{transformer_forward.1} parent=11 // pred_region
          %s383 = ssub.s32 32768, 32768
          %384 = vsyncadd [#allocation5], %s383
          %s385 = sshll.u32 [#allocation6], 4
          %s386 = int_to_ptr.vmem [resolvable:$true] %s385
          %391 = dma.hbm_to_vmem [thread:$0]  %s7, 32768, %s386, [#allocation5], 1024, 1024, 64
        $region40: #{transformer_forward.1} parent=11 // pred_fallthru
          _
        // Predicated region
        $region41: #{transformer_forward.1} parent=11 // pred_check
          %p392 = pneg %p216
        $region42: #{transformer_forward.1} parent=11 // pred_check_branch
          %394 = sbr.rel (%p392) target = $region44
        $region43: #{transformer_forward.1} parent=11 // pred_region
          _
        $region44: #{transformer_forward.1} parent=11 // pred_fallthru
          _
        // Predicated region
        $region45: #{transformer_forward.1} parent=11 // pred_check
          %p395 = pneg %p237
        $region46: #{transformer_forward.1} parent=11 // pred_check_branch
          %397 = sbr.rel (%p395) target = $region48
        $region47: #{transformer_forward.1} parent=11 // pred_region
          %s399 = ssub.s32 32768, 32768
          %400 = vsyncadd [#allocation8], %s399
          %s401 = sshll.u32 [#allocation7], 4
          %s402 = int_to_ptr.vmem [resolvable:$true] %s401
          %407 = dma.hbm_to_vmem [thread:$0]  %s9, 32768, %s402, [#allocation8], 64, 64, 4
        $region48: #{transformer_forward.1} parent=11 // pred_fallthru
          _
        // Predicated region
        $region49: #{transformer_forward.1} parent=11 // pred_check
          %p408 = pneg %p258
        $region50: #{transformer_forward.1} parent=11 // pred_check_branch
          %410 = sbr.rel (%p408) target = $region52
        $region51: #{transformer_forward.1} parent=11 // pred_region
          %s412 = ssub.s32 32, 32
          %413 = vsyncadd [#allocation8], %s412
          %s414 = sshll.u32 [#allocation9], 4
          %s415 = int_to_ptr.vmem [resolvable:$true] %s414
          %420 = dma.hbm_to_vmem [thread:$0]  %s10, 32, %s415, [#allocation8], 16, 16, 1
        $region52: #{transformer_forward.1} parent=11 // pred_fallthru
          _
        // Predicated region
        $region53: #{transformer_forward.1} parent=11 // pred_check
          %p421 = pneg %p279
        $region54: #{transformer_forward.1} parent=11 // pred_check_branch
          %423 = sbr.rel (%p421) target = $region56
        $region55: #{transformer_forward.1} parent=11 // pred_region
          _
        $region56: #{transformer_forward.1} parent=11 // pred_fallthru
          _
        // Predicated region
        $region57: #{transformer_forward.1} parent=11 // pred_check
          %p424 = pneg %p300
        $region58: #{transformer_forward.1} parent=11 // pred_check_branch
          %426 = sbr.rel (%p424) target = $region60
        $region59: #{transformer_forward.1} parent=11 // pred_region
          _
        $region60: #{transformer_forward.1} parent=11 // pred_fallthru
          _
      $region12: #{transformer_forward.1} parent=5 // pred_fallthru
        _
      %p427 = scmp.lt.s32.totalorder %s22, 2
      // Predicated region
      $region61: #{transformer_forward.1} parent=5 // pred_check
        %p428 = pneg %p427
      $region62: #{transformer_forward.1} parent=5 // pred_check_branch
        %430 = sbr.rel (%p428) target = $region64
      $region63: #{transformer_forward.1} parent=5 // pred_region
        // Predicated region
        $region65: #{transformer_forward.1} parent=63 // pred_check
          %p431 = pneg %p42
        $region66: #{transformer_forward.1} parent=63 // pred_check_branch
          %433 = sbr.rel (%p431) target = $region68
        $region67: #{transformer_forward.1} parent=63 // pred_region
          %p434 = scmp.lt.s32.totalorder %s22, 1
          %s435 = scalar_select %p434, %s22, 1
          %s436 = smul.addr %s435, 8
          %s437 = scalar_lea.vmem %s0, %s436
        $region68: #{transformer_forward.1} parent=63 // pred_fallthru
          _
      $region64: #{transformer_forward.1} parent=5 // pred_fallthru
        _
      %p438 = scmp.le.s32.totalorder 1, %s22
      %p439 = scmp.lt.s32.totalorder %s22, 3
      %p440 = pnand %p438, %p439
      %p441 = pneg %p440
      // Predicated region
      $region69: #{transformer_forward.1} parent=5 // pred_check
        _
      $region70: #{transformer_forward.1} parent=5 // pred_check_branch
        %443 = sbr.rel (%p440) target = $region72
      $region71: #{transformer_forward.1} parent=5 // pred_region
        %s444 = ssub.s32 %s22, 1
        // Predicated region
        $region73: #{transformer_forward.1} parent=71 // pred_check
          %p445 = pneg %p69
        $region74: #{transformer_forward.1} parent=71 // pred_check_branch
          %447 = sbr.rel (%p445) target = $region76
        $region75: #{transformer_forward.1} parent=71 // pred_region
          %448 = dma.done [#allocation3], 6144
        $region76: #{transformer_forward.1} parent=71 // pred_fallthru
          _
        // Predicated region
        $region77: #{transformer_forward.1} parent=71 // pred_check
          %p449 = pneg %p111
        $region78: #{transformer_forward.1} parent=71 // pred_check_branch
          %451 = sbr.rel (%p449) target = $region80
        $region79: #{transformer_forward.1} parent=71 // pred_region
          %452 = dma.done [#allocation5], 2048
        $region80: #{transformer_forward.1} parent=71 // pred_fallthru
          _
        // Predicated region
        $region81: #{transformer_forward.1} parent=71 // pred_check
          %p453 = pneg %p195
        $region82: #{transformer_forward.1} parent=71 // pred_check_branch
          %455 = sbr.rel (%p453) target = $region84
        $region83: #{transformer_forward.1} parent=71 // pred_region
          %456 = dma.done [#allocation5], 32768
        $region84: #{transformer_forward.1} parent=71 // pred_fallthru
          _
        // Predicated region
        $region85: #{transformer_forward.1} parent=71 // pred_check
          %p457 = pneg %p237
        $region86: #{transformer_forward.1} parent=71 // pred_check_branch
          %459 = sbr.rel (%p457) target = $region88
        $region87: #{transformer_forward.1} parent=71 // pred_region
          %460 = dma.done [#allocation8], 32768
        $region88: #{transformer_forward.1} parent=71 // pred_fallthru
          _
        // Predicated region
        $region89: #{transformer_forward.1} parent=71 // pred_check
          %p461 = pneg %p258
        $region90: #{transformer_forward.1} parent=71 // pred_check_branch
          %463 = sbr.rel (%p461) target = $region92
        $region91: #{transformer_forward.1} parent=71 // pred_region
          %464 = dma.done [#allocation8], 32
        $region92: #{transformer_forward.1} parent=71 // pred_fallthru
          _
        %p465 = scmp.lt.s32.totalorder %s27, 1
        %s466 = scalar_select %p465, %s27, 1
        %s467 = smul.addr %s466, 8
        %s468 = scalar_lea.vmem %s0, %s467
        %p469 = pneg %p48
        %p470 = pneg %p45
        %p471 = pneg %p69
        %p472 = pneg %p66
        %p473 = pneg %p90
        %p474 = pneg %p87
        %p475 = pneg %p111
        %p476 = pneg %p108
        %p477 = pneg %p132
        %p478 = pneg %p129
        %p479 = pneg %p153
        %p480 = pneg %p150
        %p481 = pneg %p174
        %p482 = pneg %p171
        %p483 = pneg %p195
        %p484 = pneg %p192
        %p485 = pneg %p216
        %p486 = pneg %p213
        %p487 = pneg %p237
        %p488 = pneg %p234
        %p489 = pneg %p258
        %p490 = pneg %p255
        %p491 = pneg %p279
        %p492 = pneg %p276
        %p493 = pneg %p300
        %p494 = pneg %p297
        %p495 = pneg %p326
        %p496 = pneg %p323
        %p497 = scmp.lt.s32.totalorder %s27, 1
        %s498 = scalar_select %p497, %s27, 1
        %s499 = smul.addr %s498, 8
        %s500 = scalar_lea.vmem %s13, %s499
        %p501 = scmp.lt.s32.totalorder %s27, 1
        %s502 = scalar_select %p501, %s27, 1
        %s503 = smul.addr %s502, 8
        %s504 = scalar_lea.vmem %s0, %s503
        %p505 = scmp.lt.s32.totalorder %s27, 1
        %s506 = scalar_select %p505, %s27, 1
        %s507 = smul.addr %s506, 8
        %s508 = scalar_lea.vmem %s13, %s507
        %v510 = vld [vmem:[%s504] sm:$0xff]
        %v511 = vpack.c.bf16 %v510, %v510
        %v512 = vld [vmem:[#allocation2] sm:$0xff]
        %v513 = vld [vmem:[#allocation2 + $0x8] sm:$0xf]
        %v514 = vld [vmem:[#allocation2 + $0xc] sm:$0xff]
        %v515 = vld [vmem:[#allocation2 + $0x14] sm:$0xf]
        %v516 = vld [vmem:[#allocation2 + $0x18] sm:$0xff]
        %v517 = vld [vmem:[#allocation2 + $0x20] sm:$0xf]
        %v518 = vld [vmem:[#allocation2 + $0x24] sm:$0xff]
        %v519 = vld [vmem:[#allocation2 + $0x2c] sm:$0xf]
        %v520 = vld [vmem:[#allocation2 + $0x30] sm:$0xff]
        %v521 = vld [vmem:[#allocation2 + $0x38] sm:$0xf]
        %v522 = vld [vmem:[#allocation2 + $0x3c] sm:$0xff]
        %v523 = vld [vmem:[#allocation2 + $0x44] sm:$0xf]
        %v524 = vld [vmem:[#allocation2 + $0x48] sm:$0xff]
        %v525 = vld [vmem:[#allocation2 + $0x50] sm:$0xf]
        %v526 = vld [vmem:[#allocation2 + $0x54] sm:$0xff]
        %v527 = vld [vmem:[#allocation2 + $0x5c] sm:$0xf]
        %v528 = vld [vmem:[#allocation2 + $0x60] sm:$0xff]
        %v529 = vld [vmem:[#allocation2 + $0x68] sm:$0xf]
        %v530 = vld [vmem:[#allocation2 + $0x6c] sm:$0xff]
        %v531 = vld [vmem:[#allocation2 + $0x74] sm:$0xf]
        %v532 = vld [vmem:[#allocation2 + $0x78] sm:$0xff]
        %v533 = vld [vmem:[#allocation2 + $0x80] sm:$0xf]
        %v534 = vld [vmem:[#allocation2 + $0x84] sm:$0xff]
        %v535 = vld [vmem:[#allocation2 + $0x8c] sm:$0xf]
        %v536 = vld [vmem:[#allocation2 + $0x90] sm:$0xff]
        %v537 = vld [vmem:[#allocation2 + $0x98] sm:$0xf]
        %v538 = vld [vmem:[#allocation2 + $0x9c] sm:$0xff]
        %v539 = vld [vmem:[#allocation2 + $0xa4] sm:$0xf]
        %v540 = vld [vmem:[#allocation2 + $0xa8] sm:$0xff]
        %v541 = vld [vmem:[#allocation2 + $0xb0] sm:$0xf]
        %v542 = vld [vmem:[#allocation2 + $0xb4] sm:$0xff]
        %v543 = vld [vmem:[#allocation2 + $0xbc] sm:$0xf]
        %v544 = vld [vmem:[%s2] sm:$0x7]
        %v546 = vlaneseq
        %v547 = vshrl.u32 %v546, 7
        %v548 = vsub.s32 0, %v547
        %v549 = vrot.slane %v544, %v548
        %v550 = vlaneseq
        %v551 = vshrl.u32 %v550, 7
        %v552 = vsub.s32 1, %v551
        %v553 = vrot.slane %v544, %v552
        %v554 = vlaneseq
        %v555 = vshrl.u32 %v554, 7
        %v556 = vsub.s32 2, %v555
        %v557 = vrot.slane %v544, %v556
        %v593 = vunpack.c.l.b16 %v512
        %v594 = vunpack.c.h.b16 %v512
        %v595 = vunpack.c.l.b16 %v513
        %v596 = vunpack.c.l.b16 %v514
        %v597 = vunpack.c.h.b16 %v514
        %v598 = vunpack.c.l.b16 %v515
        %v599 = vunpack.c.l.b16 %v516
        %v600 = vunpack.c.h.b16 %v516
        %v601 = vunpack.c.l.b16 %v517
        %v602 = vunpack.c.l.b16 %v518
        %v603 = vunpack.c.h.b16 %v518
        %v604 = vunpack.c.l.b16 %v519
        %v605 = vunpack.c.l.b16 %v520
        %v606 = vunpack.c.h.b16 %v520
        %v607 = vunpack.c.l.b16 %v521
        %v608 = vunpack.c.l.b16 %v522
        %v609 = vunpack.c.h.b16 %v522
        %v610 = vunpack.c.l.b16 %v523
        %v611 = vunpack.c.l.b16 %v524
        %v612 = vunpack.c.h.b16 %v524
        %v613 = vunpack.c.l.b16 %v525
        %v614 = vunpack.c.l.b16 %v526
        %v615 = vunpack.c.h.b16 %v526
        %v616 = vunpack.c.l.b16 %v527
        %v617 = vunpack.c.l.b16 %v528
        %v618 = vunpack.c.h.b16 %v528
        %v619 = vunpack.c.l.b16 %v529
        %v620 = vunpack.c.l.b16 %v530
        %v621 = vunpack.c.h.b16 %v530
        %v622 = vunpack.c.l.b16 %v531
        %v623 = vunpack.c.l.b16 %v532
        %v624 = vunpack.c.h.b16 %v532
        %v625 = vunpack.c.l.b16 %v533
        %v626 = vunpack.c.l.b16 %v534
        %v627 = vunpack.c.h.b16 %v534
        %v628 = vunpack.c.l.b16 %v535
        %v629 = vunpack.c.l.b16 %v536
        %v630 = vunpack.c.h.b16 %v536
        %v631 = vunpack.c.l.b16 %v537
        %v632 = vunpack.c.l.b16 %v538
        %v633 = vunpack.c.h.b16 %v538
        %v634 = vunpack.c.l.b16 %v539
        %v635 = vunpack.c.l.b16 %v540
        %v636 = vunpack.c.h.b16 %v540
        %v637 = vunpack.c.l.b16 %v541
        %v638 = vunpack.c.l.b16 %v542
        %v639 = vunpack.c.h.b16 %v542
        %v640 = vunpack.c.l.b16 %v543
        %v641 = vpack.c.b16 %v596, %v593
        %v642 = vpack.c.b16 %v597, %v594
        %v643 = vpack.c.b16 %v598, %v595
        %v644 = vpack.c.b16 %v602, %v599
        %v645 = vpack.c.b16 %v603, %v600
        %v646 = vpack.c.b16 %v604, %v601
        %v647 = vpack.c.b16 %v608, %v605
        %v648 = vpack.c.b16 %v609, %v606
        %v649 = vpack.c.b16 %v610, %v607
        %v650 = vpack.c.b16 %v614, %v611
        %v651 = vpack.c.b16 %v615, %v612
        %v652 = vpack.c.b16 %v616, %v613
        %v653 = vpack.c.b16 %v620, %v617
        %v654 = vpack.c.b16 %v621, %v618
        %v655 = vpack.c.b16 %v622, %v619
        %v656 = vpack.c.b16 %v626, %v623
        %v657 = vpack.c.b16 %v627, %v624
        %v658 = vpack.c.b16 %v628, %v625
        %v659 = vpack.c.b16 %v632, %v629
        %v660 = vpack.c.b16 %v633, %v630
        %v661 = vpack.c.b16 %v634, %v631
        %v662 = vpack.c.b16 %v638, %v635
        %v663 = vpack.c.b16 %v639, %v636
        %v664 = vpack.c.b16 %v640, %v637
        %689 = vmatprep.subr.bf16.mxu0 %v642
        %690 = vmatpush1.bf16.msra.mxu0 %v641
        %691 = vmatprep.subr.bf16.mxu0 %v645
        %692 = vmatpush1.bf16.msra.mxu0 %v644
        %693 = vmatprep.subr.bf16.mxu0 %v648
        %694 = vmatpush1.bf16.msra.mxu0 %v647
        %695 = vmatprep.subr.bf16.mxu0 %v651
        %696 = vmatpush1.bf16.msra.mxu0 %v650
        %697 = vmatprep.subr.bf16.mxu0 %v654
        %698 = vmatpush1.bf16.msra.mxu0 %v653
        %699 = vmatprep.subr.bf16.mxu0 %v657
        %700 = vmatpush1.bf16.msra.mxu0 %v656
        %701 = vmatprep.subr.bf16.mxu0 %v660
        %702 = vmatpush1.bf16.msra.mxu0 %v659
        %703 = vmatprep.subr.bf16.mxu0 %v663
        %704 = vmatpush1.bf16.msra.mxu0 %v662
        %705 = vmatprep.subr.bf16.mxu0 0
        %706 = vmatpush1.bf16.msra.mxu0 0
        %707 = vmatprep.subr.bf16.mxu0 0
        %708 = vmatpush1.bf16.msra.mxu0 0
        %709 = vmatprep.subr.bf16.mxu0 0
        %710 = vmatpush1.bf16.msra.mxu0 0
        %711 = vmatprep.subr.bf16.mxu0 0
        %712 = vmatpush1.bf16.msra.mxu0 0
        %713 = vmatprep.subr.bf16.mxu0 0
        %714 = vmatpush1.bf16.msra.mxu0 0
        %715 = vmatprep.subr.bf16.mxu0 0
        %716 = vmatpush1.bf16.msra.mxu0 0
        %717 = vmatprep.subr.bf16.mxu0 0
        %718 = vmatpush1.bf16.msra.mxu0 0
        %719 = vmatprep.subr.bf16.mxu0 0
        %720 = vmatpush1.bf16.msra.mxu0 0
        %721 = vmatprep.mubr.bf16.mxu0 0
        %722 = vmatmul.mubr.bf16.gmra.mrb[0].mxu0 %v511
        %v723 = vpop.f32.mrb[0].mxu0
        %v724 = vadd.f32 %v549, %v723
        %v725 = vpop.f32.mrb[0].mxu0
        %v726 = vadd.f32 %v553, %v725
        %v727 = vpop.f32.mrb[0].mxu0
        %v728 = vpop.f32.mrb[0].mxu0
        %729 = vdwg.mxu0
        %730 = vmatprep.subr.bf16.mxu0 0
        %731 = vmatpush1.bf16.msra.mxu0 %v643
        %732 = vmatprep.subr.bf16.mxu0 0
        %733 = vmatpush1.bf16.msra.mxu0 %v646
        %734 = vmatprep.subr.bf16.mxu0 0
        %735 = vmatpush1.bf16.msra.mxu0 %v649
        %736 = vmatprep.subr.bf16.mxu0 0
        %737 = vmatpush1.bf16.msra.mxu0 %v652
        %738 = vmatprep.subr.bf16.mxu0 0
        %739 = vmatpush1.bf16.msra.mxu0 %v655
        %740 = vmatprep.subr.bf16.mxu0 0
        %741 = vmatpush1.bf16.msra.mxu0 %v658
        %742 = vmatprep.subr.bf16.mxu0 0
        %743 = vmatpush1.bf16.msra.mxu0 %v661
        %744 = vmatprep.subr.bf16.mxu0 0
        %745 = vmatpush1.bf16.msra.mxu0 %v664
        %746 = vmatprep.subr.bf16.mxu0 0
        %747 = vmatpush1.bf16.msra.mxu0 0
        %748 = vmatprep.subr.bf16.mxu0 0
        %749 = vmatpush1.bf16.msra.mxu0 0
        %750 = vmatprep.subr.bf16.mxu0 0
        %751 = vmatpush1.bf16.msra.mxu0 0
        %752 = vmatprep.subr.bf16.mxu0 0
        %753 = vmatpush1.bf16.msra.mxu0 0
        %754 = vmatprep.subr.bf16.mxu0 0
        %755 = vmatpush1.bf16.msra.mxu0 0
        %756 = vmatprep.subr.bf16.mxu0 0
        %757 = vmatpush1.bf16.msra.mxu0 0
        %758 = vmatprep.subr.bf16.mxu0 0
        %759 = vmatpush1.bf16.msra.mxu0 0
        %760 = vmatprep.subr.bf16.mxu0 0
        %761 = vmatpush1.bf16.msra.mxu0 0
        %762 = vmatprep.mubr.bf16.mxu0 0
        %763 = vmatmul.mubr.bf16.gmra.mrb[0].mxu0 %v511
        %v764 = vpop.f32.mrb[0].mxu0
        %v765 = vadd.f32 %v557, %v764
        %v766 = vpop.f32.mrb[0].mxu0
        %v767 = vpop.f32.mrb[0].mxu0
        %v768 = vpop.f32.mrb[0].mxu0
        %769 = vdwg.mxu0
        %v770 = vpack.c.bf16 %v724, %v724
        %v771 = vpack.c.bf16 %v726, %v726
        %v772 = vpack.c.bf16 %v765, %v765
        %vm773 = vcmask 130048
        %v775 = vsel %vm773, %v770, 0
        %v778 = vsel %vm773, %v771, 0
        %780 = vmatprep.subr.bf16.mxu0 0
        %781 = vmatpush1.bf16.xpose.msra.mxu0 %v778
        %782 = vmatprep.subr.bf16.mxu0 0
        %783 = vmatpush1.bf16.xpose.msra.mxu0 0
        %784 = vmatprep.subr.bf16.mxu0 0
        %785 = vmatpush1.bf16.xpose.msra.mxu0 0
        %786 = vmatprep.subr.bf16.mxu0 0
        %787 = vmatpush1.bf16.xpose.msra.mxu0 0
        %788 = vmatprep.subr.bf16.mxu0 0
        %789 = vmatpush1.bf16.xpose.msra.mxu0 0
        %790 = vmatprep.subr.bf16.mxu0 0
        %791 = vmatpush1.bf16.xpose.msra.mxu0 0
        %792 = vmatprep.subr.bf16.mxu0 0
        %793 = vmatpush1.bf16.xpose.msra.mxu0 0
        %794 = vmatprep.subr.bf16.mxu0 0
        %795 = vmatpush1.bf16.xpose.msra.mxu0 0
        %796 = vmatprep.subr.bf16.mxu0 0
        %797 = vmatpush1.bf16.xpose.msra.mxu0 0
        %798 = vmatprep.subr.bf16.mxu0 0
        %799 = vmatpush1.bf16.xpose.msra.mxu0 0
        %800 = vmatprep.subr.bf16.mxu0 0
        %801 = vmatpush1.bf16.xpose.msra.mxu0 0
        %802 = vmatprep.subr.bf16.mxu0 0
        %803 = vmatpush1.bf16.xpose.msra.mxu0 0
        %804 = vmatprep.subr.bf16.mxu0 0
        %805 = vmatpush1.bf16.xpose.msra.mxu0 0
        %806 = vmatprep.subr.bf16.mxu0 0
        %807 = vmatpush1.bf16.xpose.msra.mxu0 0
        %808 = vmatprep.subr.bf16.mxu0 0
        %809 = vmatpush1.bf16.xpose.msra.mxu0 0
        %810 = vmatprep.subr.bf16.mxu0 0
        %811 = vmatpush1.bf16.xpose.msra.mxu0 0
        %812 = vmatprep.mubr.bf16.mxu0 0
        %813 = vmatmul.mubr.bf16.gmra.mrb[0].mxu0 %v775
        %v814 = vpop.f32.mrb[0].mxu0
        %v815 = vadd.f32 0.0, %v814
        %v816 = vpop.f32.mrb[0].mxu0
        %v817 = vpop.f32.mrb[0].mxu0
        %v818 = vpop.f32.mrb[0].mxu0
        %819 = vdwg.mxu0
        %vm820 = vcmask 64512
        %v821 = vsel %vm820, %v815, -inf
        %822 = vmax.xlane.f32.xlu0 %v821
        %v823 = vpop.xlane.xlu0 %822
        %v824 = vsub.f32 %v815, %v823
        %v825 = vmul.f32 %v824, 1.442695
        %v826 = vpow.pop %v825
        %v827 = vsel %vm820, %v826, 0.0
        %828 = vadd.xlane.f32.xlu0 %v827
        %v829 = vpop.xlane.xlu0 %828
        %v830 = vrcp.pop %v829
        %v831 = vmul.f32 %v826, %v830
        %v832 = vpack.c.bf16 %v831, %v831
        %v834 = vsel %vm820, %v832, 0
        %vm836 = vcmask 1043456
        %v838 = vsel %vm836, %v772, 0
        %840 = vmatprep.subr.bf16.mxu0 0
        %841 = vmatpush1.bf16.msra.mxu0 %v838
        %842 = vmatprep.subr.bf16.mxu0 0
        %843 = vmatpush1.bf16.msra.mxu0 0
        %844 = vmatprep.subr.bf16.mxu0 0
        %845 = vmatpush1.bf16.msra.mxu0 0
        %846 = vmatprep.subr.bf16.mxu0 0
        %847 = vmatpush1.bf16.msra.mxu0 0
        %848 = vmatprep.subr.bf16.mxu0 0
        %849 = vmatpush1.bf16.msra.mxu0 0
        %850 = vmatprep.subr.bf16.mxu0 0
        %851 = vmatpush1.bf16.msra.mxu0 0
        %852 = vmatprep.subr.bf16.mxu0 0
        %853 = vmatpush1.bf16.msra.mxu0 0
        %854 = vmatprep.subr.bf16.mxu0 0
        %855 = vmatpush1.bf16.msra.mxu0 0
        %856 = vmatprep.subr.bf16.mxu0 0
        %857 = vmatpush1.bf16.msra.mxu0 0
        %858 = vmatprep.subr.bf16.mxu0 0
        %859 = vmatpush1.bf16.msra.mxu0 0
        %860 = vmatprep.subr.bf16.mxu0 0
        %861 = vmatpush1.bf16.msra.mxu0 0
        %862 = vmatprep.subr.bf16.mxu0 0
        %863 = vmatpush1.bf16.msra.mxu0 0
        %864 = vmatprep.subr.bf16.mxu0 0
        %865 = vmatpush1.bf16.msra.mxu0 0
        %866 = vmatprep.subr.bf16.mxu0 0
        %867 = vmatpush1.bf16.msra.mxu0 0
        %868 = vmatprep.subr.bf16.mxu0 0
        %869 = vmatpush1.bf16.msra.mxu0 0
        %870 = vmatprep.subr.bf16.mxu0 0
        %871 = vmatpush1.bf16.msra.mxu0 0
        %872 = vmatprep.mubr.bf16.mxu0 0
        %873 = vmatmul.mubr.bf16.gmra.mrb[0].mxu0 %v834
        %v874 = vpop.f32.mrb[0].mxu0
        %v875 = vadd.f32 0.0, %v874
        %v876 = vpop.f32.mrb[0].mxu0
        %v877 = vpop.f32.mrb[0].mxu0
        %v878 = vpop.f32.mrb[0].mxu0
        %879 = vdwg.mxu0
        %881 = vrot.lane.b32.xlu0 %v770, 112
        %v882 = vpop.permute.xlu0 %881
        %884 = vrot.lane.b32.xlu0 %v771, 112
        %v885 = vpop.permute.xlu0 %884
        %v887 = vsel %vm773, %v882, 0
        %v890 = vsel %vm773, %v885, 0
        %892 = vmatprep.subr.bf16.mxu0 0
        %893 = vmatpush1.bf16.xpose.msra.mxu0 %v890
        %894 = vmatprep.subr.bf16.mxu0 0
        %895 = vmatpush1.bf16.xpose.msra.mxu0 0
        %896 = vmatprep.subr.bf16.mxu0 0
        %897 = vmatpush1.bf16.xpose.msra.mxu0 0
        %898 = vmatprep.subr.bf16.mxu0 0
        %899 = vmatpush1.bf16.xpose.msra.mxu0 0
        %900 = vmatprep.subr.bf16.mxu0 0
        %901 = vmatpush1.bf16.xpose.msra.mxu0 0
        %902 = vmatprep.subr.bf16.mxu0 0
        %903 = vmatpush1.bf16.xpose.msra.mxu0 0
        %904 = vmatprep.subr.bf16.mxu0 0
        %905 = vmatpush1.bf16.xpose.msra.mxu0 0
        %906 = vmatprep.subr.bf16.mxu0 0
        %907 = vmatpush1.bf16.xpose.msra.mxu0 0
        %908 = vmatprep.subr.bf16.mxu0 0
        %909 = vmatpush1.bf16.xpose.msra.mxu0 0
        %910 = vmatprep.subr.bf16.mxu0 0
        %911 = vmatpush1.bf16.xpose.msra.mxu0 0
        %912 = vmatprep.subr.bf16.mxu0 0
        %913 = vmatpush1.bf16.xpose.msra.mxu0 0
        %914 = vmatprep.subr.bf16.mxu0 0
        %915 = vmatpush1.bf16.xpose.msra.mxu0 0
        %916 = vmatprep.subr.bf16.mxu0 0
        %917 = vmatpush1.bf16.xpose.msra.mxu0 0
        %918 = vmatprep.subr.bf16.mxu0 0
        %919 = vmatpush1.bf16.xpose.msra.mxu0 0
        %920 = vmatprep.subr.bf16.mxu0 0
        %921 = vmatpush1.bf16.xpose.msra.mxu0 0
        %922 = vmatprep.subr.bf16.mxu0 0
        %923 = vmatpush1.bf16.xpose.msra.mxu0 0
        %924 = vmatprep.mubr.bf16.mxu0 0
        %925 = vmatmul.mubr.bf16.gmra.mrb[0].mxu0 %v887
        %v926 = vpop.f32.mrb[0].mxu0
        %v927 = vadd.f32 0.0, %v926
        %v928 = vpop.f32.mrb[0].mxu0
        %v929 = vpop.f32.mrb[0].mxu0
        %v930 = vpop.f32.mrb[0].mxu0
        %931 = vdwg.mxu0
        %v932 = vsel %vm820, %v927, -inf
        %933 = vmax.xlane.f32.xlu0 %v932
        %v934 = vpop.xlane.xlu0 %933
        %v935 = vsub.f32 %v927, %v934
        %v936 = vmul.f32 %v935, 1.442695
        %v937 = vpow.pop %v936
        %v938 = vsel %vm820, %v937, 0.0
        %939 = vadd.xlane.f32.xlu0 %v938
        %v940 = vpop.xlane.xlu0 %939
        %v941 = vrcp.pop %v940
        %v942 = vmul.f32 %v937, %v941
        %v943 = vpack.c.bf16 %v942, %v942
        %945 = vrot.lane.b32.xlu0 %v772, 112
        %v946 = vpop.permute.xlu0 %945
        %v948 = vsel %vm820, %v943, 0
        %v951 = vsel %vm836, %v946, 0
        %953 = vmatprep.subr.bf16.mxu0 0
        %954 = vmatpush1.bf16.msra.mxu0 %v951
        %955 = vmatprep.subr.bf16.mxu0 0
        %956 = vmatpush1.bf16.msra.mxu0 0
        %957 = vmatprep.subr.bf16.mxu0 0
        %958 = vmatpush1.bf16.msra.mxu0 0
        %959 = vmatprep.subr.bf16.mxu0 0
        %960 = vmatpush1.bf16.msra.mxu0 0
        %961 = vmatprep.subr.bf16.mxu0 0
        %962 = vmatpush1.bf16.msra.mxu0 0
        %963 = vmatprep.subr.bf16.mxu0 0
        %964 = vmatpush1.bf16.msra.mxu0 0
        %965 = vmatprep.subr.bf16.mxu0 0
        %966 = vmatpush1.bf16.msra.mxu0 0
        %967 = vmatprep.subr.bf16.mxu0 0
        %968 = vmatpush1.bf16.msra.mxu0 0
        %969 = vmatprep.subr.bf16.mxu0 0
        %970 = vmatpush1.bf16.msra.mxu0 0
        %971 = vmatprep.subr.bf16.mxu0 0
        %972 = vmatpush1.bf16.msra.mxu0 0
        %973 = vmatprep.subr.bf16.mxu0 0
        %974 = vmatpush1.bf16.msra.mxu0 0
        %975 = vmatprep.subr.bf16.mxu0 0
        %976 = vmatpush1.bf16.msra.mxu0 0
        %977 = vmatprep.subr.bf16.mxu0 0
        %978 = vmatpush1.bf16.msra.mxu0 0
        %979 = vmatprep.subr.bf16.mxu0 0
        %980 = vmatpush1.bf16.msra.mxu0 0
        %981 = vmatprep.subr.bf16.mxu0 0
        %982 = vmatpush1.bf16.msra.mxu0 0
        %983 = vmatprep.subr.bf16.mxu0 0
        %984 = vmatpush1.bf16.msra.mxu0 0
        %985 = vmatprep.mubr.bf16.mxu0 0
        %986 = vmatmul.mubr.bf16.gmra.mrb[0].mxu0 %v948
        %v987 = vpop.f32.mrb[0].mxu0
        %v988 = vadd.f32 0.0, %v987
        %v989 = vpop.f32.mrb[0].mxu0
        %v990 = vpop.f32.mrb[0].mxu0
        %v991 = vpop.f32.mrb[0].mxu0
        %992 = vdwg.mxu0
        %993 = vrot.lane.b32.xlu0 %v770, 96
        %v994 = vpop.permute.xlu0 %993
        %995 = vrot.lane.b32.xlu0 %v771, 96
        %v996 = vpop.permute.xlu0 %995
        %v998 = vsel %vm773, %v994, 0
        %v1001 = vsel %vm773, %v996, 0
        %1003 = vmatprep.subr.bf16.mxu0 0
        %1004 = vmatpush1.bf16.xpose.msra.mxu0 %v1001
        %1005 = vmatprep.subr.bf16.mxu0 0
        %1006 = vmatpush1.bf16.xpose.msra.mxu0 0
        %1007 = vmatprep.subr.bf16.mxu0 0
        %1008 = vmatpush1.bf16.xpose.msra.mxu0 0
        %1009 = vmatprep.subr.bf16.mxu0 0
        %1010 = vmatpush1.bf16.xpose.msra.mxu0 0
        %1011 = vmatprep.subr.bf16.mxu0 0
        %1012 = vmatpush1.bf16.xpose.msra.mxu0 0
        %1013 = vmatprep.subr.bf16.mxu0 0
        %1014 = vmatpush1.bf16.xpose.msra.mxu0 0
        %1015 = vmatprep.subr.bf16.mxu0 0
        %1016 = vmatpush1.bf16.xpose.msra.mxu0 0
        %1017 = vmatprep.subr.bf16.mxu0 0
        %1018 = vmatpush1.bf16.xpose.msra.mxu0 0
        %1019 = vmatprep.subr.bf16.mxu0 0
        %1020 = vmatpush1.bf16.xpose.msra.mxu0 0
        %1021 = vmatprep.subr.bf16.mxu0 0
        %1022 = vmatpush1.bf16.xpose.msra.mxu0 0
        %1023 = vmatprep.subr.bf16.mxu0 0
        %1024 = vmatpush1.bf16.xpose.msra.mxu0 0
        %1025 = vmatprep.subr.bf16.mxu0 0
        %1026 = vmatpush1.bf16.xpose.msra.mxu0 0
        %1027 = vmatprep.subr.bf16.mxu0 0
        %1028 = vmatpush1.bf16.xpose.msra.mxu0 0
        %1029 = vmatprep.subr.bf16.mxu0 0
        %1030 = vmatpush1.bf16.xpose.msra.mxu0 0
        %1031 = vmatprep.subr.bf16.mxu0 0
        %1032 = vmatpush1.bf16.xpose.msra.mxu0 0
        %1033 = vmatprep.subr.bf16.mxu0 0
        %1034 = vmatpush1.bf16.xpose.msra.mxu0 0
        %1035 = vmatprep.mubr.bf16.mxu0 0
        %1036 = vmatmul.mubr.bf16.gmra.mrb[0].mxu0 %v998
        %v1037 = vpop.f32.mrb[0].mxu0
        %v1038 = vadd.f32 0.0, %v1037
        %v1039 = vpop.f32.mrb[0].mxu0
        %v1040 = vpop.f32.mrb[0].mxu0
        %v1041 = vpop.f32.mrb[0].mxu0
        %1042 = vdwg.mxu0
        %v1043 = vsel %vm820, %v1038, -inf
        %1044 = vmax.xlane.f32.xlu0 %v1043
        %v1045 = vpop.xlane.xlu0 %1044
        %v1046 = vsub.f32 %v1038, %v1045
        %v1047 = vmul.f32 %v1046, 1.442695
        %v1048 = vpow.pop %v1047
        %v1049 = vsel %vm820, %v1048, 0.0
        %1050 = vadd.xlane.f32.xlu0 %v1049
        %v1051 = vpop.xlane.xlu0 %1050
        %v1052 = vrcp.pop %v1051
        %v1053 = vmul.f32 %v1048, %v1052
        %v1054 = vpack.c.bf16 %v1053, %v1053
        %1055 = vrot.lane.b32.xlu0 %v772, 96
        %v1056 = vpop.permute.xlu0 %1055
        %v1058 = vsel %vm820, %v1054, 0
        %v1061 = vsel %vm836, %v1056, 0
        %1063 = vmatprep.subr.bf16.mxu0 0
        %1064 = vmatpush1.bf16.msra.mxu0 %v1061
        %1065 = vmatprep.subr.bf16.mxu0 0
        %1066 = vmatpush1.bf16.msra.mxu0 0
        %1067 = vmatprep.subr.bf16.mxu0 0
        %1068 = vmatpush1.bf16.msra.mxu0 0
        %1069 = vmatprep.subr.bf16.mxu0 0
        %1070 = vmatpush1.bf16.msra.mxu0 0
        %1071 = vmatprep.subr.bf16.mxu0 0
        %1072 = vmatpush1.bf16.msra.mxu0 0
        %1073 = vmatprep.subr.bf16.mxu0 0
        %1074 = vmatpush1.bf16.msra.mxu0 0
        %1075 = vmatprep.subr.bf16.mxu0 0
        %1076 = vmatpush1.bf16.msra.mxu0 0
        %1077 = vmatprep.subr.bf16.mxu0 0
        %1078 = vmatpush1.bf16.msra.mxu0 0
        %1079 = vmatprep.subr.bf16.mxu0 0
        %1080 = vmatpush1.bf16.msra.mxu0 0
        %1081 = vmatprep.subr.bf16.mxu0 0
        %1082 = vmatpush1.bf16.msra.mxu0 0
        %1083 = vmatprep.subr.bf16.mxu0 0
        %1084 = vmatpush1.bf16.msra.mxu0 0
        %1085 = vmatprep.subr.bf16.mxu0 0
        %1086 = vmatpush1.bf16.msra.mxu0 0
        %1087 = vmatprep.subr.bf16.mxu0 0
        %1088 = vmatpush1.bf16.msra.mxu0 0
        %1089 = vmatprep.subr.bf16.mxu0 0
        %1090 = vmatpush1.bf16.msra.mxu0 0
        %1091 = vmatprep.subr.bf16.mxu0 0
        %1092 = vmatpush1.bf16.msra.mxu0 0
        %1093 = vmatprep.subr.bf16.mxu0 0
        %1094 = vmatpush1.bf16.msra.mxu0 0
        %1095 = vmatprep.mubr.bf16.mxu0 0
        %1096 = vmatmul.mubr.bf16.gmra.mrb[0].mxu0 %v1058
        %v1097 = vpop.f32.mrb[0].mxu0
        %v1098 = vadd.f32 0.0, %v1097
        %v1099 = vpop.f32.mrb[0].mxu0
        %v1100 = vpop.f32.mrb[0].mxu0
        %v1101 = vpop.f32.mrb[0].mxu0
        %1102 = vdwg.mxu0
        %1103 = vrot.lane.b32.xlu0 %v770, 80
        %v1104 = vpop.permute.xlu0 %1103
        %1105 = vrot.lane.b32.xlu0 %v771, 80
        %v1106 = vpop.permute.xlu0 %1105
        %v1108 = vsel %vm773, %v1104, 0
        %v1111 = vsel %vm773, %v1106, 0
        %1113 = vmatprep.subr.bf16.mxu0 0
        %1114 = vmatpush1.bf16.xpose.msra.mxu0 %v1111
        %1115 = vmatprep.subr.bf16.mxu0 0
        %1116 = vmatpush1.bf16.xpose.msra.mxu0 0
        %1117 = vmatprep.subr.bf16.mxu0 0
        %1118 = vmatpush1.bf16.xpose.msra.mxu0 0
        %1119 = vmatprep.subr.bf16.mxu0 0
        %1120 = vmatpush1.bf16.xpose.msra.mxu0 0
        %1121 = vmatprep.subr.bf16.mxu0 0
        %1122 = vmatpush1.bf16.xpose.msra.mxu0 0
        %1123 = vmatprep.subr.bf16.mxu0 0
        %1124 = vmatpush1.bf16.xpose.msra.mxu0 0
        %1125 = vmatprep.subr.bf16.mxu0 0
        %1126 = vmatpush1.bf16.xpose.msra.mxu0 0
        %1127 = vmatprep.subr.bf16.mxu0 0
        %1128 = vmatpush1.bf16.xpose.msra.mxu0 0
        %1129 = vmatprep.subr.bf16.mxu0 0
        %1130 = vmatpush1.bf16.xpose.msra.mxu0 0
        %1131 = vmatprep.subr.bf16.mxu0 0
        %1132 = vmatpush1.bf16.xpose.msra.mxu0 0
        %1133 = vmatprep.subr.bf16.mxu0 0
        %1134 = vmatpush1.bf16.xpose.msra.mxu0 0
        %1135 = vmatprep.subr.bf16.mxu0 0
        %1136 = vmatpush1.bf16.xpose.msra.mxu0 0
        %1137 = vmatprep.subr.bf16.mxu0 0
        %1138 = vmatpush1.bf16.xpose.msra.mxu0 0
        %1139 = vmatprep.subr.bf16.mxu0 0
        %1140 = vmatpush1.bf16.xpose.msra.mxu0 0
        %1141 = vmatprep.subr.bf16.mxu0 0
        %1142 = vmatpush1.bf16.xpose.msra.mxu0 0
        %1143 = vmatprep.subr.bf16.mxu0 0
        %1144 = vmatpush1.bf16.xpose.msra.mxu0 0
        %1145 = vmatprep.mubr.bf16.mxu0 0
        %1146 = vmatmul.mubr.bf16.gmra.mrb[0].mxu0 %v1108
        %v1147 = vpop.f32.mrb[0].mxu0
        %v1148 = vadd.f32 0.0, %v1147
        %v1149 = vpop.f32.mrb[0].mxu0
        %v1150 = vpop.f32.mrb[0].mxu0
        %v1151 = vpop.f32.mrb[0].mxu0
        %1152 = vdwg.mxu0
        %v1153 = vsel %vm820, %v1148, -inf
        %1154 = vmax.xlane.f32.xlu0 %v1153
        %v1155 = vpop.xlane.xlu0 %1154
        %v1156 = vsub.f32 %v1148, %v1155
        %v1157 = vmul.f32 %v1156, 1.442695
        %v1158 = vpow.pop %v1157
        %v1159 = vsel %vm820, %v1158, 0.0
        %1160 = vadd.xlane.f32.xlu0 %v1159
        %v1161 = vpop.xlane.xlu0 %1160
        %v1162 = vrcp.pop %v1161
        %v1163 = vmul.f32 %v1158, %v1162
        %v1164 = vpack.c.bf16 %v1163, %v1163
        %1165 = vrot.lane.b32.xlu0 %v772, 80
        %v1166 = vpop.permute.xlu0 %1165
        %v1168 = vsel %vm820, %v1164, 0
        %v1171 = vsel %vm836, %v1166, 0
        %1173 = vmatprep.subr.bf16.mxu0 0
        %1174 = vmatpush1.bf16.msra.mxu0 %v1171
        %1175 = vmatprep.subr.bf16.mxu0 0
        %1176 = vmatpush1.bf16.msra.mxu0 0
        %1177 = vmatprep.subr.bf16.mxu0 0
        %1178 = vmatpush1.bf16.msra.mxu0 0
        %1179 = vmatprep.subr.bf16.mxu0 0
        %1180 = vmatpush1.bf16.msra.mxu0 0
        %1181 = vmatprep.subr.bf16.mxu0 0
        %1182 = vmatpush1.bf16.msra.mxu0 0
        %1183 = vmatprep.subr.bf16.mxu0 0
        %1184 = vmatpush1.bf16.msra.mxu0 0
        %1185 = vmatprep.subr.bf16.mxu0 0
        %1186 = vmatpush1.bf16.msra.mxu0 0
        %1187 = vmatprep.subr.bf16.mxu0 0
        %1188 = vmatpush1.bf16.msra.mxu0 0
        %1189 = vmatprep.subr.bf16.mxu0 0
        %1190 = vmatpush1.bf16.msra.mxu0 0
        %1191 = vmatprep.subr.bf16.mxu0 0
        %1192 = vmatpush1.bf16.msra.mxu0 0
        %1193 = vmatprep.subr.bf16.mxu0 0
        %1194 = vmatpush1.bf16.msra.mxu0 0
        %1195 = vmatprep.subr.bf16.mxu0 0
        %1196 = vmatpush1.bf16.msra.mxu0 0
        %1197 = vmatprep.subr.bf16.mxu0 0
        %1198 = vmatpush1.bf16.msra.mxu0 0
        %1199 = vmatprep.subr.bf16.mxu0 0
        %1200 = vmatpush1.bf16.msra.mxu0 0
        %1201 = vmatprep.subr.bf16.mxu0 0
        %1202 = vmatpush1.bf16.msra.mxu0 0
        %1203 = vmatprep.subr.bf16.mxu0 0
        %1204 = vmatpush1.bf16.msra.mxu0 0
        %1205 = vmatprep.mubr.bf16.mxu0 0
        %1206 = vmatmul.mubr.bf16.gmra.mrb[0].mxu0 %v1168
        %v1207 = vpop.f32.mrb[0].mxu0
        %v1208 = vadd.f32 0.0, %v1207
        %v1209 = vpop.f32.mrb[0].mxu0
        %v1210 = vpop.f32.mrb[0].mxu0
        %v1211 = vpop.f32.mrb[0].mxu0
        %1212 = vdwg.mxu0
        %1213 = vrot.lane.b32.xlu0 %v770, 64
        %v1214 = vpop.permute.xlu0 %1213
        %1215 = vrot.lane.b32.xlu0 %v771, 64
        %v1216 = vpop.permute.xlu0 %1215
        %v1218 = vsel %vm773, %v1214, 0
        %v1221 = vsel %vm773, %v1216, 0
        %1223 = vmatprep.subr.bf16.mxu0 0
        %1224 = vmatpush1.bf16.xpose.msra.mxu0 %v1221
        %1225 = vmatprep.subr.bf16.mxu0 0
        %1226 = vmatpush1.bf16.xpose.msra.mxu0 0
        %1227 = vmatprep.subr.bf16.mxu0 0
        %1228 = vmatpush1.bf16.xpose.msra.mxu0 0
        %1229 = vmatprep.subr.bf16.mxu0 0
        %1230 = vmatpush1.bf16.xpose.msra.mxu0 0
        %1231 = vmatprep.subr.bf16.mxu0 0
        %1232 = vmatpush1.bf16.xpose.msra.mxu0 0
        %1233 = vmatprep.subr.bf16.mxu0 0
        %1234 = vmatpush1.bf16.xpose.msra.mxu0 0
        %1235 = vmatprep.subr.bf16.mxu0 0
        %1236 = vmatpush1.bf16.xpose.msra.mxu0 0
        %1237 = vmatprep.subr.bf16.mxu0 0
        %1238 = vmatpush1.bf16.xpose.msra.mxu0 0
        %1239 = vmatprep.subr.bf16.mxu0 0
        %1240 = vmatpush1.bf16.xpose.msra.mxu0 0
        %1241 = vmatprep.subr.bf16.mxu0 0
        %1242 = vmatpush1.bf16.xpose.msra.mxu0 0
        %1243 = vmatprep.subr.bf16.mxu0 0
        %1244 = vmatpush1.bf16.xpose.msra.mxu0 0
        %1245 = vmatprep.subr.bf16.mxu0 0
        %1246 = vmatpush1.bf16.xpose.msra.mxu0 0
        %1247 = vmatprep.subr.bf16.mxu0 0
        %1248 = vmatpush1.bf16.xpose.msra.mxu0 0
        %1249 = vmatprep.subr.bf16.mxu0 0
        %1250 = vmatpush1.bf16.xpose.msra.mxu0 0
        %1251 = vmatprep.subr.bf16.mxu0 0
        %1252 = vmatpush1.bf16.xpose.msra.mxu0 0
        %1253 = vmatprep.subr.bf16.mxu0 0
        %1254 = vmatpush1.bf16.xpose.msra.mxu0 0
        %1255 = vmatprep.mubr.bf16.mxu0 0
        %1256 = vmatmul.mubr.bf16.gmra.mrb[0].mxu0 %v1218
        %v1257 = vpop.f32.mrb[0].mxu0
        %v1258 = vadd.f32 0.0, %v1257
        %v1259 = vpop.f32.mrb[0].mxu0
        %v1260 = vpop.f32.mrb[0].mxu0
        %v1261 = vpop.f32.mrb[0].mxu0
        %1262 = vdwg.mxu0
        %v1263 = vsel %vm820, %v1258, -inf
        %1264 = vmax.xlane.f32.xlu0 %v1263
        %v1265 = vpop.xlane.xlu0 %1264
        %v1266 = vsub.f32 %v1258, %v1265
        %v1267 = vmul.f32 %v1266, 1.442695
        %v1268 = vpow.pop %v1267
        %v1269 = vsel %vm820, %v1268, 0.0
        %1270 = vadd.xlane.f32.xlu0 %v1269
        %v1271 = vpop.xlane.xlu0 %1270
        %v1272 = vrcp.pop %v1271
        %v1273 = vmul.f32 %v1268, %v1272
        %v1274 = vpack.c.bf16 %v1273, %v1273
        %1275 = vrot.lane.b32.xlu0 %v772, 64
        %v1276 = vpop.permute.xlu0 %1275
        %v1278 = vsel %vm820, %v1274, 0
        %v1281 = vsel %vm836, %v1276, 0
        %1283 = vmatprep.subr.bf16.mxu0 0
        %1284 = vmatpush1.bf16.msra.mxu0 %v1281
        %1285 = vmatprep.subr.bf16.mxu0 0
        %1286 = vmatpush1.bf16.msra.mxu0 0
        %1287 = vmatprep.subr.bf16.mxu0 0
        %1288 = vmatpush1.bf16.msra.mxu0 0
        %1289 = vmatprep.subr.bf16.mxu0 0
        %1290 = vmatpush1.bf16.msra.mxu0 0
        %1291 = vmatprep.subr.bf16.mxu0 0
        %1292 = vmatpush1.bf16.msra.mxu0 0
        %1293 = vmatprep.subr.bf16.mxu0 0
        %1294 = vmatpush1.bf16.msra.mxu0 0
        %1295 = vmatprep.subr.bf16.mxu0 0
        %1296 = vmatpush1.bf16.msra.mxu0 0
        %1297 = vmatprep.subr.bf16.mxu0 0
        %1298 = vmatpush1.bf16.msra.mxu0 0
        %1299 = vmatprep.subr.bf16.mxu0 0
        %1300 = vmatpush1.bf16.msra.mxu0 0
        %1301 = vmatprep.subr.bf16.mxu0 0
        %1302 = vmatpush1.bf16.msra.mxu0 0
        %1303 = vmatprep.subr.bf16.mxu0 0
        %1304 = vmatpush1.bf16.msra.mxu0 0
        %1305 = vmatprep.subr.bf16.mxu0 0
        %1306 = vmatpush1.bf16.msra.mxu0 0
        %1307 = vmatprep.subr.bf16.mxu0 0
        %1308 = vmatpush1.bf16.msra.mxu0 0
        %1309 = vmatprep.subr.bf16.mxu0 0
        %1310 = vmatpush1.bf16.msra.mxu0 0
        %1311 = vmatprep.subr.bf16.mxu0 0
        %1312 = vmatpush1.bf16.msra.mxu0 0
        %1313 = vmatprep.subr.bf16.mxu0 0
        %1314 = vmatpush1.bf16.msra.mxu0 0
        %1315 = vmatprep.mubr.bf16.mxu0 0
        %1316 = vmatmul.mubr.bf16.gmra.mrb[0].mxu0 %v1278
        %v1317 = vpop.f32.mrb[0].mxu0
        %v1318 = vadd.f32 0.0, %v1317
        %v1319 = vpop.f32.mrb[0].mxu0
        %v1320 = vpop.f32.mrb[0].mxu0
        %v1321 = vpop.f32.mrb[0].mxu0
        %1322 = vdwg.mxu0
        %1323 = vrot.lane.b32.xlu0 %v770, 48
        %v1324 = vpop.permute.xlu0 %1323
        %1325 = vrot.lane.b32.xlu0 %v771, 48
        %v1326 = vpop.permute.xlu0 %1325
        %v1328 = vsel %vm773, %v1324, 0
        %v1331 = vsel %vm773, %v1326, 0
        %1333 = vmatprep.subr.bf16.mxu0 0
        %1334 = vmatpush1.bf16.xpose.msra.mxu0 %v1331
        %1335 = vmatprep.subr.bf16.mxu0 0
        %1336 = vmatpush1.bf16.xpose.msra.mxu0 0
        %1337 = vmatprep.subr.bf16.mxu0 0
        %1338 = vmatpush1.bf16.xpose.msra.mxu0 0
        %1339 = vmatprep.subr.bf16.mxu0 0
        %1340 = vmatpush1.bf16.xpose.msra.mxu0 0
        %1341 = vmatprep.subr.bf16.mxu0 0
        %1342 = vmatpush1.bf16.xpose.msra.mxu0 0
        %1343 = vmatprep.subr.bf16.mxu0 0
        %1344 = vmatpush1.bf16.xpose.msra.mxu0 0
        %1345 = vmatprep.subr.bf16.mxu0 0
        %1346 = vmatpush1.bf16.xpose.msra.mxu0 0
        %1347 = vmatprep.subr.bf16.mxu0 0
        %1348 = vmatpush1.bf16.xpose.msra.mxu0 0
        %1349 = vmatprep.subr.bf16.mxu0 0
        %1350 = vmatpush1.bf16.xpose.msra.mxu0 0
        %1351 = vmatprep.subr.bf16.mxu0 0
        %1352 = vmatpush1.bf16.xpose.msra.mxu0 0
        %1353 = vmatprep.subr.bf16.mxu0 0
        %1354 = vmatpush1.bf16.xpose.msra.mxu0 0
        %1355 = vmatprep.subr.bf16.mxu0 0
        %1356 = vmatpush1.bf16.xpose.msra.mxu0 0
        %1357 = vmatprep.subr.bf16.mxu0 0
        %1358 = vmatpush1.bf16.xpose.msra.mxu0 0
        %1359 = vmatprep.subr.bf16.mxu0 0
        %1360 = vmatpush1.bf16.xpose.msra.mxu0 0
        %1361 = vmatprep.subr.bf16.mxu0 0
        %1362 = vmatpush1.bf16.xpose.msra.mxu0 0
        %1363 = vmatprep.subr.bf16.mxu0 0
        %1364 = vmatpush1.bf16.xpose.msra.mxu0 0
        %1365 = vmatprep.mubr.bf16.mxu0 0
        %1366 = vmatmul.mubr.bf16.gmra.mrb[0].mxu0 %v1328
        %v1367 = vpop.f32.mrb[0].mxu0
        %v1368 = vadd.f32 0.0, %v1367
        %v1369 = vpop.f32.mrb[0].mxu0
        %v1370 = vpop.f32.mrb[0].mxu0
        %v1371 = vpop.f32.mrb[0].mxu0
        %1372 = vdwg.mxu0
        %v1373 = vsel %vm820, %v1368, -inf
        %1374 = vmax.xlane.f32.xlu0 %v1373
        %v1375 = vpop.xlane.xlu0 %1374
        %v1376 = vsub.f32 %v1368, %v1375
        %v1377 = vmul.f32 %v1376, 1.442695
        %v1378 = vpow.pop %v1377
        %v1379 = vsel %vm820, %v1378, 0.0
        %1380 = vadd.xlane.f32.xlu0 %v1379
        %v1381 = vpop.xlane.xlu0 %1380
        %v1382 = vrcp.pop %v1381
        %v1383 = vmul.f32 %v1378, %v1382
        %v1384 = vpack.c.bf16 %v1383, %v1383
        %1385 = vrot.lane.b32.xlu0 %v772, 48
        %v1386 = vpop.permute.xlu0 %1385
        %v1388 = vsel %vm820, %v1384, 0
        %v1391 = vsel %vm836, %v1386, 0
        %1393 = vmatprep.subr.bf16.mxu0 0
        %1394 = vmatpush1.bf16.msra.mxu0 %v1391
        %1395 = vmatprep.subr.bf16.mxu0 0
        %1396 = vmatpush1.bf16.msra.mxu0 0
        %1397 = vmatprep.subr.bf16.mxu0 0
        %1398 = vmatpush1.bf16.msra.mxu0 0
        %1399 = vmatprep.subr.bf16.mxu0 0
        %1400 = vmatpush1.bf16.msra.mxu0 0
        %1401 = vmatprep.subr.bf16.mxu0 0
        %1402 = vmatpush1.bf16.msra.mxu0 0
        %1403 = vmatprep.subr.bf16.mxu0 0
        %1404 = vmatpush1.bf16.msra.mxu0 0
        %1405 = vmatprep.subr.bf16.mxu0 0
        %1406 = vmatpush1.bf16.msra.mxu0 0
        %1407 = vmatprep.subr.bf16.mxu0 0
        %1408 = vmatpush1.bf16.msra.mxu0 0
        %1409 = vmatprep.subr.bf16.mxu0 0
        %1410 = vmatpush1.bf16.msra.mxu0 0
        %1411 = vmatprep.subr.bf16.mxu0 0
        %1412 = vmatpush1.bf16.msra.mxu0 0
        %1413 = vmatprep.subr.bf16.mxu0 0
        %1414 = vmatpush1.bf16.msra.mxu0 0
        %1415 = vmatprep.subr.bf16.mxu0 0
        %1416 = vmatpush1.bf16.msra.mxu0 0
        %1417 = vmatprep.subr.bf16.mxu0 0
        %1418 = vmatpush1.bf16.msra.mxu0 0
        %1419 = vmatprep.subr.bf16.mxu0 0
        %1420 = vmatpush1.bf16.msra.mxu0 0
        %1421 = vmatprep.subr.bf16.mxu0 0
        %1422 = vmatpush1.bf16.msra.mxu0 0
        %1423 = vmatprep.subr.bf16.mxu0 0
        %1424 = vmatpush1.bf16.msra.mxu0 0
        %1425 = vmatprep.mubr.bf16.mxu0 0
        %1426 = vmatmul.mubr.bf16.gmra.mrb[0].mxu0 %v1388
        %v1427 = vpop.f32.mrb[0].mxu0
        %v1428 = vadd.f32 0.0, %v1427
        %v1429 = vpop.f32.mrb[0].mxu0
        %v1430 = vpop.f32.mrb[0].mxu0
        %v1431 = vpop.f32.mrb[0].mxu0
        %1432 = vdwg.mxu0
        %1433 = vrot.lane.b32.xlu0 %v770, 32
        %v1434 = vpop.permute.xlu0 %1433
        %1435 = vrot.lane.b32.xlu0 %v771, 32
        %v1436 = vpop.permute.xlu0 %1435
        %v1438 = vsel %vm773, %v1434, 0
        %v1441 = vsel %vm773, %v1436, 0
        %1443 = vmatprep.subr.bf16.mxu0 0
        %1444 = vmatpush1.bf16.xpose.msra.mxu0 %v1441
        %1445 = vmatprep.subr.bf16.mxu0 0
        %1446 = vmatpush1.bf16.xpose.msra.mxu0 0
        %1447 = vmatprep.subr.bf16.mxu0 0
        %1448 = vmatpush1.bf16.xpose.msra.mxu0 0
        %1449 = vmatprep.subr.bf16.mxu0 0
        %1450 = vmatpush1.bf16.xpose.msra.mxu0 0
        %1451 = vmatprep.subr.bf16.mxu0 0
        %1452 = vmatpush1.bf16.xpose.msra.mxu0 0
        %1453 = vmatprep.subr.bf16.mxu0 0
        %1454 = vmatpush1.bf16.xpose.msra.mxu0 0
        %1455 = vmatprep.subr.bf16.mxu0 0
        %1456 = vmatpush1.bf16.xpose.msra.mxu0 0
        %1457 = vmatprep.subr.bf16.mxu0 0
        %1458 = vmatpush1.bf16.xpose.msra.mxu0 0
        %1459 = vmatprep.subr.bf16.mxu0 0
        %1460 = vmatpush1.bf16.xpose.msra.mxu0 0
        %1461 = vmatprep.subr.bf16.mxu0 0
        %1462 = vmatpush1.bf16.xpose.msra.mxu0 0
        %1463 = vmatprep.subr.bf16.mxu0 0
        %1464 = vmatpush1.bf16.xpose.msra.mxu0 0
        %1465 = vmatprep.subr.bf16.mxu0 0
        %1466 = vmatpush1.bf16.xpose.msra.mxu0 0
        %1467 = vmatprep.subr.bf16.mxu0 0
        %1468 = vmatpush1.bf16.xpose.msra.mxu0 0
        %1469 = vmatprep.subr.bf16.mxu0 0
        %1470 = vmatpush1.bf16.xpose.msra.mxu0 0
        %1471 = vmatprep.subr.bf16.mxu0 0
        %1472 = vmatpush1.bf16.xpose.msra.mxu0 0
        %1473 = vmatprep.subr.bf16.mxu0 0
        %1474 = vmatpush1.bf16.xpose.msra.mxu0 0
        %1475 = vmatprep.mubr.bf16.mxu0 0
        %1476 = vmatmul.mubr.bf16.gmra.mrb[0].mxu0 %v1438
        %v1477 = vpop.f32.mrb[0].mxu0
        %v1478 = vadd.f32 0.0, %v1477
        %v1479 = vpop.f32.mrb[0].mxu0
        %v1480 = vpop.f32.mrb[0].mxu0
        %v1481 = vpop.f32.mrb[0].mxu0
        %1482 = vdwg.mxu0
        %v1483 = vsel %vm820, %v1478, -inf
        %1484 = vmax.xlane.f32.xlu0 %v1483
        %v1485 = vpop.xlane.xlu0 %1484
        %v1486 = vsub.f32 %v1478, %v1485
        %v1487 = vmul.f32 %v1486, 1.442695
        %v1488 = vpow.pop %v1487
        %v1489 = vsel %vm820, %v1488, 0.0
        %1490 = vadd.xlane.f32.xlu0 %v1489
        %v1491 = vpop.xlane.xlu0 %1490
        %v1492 = vrcp.pop %v1491
        %v1493 = vmul.f32 %v1488, %v1492
        %v1494 = vpack.c.bf16 %v1493, %v1493
        %1495 = vrot.lane.b32.xlu0 %v772, 32
        %v1496 = vpop.permute.xlu0 %1495
        %v1498 = vsel %vm820, %v1494, 0
        %v1501 = vsel %vm836, %v1496, 0
        %1503 = vmatprep.subr.bf16.mxu0 0
        %1504 = vmatpush1.bf16.msra.mxu0 %v1501
        %1505 = vmatprep.subr.bf16.mxu0 0
        %1506 = vmatpush1.bf16.msra.mxu0 0
        %1507 = vmatprep.subr.bf16.mxu0 0
        %1508 = vmatpush1.bf16.msra.mxu0 0
        %1509 = vmatprep.subr.bf16.mxu0 0
        %1510 = vmatpush1.bf16.msra.mxu0 0
        %1511 = vmatprep.subr.bf16.mxu0 0
        %1512 = vmatpush1.bf16.msra.mxu0 0
        %1513 = vmatprep.subr.bf16.mxu0 0
        %1514 = vmatpush1.bf16.msra.mxu0 0
        %1515 = vmatprep.subr.bf16.mxu0 0
        %1516 = vmatpush1.bf16.msra.mxu0 0
        %1517 = vmatprep.subr.bf16.mxu0 0
        %1518 = vmatpush1.bf16.msra.mxu0 0
        %1519 = vmatprep.subr.bf16.mxu0 0
        %1520 = vmatpush1.bf16.msra.mxu0 0
        %1521 = vmatprep.subr.bf16.mxu0 0
        %1522 = vmatpush1.bf16.msra.mxu0 0
        %1523 = vmatprep.subr.bf16.mxu0 0
        %1524 = vmatpush1.bf16.msra.mxu0 0
        %1525 = vmatprep.subr.bf16.mxu0 0
        %1526 = vmatpush1.bf16.msra.mxu0 0
        %1527 = vmatprep.subr.bf16.mxu0 0
        %1528 = vmatpush1.bf16.msra.mxu0 0
        %1529 = vmatprep.subr.bf16.mxu0 0
        %1530 = vmatpush1.bf16.msra.mxu0 0
        %1531 = vmatprep.subr.bf16.mxu0 0
        %1532 = vmatpush1.bf16.msra.mxu0 0
        %1533 = vmatprep.subr.bf16.mxu0 0
        %1534 = vmatpush1.bf16.msra.mxu0 0
        %1535 = vmatprep.mubr.bf16.mxu0 0
        %1536 = vmatmul.mubr.bf16.gmra.mrb[0].mxu0 %v1498
        %v1537 = vpop.f32.mrb[0].mxu0
        %v1538 = vadd.f32 0.0, %v1537
        %v1539 = vpop.f32.mrb[0].mxu0
        %v1540 = vpop.f32.mrb[0].mxu0
        %v1541 = vpop.f32.mrb[0].mxu0
        %1542 = vdwg.mxu0
        %1543 = vrot.lane.b32.xlu0 %v770, 16
        %v1544 = vpop.permute.xlu0 %1543
        %1545 = vrot.lane.b32.xlu0 %v771, 16
        %v1546 = vpop.permute.xlu0 %1545
        %v1548 = vsel %vm773, %v1544, 0
        %v1551 = vsel %vm773, %v1546, 0
        %1553 = vmatprep.subr.bf16.mxu0 0
        %1554 = vmatpush1.bf16.xpose.msra.mxu0 %v1551
        %1555 = vmatprep.subr.bf16.mxu0 0
        %1556 = vmatpush1.bf16.xpose.msra.mxu0 0
        %1557 = vmatprep.subr.bf16.mxu0 0
        %1558 = vmatpush1.bf16.xpose.msra.mxu0 0
        %1559 = vmatprep.subr.bf16.mxu0 0
        %1560 = vmatpush1.bf16.xpose.msra.mxu0 0
        %1561 = vmatprep.subr.bf16.mxu0 0
        %1562 = vmatpush1.bf16.xpose.msra.mxu0 0
        %1563 = vmatprep.subr.bf16.mxu0 0
        %1564 = vmatpush1.bf16.xpose.msra.mxu0 0
        %1565 = vmatprep.subr.bf16.mxu0 0
        %1566 = vmatpush1.bf16.xpose.msra.mxu0 0
        %1567 = vmatprep.subr.bf16.mxu0 0
        %1568 = vmatpush1.bf16.xpose.msra.mxu0 0
        %1569 = vmatprep.subr.bf16.mxu0 0
        %1570 = vmatpush1.bf16.xpose.msra.mxu0 0
        %1571 = vmatprep.subr.bf16.mxu0 0
        %1572 = vmatpush1.bf16.xpose.msra.mxu0 0
        %1573 = vmatprep.subr.bf16.mxu0 0
        %1574 = vmatpush1.bf16.xpose.msra.mxu0 0
        %1575 = vmatprep.subr.bf16.mxu0 0
        %1576 = vmatpush1.bf16.xpose.msra.mxu0 0
        %1577 = vmatprep.subr.bf16.mxu0 0
        %1578 = vmatpush1.bf16.xpose.msra.mxu0 0
        %1579 = vmatprep.subr.bf16.mxu0 0
        %1580 = vmatpush1.bf16.xpose.msra.mxu0 0
        %1581 = vmatprep.subr.bf16.mxu0 0
        %1582 = vmatpush1.bf16.xpose.msra.mxu0 0
        %1583 = vmatprep.subr.bf16.mxu0 0
        %1584 = vmatpush1.bf16.xpose.msra.mxu0 0
        %1585 = vmatprep.mubr.bf16.mxu0 0
        %1586 = vmatmul.mubr.bf16.gmra.mrb[0].mxu0 %v1548
        %v1587 = vpop.f32.mrb[0].mxu0
        %v1588 = vadd.f32 0.0, %v1587
        %v1589 = vpop.f32.mrb[0].mxu0
        %v1590 = vpop.f32.mrb[0].mxu0
        %v1591 = vpop.f32.mrb[0].mxu0
        %1592 = vdwg.mxu0
        %v1593 = vsel %vm820, %v1588, -inf
        %1594 = vmax.xlane.f32.xlu0 %v1593
        %v1595 = vpop.xlane.xlu0 %1594
        %v1596 = vsub.f32 %v1588, %v1595
        %v1597 = vmul.f32 %v1596, 1.442695
        %v1598 = vpow.pop %v1597
        %v1599 = vsel %vm820, %v1598, 0.0
        %1600 = vadd.xlane.f32.xlu0 %v1599
        %v1601 = vpop.xlane.xlu0 %1600
        %v1602 = vrcp.pop %v1601
        %v1603 = vmul.f32 %v1598, %v1602
        %v1604 = vpack.c.bf16 %v1603, %v1603
        %1605 = vrot.lane.b32.xlu0 %v772, 16
        %v1606 = vpop.permute.xlu0 %1605
        %v1608 = vsel %vm820, %v1604, 0
        %v1611 = vsel %vm836, %v1606, 0
        %1613 = vmatprep.subr.bf16.mxu0 0
        %1614 = vmatpush1.bf16.msra.mxu0 %v1611
        %1615 = vmatprep.subr.bf16.mxu0 0
        %1616 = vmatpush1.bf16.msra.mxu0 0
        %1617 = vmatprep.subr.bf16.mxu0 0
        %1618 = vmatpush1.bf16.msra.mxu0 0
        %1619 = vmatprep.subr.bf16.mxu0 0
        %1620 = vmatpush1.bf16.msra.mxu0 0
        %1621 = vmatprep.subr.bf16.mxu0 0
        %1622 = vmatpush1.bf16.msra.mxu0 0
        %1623 = vmatprep.subr.bf16.mxu0 0
        %1624 = vmatpush1.bf16.msra.mxu0 0
        %1625 = vmatprep.subr.bf16.mxu0 0
        %1626 = vmatpush1.bf16.msra.mxu0 0
        %1627 = vmatprep.subr.bf16.mxu0 0
        %1628 = vmatpush1.bf16.msra.mxu0 0
        %1629 = vmatprep.subr.bf16.mxu0 0
        %1630 = vmatpush1.bf16.msra.mxu0 0
        %1631 = vmatprep.subr.bf16.mxu0 0
        %1632 = vmatpush1.bf16.msra.mxu0 0
        %1633 = vmatprep.subr.bf16.mxu0 0
        %1634 = vmatpush1.bf16.msra.mxu0 0
        %1635 = vmatprep.subr.bf16.mxu0 0
        %1636 = vmatpush1.bf16.msra.mxu0 0
        %1637 = vmatprep.subr.bf16.mxu0 0
        %1638 = vmatpush1.bf16.msra.mxu0 0
        %1639 = vmatprep.subr.bf16.mxu0 0
        %1640 = vmatpush1.bf16.msra.mxu0 0
        %1641 = vmatprep.subr.bf16.mxu0 0
        %1642 = vmatpush1.bf16.msra.mxu0 0
        %1643 = vmatprep.subr.bf16.mxu0 0
        %1644 = vmatpush1.bf16.msra.mxu0 0
        %1645 = vmatprep.mubr.bf16.mxu0 0
        %1646 = vmatmul.mubr.bf16.gmra.mrb[0].mxu0 %v1608
        %v1647 = vpop.f32.mrb[0].mxu0
        %v1648 = vadd.f32 0.0, %v1647
        %v1649 = vpop.f32.mrb[0].mxu0
        %v1650 = vpop.f32.mrb[0].mxu0
        %v1651 = vpop.f32.mrb[0].mxu0
        %1652 = vdwg.mxu0
        %1654 = vrot.lane.b32.xlu0 %v988, 16
        %v1655 = vpop.permute.xlu0 %1654
        %1658 = vrot.lane.b32.xlu0 %v1098, 32
        %v1659 = vpop.permute.xlu0 %1658
        %1662 = vrot.lane.b32.xlu0 %v1208, 48
        %v1663 = vpop.permute.xlu0 %1662
        %1666 = vrot.lane.b32.xlu0 %v1318, 64
        %v1667 = vpop.permute.xlu0 %1666
        %1670 = vrot.lane.b32.xlu0 %v1428, 80
        %v1671 = vpop.permute.xlu0 %1670
        %1674 = vrot.lane.b32.xlu0 %v1538, 96
        %v1675 = vpop.permute.xlu0 %1674
        %1678 = vrot.lane.b32.xlu0 %v1648, 112
        %v1679 = vpop.permute.xlu0 %1678
        %v1681 = vsel %vm773, %v875, %v1655
        %vm1682 = vcmask 261120
        %v1683 = vsel %vm1682, %v1681, %v1659
        %vm1684 = vcmask 392192
        %v1685 = vsel %vm1684, %v1683, %v1663
        %vm1686 = vcmask 523264
        %v1687 = vsel %vm1686, %v1685, %v1667
        %vm1688 = vcmask 654336
        %v1689 = vsel %vm1688, %v1687, %v1671
        %vm1690 = vcmask 785408
        %v1691 = vsel %vm1690, %v1689, %v1675
        %vm1692 = vcmask 916480
        %v1693 = vsel %vm1692, %v1691, %v1679
        %v1694 = vpack.c.bf16 %v1693, %v1693
        %v1695 = vld [vmem:[#allocation4] sm:$0xf]
        %v1696 = vld [vmem:[#allocation4 + $0x4] sm:$0xf]
        %v1697 = vld [vmem:[#allocation4 + $0x8] sm:$0xf]
        %v1698 = vld [vmem:[#allocation4 + $0xc] sm:$0xf]
        %v1699 = vld [vmem:[#allocation4 + $0x10] sm:$0xf]
        %v1700 = vld [vmem:[#allocation4 + $0x14] sm:$0xf]
        %v1701 = vld [vmem:[#allocation4 + $0x18] sm:$0xf]
        %v1702 = vld [vmem:[#allocation4 + $0x1c] sm:$0xf]
        %v1703 = vld [vmem:[#allocation4 + $0x20] sm:$0xf]
        %v1704 = vld [vmem:[#allocation4 + $0x24] sm:$0xf]
        %v1705 = vld [vmem:[#allocation4 + $0x28] sm:$0xf]
        %v1706 = vld [vmem:[#allocation4 + $0x2c] sm:$0xf]
        %v1707 = vld [vmem:[#allocation4 + $0x30] sm:$0xf]
        %v1708 = vld [vmem:[#allocation4 + $0x34] sm:$0xf]
        %v1709 = vld [vmem:[#allocation4 + $0x38] sm:$0xf]
        %v1710 = vld [vmem:[#allocation4 + $0x3c] sm:$0xf]
        %v1711 = vld [vmem:[%s4] sm:$0x1]
        %v1713 = vlaneseq
        %v1714 = vshrl.u32 %v1713, 7
        %v1715 = vsub.s32 0, %v1714
        %v1716 = vrot.slane %v1711, %v1715
        %v1734 = vunpack.c.l.b16 %v1695
        %v1735 = vunpack.c.l.b16 %v1696
        %v1736 = vunpack.c.l.b16 %v1697
        %v1737 = vunpack.c.l.b16 %v1698
        %v1738 = vunpack.c.l.b16 %v1699
        %v1739 = vunpack.c.l.b16 %v1700
        %v1740 = vunpack.c.l.b16 %v1701
        %v1741 = vunpack.c.l.b16 %v1702
        %v1742 = vunpack.c.l.b16 %v1703
        %v1743 = vunpack.c.l.b16 %v1704
        %v1744 = vunpack.c.l.b16 %v1705
        %v1745 = vunpack.c.l.b16 %v1706
        %v1746 = vunpack.c.l.b16 %v1707
        %v1747 = vunpack.c.l.b16 %v1708
        %v1748 = vunpack.c.l.b16 %v1709
        %v1749 = vunpack.c.l.b16 %v1710
        %v1750 = vpack.c.b16 %v1735, %v1734
        %v1751 = vpack.c.b16 %v1737, %v1736
        %v1752 = vpack.c.b16 %v1739, %v1738
        %v1753 = vpack.c.b16 %v1741, %v1740
        %v1754 = vpack.c.b16 %v1743, %v1742
        %v1755 = vpack.c.b16 %v1745, %v1744
        %v1756 = vpack.c.b16 %v1747, %v1746
        %v1757 = vpack.c.b16 %v1749, %v1748
        %1766 = vmatprep.subr.bf16.mxu0 0
        %1767 = vmatpush1.bf16.msra.mxu0 %v1750
        %1768 = vmatprep.subr.bf16.mxu0 0
        %1769 = vmatpush1.bf16.msra.mxu0 %v1751
        %1770 = vmatprep.subr.bf16.mxu0 0
        %1771 = vmatpush1.bf16.msra.mxu0 %v1752
        %1772 = vmatprep.subr.bf16.mxu0 0
        %1773 = vmatpush1.bf16.msra.mxu0 %v1753
        %1774 = vmatprep.subr.bf16.mxu0 0
        %1775 = vmatpush1.bf16.msra.mxu0 %v1754
        %1776 = vmatprep.subr.bf16.mxu0 0
        %1777 = vmatpush1.bf16.msra.mxu0 %v1755
        %1778 = vmatprep.subr.bf16.mxu0 0
        %1779 = vmatpush1.bf16.msra.mxu0 %v1756
        %1780 = vmatprep.subr.bf16.mxu0 0
        %1781 = vmatpush1.bf16.msra.mxu0 %v1757
        %1782 = vmatprep.subr.bf16.mxu0 0
        %1783 = vmatpush1.bf16.msra.mxu0 0
        %1784 = vmatprep.subr.bf16.mxu0 0
        %1785 = vmatpush1.bf16.msra.mxu0 0
        %1786 = vmatprep.subr.bf16.mxu0 0
        %1787 = vmatpush1.bf16.msra.mxu0 0
        %1788 = vmatprep.subr.bf16.mxu0 0
        %1789 = vmatpush1.bf16.msra.mxu0 0
        %1790 = vmatprep.subr.bf16.mxu0 0
        %1791 = vmatpush1.bf16.msra.mxu0 0
        %1792 = vmatprep.subr.bf16.mxu0 0
        %1793 = vmatpush1.bf16.msra.mxu0 0
        %1794 = vmatprep.subr.bf16.mxu0 0
        %1795 = vmatpush1.bf16.msra.mxu0 0
        %1796 = vmatprep.subr.bf16.mxu0 0
        %1797 = vmatpush1.bf16.msra.mxu0 0
        %1798 = vmatprep.mubr.bf16.mxu0 0
        %1799 = vmatmul.mubr.bf16.gmra.mrb[0].mxu0 %v1694
        %v1800 = vpop.f32.mrb[0].mxu0
        %v1801 = vadd.f32 %v1716, %v1800
        %v1802 = vpop.f32.mrb[0].mxu0
        %v1803 = vpop.f32.mrb[0].mxu0
        %v1804 = vpop.f32.mrb[0].mxu0
        %1805 = vdwg.mxu0
        %v1806 = vadd.f32 %v510, %v1801
        %v1807 = vld [vmem:[%s5] sm:$0x1]
        %v1808 = vld [vmem:[%s6] sm:$0x1]
        %1809 = vadd.xlane.f32.xlu0 %v1806
        %v1810 = vpop.xlane.xlu0 %1809
        %v1811 = vrcp.pop 128.0
        %v1812 = vmul.f32 %v1810, %v1811
        %v1813 = vsub.f32 %v1806, %v1812
        %v1814 = vmul.f32 %v1813, %v1813
        %1815 = vadd.xlane.f32.xlu0 %v1814
        %v1816 = vpop.xlane.xlu0 %1815
        %v1817 = vmul.f32 %v1816, %v1811
        %v1818 = vadd.f32 %v1817, 1e-05
        %v1819 = vrsqrt.pop %v1818
        %v1820 = vmul.f32 %v1813, %v1819
        %v1822 = vlaneseq
        %v1823 = vshrl.u32 %v1822, 7
        %v1824 = vsub.s32 0, %v1823
        %v1825 = vrot.slane %v1807, %v1824
        %v1827 = vmul.f32 %v1820, %v1825
        %v1829 = vlaneseq
        %v1830 = vshrl.u32 %v1829, 7
        %v1831 = vsub.s32 0, %v1830
        %v1832 = vrot.slane %v1808, %v1831
        %v1834 = vadd.f32 %v1827, %v1832
        %v1835 = vpack.c.bf16 %v1834, %v1834
        %v1836 = vld [vmem:[#allocation6] sm:$0xff]
        %v1837 = vld [vmem:[#allocation6 + $0x8] sm:$0xff]
        %v1838 = vld [vmem:[#allocation6 + $0x10] sm:$0xff]
        %v1839 = vld [vmem:[#allocation6 + $0x18] sm:$0xff]
        %v1840 = vld [vmem:[#allocation6 + $0x20] sm:$0xff]
        %v1841 = vld [vmem:[#allocation6 + $0x28] sm:$0xff]
        %v1842 = vld [vmem:[#allocation6 + $0x30] sm:$0xff]
        %v1843 = vld [vmem:[#allocation6 + $0x38] sm:$0xff]
        %v1844 = vld [vmem:[#allocation6 + $0x40] sm:$0xff]
        %v1845 = vld [vmem:[#allocation6 + $0x48] sm:$0xff]
        %v1846 = vld [vmem:[#allocation6 + $0x50] sm:$0xff]
        %v1847 = vld [vmem:[#allocation6 + $0x58] sm:$0xff]
        %v1848 = vld [vmem:[#allocation6 + $0x60] sm:$0xff]
        %v1849 = vld [vmem:[#allocation6 + $0x68] sm:$0xff]
        %v1850 = vld [vmem:[#allocation6 + $0x70] sm:$0xff]
        %v1851 = vld [vmem:[#allocation6 + $0x78] sm:$0xff]
        %v1852 = vld [vmem:[#allocation6 + $0x80] sm:$0xff]
        %v1853 = vld [vmem:[#allocation6 + $0x88] sm:$0xff]
        %v1854 = vld [vmem:[#allocation6 + $0x90] sm:$0xff]
        %v1855 = vld [vmem:[#allocation6 + $0x98] sm:$0xff]
        %v1856 = vld [vmem:[#allocation6 + $0xa0] sm:$0xff]
        %v1857 = vld [vmem:[#allocation6 + $0xa8] sm:$0xff]
        %v1858 = vld [vmem:[#allocation6 + $0xb0] sm:$0xff]
        %v1859 = vld [vmem:[#allocation6 + $0xb8] sm:$0xff]
        %v1860 = vld [vmem:[#allocation6 + $0xc0] sm:$0xff]
        %v1861 = vld [vmem:[#allocation6 + $0xc8] sm:$0xff]
        %v1862 = vld [vmem:[#allocation6 + $0xd0] sm:$0xff]
        %v1863 = vld [vmem:[#allocation6 + $0xd8] sm:$0xff]
        %v1864 = vld [vmem:[#allocation6 + $0xe0] sm:$0xff]
        %v1865 = vld [vmem:[#allocation6 + $0xe8] sm:$0xff]
        %v1866 = vld [vmem:[#allocation6 + $0xf0] sm:$0xff]
        %v1867 = vld [vmem:[#allocation6 + $0xf8] sm:$0xff]
        %v1868 = vld [vmem:[#allocation6 + $0x100] sm:$0xff]
        %v1869 = vld [vmem:[#allocation6 + $0x108] sm:$0xff]
        %v1870 = vld [vmem:[#allocation6 + $0x110] sm:$0xff]
        %v1871 = vld [vmem:[#allocation6 + $0x118] sm:$0xff]
        %v1872 = vld [vmem:[#allocation6 + $0x120] sm:$0xff]
        %v1873 = vld [vmem:[#allocation6 + $0x128] sm:$0xff]
        %v1874 = vld [vmem:[#allocation6 + $0x130] sm:$0xff]
        %v1875 = vld [vmem:[#allocation6 + $0x138] sm:$0xff]
        %v1876 = vld [vmem:[#allocation6 + $0x140] sm:$0xff]
        %v1877 = vld [vmem:[#allocation6 + $0x148] sm:$0xff]
        %v1878 = vld [vmem:[#allocation6 + $0x150] sm:$0xff]
        %v1879 = vld [vmem:[#allocation6 + $0x158] sm:$0xff]
        %v1880 = vld [vmem:[#allocation6 + $0x160] sm:$0xff]
        %v1881 = vld [vmem:[#allocation6 + $0x168] sm:$0xff]
        %v1882 = vld [vmem:[#allocation6 + $0x170] sm:$0xff]
        %v1883 = vld [vmem:[#allocation6 + $0x178] sm:$0xff]
        %v1884 = vld [vmem:[#allocation6 + $0x180] sm:$0xff]
        %v1885 = vld [vmem:[#allocation6 + $0x188] sm:$0xff]
        %v1886 = vld [vmem:[#allocation6 + $0x190] sm:$0xff]
        %v1887 = vld [vmem:[#allocation6 + $0x198] sm:$0xff]
        %v1888 = vld [vmem:[#allocation6 + $0x1a0] sm:$0xff]
        %v1889 = vld [vmem:[#allocation6 + $0x1a8] sm:$0xff]
        %v1890 = vld [vmem:[#allocation6 + $0x1b0] sm:$0xff]
        %v1891 = vld [vmem:[#allocation6 + $0x1b8] sm:$0xff]
        %v1892 = vld [vmem:[#allocation6 + $0x1c0] sm:$0xff]
        %v1893 = vld [vmem:[#allocation6 + $0x1c8] sm:$0xff]
        %v1894 = vld [vmem:[#allocation6 + $0x1d0] sm:$0xff]
        %v1895 = vld [vmem:[#allocation6 + $0x1d8] sm:$0xff]
        %v1896 = vld [vmem:[#allocation6 + $0x1e0] sm:$0xff]
        %v1897 = vld [vmem:[#allocation6 + $0x1e8] sm:$0xff]
        %v1898 = vld [vmem:[#allocation6 + $0x1f0] sm:$0xff]
        %v1899 = vld [vmem:[#allocation6 + $0x1f8] sm:$0xff]
        %v1900 = vld [vmem:[#allocation6 + $0x200] sm:$0xff]
        %v1901 = vld [vmem:[#allocation6 + $0x208] sm:$0xff]
        %v1902 = vld [vmem:[#allocation6 + $0x210] sm:$0xff]
        %v1903 = vld [vmem:[#allocation6 + $0x218] sm:$0xff]
        %v1904 = vld [vmem:[#allocation6 + $0x220] sm:$0xff]
        %v1905 = vld [vmem:[#allocation6 + $0x228] sm:$0xff]
        %v1906 = vld [vmem:[#allocation6 + $0x230] sm:$0xff]
        %v1907 = vld [vmem:[#allocation6 + $0x238] sm:$0xff]
        %v1908 = vld [vmem:[#allocation6 + $0x240] sm:$0xff]
        %v1909 = vld [vmem:[#allocation6 + $0x248] sm:$0xff]
        %v1910 = vld [vmem:[#allocation6 + $0x250] sm:$0xff]
        %v1911 = vld [vmem:[#allocation6 + $0x258] sm:$0xff]
        %v1912 = vld [vmem:[#allocation6 + $0x260] sm:$0xff]
        %v1913 = vld [vmem:[#allocation6 + $0x268] sm:$0xff]
        %v1914 = vld [vmem:[#allocation6 + $0x270] sm:$0xff]
        %v1915 = vld [vmem:[#allocation6 + $0x278] sm:$0xff]
        %v1916 = vld [vmem:[#allocation6 + $0x280] sm:$0xff]
        %v1917 = vld [vmem:[#allocation6 + $0x288] sm:$0xff]
        %v1918 = vld [vmem:[#allocation6 + $0x290] sm:$0xff]
        %v1919 = vld [vmem:[#allocation6 + $0x298] sm:$0xff]
        %v1920 = vld [vmem:[#allocation6 + $0x2a0] sm:$0xff]
        %v1921 = vld [vmem:[#allocation6 + $0x2a8] sm:$0xff]
        %v1922 = vld [vmem:[#allocation6 + $0x2b0] sm:$0xff]
        %v1923 = vld [vmem:[#allocation6 + $0x2b8] sm:$0xff]
        %v1924 = vld [vmem:[#allocation6 + $0x2c0] sm:$0xff]
        %v1925 = vld [vmem:[#allocation6 + $0x2c8] sm:$0xff]
        %v1926 = vld [vmem:[#allocation6 + $0x2d0] sm:$0xff]
        %v1927 = vld [vmem:[#allocation6 + $0x2d8] sm:$0xff]
        %v1928 = vld [vmem:[#allocation6 + $0x2e0] sm:$0xff]
        %v1929 = vld [vmem:[#allocation6 + $0x2e8] sm:$0xff]
        %v1930 = vld [vmem:[#allocation6 + $0x2f0] sm:$0xff]
        %v1931 = vld [vmem:[#allocation6 + $0x2f8] sm:$0xff]
        %v1932 = vld [vmem:[#allocation6 + $0x300] sm:$0xff]
        %v1933 = vld [vmem:[#allocation6 + $0x308] sm:$0xff]
        %v1934 = vld [vmem:[#allocation6 + $0x310] sm:$0xff]
        %v1935 = vld [vmem:[#allocation6 + $0x318] sm:$0xff]
        %v1936 = vld [vmem:[#allocation6 + $0x320] sm:$0xff]
        %v1937 = vld [vmem:[#allocation6 + $0x328] sm:$0xff]
        %v1938 = vld [vmem:[#allocation6 + $0x330] sm:$0xff]
        %v1939 = vld [vmem:[#allocation6 + $0x338] sm:$0xff]
        %v1940 = vld [vmem:[#allocation6 + $0x340] sm:$0xff]
        %v1941 = vld [vmem:[#allocation6 + $0x348] sm:$0xff]
        %v1942 = vld [vmem:[#allocation6 + $0x350] sm:$0xff]
        %v1943 = vld [vmem:[#allocation6 + $0x358] sm:$0xff]
        %v1944 = vld [vmem:[#allocation6 + $0x360] sm:$0xff]
        %v1945 = vld [vmem:[#allocation6 + $0x368] sm:$0xff]
        %v1946 = vld [vmem:[#allocation6 + $0x370] sm:$0xff]
        %v1947 = vld [vmem:[#allocation6 + $0x378] sm:$0xff]
        %v1948 = vld [vmem:[#allocation6 + $0x380] sm:$0xff]
        %v1949 = vld [vmem:[#allocation6 + $0x388] sm:$0xff]
        %v1950 = vld [vmem:[#allocation6 + $0x390] sm:$0xff]
        %v1951 = vld [vmem:[#allocation6 + $0x398] sm:$0xff]
        %v1952 = vld [vmem:[#allocation6 + $0x3a0] sm:$0xff]
        %v1953 = vld [vmem:[#allocation6 + $0x3a8] sm:$0xff]
        %v1954 = vld [vmem:[#allocation6 + $0x3b0] sm:$0xff]
        %v1955 = vld [vmem:[#allocation6 + $0x3b8] sm:$0xff]
        %v1956 = vld [vmem:[#allocation6 + $0x3c0] sm:$0xff]
        %v1957 = vld [vmem:[#allocation6 + $0x3c8] sm:$0xff]
        %v1958 = vld [vmem:[#allocation6 + $0x3d0] sm:$0xff]
        %v1959 = vld [vmem:[#allocation6 + $0x3d8] sm:$0xff]
        %v1960 = vld [vmem:[#allocation6 + $0x3e0] sm:$0xff]
        %v1961 = vld [vmem:[#allocation6 + $0x3e8] sm:$0xff]
        %v1962 = vld [vmem:[#allocation6 + $0x3f0] sm:$0xff]
        %v1963 = vld [vmem:[#allocation6 + $0x3f8] sm:$0xff]
        %v1964 = vld [vmem:[%s8] sm:$0xff]
        %v1965 = vld [vmem:[%s8 + $0x8] sm:$0xff]
        %v1968 = vlaneseq
        %v1969 = vshrl.u32 %v1968, 7
        %v1970 = vsub.s32 0, %v1969
        %v1971 = vrot.slane %v1964, %v1970
        %v1972 = vlaneseq
        %v1973 = vshrl.u32 %v1972, 7
        %v1974 = vsub.s32 1, %v1973
        %v1975 = vrot.slane %v1964, %v1974
        %v1976 = vlaneseq
        %v1977 = vshrl.u32 %v1976, 7
        %v1978 = vsub.s32 2, %v1977
        %v1979 = vrot.slane %v1964, %v1978
        %v1980 = vlaneseq
        %v1981 = vshrl.u32 %v1980, 7
        %v1982 = vsub.s32 3, %v1981
        %v1983 = vrot.slane %v1964, %v1982
        %v1984 = vlaneseq
        %v1985 = vshrl.u32 %v1984, 7
        %v1986 = vsub.s32 4, %v1985
        %v1987 = vrot.slane %v1964, %v1986
        %v1988 = vlaneseq
        %v1989 = vshrl.u32 %v1988, 7
        %v1990 = vsub.s32 5, %v1989
        %v1991 = vrot.slane %v1964, %v1990
        %v1992 = vlaneseq
        %v1993 = vshrl.u32 %v1992, 7
        %v1994 = vsub.s32 6, %v1993
        %v1995 = vrot.slane %v1964, %v1994
        %v1996 = vlaneseq
        %v1997 = vshrl.u32 %v1996, 7
        %v1998 = vsub.s32 7, %v1997
        %v1999 = vrot.slane %v1964, %v1998
        %v2000 = vlaneseq
        %v2001 = vshrl.u32 %v2000, 7
        %v2002 = vsub.s32 0, %v2001
        %v2003 = vrot.slane %v1965, %v2002
        %v2004 = vlaneseq
        %v2005 = vshrl.u32 %v2004, 7
        %v2006 = vsub.s32 1, %v2005
        %v2007 = vrot.slane %v1965, %v2006
        %v2008 = vlaneseq
        %v2009 = vshrl.u32 %v2008, 7
        %v2010 = vsub.s32 2, %v2009
        %v2011 = vrot.slane %v1965, %v2010
        %v2012 = vlaneseq
        %v2013 = vshrl.u32 %v2012, 7
        %v2014 = vsub.s32 3, %v2013
        %v2015 = vrot.slane %v1965, %v2014
        %v2016 = vlaneseq
        %v2017 = vshrl.u32 %v2016, 7
        %v2018 = vsub.s32 4, %v2017
        %v2019 = vrot.slane %v1965, %v2018
        %v2020 = vlaneseq
        %v2021 = vshrl.u32 %v2020, 7
        %v2022 = vsub.s32 5, %v2021
        %v2023 = vrot.slane %v1965, %v2022
        %v2024 = vlaneseq
        %v2025 = vshrl.u32 %v2024, 7
        %v2026 = vsub.s32 6, %v2025
        %v2027 = vrot.slane %v1965, %v2026
        %v2028 = vlaneseq
        %v2029 = vshrl.u32 %v2028, 7
        %v2030 = vsub.s32 7, %v2029
        %v2031 = vrot.slane %v1965, %v2030
        %v2176 = vunpack.c.l.b16 %v1836
        %v2177 = vunpack.c.h.b16 %v1836
        %v2178 = vunpack.c.l.b16 %v1837
        %v2179 = vunpack.c.h.b16 %v1837
        %v2180 = vunpack.c.l.b16 %v1838
        %v2181 = vunpack.c.h.b16 %v1838
        %v2182 = vunpack.c.l.b16 %v1839
        %v2183 = vunpack.c.h.b16 %v1839
        %v2184 = vunpack.c.l.b16 %v1840
        %v2185 = vunpack.c.h.b16 %v1840
        %v2186 = vunpack.c.l.b16 %v1841
        %v2187 = vunpack.c.h.b16 %v1841
        %v2188 = vunpack.c.l.b16 %v1842
        %v2189 = vunpack.c.h.b16 %v1842
        %v2190 = vunpack.c.l.b16 %v1843
        %v2191 = vunpack.c.h.b16 %v1843
        %v2192 = vunpack.c.l.b16 %v1844
        %v2193 = vunpack.c.h.b16 %v1844
        %v2194 = vunpack.c.l.b16 %v1845
        %v2195 = vunpack.c.h.b16 %v1845
        %v2196 = vunpack.c.l.b16 %v1846
        %v2197 = vunpack.c.h.b16 %v1846
        %v2198 = vunpack.c.l.b16 %v1847
        %v2199 = vunpack.c.h.b16 %v1847
        %v2200 = vunpack.c.l.b16 %v1848
        %v2201 = vunpack.c.h.b16 %v1848
        %v2202 = vunpack.c.l.b16 %v1849
        %v2203 = vunpack.c.h.b16 %v1849
        %v2204 = vunpack.c.l.b16 %v1850
        %v2205 = vunpack.c.h.b16 %v1850
        %v2206 = vunpack.c.l.b16 %v1851
        %v2207 = vunpack.c.h.b16 %v1851
        %v2208 = vunpack.c.l.b16 %v1852
        %v2209 = vunpack.c.h.b16 %v1852
        %v2210 = vunpack.c.l.b16 %v1853
        %v2211 = vunpack.c.h.b16 %v1853
        %v2212 = vunpack.c.l.b16 %v1854
        %v2213 = vunpack.c.h.b16 %v1854
        %v2214 = vunpack.c.l.b16 %v1855
        %v2215 = vunpack.c.h.b16 %v1855
        %v2216 = vunpack.c.l.b16 %v1856
        %v2217 = vunpack.c.h.b16 %v1856
        %v2218 = vunpack.c.l.b16 %v1857
        %v2219 = vunpack.c.h.b16 %v1857
        %v2220 = vunpack.c.l.b16 %v1858
        %v2221 = vunpack.c.h.b16 %v1858
        %v2222 = vunpack.c.l.b16 %v1859
        %v2223 = vunpack.c.h.b16 %v1859
        %v2224 = vunpack.c.l.b16 %v1860
        %v2225 = vunpack.c.h.b16 %v1860
        %v2226 = vunpack.c.l.b16 %v1861
        %v2227 = vunpack.c.h.b16 %v1861
        %v2228 = vunpack.c.l.b16 %v1862
        %v2229 = vunpack.c.h.b16 %v1862
        %v2230 = vunpack.c.l.b16 %v1863
        %v2231 = vunpack.c.h.b16 %v1863
        %v2232 = vunpack.c.l.b16 %v1864
        %v2233 = vunpack.c.h.b16 %v1864
        %v2234 = vunpack.c.l.b16 %v1865
        %v2235 = vunpack.c.h.b16 %v1865
        %v2236 = vunpack.c.l.b16 %v1866
        %v2237 = vunpack.c.h.b16 %v1866
        %v2238 = vunpack.c.l.b16 %v1867
        %v2239 = vunpack.c.h.b16 %v1867
        %v2240 = vunpack.c.l.b16 %v1868
        %v2241 = vunpack.c.h.b16 %v1868
        %v2242 = vunpack.c.l.b16 %v1869
        %v2243 = vunpack.c.h.b16 %v1869
        %v2244 = vunpack.c.l.b16 %v1870
        %v2245 = vunpack.c.h.b16 %v1870
        %v2246 = vunpack.c.l.b16 %v1871
        %v2247 = vunpack.c.h.b16 %v1871
        %v2248 = vunpack.c.l.b16 %v1872
        %v2249 = vunpack.c.h.b16 %v1872
        %v2250 = vunpack.c.l.b16 %v1873
        %v2251 = vunpack.c.h.b16 %v1873
        %v2252 = vunpack.c.l.b16 %v1874
        %v2253 = vunpack.c.h.b16 %v1874
        %v2254 = vunpack.c.l.b16 %v1875
        %v2255 = vunpack.c.h.b16 %v1875
        %v2256 = vunpack.c.l.b16 %v1876
        %v2257 = vunpack.c.h.b16 %v1876
        %v2258 = vunpack.c.l.b16 %v1877
        %v2259 = vunpack.c.h.b16 %v1877
        %v2260 = vunpack.c.l.b16 %v1878
        %v2261 = vunpack.c.h.b16 %v1878
        %v2262 = vunpack.c.l.b16 %v1879
        %v2263 = vunpack.c.h.b16 %v1879
        %v2264 = vunpack.c.l.b16 %v1880
        %v2265 = vunpack.c.h.b16 %v1880
        %v2266 = vunpack.c.l.b16 %v1881
        %v2267 = vunpack.c.h.b16 %v1881
        %v2268 = vunpack.c.l.b16 %v1882
        %v2269 = vunpack.c.h.b16 %v1882
        %v2270 = vunpack.c.l.b16 %v1883
        %v2271 = vunpack.c.h.b16 %v1883
        %v2272 = vunpack.c.l.b16 %v1884
        %v2273 = vunpack.c.h.b16 %v1884
        %v2274 = vunpack.c.l.b16 %v1885
        %v2275 = vunpack.c.h.b16 %v1885
        %v2276 = vunpack.c.l.b16 %v1886
        %v2277 = vunpack.c.h.b16 %v1886
        %v2278 = vunpack.c.l.b16 %v1887
        %v2279 = vunpack.c.h.b16 %v1887
        %v2280 = vunpack.c.l.b16 %v1888
        %v2281 = vunpack.c.h.b16 %v1888
        %v2282 = vunpack.c.l.b16 %v1889
        %v2283 = vunpack.c.h.b16 %v1889
        %v2284 = vunpack.c.l.b16 %v1890
        %v2285 = vunpack.c.h.b16 %v1890
        %v2286 = vunpack.c.l.b16 %v1891
        %v2287 = vunpack.c.h.b16 %v1891
        %v2288 = vunpack.c.l.b16 %v1892
        %v2289 = vunpack.c.h.b16 %v1892
        %v2290 = vunpack.c.l.b16 %v1893
        %v2291 = vunpack.c.h.b16 %v1893
        %v2292 = vunpack.c.l.b16 %v1894
        %v2293 = vunpack.c.h.b16 %v1894
        %v2294 = vunpack.c.l.b16 %v1895
        %v2295 = vunpack.c.h.b16 %v1895
        %v2296 = vunpack.c.l.b16 %v1896
        %v2297 = vunpack.c.h.b16 %v1896
        %v2298 = vunpack.c.l.b16 %v1897
        %v2299 = vunpack.c.h.b16 %v1897
        %v2300 = vunpack.c.l.b16 %v1898
        %v2301 = vunpack.c.h.b16 %v1898
        %v2302 = vunpack.c.l.b16 %v1899
        %v2303 = vunpack.c.h.b16 %v1899
        %v2304 = vunpack.c.l.b16 %v1900
        %v2305 = vunpack.c.h.b16 %v1900
        %v2306 = vunpack.c.l.b16 %v1901
        %v2307 = vunpack.c.h.b16 %v1901
        %v2308 = vunpack.c.l.b16 %v1902
        %v2309 = vunpack.c.h.b16 %v1902
        %v2310 = vunpack.c.l.b16 %v1903
        %v2311 = vunpack.c.h.b16 %v1903
        %v2312 = vunpack.c.l.b16 %v1904
        %v2313 = vunpack.c.h.b16 %v1904
        %v2314 = vunpack.c.l.b16 %v1905
        %v2315 = vunpack.c.h.b16 %v1905
        %v2316 = vunpack.c.l.b16 %v1906
        %v2317 = vunpack.c.h.b16 %v1906
        %v2318 = vunpack.c.l.b16 %v1907
        %v2319 = vunpack.c.h.b16 %v1907
        %v2320 = vunpack.c.l.b16 %v1908
        %v2321 = vunpack.c.h.b16 %v1908
        %v2322 = vunpack.c.l.b16 %v1909
        %v2323 = vunpack.c.h.b16 %v1909
        %v2324 = vunpack.c.l.b16 %v1910
        %v2325 = vunpack.c.h.b16 %v1910
        %v2326 = vunpack.c.l.b16 %v1911
        %v2327 = vunpack.c.h.b16 %v1911
        %v2328 = vunpack.c.l.b16 %v1912
        %v2329 = vunpack.c.h.b16 %v1912
        %v2330 = vunpack.c.l.b16 %v1913
        %v2331 = vunpack.c.h.b16 %v1913
        %v2332 = vunpack.c.l.b16 %v1914
        %v2333 = vunpack.c.h.b16 %v1914
        %v2334 = vunpack.c.l.b16 %v1915
        %v2335 = vunpack.c.h.b16 %v1915
        %v2336 = vunpack.c.l.b16 %v1916
        %v2337 = vunpack.c.h.b16 %v1916
        %v2338 = vunpack.c.l.b16 %v1917
        %v2339 = vunpack.c.h.b16 %v1917
        %v2340 = vunpack.c.l.b16 %v1918
        %v2341 = vunpack.c.h.b16 %v1918
        %v2342 = vunpack.c.l.b16 %v1919
        %v2343 = vunpack.c.h.b16 %v1919
        %v2344 = vunpack.c.l.b16 %v1920
        %v2345 = vunpack.c.h.b16 %v1920
        %v2346 = vunpack.c.l.b16 %v1921
        %v2347 = vunpack.c.h.b16 %v1921
        %v2348 = vunpack.c.l.b16 %v1922
        %v2349 = vunpack.c.h.b16 %v1922
        %v2350 = vunpack.c.l.b16 %v1923
        %v2351 = vunpack.c.h.b16 %v1923
        %v2352 = vunpack.c.l.b16 %v1924
        %v2353 = vunpack.c.h.b16 %v1924
        %v2354 = vunpack.c.l.b16 %v1925
        %v2355 = vunpack.c.h.b16 %v1925
        %v2356 = vunpack.c.l.b16 %v1926
        %v2357 = vunpack.c.h.b16 %v1926
        %v2358 = vunpack.c.l.b16 %v1927
        %v2359 = vunpack.c.h.b16 %v1927
        %v2360 = vunpack.c.l.b16 %v1928
        %v2361 = vunpack.c.h.b16 %v1928
        %v2362 = vunpack.c.l.b16 %v1929
        %v2363 = vunpack.c.h.b16 %v1929
        %v2364 = vunpack.c.l.b16 %v1930
        %v2365 = vunpack.c.h.b16 %v1930
        %v2366 = vunpack.c.l.b16 %v1931
        %v2367 = vunpack.c.h.b16 %v1931
        %v2368 = vunpack.c.l.b16 %v1932
        %v2369 = vunpack.c.h.b16 %v1932
        %v2370 = vunpack.c.l.b16 %v1933
        %v2371 = vunpack.c.h.b16 %v1933
        %v2372 = vunpack.c.l.b16 %v1934
        %v2373 = vunpack.c.h.b16 %v1934
        %v2374 = vunpack.c.l.b16 %v1935
        %v2375 = vunpack.c.h.b16 %v1935
        %v2376 = vunpack.c.l.b16 %v1936
        %v2377 = vunpack.c.h.b16 %v1936
        %v2378 = vunpack.c.l.b16 %v1937
        %v2379 = vunpack.c.h.b16 %v1937
        %v2380 = vunpack.c.l.b16 %v1938
        %v2381 = vunpack.c.h.b16 %v1938
        %v2382 = vunpack.c.l.b16 %v1939
        %v2383 = vunpack.c.h.b16 %v1939
        %v2384 = vunpack.c.l.b16 %v1940
        %v2385 = vunpack.c.h.b16 %v1940
        %v2386 = vunpack.c.l.b16 %v1941
        %v2387 = vunpack.c.h.b16 %v1941
        %v2388 = vunpack.c.l.b16 %v1942
        %v2389 = vunpack.c.h.b16 %v1942
        %v2390 = vunpack.c.l.b16 %v1943
        %v2391 = vunpack.c.h.b16 %v1943
        %v2392 = vunpack.c.l.b16 %v1944
        %v2393 = vunpack.c.h.b16 %v1944
        %v2394 = vunpack.c.l.b16 %v1945
        %v2395 = vunpack.c.h.b16 %v1945
        %v2396 = vunpack.c.l.b16 %v1946
        %v2397 = vunpack.c.h.b16 %v1946
        %v2398 = vunpack.c.l.b16 %v1947
        %v2399 = vunpack.c.h.b16 %v1947
        %v2400 = vunpack.c.l.b16 %v1948
        %v2401 = vunpack.c.h.b16 %v1948
        %v2402 = vunpack.c.l.b16 %v1949
        %v2403 = vunpack.c.h.b16 %v1949
        %v2404 = vunpack.c.l.b16 %v1950
        %v2405 = vunpack.c.h.b16 %v1950
        %v2406 = vunpack.c.l.b16 %v1951
        %v2407 = vunpack.c.h.b16 %v1951
        %v2408 = vunpack.c.l.b16 %v1952
        %v2409 = vunpack.c.h.b16 %v1952
        %v2410 = vunpack.c.l.b16 %v1953
        %v2411 = vunpack.c.h.b16 %v1953
        %v2412 = vunpack.c.l.b16 %v1954
        %v2413 = vunpack.c.h.b16 %v1954
        %v2414 = vunpack.c.l.b16 %v1955
        %v2415 = vunpack.c.h.b16 %v1955
        %v2416 = vunpack.c.l.b16 %v1956
        %v2417 = vunpack.c.h.b16 %v1956
        %v2418 = vunpack.c.l.b16 %v1957
        %v2419 = vunpack.c.h.b16 %v1957
        %v2420 = vunpack.c.l.b16 %v1958
        %v2421 = vunpack.c.h.b16 %v1958
        %v2422 = vunpack.c.l.b16 %v1959
        %v2423 = vunpack.c.h.b16 %v1959
        %v2424 = vunpack.c.l.b16 %v1960
        %v2425 = vunpack.c.h.b16 %v1960
        %v2426 = vunpack.c.l.b16 %v1961
        %v2427 = vunpack.c.h.b16 %v1961
        %v2428 = vunpack.c.l.b16 %v1962
        %v2429 = vunpack.c.h.b16 %v1962
        %v2430 = vunpack.c.l.b16 %v1963
        %v2431 = vunpack.c.h.b16 %v1963
        %v2432 = vpack.c.b16 %v2192, %v2176
        %v2433 = vpack.c.b16 %v2193, %v2177
        %v2434 = vpack.c.b16 %v2194, %v2178
        %v2435 = vpack.c.b16 %v2195, %v2179
        %v2436 = vpack.c.b16 %v2196, %v2180
        %v2437 = vpack.c.b16 %v2197, %v2181
        %v2438 = vpack.c.b16 %v2198, %v2182
        %v2439 = vpack.c.b16 %v2199, %v2183
        %v2440 = vpack.c.b16 %v2200, %v2184
        %v2441 = vpack.c.b16 %v2201, %v2185
        %v2442 = vpack.c.b16 %v2202, %v2186
        %v2443 = vpack.c.b16 %v2203, %v2187
        %v2444 = vpack.c.b16 %v2204, %v2188
        %v2445 = vpack.c.b16 %v2205, %v2189
        %v2446 = vpack.c.b16 %v2206, %v2190
        %v2447 = vpack.c.b16 %v2207, %v2191
        %v2448 = vpack.c.b16 %v2224, %v2208
        %v2449 = vpack.c.b16 %v2225, %v2209
        %v2450 = vpack.c.b16 %v2226, %v2210
        %v2451 = vpack.c.b16 %v2227, %v2211
        %v2452 = vpack.c.b16 %v2228, %v2212
        %v2453 = vpack.c.b16 %v2229, %v2213
        %v2454 = vpack.c.b16 %v2230, %v2214
        %v2455 = vpack.c.b16 %v2231, %v2215
        %v2456 = vpack.c.b16 %v2232, %v2216
        %v2457 = vpack.c.b16 %v2233, %v2217
        %v2458 = vpack.c.b16 %v2234, %v2218
        %v2459 = vpack.c.b16 %v2235, %v2219
        %v2460 = vpack.c.b16 %v2236, %v2220
        %v2461 = vpack.c.b16 %v2237, %v2221
        %v2462 = vpack.c.b16 %v2238, %v2222
        %v2463 = vpack.c.b16 %v2239, %v2223
        %v2464 = vpack.c.b16 %v2256, %v2240
        %v2465 = vpack.c.b16 %v2257, %v2241
        %v2466 = vpack.c.b16 %v2258, %v2242
        %v2467 = vpack.c.b16 %v2259, %v2243
        %v2468 = vpack.c.b16 %v2260, %v2244
        %v2469 = vpack.c.b16 %v2261, %v2245
        %v2470 = vpack.c.b16 %v2262, %v2246
        %v2471 = vpack.c.b16 %v2263, %v2247
        %v2472 = vpack.c.b16 %v2264, %v2248
        %v2473 = vpack.c.b16 %v2265, %v2249
        %v2474 = vpack.c.b16 %v2266, %v2250
        %v2475 = vpack.c.b16 %v2267, %v2251
        %v2476 = vpack.c.b16 %v2268, %v2252
        %v2477 = vpack.c.b16 %v2269, %v2253
        %v2478 = vpack.c.b16 %v2270, %v2254
        %v2479 = vpack.c.b16 %v2271, %v2255
        %v2480 = vpack.c.b16 %v2288, %v2272
        %v2481 = vpack.c.b16 %v2289, %v2273
        %v2482 = vpack.c.b16 %v2290, %v2274
        %v2483 = vpack.c.b16 %v2291, %v2275
        %v2484 = vpack.c.b16 %v2292, %v2276
        %v2485 = vpack.c.b16 %v2293, %v2277
        %v2486 = vpack.c.b16 %v2294, %v2278
        %v2487 = vpack.c.b16 %v2295, %v2279
        %v2488 = vpack.c.b16 %v2296, %v2280
        %v2489 = vpack.c.b16 %v2297, %v2281
        %v2490 = vpack.c.b16 %v2298, %v2282
        %v2491 = vpack.c.b16 %v2299, %v2283
        %v2492 = vpack.c.b16 %v2300, %v2284
        %v2493 = vpack.c.b16 %v2301, %v2285
        %v2494 = vpack.c.b16 %v2302, %v2286
        %v2495 = vpack.c.b16 %v2303, %v2287
        %v2496 = vpack.c.b16 %v2320, %v2304
        %v2497 = vpack.c.b16 %v2321, %v2305
        %v2498 = vpack.c.b16 %v2322, %v2306
        %v2499 = vpack.c.b16 %v2323, %v2307
        %v2500 = vpack.c.b16 %v2324, %v2308
        %v2501 = vpack.c.b16 %v2325, %v2309
        %v2502 = vpack.c.b16 %v2326, %v2310
        %v2503 = vpack.c.b16 %v2327, %v2311
        %v2504 = vpack.c.b16 %v2328, %v2312
        %v2505 = vpack.c.b16 %v2329, %v2313
        %v2506 = vpack.c.b16 %v2330, %v2314
        %v2507 = vpack.c.b16 %v2331, %v2315
        %v2508 = vpack.c.b16 %v2332, %v2316
        %v2509 = vpack.c.b16 %v2333, %v2317
        %v2510 = vpack.c.b16 %v2334, %v2318
        %v2511 = vpack.c.b16 %v2335, %v2319
        %v2512 = vpack.c.b16 %v2352, %v2336
        %v2513 = vpack.c.b16 %v2353, %v2337
        %v2514 = vpack.c.b16 %v2354, %v2338
        %v2515 = vpack.c.b16 %v2355, %v2339
        %v2516 = vpack.c.b16 %v2356, %v2340
        %v2517 = vpack.c.b16 %v2357, %v2341
        %v2518 = vpack.c.b16 %v2358, %v2342
        %v2519 = vpack.c.b16 %v2359, %v2343
        %v2520 = vpack.c.b16 %v2360, %v2344
        %v2521 = vpack.c.b16 %v2361, %v2345
        %v2522 = vpack.c.b16 %v2362, %v2346
        %v2523 = vpack.c.b16 %v2363, %v2347
        %v2524 = vpack.c.b16 %v2364, %v2348
        %v2525 = vpack.c.b16 %v2365, %v2349
        %v2526 = vpack.c.b16 %v2366, %v2350
        %v2527 = vpack.c.b16 %v2367, %v2351
        %v2528 = vpack.c.b16 %v2384, %v2368
        %v2529 = vpack.c.b16 %v2385, %v2369
        %v2530 = vpack.c.b16 %v2386, %v2370
        %v2531 = vpack.c.b16 %v2387, %v2371
        %v2532 = vpack.c.b16 %v2388, %v2372
        %v2533 = vpack.c.b16 %v2389, %v2373
        %v2534 = vpack.c.b16 %v2390, %v2374
        %v2535 = vpack.c.b16 %v2391, %v2375
        %v2536 = vpack.c.b16 %v2392, %v2376
        %v2537 = vpack.c.b16 %v2393, %v2377
        %v2538 = vpack.c.b16 %v2394, %v2378
        %v2539 = vpack.c.b16 %v2395, %v2379
        %v2540 = vpack.c.b16 %v2396, %v2380
        %v2541 = vpack.c.b16 %v2397, %v2381
        %v2542 = vpack.c.b16 %v2398, %v2382
        %v2543 = vpack.c.b16 %v2399, %v2383
        %v2544 = vpack.c.b16 %v2416, %v2400
        %v2545 = vpack.c.b16 %v2417, %v2401
        %v2546 = vpack.c.b16 %v2418, %v2402
        %v2547 = vpack.c.b16 %v2419, %v2403
        %v2548 = vpack.c.b16 %v2420, %v2404
        %v2549 = vpack.c.b16 %v2421, %v2405
        %v2550 = vpack.c.b16 %v2422, %v2406
        %v2551 = vpack.c.b16 %v2423, %v2407
        %v2552 = vpack.c.b16 %v2424, %v2408
        %v2553 = vpack.c.b16 %v2425, %v2409
        %v2554 = vpack.c.b16 %v2426, %v2410
        %v2555 = vpack.c.b16 %v2427, %v2411
        %v2556 = vpack.c.b16 %v2428, %v2412
        %v2557 = vpack.c.b16 %v2429, %v2413
        %v2558 = vpack.c.b16 %v2430, %v2414
        %v2559 = vpack.c.b16 %v2431, %v2415
        %2688 = vmatprep.subr.bf16.mxu0 %v2433
        %2689 = vmatpush1.bf16.msra.mxu0 %v2432
        %2690 = vmatprep.subr.bf16.mxu0 %v2449
        %2691 = vmatpush1.bf16.msra.mxu0 %v2448
        %2692 = vmatprep.subr.bf16.mxu0 %v2465
        %2693 = vmatpush1.bf16.msra.mxu0 %v2464
        %2694 = vmatprep.subr.bf16.mxu0 %v2481
        %2695 = vmatpush1.bf16.msra.mxu0 %v2480
        %2696 = vmatprep.subr.bf16.mxu0 %v2497
        %2697 = vmatpush1.bf16.msra.mxu0 %v2496
        %2698 = vmatprep.subr.bf16.mxu0 %v2513
        %2699 = vmatpush1.bf16.msra.mxu0 %v2512
        %2700 = vmatprep.subr.bf16.mxu0 %v2529
        %2701 = vmatpush1.bf16.msra.mxu0 %v2528
        %2702 = vmatprep.subr.bf16.mxu0 %v2545
        %2703 = vmatpush1.bf16.msra.mxu0 %v2544
        %2704 = vmatprep.subr.bf16.mxu0 0
        %2705 = vmatpush1.bf16.msra.mxu0 0
        %2706 = vmatprep.subr.bf16.mxu0 0
        %2707 = vmatpush1.bf16.msra.mxu0 0
        %2708 = vmatprep.subr.bf16.mxu0 0
        %2709 = vmatpush1.bf16.msra.mxu0 0
        %2710 = vmatprep.subr.bf16.mxu0 0
        %2711 = vmatpush1.bf16.msra.mxu0 0
        %2712 = vmatprep.subr.bf16.mxu0 0
        %2713 = vmatpush1.bf16.msra.mxu0 0
        %2714 = vmatprep.subr.bf16.mxu0 0
        %2715 = vmatpush1.bf16.msra.mxu0 0
        %2716 = vmatprep.subr.bf16.mxu0 0
        %2717 = vmatpush1.bf16.msra.mxu0 0
        %2718 = vmatprep.subr.bf16.mxu0 0
        %2719 = vmatpush1.bf16.msra.mxu0 0
        %2720 = vmatprep.mubr.bf16.mxu0 0
        %2721 = vmatmul.mubr.bf16.gmra.mrb[0].mxu0 %v1835
        %v2722 = vpop.f32.mrb[0].mxu0
        %v2723 = vadd.f32 %v1971, %v2722
        %v2724 = vpop.f32.mrb[0].mxu0
        %v2725 = vadd.f32 %v1975, %v2724
        %v2726 = vpop.f32.mrb[0].mxu0
        %v2727 = vpop.f32.mrb[0].mxu0
        %2728 = vdwg.mxu0
        %2729 = vmatprep.subr.bf16.mxu0 %v2435
        %2730 = vmatpush1.bf16.msra.mxu0 %v2434
        %2731 = vmatprep.subr.bf16.mxu0 %v2451
        %2732 = vmatpush1.bf16.msra.mxu0 %v2450
        %2733 = vmatprep.subr.bf16.mxu0 %v2467
        %2734 = vmatpush1.bf16.msra.mxu0 %v2466
        %2735 = vmatprep.subr.bf16.mxu0 %v2483
        %2736 = vmatpush1.bf16.msra.mxu0 %v2482
        %2737 = vmatprep.subr.bf16.mxu0 %v2499
        %2738 = vmatpush1.bf16.msra.mxu0 %v2498
        %2739 = vmatprep.subr.bf16.mxu0 %v2515
        %2740 = vmatpush1.bf16.msra.mxu0 %v2514
        %2741 = vmatprep.subr.bf16.mxu0 %v2531
        %2742 = vmatpush1.bf16.msra.mxu0 %v2530
        %2743 = vmatprep.subr.bf16.mxu0 %v2547
        %2744 = vmatpush1.bf16.msra.mxu0 %v2546
        %2745 = vmatprep.subr.bf16.mxu0 0
        %2746 = vmatpush1.bf16.msra.mxu0 0
        %2747 = vmatprep.subr.bf16.mxu0 0
        %2748 = vmatpush1.bf16.msra.mxu0 0
        %2749 = vmatprep.subr.bf16.mxu0 0
        %2750 = vmatpush1.bf16.msra.mxu0 0
        %2751 = vmatprep.subr.bf16.mxu0 0
        %2752 = vmatpush1.bf16.msra.mxu0 0
        %2753 = vmatprep.subr.bf16.mxu0 0
        %2754 = vmatpush1.bf16.msra.mxu0 0
        %2755 = vmatprep.subr.bf16.mxu0 0
        %2756 = vmatpush1.bf16.msra.mxu0 0
        %2757 = vmatprep.subr.bf16.mxu0 0
        %2758 = vmatpush1.bf16.msra.mxu0 0
        %2759 = vmatprep.subr.bf16.mxu0 0
        %2760 = vmatpush1.bf16.msra.mxu0 0
        %2761 = vmatprep.mubr.bf16.mxu0 0
        %2762 = vmatmul.mubr.bf16.gmra.mrb[0].mxu0 %v1835
        %v2763 = vpop.f32.mrb[0].mxu0
        %v2764 = vadd.f32 %v1979, %v2763
        %v2765 = vpop.f32.mrb[0].mxu0
        %v2766 = vadd.f32 %v1983, %v2765
        %v2767 = vpop.f32.mrb[0].mxu0
        %v2768 = vpop.f32.mrb[0].mxu0
        %2769 = vdwg.mxu0
        %2770 = vmatprep.subr.bf16.mxu0 %v2437
        %2771 = vmatpush1.bf16.msra.mxu0 %v2436
        %2772 = vmatprep.subr.bf16.mxu0 %v2453
        %2773 = vmatpush1.bf16.msra.mxu0 %v2452
        %2774 = vmatprep.subr.bf16.mxu0 %v2469
        %2775 = vmatpush1.bf16.msra.mxu0 %v2468
        %2776 = vmatprep.subr.bf16.mxu0 %v2485
        %2777 = vmatpush1.bf16.msra.mxu0 %v2484
        %2778 = vmatprep.subr.bf16.mxu0 %v2501
        %2779 = vmatpush1.bf16.msra.mxu0 %v2500
        %2780 = vmatprep.subr.bf16.mxu0 %v2517
        %2781 = vmatpush1.bf16.msra.mxu0 %v2516
        %2782 = vmatprep.subr.bf16.mxu0 %v2533
        %2783 = vmatpush1.bf16.msra.mxu0 %v2532
        %2784 = vmatprep.subr.bf16.mxu0 %v2549
        %2785 = vmatpush1.bf16.msra.mxu0 %v2548
        %2786 = vmatprep.subr.bf16.mxu0 0
        %2787 = vmatpush1.bf16.msra.mxu0 0
        %2788 = vmatprep.subr.bf16.mxu0 0
        %2789 = vmatpush1.bf16.msra.mxu0 0
        %2790 = vmatprep.subr.bf16.mxu0 0
        %2791 = vmatpush1.bf16.msra.mxu0 0
        %2792 = vmatprep.subr.bf16.mxu0 0
        %2793 = vmatpush1.bf16.msra.mxu0 0
        %2794 = vmatprep.subr.bf16.mxu0 0
        %2795 = vmatpush1.bf16.msra.mxu0 0
        %2796 = vmatprep.subr.bf16.mxu0 0
        %2797 = vmatpush1.bf16.msra.mxu0 0
        %2798 = vmatprep.subr.bf16.mxu0 0
        %2799 = vmatpush1.bf16.msra.mxu0 0
        %2800 = vmatprep.subr.bf16.mxu0 0
        %2801 = vmatpush1.bf16.msra.mxu0 0
        %2802 = vmatprep.mubr.bf16.mxu0 0
        %2803 = vmatmul.mubr.bf16.gmra.mrb[0].mxu0 %v1835
        %v2804 = vpop.f32.mrb[0].mxu0
        %v2805 = vadd.f32 %v1987, %v2804
        %v2806 = vpop.f32.mrb[0].mxu0
        %v2807 = vadd.f32 %v1991, %v2806
        %v2808 = vpop.f32.mrb[0].mxu0
        %v2809 = vpop.f32.mrb[0].mxu0
        %2810 = vdwg.mxu0
        %2811 = vmatprep.subr.bf16.mxu0 %v2439
        %2812 = vmatpush1.bf16.msra.mxu0 %v2438
        %2813 = vmatprep.subr.bf16.mxu0 %v2455
        %2814 = vmatpush1.bf16.msra.mxu0 %v2454
        %2815 = vmatprep.subr.bf16.mxu0 %v2471
        %2816 = vmatpush1.bf16.msra.mxu0 %v2470
        %2817 = vmatprep.subr.bf16.mxu0 %v2487
        %2818 = vmatpush1.bf16.msra.mxu0 %v2486
        %2819 = vmatprep.subr.bf16.mxu0 %v2503
        %2820 = vmatpush1.bf16.msra.mxu0 %v2502
        %2821 = vmatprep.subr.bf16.mxu0 %v2519
        %2822 = vmatpush1.bf16.msra.mxu0 %v2518
        %2823 = vmatprep.subr.bf16.mxu0 %v2535
        %2824 = vmatpush1.bf16.msra.mxu0 %v2534
        %2825 = vmatprep.subr.bf16.mxu0 %v2551
        %2826 = vmatpush1.bf16.msra.mxu0 %v2550
        %2827 = vmatprep.subr.bf16.mxu0 0
        %2828 = vmatpush1.bf16.msra.mxu0 0
        %2829 = vmatprep.subr.bf16.mxu0 0
        %2830 = vmatpush1.bf16.msra.mxu0 0
        %2831 = vmatprep.subr.bf16.mxu0 0
        %2832 = vmatpush1.bf16.msra.mxu0 0
        %2833 = vmatprep.subr.bf16.mxu0 0
        %2834 = vmatpush1.bf16.msra.mxu0 0
        %2835 = vmatprep.subr.bf16.mxu0 0
        %2836 = vmatpush1.bf16.msra.mxu0 0
        %2837 = vmatprep.subr.bf16.mxu0 0
        %2838 = vmatpush1.bf16.msra.mxu0 0
        %2839 = vmatprep.subr.bf16.mxu0 0
        %2840 = vmatpush1.bf16.msra.mxu0 0
        %2841 = vmatprep.subr.bf16.mxu0 0
        %2842 = vmatpush1.bf16.msra.mxu0 0
        %2843 = vmatprep.mubr.bf16.mxu0 0
        %2844 = vmatmul.mubr.bf16.gmra.mrb[0].mxu0 %v1835
        %v2845 = vpop.f32.mrb[0].mxu0
        %v2846 = vadd.f32 %v1995, %v2845
        %v2847 = vpop.f32.mrb[0].mxu0
        %v2848 = vadd.f32 %v1999, %v2847
        %v2849 = vpop.f32.mrb[0].mxu0
        %v2850 = vpop.f32.mrb[0].mxu0
        %2851 = vdwg.mxu0
        %2852 = vmatprep.subr.bf16.mxu0 %v2441
        %2853 = vmatpush1.bf16.msra.mxu0 %v2440
        %2854 = vmatprep.subr.bf16.mxu0 %v2457
        %2855 = vmatpush1.bf16.msra.mxu0 %v2456
        %2856 = vmatprep.subr.bf16.mxu0 %v2473
        %2857 = vmatpush1.bf16.msra.mxu0 %v2472
        %2858 = vmatprep.subr.bf16.mxu0 %v2489
        %2859 = vmatpush1.bf16.msra.mxu0 %v2488
        %2860 = vmatprep.subr.bf16.mxu0 %v2505
        %2861 = vmatpush1.bf16.msra.mxu0 %v2504
        %2862 = vmatprep.subr.bf16.mxu0 %v2521
        %2863 = vmatpush1.bf16.msra.mxu0 %v2520
        %2864 = vmatprep.subr.bf16.mxu0 %v2537
        %2865 = vmatpush1.bf16.msra.mxu0 %v2536
        %2866 = vmatprep.subr.bf16.mxu0 %v2553
        %2867 = vmatpush1.bf16.msra.mxu0 %v2552
        %2868 = vmatprep.subr.bf16.mxu0 0
        %2869 = vmatpush1.bf16.msra.mxu0 0
        %2870 = vmatprep.subr.bf16.mxu0 0
        %2871 = vmatpush1.bf16.msra.mxu0 0
        %2872 = vmatprep.subr.bf16.mxu0 0
        %2873 = vmatpush1.bf16.msra.mxu0 0
        %2874 = vmatprep.subr.bf16.mxu0 0
        %2875 = vmatpush1.bf16.msra.mxu0 0
        %2876 = vmatprep.subr.bf16.mxu0 0
        %2877 = vmatpush1.bf16.msra.mxu0 0
        %2878 = vmatprep.subr.bf16.mxu0 0
        %2879 = vmatpush1.bf16.msra.mxu0 0
        %2880 = vmatprep.subr.bf16.mxu0 0
        %2881 = vmatpush1.bf16.msra.mxu0 0
        %2882 = vmatprep.subr.bf16.mxu0 0
        %2883 = vmatpush1.bf16.msra.mxu0 0
        %2884 = vmatprep.mubr.bf16.mxu0 0
        %2885 = vmatmul.mubr.bf16.gmra.mrb[0].mxu0 %v1835
        %v2886 = vpop.f32.mrb[0].mxu0
        %v2887 = vadd.f32 %v2003, %v2886
        %v2888 = vpop.f32.mrb[0].mxu0
        %v2889 = vadd.f32 %v2007, %v2888
        %v2890 = vpop.f32.mrb[0].mxu0
        %v2891 = vpop.f32.mrb[0].mxu0
        %2892 = vdwg.mxu0
        %2893 = vmatprep.subr.bf16.mxu0 %v2443
        %2894 = vmatpush1.bf16.msra.mxu0 %v2442
        %2895 = vmatprep.subr.bf16.mxu0 %v2459
        %2896 = vmatpush1.bf16.msra.mxu0 %v2458
        %2897 = vmatprep.subr.bf16.mxu0 %v2475
        %2898 = vmatpush1.bf16.msra.mxu0 %v2474
        %2899 = vmatprep.subr.bf16.mxu0 %v2491
        %2900 = vmatpush1.bf16.msra.mxu0 %v2490
        %2901 = vmatprep.subr.bf16.mxu0 %v2507
        %2902 = vmatpush1.bf16.msra.mxu0 %v2506
        %2903 = vmatprep.subr.bf16.mxu0 %v2523
        %2904 = vmatpush1.bf16.msra.mxu0 %v2522
        %2905 = vmatprep.subr.bf16.mxu0 %v2539
        %2906 = vmatpush1.bf16.msra.mxu0 %v2538
        %2907 = vmatprep.subr.bf16.mxu0 %v2555
        %2908 = vmatpush1.bf16.msra.mxu0 %v2554
        %2909 = vmatprep.subr.bf16.mxu0 0
        %2910 = vmatpush1.bf16.msra.mxu0 0
        %2911 = vmatprep.subr.bf16.mxu0 0
        %2912 = vmatpush1.bf16.msra.mxu0 0
        %2913 = vmatprep.subr.bf16.mxu0 0
        %2914 = vmatpush1.bf16.msra.mxu0 0
        %2915 = vmatprep.subr.bf16.mxu0 0
        %2916 = vmatpush1.bf16.msra.mxu0 0
        %2917 = vmatprep.subr.bf16.mxu0 0
        %2918 = vmatpush1.bf16.msra.mxu0 0
        %2919 = vmatprep.subr.bf16.mxu0 0
        %2920 = vmatpush1.bf16.msra.mxu0 0
        %2921 = vmatprep.subr.bf16.mxu0 0
        %2922 = vmatpush1.bf16.msra.mxu0 0
        %2923 = vmatprep.subr.bf16.mxu0 0
        %2924 = vmatpush1.bf16.msra.mxu0 0
        %2925 = vmatprep.mubr.bf16.mxu0 0
        %2926 = vmatmul.mubr.bf16.gmra.mrb[0].mxu0 %v1835
        %v2927 = vpop.f32.mrb[0].mxu0
        %v2928 = vadd.f32 %v2011, %v2927
        %v2929 = vpop.f32.mrb[0].mxu0
        %v2930 = vadd.f32 %v2015, %v2929
        %v2931 = vpop.f32.mrb[0].mxu0
        %v2932 = vpop.f32.mrb[0].mxu0
        %2933 = vdwg.mxu0
        %2934 = vmatprep.subr.bf16.mxu0 %v2445
        %2935 = vmatpush1.bf16.msra.mxu0 %v2444
        %2936 = vmatprep.subr.bf16.mxu0 %v2461
        %2937 = vmatpush1.bf16.msra.mxu0 %v2460
        %2938 = vmatprep.subr.bf16.mxu0 %v2477
        %2939 = vmatpush1.bf16.msra.mxu0 %v2476
        %2940 = vmatprep.subr.bf16.mxu0 %v2493
        %2941 = vmatpush1.bf16.msra.mxu0 %v2492
        %2942 = vmatprep.subr.bf16.mxu0 %v2509
        %2943 = vmatpush1.bf16.msra.mxu0 %v2508
        %2944 = vmatprep.subr.bf16.mxu0 %v2525
        %2945 = vmatpush1.bf16.msra.mxu0 %v2524
        %2946 = vmatprep.subr.bf16.mxu0 %v2541
        %2947 = vmatpush1.bf16.msra.mxu0 %v2540
        %2948 = vmatprep.subr.bf16.mxu0 %v2557
        %2949 = vmatpush1.bf16.msra.mxu0 %v2556
        %2950 = vmatprep.subr.bf16.mxu0 0
        %2951 = vmatpush1.bf16.msra.mxu0 0
        %2952 = vmatprep.subr.bf16.mxu0 0
        %2953 = vmatpush1.bf16.msra.mxu0 0
        %2954 = vmatprep.subr.bf16.mxu0 0
        %2955 = vmatpush1.bf16.msra.mxu0 0
        %2956 = vmatprep.subr.bf16.mxu0 0
        %2957 = vmatpush1.bf16.msra.mxu0 0
        %2958 = vmatprep.subr.bf16.mxu0 0
        %2959 = vmatpush1.bf16.msra.mxu0 0
        %2960 = vmatprep.subr.bf16.mxu0 0
        %2961 = vmatpush1.bf16.msra.mxu0 0
        %2962 = vmatprep.subr.bf16.mxu0 0
        %2963 = vmatpush1.bf16.msra.mxu0 0
        %2964 = vmatprep.subr.bf16.mxu0 0
        %2965 = vmatpush1.bf16.msra.mxu0 0
        %2966 = vmatprep.mubr.bf16.mxu0 0
        %2967 = vmatmul.mubr.bf16.gmra.mrb[0].mxu0 %v1835
        %v2968 = vpop.f32.mrb[0].mxu0
        %v2969 = vadd.f32 %v2019, %v2968
        %v2970 = vpop.f32.mrb[0].mxu0
        %v2971 = vadd.f32 %v2023, %v2970
        %v2972 = vpop.f32.mrb[0].mxu0
        %v2973 = vpop.f32.mrb[0].mxu0
        %2974 = vdwg.mxu0
        %2975 = vmatprep.subr.bf16.mxu0 %v2447
        %2976 = vmatpush1.bf16.msra.mxu0 %v2446
        %2977 = vmatprep.subr.bf16.mxu0 %v2463
        %2978 = vmatpush1.bf16.msra.mxu0 %v2462
        %2979 = vmatprep.subr.bf16.mxu0 %v2479
        %2980 = vmatpush1.bf16.msra.mxu0 %v2478
        %2981 = vmatprep.subr.bf16.mxu0 %v2495
        %2982 = vmatpush1.bf16.msra.mxu0 %v2494
        %2983 = vmatprep.subr.bf16.mxu0 %v2511
        %2984 = vmatpush1.bf16.msra.mxu0 %v2510
        %2985 = vmatprep.subr.bf16.mxu0 %v2527
        %2986 = vmatpush1.bf16.msra.mxu0 %v2526
        %2987 = vmatprep.subr.bf16.mxu0 %v2543
        %2988 = vmatpush1.bf16.msra.mxu0 %v2542
        %2989 = vmatprep.subr.bf16.mxu0 %v2559
        %2990 = vmatpush1.bf16.msra.mxu0 %v2558
        %2991 = vmatprep.subr.bf16.mxu0 0
        %2992 = vmatpush1.bf16.msra.mxu0 0
        %2993 = vmatprep.subr.bf16.mxu0 0
        %2994 = vmatpush1.bf16.msra.mxu0 0
        %2995 = vmatprep.subr.bf16.mxu0 0
        %2996 = vmatpush1.bf16.msra.mxu0 0
        %2997 = vmatprep.subr.bf16.mxu0 0
        %2998 = vmatpush1.bf16.msra.mxu0 0
        %2999 = vmatprep.subr.bf16.mxu0 0
        %3000 = vmatpush1.bf16.msra.mxu0 0
        %3001 = vmatprep.subr.bf16.mxu0 0
        %3002 = vmatpush1.bf16.msra.mxu0 0
        %3003 = vmatprep.subr.bf16.mxu0 0
        %3004 = vmatpush1.bf16.msra.mxu0 0
        %3005 = vmatprep.subr.bf16.mxu0 0
        %3006 = vmatpush1.bf16.msra.mxu0 0
        %3007 = vmatprep.mubr.bf16.mxu0 0
        %3008 = vmatmul.mubr.bf16.gmra.mrb[0].mxu0 %v1835
        %v3009 = vpop.f32.mrb[0].mxu0
        %v3010 = vadd.f32 %v2027, %v3009
        %v3011 = vpop.f32.mrb[0].mxu0
        %v3012 = vadd.f32 %v2031, %v3011
        %v3013 = vpop.f32.mrb[0].mxu0
        %v3014 = vpop.f32.mrb[0].mxu0
        %3015 = vdwg.mxu0
        %v3016 = vmul.f32 %v2723, 0.5
        %v3017 = vmul.f32 %v2725, 0.5
        %v3018 = vmul.f32 %v2764, 0.5
        %v3019 = vmul.f32 %v2766, 0.5
        %v3020 = vmul.f32 %v2805, 0.5
        %v3021 = vmul.f32 %v2807, 0.5
        %v3022 = vmul.f32 %v2846, 0.5
        %v3023 = vmul.f32 %v2848, 0.5
        %v3024 = vmul.f32 %v2887, 0.5
        %v3025 = vmul.f32 %v2889, 0.5
        %v3026 = vmul.f32 %v2928, 0.5
        %v3027 = vmul.f32 %v2930, 0.5
        %v3028 = vmul.f32 %v2969, 0.5
        %v3029 = vmul.f32 %v2971, 0.5
        %v3030 = vmul.f32 %v3010, 0.5
        %v3031 = vmul.f32 %v3012, 0.5
        %v3032 = vmul.f32 %v2723, 0.70710677
        %v3033 = vmul.f32 %v2725, 0.70710677
        %v3034 = vmul.f32 %v2764, 0.70710677
        %v3035 = vmul.f32 %v2766, 0.70710677
        %v3036 = vmul.f32 %v2805, 0.70710677
        %v3037 = vmul.f32 %v2807, 0.70710677
        %v3038 = vmul.f32 %v2846, 0.70710677
        %v3039 = vmul.f32 %v2848, 0.70710677
        %v3040 = vmul.f32 %v2887, 0.70710677
        %v3041 = vmul.f32 %v2889, 0.70710677
        %v3042 = vmul.f32 %v2928, 0.70710677
        %v3043 = vmul.f32 %v2930, 0.70710677
        %v3044 = vmul.f32 %v2969, 0.70710677
        %v3045 = vmul.f32 %v2971, 0.70710677
        %v3046 = vmul.f32 %v3010, 0.70710677
        %v3047 = vmul.f32 %v3012, 0.70710677
        %v3048 = verf.f32.pop %v3032
        %v3049 = verf.f32.pop %v3033
        %v3050 = verf.f32.pop %v3034
        %v3051 = verf.f32.pop %v3035
        %v3052 = verf.f32.pop %v3036
        %v3053 = verf.f32.pop %v3037
        %v3054 = verf.f32.pop %v3038
        %v3055 = verf.f32.pop %v3039
        %v3056 = verf.f32.pop %v3040
        %v3057 = verf.f32.pop %v3041
        %v3058 = verf.f32.pop %v3042
        %v3059 = verf.f32.pop %v3043
        %v3060 = verf.f32.pop %v3044
        %v3061 = verf.f32.pop %v3045
        %v3062 = verf.f32.pop %v3046
        %v3063 = verf.f32.pop %v3047
        %v3064 = vadd.f32 %v3048, 1.0
        %v3065 = vadd.f32 %v3049, 1.0
        %v3066 = vadd.f32 %v3050, 1.0
        %v3067 = vadd.f32 %v3051, 1.0
        %v3068 = vadd.f32 %v3052, 1.0
        %v3069 = vadd.f32 %v3053, 1.0
        %v3070 = vadd.f32 %v3054, 1.0
        %v3071 = vadd.f32 %v3055, 1.0
        %v3072 = vadd.f32 %v3056, 1.0
        %v3073 = vadd.f32 %v3057, 1.0
        %v3074 = vadd.f32 %v3058, 1.0
        %v3075 = vadd.f32 %v3059, 1.0
        %v3076 = vadd.f32 %v3060, 1.0
        %v3077 = vadd.f32 %v3061, 1.0
        %v3078 = vadd.f32 %v3062, 1.0
        %v3079 = vadd.f32 %v3063, 1.0
        %v3080 = vmul.f32 %v3016, %v3064
        %v3081 = vmul.f32 %v3017, %v3065
        %v3082 = vmul.f32 %v3018, %v3066
        %v3083 = vmul.f32 %v3019, %v3067
        %v3084 = vmul.f32 %v3020, %v3068
        %v3085 = vmul.f32 %v3021, %v3069
        %v3086 = vmul.f32 %v3022, %v3070
        %v3087 = vmul.f32 %v3023, %v3071
        %v3088 = vmul.f32 %v3024, %v3072
        %v3089 = vmul.f32 %v3025, %v3073
        %v3090 = vmul.f32 %v3026, %v3074
        %v3091 = vmul.f32 %v3027, %v3075
        %v3092 = vmul.f32 %v3028, %v3076
        %v3093 = vmul.f32 %v3029, %v3077
        %v3094 = vmul.f32 %v3030, %v3078
        %v3095 = vmul.f32 %v3031, %v3079
        %v3096 = vpack.c.bf16 %v3080, %v3080
        %v3097 = vpack.c.bf16 %v3081, %v3081
        %v3098 = vpack.c.bf16 %v3082, %v3082
        %v3099 = vpack.c.bf16 %v3083, %v3083
        %v3100 = vpack.c.bf16 %v3084, %v3084
        %v3101 = vpack.c.bf16 %v3085, %v3085
        %v3102 = vpack.c.bf16 %v3086, %v3086
        %v3103 = vpack.c.bf16 %v3087, %v3087
        %v3104 = vpack.c.bf16 %v3088, %v3088
        %v3105 = vpack.c.bf16 %v3089, %v3089
        %v3106 = vpack.c.bf16 %v3090, %v3090
        %v3107 = vpack.c.bf16 %v3091, %v3091
        %v3108 = vpack.c.bf16 %v3092, %v3092
        %v3109 = vpack.c.bf16 %v3093, %v3093
        %v3110 = vpack.c.bf16 %v3094, %v3094
        %v3111 = vpack.c.bf16 %v3095, %v3095
        %v3112 = vld [vmem:[#allocation7] sm:$0xf]
        %v3113 = vld [vmem:[#allocation7 + $0x4] sm:$0xf]
        %v3114 = vld [vmem:[#allocation7 + $0x8] sm:$0xf]
        %v3115 = vld [vmem:[#allocation7 + $0xc] sm:$0xf]
        %v3116 = vld [vmem:[#allocation7 + $0x10] sm:$0xf]
        %v3117 = vld [vmem:[#allocation7 + $0x14] sm:$0xf]
        %v3118 = vld [vmem:[#allocation7 + $0x18] sm:$0xf]
        %v3119 = vld [vmem:[#allocation7 + $0x1c] sm:$0xf]
        %v3120 = vld [vmem:[#allocation7 + $0x20] sm:$0xf]
        %v3121 = vld [vmem:[#allocation7 + $0x24] sm:$0xf]
        %v3122 = vld [vmem:[#allocation7 + $0x28] sm:$0xf]
        %v3123 = vld [vmem:[#allocation7 + $0x2c] sm:$0xf]
        %v3124 = vld [vmem:[#allocation7 + $0x30] sm:$0xf]
        %v3125 = vld [vmem:[#allocation7 + $0x34] sm:$0xf]
        %v3126 = vld [vmem:[#allocation7 + $0x38] sm:$0xf]
        %v3127 = vld [vmem:[#allocation7 + $0x3c] sm:$0xf]
        %v3128 = vld [vmem:[#allocation7 + $0x40] sm:$0xf]
        %v3129 = vld [vmem:[#allocation7 + $0x44] sm:$0xf]
        %v3130 = vld [vmem:[#allocation7 + $0x48] sm:$0xf]
        %v3131 = vld [vmem:[#allocation7 + $0x4c] sm:$0xf]
        %v3132 = vld [vmem:[#allocation7 + $0x50] sm:$0xf]
        %v3133 = vld [vmem:[#allocation7 + $0x54] sm:$0xf]
        %v3134 = vld [vmem:[#allocation7 + $0x58] sm:$0xf]
        %v3135 = vld [vmem:[#allocation7 + $0x5c] sm:$0xf]
        %v3136 = vld [vmem:[#allocation7 + $0x60] sm:$0xf]
        %v3137 = vld [vmem:[#allocation7 + $0x64] sm:$0xf]
        %v3138 = vld [vmem:[#allocation7 + $0x68] sm:$0xf]
        %v3139 = vld [vmem:[#allocation7 + $0x6c] sm:$0xf]
        %v3140 = vld [vmem:[#allocation7 + $0x70] sm:$0xf]
        %v3141 = vld [vmem:[#allocation7 + $0x74] sm:$0xf]
        %v3142 = vld [vmem:[#allocation7 + $0x78] sm:$0xf]
        %v3143 = vld [vmem:[#allocation7 + $0x7c] sm:$0xf]
        %v3144 = vld [vmem:[#allocation7 + $0x80] sm:$0xf]
        %v3145 = vld [vmem:[#allocation7 + $0x84] sm:$0xf]
        %v3146 = vld [vmem:[#allocation7 + $0x88] sm:$0xf]
        %v3147 = vld [vmem:[#allocation7 + $0x8c] sm:$0xf]
        %v3148 = vld [vmem:[#allocation7 + $0x90] sm:$0xf]
        %v3149 = vld [vmem:[#allocation7 + $0x94] sm:$0xf]
        %v3150 = vld [vmem:[#allocation7 + $0x98] sm:$0xf]
        %v3151 = vld [vmem:[#allocation7 + $0x9c] sm:$0xf]
        %v3152 = vld [vmem:[#allocation7 + $0xa0] sm:$0xf]
        %v3153 = vld [vmem:[#allocation7 + $0xa4] sm:$0xf]
        %v3154 = vld [vmem:[#allocation7 + $0xa8] sm:$0xf]
        %v3155 = vld [vmem:[#allocation7 + $0xac] sm:$0xf]
        %v3156 = vld [vmem:[#allocation7 + $0xb0] sm:$0xf]
        %v3157 = vld [vmem:[#allocation7 + $0xb4] sm:$0xf]
        %v3158 = vld [vmem:[#allocation7 + $0xb8] sm:$0xf]
        %v3159 = vld [vmem:[#allocation7 + $0xbc] sm:$0xf]
        %v3160 = vld [vmem:[#allocation7 + $0xc0] sm:$0xf]
        %v3161 = vld [vmem:[#allocation7 + $0xc4] sm:$0xf]
        %v3162 = vld [vmem:[#allocation7 + $0xc8] sm:$0xf]
        %v3163 = vld [vmem:[#allocation7 + $0xcc] sm:$0xf]
        %v3164 = vld [vmem:[#allocation7 + $0xd0] sm:$0xf]
        %v3165 = vld [vmem:[#allocation7 + $0xd4] sm:$0xf]
        %v3166 = vld [vmem:[#allocation7 + $0xd8] sm:$0xf]
        %v3167 = vld [vmem:[#allocation7 + $0xdc] sm:$0xf]
        %v3168 = vld [vmem:[#allocation7 + $0xe0] sm:$0xf]
        %v3169 = vld [vmem:[#allocation7 + $0xe4] sm:$0xf]
        %v3170 = vld [vmem:[#allocation7 + $0xe8] sm:$0xf]
        %v3171 = vld [vmem:[#allocation7 + $0xec] sm:$0xf]
        %v3172 = vld [vmem:[#allocation7 + $0xf0] sm:$0xf]
        %v3173 = vld [vmem:[#allocation7 + $0xf4] sm:$0xf]
        %v3174 = vld [vmem:[#allocation7 + $0xf8] sm:$0xf]
        %v3175 = vld [vmem:[#allocation7 + $0xfc] sm:$0xf]
        %v3176 = vld [vmem:[#allocation7 + $0x100] sm:$0xf]
        %v3177 = vld [vmem:[#allocation7 + $0x104] sm:$0xf]
        %v3178 = vld [vmem:[#allocation7 + $0x108] sm:$0xf]
        %v3179 = vld [vmem:[#allocation7 + $0x10c] sm:$0xf]
        %v3180 = vld [vmem:[#allocation7 + $0x110] sm:$0xf]
        %v3181 = vld [vmem:[#allocation7 + $0x114] sm:$0xf]
        %v3182 = vld [vmem:[#allocation7 + $0x118] sm:$0xf]
        %v3183 = vld [vmem:[#allocation7 + $0x11c] sm:$0xf]
        %v3184 = vld [vmem:[#allocation7 + $0x120] sm:$0xf]
        %v3185 = vld [vmem:[#allocation7 + $0x124] sm:$0xf]
        %v3186 = vld [vmem:[#allocation7 + $0x128] sm:$0xf]
        %v3187 = vld [vmem:[#allocation7 + $0x12c] sm:$0xf]
        %v3188 = vld [vmem:[#allocation7 + $0x130] sm:$0xf]
        %v3189 = vld [vmem:[#allocation7 + $0x134] sm:$0xf]
        %v3190 = vld [vmem:[#allocation7 + $0x138] sm:$0xf]
        %v3191 = vld [vmem:[#allocation7 + $0x13c] sm:$0xf]
        %v3192 = vld [vmem:[#allocation7 + $0x140] sm:$0xf]
        %v3193 = vld [vmem:[#allocation7 + $0x144] sm:$0xf]
        %v3194 = vld [vmem:[#allocation7 + $0x148] sm:$0xf]
        %v3195 = vld [vmem:[#allocation7 + $0x14c] sm:$0xf]
        %v3196 = vld [vmem:[#allocation7 + $0x150] sm:$0xf]
        %v3197 = vld [vmem:[#allocation7 + $0x154] sm:$0xf]
        %v3198 = vld [vmem:[#allocation7 + $0x158] sm:$0xf]
        %v3199 = vld [vmem:[#allocation7 + $0x15c] sm:$0xf]
        %v3200 = vld [vmem:[#allocation7 + $0x160] sm:$0xf]
        %v3201 = vld [vmem:[#allocation7 + $0x164] sm:$0xf]
        %v3202 = vld [vmem:[#allocation7 + $0x168] sm:$0xf]
        %v3203 = vld [vmem:[#allocation7 + $0x16c] sm:$0xf]
        %v3204 = vld [vmem:[#allocation7 + $0x170] sm:$0xf]
        %v3205 = vld [vmem:[#allocation7 + $0x174] sm:$0xf]
        %v3206 = vld [vmem:[#allocation7 + $0x178] sm:$0xf]
        %v3207 = vld [vmem:[#allocation7 + $0x17c] sm:$0xf]
        %v3208 = vld [vmem:[#allocation7 + $0x180] sm:$0xf]
        %v3209 = vld [vmem:[#allocation7 + $0x184] sm:$0xf]
        %v3210 = vld [vmem:[#allocation7 + $0x188] sm:$0xf]
        %v3211 = vld [vmem:[#allocation7 + $0x18c] sm:$0xf]
        %v3212 = vld [vmem:[#allocation7 + $0x190] sm:$0xf]
        %v3213 = vld [vmem:[#allocation7 + $0x194] sm:$0xf]
        %v3214 = vld [vmem:[#allocation7 + $0x198] sm:$0xf]
        %v3215 = vld [vmem:[#allocation7 + $0x19c] sm:$0xf]
        %v3216 = vld [vmem:[#allocation7 + $0x1a0] sm:$0xf]
        %v3217 = vld [vmem:[#allocation7 + $0x1a4] sm:$0xf]
        %v3218 = vld [vmem:[#allocation7 + $0x1a8] sm:$0xf]
        %v3219 = vld [vmem:[#allocation7 + $0x1ac] sm:$0xf]
        %v3220 = vld [vmem:[#allocation7 + $0x1b0] sm:$0xf]
        %v3221 = vld [vmem:[#allocation7 + $0x1b4] sm:$0xf]
        %v3222 = vld [vmem:[#allocation7 + $0x1b8] sm:$0xf]
        %v3223 = vld [vmem:[#allocation7 + $0x1bc] sm:$0xf]
        %v3224 = vld [vmem:[#allocation7 + $0x1c0] sm:$0xf]
        %v3225 = vld [vmem:[#allocation7 + $0x1c4] sm:$0xf]
        %v3226 = vld [vmem:[#allocation7 + $0x1c8] sm:$0xf]
        %v3227 = vld [vmem:[#allocation7 + $0x1cc] sm:$0xf]
        %v3228 = vld [vmem:[#allocation7 + $0x1d0] sm:$0xf]
        %v3229 = vld [vmem:[#allocation7 + $0x1d4] sm:$0xf]
        %v3230 = vld [vmem:[#allocation7 + $0x1d8] sm:$0xf]
        %v3231 = vld [vmem:[#allocation7 + $0x1dc] sm:$0xf]
        %v3232 = vld [vmem:[#allocation7 + $0x1e0] sm:$0xf]
        %v3233 = vld [vmem:[#allocation7 + $0x1e4] sm:$0xf]
        %v3234 = vld [vmem:[#allocation7 + $0x1e8] sm:$0xf]
        %v3235 = vld [vmem:[#allocation7 + $0x1ec] sm:$0xf]
        %v3236 = vld [vmem:[#allocation7 + $0x1f0] sm:$0xf]
        %v3237 = vld [vmem:[#allocation7 + $0x1f4] sm:$0xf]
        %v3238 = vld [vmem:[#allocation7 + $0x1f8] sm:$0xf]
        %v3239 = vld [vmem:[#allocation7 + $0x1fc] sm:$0xf]
        %v3240 = vld [vmem:[#allocation7 + $0x200] sm:$0xf]
        %v3241 = vld [vmem:[#allocation7 + $0x204] sm:$0xf]
        %v3242 = vld [vmem:[#allocation7 + $0x208] sm:$0xf]
        %v3243 = vld [vmem:[#allocation7 + $0x20c] sm:$0xf]
        %v3244 = vld [vmem:[#allocation7 + $0x210] sm:$0xf]
        %v3245 = vld [vmem:[#allocation7 + $0x214] sm:$0xf]
        %v3246 = vld [vmem:[#allocation7 + $0x218] sm:$0xf]
        %v3247 = vld [vmem:[#allocation7 + $0x21c] sm:$0xf]
        %v3248 = vld [vmem:[#allocation7 + $0x220] sm:$0xf]
        %v3249 = vld [vmem:[#allocation7 + $0x224] sm:$0xf]
        %v3250 = vld [vmem:[#allocation7 + $0x228] sm:$0xf]
        %v3251 = vld [vmem:[#allocation7 + $0x22c] sm:$0xf]
        %v3252 = vld [vmem:[#allocation7 + $0x230] sm:$0xf]
        %v3253 = vld [vmem:[#allocation7 + $0x234] sm:$0xf]
        %v3254 = vld [vmem:[#allocation7 + $0x238] sm:$0xf]
        %v3255 = vld [vmem:[#allocation7 + $0x23c] sm:$0xf]
        %v3256 = vld [vmem:[#allocation7 + $0x240] sm:$0xf]
        %v3257 = vld [vmem:[#allocation7 + $0x244] sm:$0xf]
        %v3258 = vld [vmem:[#allocation7 + $0x248] sm:$0xf]
        %v3259 = vld [vmem:[#allocation7 + $0x24c] sm:$0xf]
        %v3260 = vld [vmem:[#allocation7 + $0x250] sm:$0xf]
        %v3261 = vld [vmem:[#allocation7 + $0x254] sm:$0xf]
        %v3262 = vld [vmem:[#allocation7 + $0x258] sm:$0xf]
        %v3263 = vld [vmem:[#allocation7 + $0x25c] sm:$0xf]
        %v3264 = vld [vmem:[#allocation7 + $0x260] sm:$0xf]
        %v3265 = vld [vmem:[#allocation7 + $0x264] sm:$0xf]
        %v3266 = vld [vmem:[#allocation7 + $0x268] sm:$0xf]
        %v3267 = vld [vmem:[#allocation7 + $0x26c] sm:$0xf]
        %v3268 = vld [vmem:[#allocation7 + $0x270] sm:$0xf]
        %v3269 = vld [vmem:[#allocation7 + $0x274] sm:$0xf]
        %v3270 = vld [vmem:[#allocation7 + $0x278] sm:$0xf]
        %v3271 = vld [vmem:[#allocation7 + $0x27c] sm:$0xf]
        %v3272 = vld [vmem:[#allocation7 + $0x280] sm:$0xf]
        %v3273 = vld [vmem:[#allocation7 + $0x284] sm:$0xf]
        %v3274 = vld [vmem:[#allocation7 + $0x288] sm:$0xf]
        %v3275 = vld [vmem:[#allocation7 + $0x28c] sm:$0xf]
        %v3276 = vld [vmem:[#allocation7 + $0x290] sm:$0xf]
        %v3277 = vld [vmem:[#allocation7 + $0x294] sm:$0xf]
        %v3278 = vld [vmem:[#allocation7 + $0x298] sm:$0xf]
        %v3279 = vld [vmem:[#allocation7 + $0x29c] sm:$0xf]
        %v3280 = vld [vmem:[#allocation7 + $0x2a0] sm:$0xf]
        %v3281 = vld [vmem:[#allocation7 + $0x2a4] sm:$0xf]
        %v3282 = vld [vmem:[#allocation7 + $0x2a8] sm:$0xf]
        %v3283 = vld [vmem:[#allocation7 + $0x2ac] sm:$0xf]
        %v3284 = vld [vmem:[#allocation7 + $0x2b0] sm:$0xf]
        %v3285 = vld [vmem:[#allocation7 + $0x2b4] sm:$0xf]
        %v3286 = vld [vmem:[#allocation7 + $0x2b8] sm:$0xf]
        %v3287 = vld [vmem:[#allocation7 + $0x2bc] sm:$0xf]
        %v3288 = vld [vmem:[#allocation7 + $0x2c0] sm:$0xf]
        %v3289 = vld [vmem:[#allocation7 + $0x2c4] sm:$0xf]
        %v3290 = vld [vmem:[#allocation7 + $0x2c8] sm:$0xf]
        %v3291 = vld [vmem:[#allocation7 + $0x2cc] sm:$0xf]
        %v3292 = vld [vmem:[#allocation7 + $0x2d0] sm:$0xf]
        %v3293 = vld [vmem:[#allocation7 + $0x2d4] sm:$0xf]
        %v3294 = vld [vmem:[#allocation7 + $0x2d8] sm:$0xf]
        %v3295 = vld [vmem:[#allocation7 + $0x2dc] sm:$0xf]
        %v3296 = vld [vmem:[#allocation7 + $0x2e0] sm:$0xf]
        %v3297 = vld [vmem:[#allocation7 + $0x2e4] sm:$0xf]
        %v3298 = vld [vmem:[#allocation7 + $0x2e8] sm:$0xf]
        %v3299 = vld [vmem:[#allocation7 + $0x2ec] sm:$0xf]
        %v3300 = vld [vmem:[#allocation7 + $0x2f0] sm:$0xf]
        %v3301 = vld [vmem:[#allocation7 + $0x2f4] sm:$0xf]
        %v3302 = vld [vmem:[#allocation7 + $0x2f8] sm:$0xf]
        %v3303 = vld [vmem:[#allocation7 + $0x2fc] sm:$0xf]
        %v3304 = vld [vmem:[#allocation7 + $0x300] sm:$0xf]
        %v3305 = vld [vmem:[#allocation7 + $0x304] sm:$0xf]
        %v3306 = vld [vmem:[#allocation7 + $0x308] sm:$0xf]
        %v3307 = vld [vmem:[#allocation7 + $0x30c] sm:$0xf]
        %v3308 = vld [vmem:[#allocation7 + $0x310] sm:$0xf]
        %v3309 = vld [vmem:[#allocation7 + $0x314] sm:$0xf]
        %v3310 = vld [vmem:[#allocation7 + $0x318] sm:$0xf]
        %v3311 = vld [vmem:[#allocation7 + $0x31c] sm:$0xf]
        %v3312 = vld [vmem:[#allocation7 + $0x320] sm:$0xf]
        %v3313 = vld [vmem:[#allocation7 + $0x324] sm:$0xf]
        %v3314 = vld [vmem:[#allocation7 + $0x328] sm:$0xf]
        %v3315 = vld [vmem:[#allocation7 + $0x32c] sm:$0xf]
        %v3316 = vld [vmem:[#allocation7 + $0x330] sm:$0xf]
        %v3317 = vld [vmem:[#allocation7 + $0x334] sm:$0xf]
        %v3318 = vld [vmem:[#allocation7 + $0x338] sm:$0xf]
        %v3319 = vld [vmem:[#allocation7 + $0x33c] sm:$0xf]
        %v3320 = vld [vmem:[#allocation7 + $0x340] sm:$0xf]
        %v3321 = vld [vmem:[#allocation7 + $0x344] sm:$0xf]
        %v3322 = vld [vmem:[#allocation7 + $0x348] sm:$0xf]
        %v3323 = vld [vmem:[#allocation7 + $0x34c] sm:$0xf]
        %v3324 = vld [vmem:[#allocation7 + $0x350] sm:$0xf]
        %v3325 = vld [vmem:[#allocation7 + $0x354] sm:$0xf]
        %v3326 = vld [vmem:[#allocation7 + $0x358] sm:$0xf]
        %v3327 = vld [vmem:[#allocation7 + $0x35c] sm:$0xf]
        %v3328 = vld [vmem:[#allocation7 + $0x360] sm:$0xf]
        %v3329 = vld [vmem:[#allocation7 + $0x364] sm:$0xf]
        %v3330 = vld [vmem:[#allocation7 + $0x368] sm:$0xf]
        %v3331 = vld [vmem:[#allocation7 + $0x36c] sm:$0xf]
        %v3332 = vld [vmem:[#allocation7 + $0x370] sm:$0xf]
        %v3333 = vld [vmem:[#allocation7 + $0x374] sm:$0xf]
        %v3334 = vld [vmem:[#allocation7 + $0x378] sm:$0xf]
        %v3335 = vld [vmem:[#allocation7 + $0x37c] sm:$0xf]
        %v3336 = vld [vmem:[#allocation7 + $0x380] sm:$0xf]
        %v3337 = vld [vmem:[#allocation7 + $0x384] sm:$0xf]
        %v3338 = vld [vmem:[#allocation7 + $0x388] sm:$0xf]
        %v3339 = vld [vmem:[#allocation7 + $0x38c] sm:$0xf]
        %v3340 = vld [vmem:[#allocation7 + $0x390] sm:$0xf]
        %v3341 = vld [vmem:[#allocation7 + $0x394] sm:$0xf]
        %v3342 = vld [vmem:[#allocation7 + $0x398] sm:$0xf]
        %v3343 = vld [vmem:[#allocation7 + $0x39c] sm:$0xf]
        %v3344 = vld [vmem:[#allocation7 + $0x3a0] sm:$0xf]
        %v3345 = vld [vmem:[#allocation7 + $0x3a4] sm:$0xf]
        %v3346 = vld [vmem:[#allocation7 + $0x3a8] sm:$0xf]
        %v3347 = vld [vmem:[#allocation7 + $0x3ac] sm:$0xf]
        %v3348 = vld [vmem:[#allocation7 + $0x3b0] sm:$0xf]
        %v3349 = vld [vmem:[#allocation7 + $0x3b4] sm:$0xf]
        %v3350 = vld [vmem:[#allocation7 + $0x3b8] sm:$0xf]
        %v3351 = vld [vmem:[#allocation7 + $0x3bc] sm:$0xf]
        %v3352 = vld [vmem:[#allocation7 + $0x3c0] sm:$0xf]
        %v3353 = vld [vmem:[#allocation7 + $0x3c4] sm:$0xf]
        %v3354 = vld [vmem:[#allocation7 + $0x3c8] sm:$0xf]
        %v3355 = vld [vmem:[#allocation7 + $0x3cc] sm:$0xf]
        %v3356 = vld [vmem:[#allocation7 + $0x3d0] sm:$0xf]
        %v3357 = vld [vmem:[#allocation7 + $0x3d4] sm:$0xf]
        %v3358 = vld [vmem:[#allocation7 + $0x3d8] sm:$0xf]
        %v3359 = vld [vmem:[#allocation7 + $0x3dc] sm:$0xf]
        %v3360 = vld [vmem:[#allocation7 + $0x3e0] sm:$0xf]
        %v3361 = vld [vmem:[#allocation7 + $0x3e4] sm:$0xf]
        %v3362 = vld [vmem:[#allocation7 + $0x3e8] sm:$0xf]
        %v3363 = vld [vmem:[#allocation7 + $0x3ec] sm:$0xf]
        %v3364 = vld [vmem:[#allocation7 + $0x3f0] sm:$0xf]
        %v3365 = vld [vmem:[#allocation7 + $0x3f4] sm:$0xf]
        %v3366 = vld [vmem:[#allocation7 + $0x3f8] sm:$0xf]
        %v3367 = vld [vmem:[#allocation7 + $0x3fc] sm:$0xf]
        %v3368 = vld [vmem:[#allocation9] sm:$0x1]
        %v3370 = vlaneseq
        %v3371 = vshrl.u32 %v3370, 7
        %v3372 = vsub.s32 0, %v3371
        %v3373 = vrot.slane %v3368, %v3372
        %v3631 = vunpack.c.l.b16 %v3112
        %v3632 = vunpack.c.l.b16 %v3113
        %v3633 = vunpack.c.l.b16 %v3114
        %v3634 = vunpack.c.l.b16 %v3115
        %v3635 = vunpack.c.l.b16 %v3116
        %v3636 = vunpack.c.l.b16 %v3117
        %v3637 = vunpack.c.l.b16 %v3118
        %v3638 = vunpack.c.l.b16 %v3119
        %v3639 = vunpack.c.l.b16 %v3120
        %v3640 = vunpack.c.l.b16 %v3121
        %v3641 = vunpack.c.l.b16 %v3122
        %v3642 = vunpack.c.l.b16 %v3123
        %v3643 = vunpack.c.l.b16 %v3124
        %v3644 = vunpack.c.l.b16 %v3125
        %v3645 = vunpack.c.l.b16 %v3126
        %v3646 = vunpack.c.l.b16 %v3127
        %v3647 = vunpack.c.l.b16 %v3128
        %v3648 = vunpack.c.l.b16 %v3129
        %v3649 = vunpack.c.l.b16 %v3130
        %v3650 = vunpack.c.l.b16 %v3131
        %v3651 = vunpack.c.l.b16 %v3132
        %v3652 = vunpack.c.l.b16 %v3133
        %v3653 = vunpack.c.l.b16 %v3134
        %v3654 = vunpack.c.l.b16 %v3135
        %v3655 = vunpack.c.l.b16 %v3136
        %v3656 = vunpack.c.l.b16 %v3137
        %v3657 = vunpack.c.l.b16 %v3138
        %v3658 = vunpack.c.l.b16 %v3139
        %v3659 = vunpack.c.l.b16 %v3140
        %v3660 = vunpack.c.l.b16 %v3141
        %v3661 = vunpack.c.l.b16 %v3142
        %v3662 = vunpack.c.l.b16 %v3143
        %v3663 = vunpack.c.l.b16 %v3144
        %v3664 = vunpack.c.l.b16 %v3145
        %v3665 = vunpack.c.l.b16 %v3146
        %v3666 = vunpack.c.l.b16 %v3147
        %v3667 = vunpack.c.l.b16 %v3148
        %v3668 = vunpack.c.l.b16 %v3149
        %v3669 = vunpack.c.l.b16 %v3150
        %v3670 = vunpack.c.l.b16 %v3151
        %v3671 = vunpack.c.l.b16 %v3152
        %v3672 = vunpack.c.l.b16 %v3153
        %v3673 = vunpack.c.l.b16 %v3154
        %v3674 = vunpack.c.l.b16 %v3155
        %v3675 = vunpack.c.l.b16 %v3156
        %v3676 = vunpack.c.l.b16 %v3157
        %v3677 = vunpack.c.l.b16 %v3158
        %v3678 = vunpack.c.l.b16 %v3159
        %v3679 = vunpack.c.l.b16 %v3160
        %v3680 = vunpack.c.l.b16 %v3161
        %v3681 = vunpack.c.l.b16 %v3162
        %v3682 = vunpack.c.l.b16 %v3163
        %v3683 = vunpack.c.l.b16 %v3164
        %v3684 = vunpack.c.l.b16 %v3165
        %v3685 = vunpack.c.l.b16 %v3166
        %v3686 = vunpack.c.l.b16 %v3167
        %v3687 = vunpack.c.l.b16 %v3168
        %v3688 = vunpack.c.l.b16 %v3169
        %v3689 = vunpack.c.l.b16 %v3170
        %v3690 = vunpack.c.l.b16 %v3171
        %v3691 = vunpack.c.l.b16 %v3172
        %v3692 = vunpack.c.l.b16 %v3173
        %v3693 = vunpack.c.l.b16 %v3174
        %v3694 = vunpack.c.l.b16 %v3175
        %v3695 = vunpack.c.l.b16 %v3176
        %v3696 = vunpack.c.l.b16 %v3177
        %v3697 = vunpack.c.l.b16 %v3178
        %v3698 = vunpack.c.l.b16 %v3179
        %v3699 = vunpack.c.l.b16 %v3180
        %v3700 = vunpack.c.l.b16 %v3181
        %v3701 = vunpack.c.l.b16 %v3182
        %v3702 = vunpack.c.l.b16 %v3183
        %v3703 = vunpack.c.l.b16 %v3184
        %v3704 = vunpack.c.l.b16 %v3185
        %v3705 = vunpack.c.l.b16 %v3186
        %v3706 = vunpack.c.l.b16 %v3187
        %v3707 = vunpack.c.l.b16 %v3188
        %v3708 = vunpack.c.l.b16 %v3189
        %v3709 = vunpack.c.l.b16 %v3190
        %v3710 = vunpack.c.l.b16 %v3191
        %v3711 = vunpack.c.l.b16 %v3192
        %v3712 = vunpack.c.l.b16 %v3193
        %v3713 = vunpack.c.l.b16 %v3194
        %v3714 = vunpack.c.l.b16 %v3195
        %v3715 = vunpack.c.l.b16 %v3196
        %v3716 = vunpack.c.l.b16 %v3197
        %v3717 = vunpack.c.l.b16 %v3198
        %v3718 = vunpack.c.l.b16 %v3199
        %v3719 = vunpack.c.l.b16 %v3200
        %v3720 = vunpack.c.l.b16 %v3201
        %v3721 = vunpack.c.l.b16 %v3202
        %v3722 = vunpack.c.l.b16 %v3203
        %v3723 = vunpack.c.l.b16 %v3204
        %v3724 = vunpack.c.l.b16 %v3205
        %v3725 = vunpack.c.l.b16 %v3206
        %v3726 = vunpack.c.l.b16 %v3207
        %v3727 = vunpack.c.l.b16 %v3208
        %v3728 = vunpack.c.l.b16 %v3209
        %v3729 = vunpack.c.l.b16 %v3210
        %v3730 = vunpack.c.l.b16 %v3211
        %v3731 = vunpack.c.l.b16 %v3212
        %v3732 = vunpack.c.l.b16 %v3213
        %v3733 = vunpack.c.l.b16 %v3214
        %v3734 = vunpack.c.l.b16 %v3215
        %v3735 = vunpack.c.l.b16 %v3216
        %v3736 = vunpack.c.l.b16 %v3217
        %v3737 = vunpack.c.l.b16 %v3218
        %v3738 = vunpack.c.l.b16 %v3219
        %v3739 = vunpack.c.l.b16 %v3220
        %v3740 = vunpack.c.l.b16 %v3221
        %v3741 = vunpack.c.l.b16 %v3222
        %v3742 = vunpack.c.l.b16 %v3223
        %v3743 = vunpack.c.l.b16 %v3224
        %v3744 = vunpack.c.l.b16 %v3225
        %v3745 = vunpack.c.l.b16 %v3226
        %v3746 = vunpack.c.l.b16 %v3227
        %v3747 = vunpack.c.l.b16 %v3228
        %v3748 = vunpack.c.l.b16 %v3229
        %v3749 = vunpack.c.l.b16 %v3230
        %v3750 = vunpack.c.l.b16 %v3231
        %v3751 = vunpack.c.l.b16 %v3232
        %v3752 = vunpack.c.l.b16 %v3233
        %v3753 = vunpack.c.l.b16 %v3234
        %v3754 = vunpack.c.l.b16 %v3235
        %v3755 = vunpack.c.l.b16 %v3236
        %v3756 = vunpack.c.l.b16 %v3237
        %v3757 = vunpack.c.l.b16 %v3238
        %v3758 = vunpack.c.l.b16 %v3239
        %v3759 = vunpack.c.l.b16 %v3240
        %v3760 = vunpack.c.l.b16 %v3241
        %v3761 = vunpack.c.l.b16 %v3242
        %v3762 = vunpack.c.l.b16 %v3243
        %v3763 = vunpack.c.l.b16 %v3244
        %v3764 = vunpack.c.l.b16 %v3245
        %v3765 = vunpack.c.l.b16 %v3246
        %v3766 = vunpack.c.l.b16 %v3247
        %v3767 = vunpack.c.l.b16 %v3248
        %v3768 = vunpack.c.l.b16 %v3249
        %v3769 = vunpack.c.l.b16 %v3250
        %v3770 = vunpack.c.l.b16 %v3251
        %v3771 = vunpack.c.l.b16 %v3252
        %v3772 = vunpack.c.l.b16 %v3253
        %v3773 = vunpack.c.l.b16 %v3254
        %v3774 = vunpack.c.l.b16 %v3255
        %v3775 = vunpack.c.l.b16 %v3256
        %v3776 = vunpack.c.l.b16 %v3257
        %v3777 = vunpack.c.l.b16 %v3258
        %v3778 = vunpack.c.l.b16 %v3259
        %v3779 = vunpack.c.l.b16 %v3260
        %v3780 = vunpack.c.l.b16 %v3261
        %v3781 = vunpack.c.l.b16 %v3262
        %v3782 = vunpack.c.l.b16 %v3263
        %v3783 = vunpack.c.l.b16 %v3264
        %v3784 = vunpack.c.l.b16 %v3265
        %v3785 = vunpack.c.l.b16 %v3266
        %v3786 = vunpack.c.l.b16 %v3267
        %v3787 = vunpack.c.l.b16 %v3268
        %v3788 = vunpack.c.l.b16 %v3269
        %v3789 = vunpack.c.l.b16 %v3270
        %v3790 = vunpack.c.l.b16 %v3271
        %v3791 = vunpack.c.l.b16 %v3272
        %v3792 = vunpack.c.l.b16 %v3273
        %v3793 = vunpack.c.l.b16 %v3274
        %v3794 = vunpack.c.l.b16 %v3275
        %v3795 = vunpack.c.l.b16 %v3276
        %v3796 = vunpack.c.l.b16 %v3277
        %v3797 = vunpack.c.l.b16 %v3278
        %v3798 = vunpack.c.l.b16 %v3279
        %v3799 = vunpack.c.l.b16 %v3280
        %v3800 = vunpack.c.l.b16 %v3281
        %v3801 = vunpack.c.l.b16 %v3282
        %v3802 = vunpack.c.l.b16 %v3283
        %v3803 = vunpack.c.l.b16 %v3284
        %v3804 = vunpack.c.l.b16 %v3285
        %v3805 = vunpack.c.l.b16 %v3286
        %v3806 = vunpack.c.l.b16 %v3287
        %v3807 = vunpack.c.l.b16 %v3288
        %v3808 = vunpack.c.l.b16 %v3289
        %v3809 = vunpack.c.l.b16 %v3290
        %v3810 = vunpack.c.l.b16 %v3291
        %v3811 = vunpack.c.l.b16 %v3292
        %v3812 = vunpack.c.l.b16 %v3293
        %v3813 = vunpack.c.l.b16 %v3294
        %v3814 = vunpack.c.l.b16 %v3295
        %v3815 = vunpack.c.l.b16 %v3296
        %v3816 = vunpack.c.l.b16 %v3297
        %v3817 = vunpack.c.l.b16 %v3298
        %v3818 = vunpack.c.l.b16 %v3299
        %v3819 = vunpack.c.l.b16 %v3300
        %v3820 = vunpack.c.l.b16 %v3301
        %v3821 = vunpack.c.l.b16 %v3302
        %v3822 = vunpack.c.l.b16 %v3303
        %v3823 = vunpack.c.l.b16 %v3304
        %v3824 = vunpack.c.l.b16 %v3305
        %v3825 = vunpack.c.l.b16 %v3306
        %v3826 = vunpack.c.l.b16 %v3307
        %v3827 = vunpack.c.l.b16 %v3308
        %v3828 = vunpack.c.l.b16 %v3309
        %v3829 = vunpack.c.l.b16 %v3310
        %v3830 = vunpack.c.l.b16 %v3311
        %v3831 = vunpack.c.l.b16 %v3312
        %v3832 = vunpack.c.l.b16 %v3313
        %v3833 = vunpack.c.l.b16 %v3314
        %v3834 = vunpack.c.l.b16 %v3315
        %v3835 = vunpack.c.l.b16 %v3316
        %v3836 = vunpack.c.l.b16 %v3317
        %v3837 = vunpack.c.l.b16 %v3318
        %v3838 = vunpack.c.l.b16 %v3319
        %v3839 = vunpack.c.l.b16 %v3320
        %v3840 = vunpack.c.l.b16 %v3321
        %v3841 = vunpack.c.l.b16 %v3322
        %v3842 = vunpack.c.l.b16 %v3323
        %v3843 = vunpack.c.l.b16 %v3324
        %v3844 = vunpack.c.l.b16 %v3325
        %v3845 = vunpack.c.l.b16 %v3326
        %v3846 = vunpack.c.l.b16 %v3327
        %v3847 = vunpack.c.l.b16 %v3328
        %v3848 = vunpack.c.l.b16 %v3329
        %v3849 = vunpack.c.l.b16 %v3330
        %v3850 = vunpack.c.l.b16 %v3331
        %v3851 = vunpack.c.l.b16 %v3332
        %v3852 = vunpack.c.l.b16 %v3333
        %v3853 = vunpack.c.l.b16 %v3334
        %v3854 = vunpack.c.l.b16 %v3335
        %v3855 = vunpack.c.l.b16 %v3336
        %v3856 = vunpack.c.l.b16 %v3337
        %v3857 = vunpack.c.l.b16 %v3338
        %v3858 = vunpack.c.l.b16 %v3339
        %v3859 = vunpack.c.l.b16 %v3340
        %v3860 = vunpack.c.l.b16 %v3341
        %v3861 = vunpack.c.l.b16 %v3342
        %v3862 = vunpack.c.l.b16 %v3343
        %v3863 = vunpack.c.l.b16 %v3344
        %v3864 = vunpack.c.l.b16 %v3345
        %v3865 = vunpack.c.l.b16 %v3346
        %v3866 = vunpack.c.l.b16 %v3347
        %v3867 = vunpack.c.l.b16 %v3348
        %v3868 = vunpack.c.l.b16 %v3349
        %v3869 = vunpack.c.l.b16 %v3350
        %v3870 = vunpack.c.l.b16 %v3351
        %v3871 = vunpack.c.l.b16 %v3352
        %v3872 = vunpack.c.l.b16 %v3353
        %v3873 = vunpack.c.l.b16 %v3354
        %v3874 = vunpack.c.l.b16 %v3355
        %v3875 = vunpack.c.l.b16 %v3356
        %v3876 = vunpack.c.l.b16 %v3357
        %v3877 = vunpack.c.l.b16 %v3358
        %v3878 = vunpack.c.l.b16 %v3359
        %v3879 = vunpack.c.l.b16 %v3360
        %v3880 = vunpack.c.l.b16 %v3361
        %v3881 = vunpack.c.l.b16 %v3362
        %v3882 = vunpack.c.l.b16 %v3363
        %v3883 = vunpack.c.l.b16 %v3364
        %v3884 = vunpack.c.l.b16 %v3365
        %v3885 = vunpack.c.l.b16 %v3366
        %v3886 = vunpack.c.l.b16 %v3367
        %v3887 = vpack.c.b16 %v3632, %v3631
        %v3888 = vpack.c.b16 %v3634, %v3633
        %v3889 = vpack.c.b16 %v3636, %v3635
        %v3890 = vpack.c.b16 %v3638, %v3637
        %v3891 = vpack.c.b16 %v3640, %v3639
        %v3892 = vpack.c.b16 %v3642, %v3641
        %v3893 = vpack.c.b16 %v3644, %v3643
        %v3894 = vpack.c.b16 %v3646, %v3645
        %v3895 = vpack.c.b16 %v3648, %v3647
        %v3896 = vpack.c.b16 %v3650, %v3649
        %v3897 = vpack.c.b16 %v3652, %v3651
        %v3898 = vpack.c.b16 %v3654, %v3653
        %v3899 = vpack.c.b16 %v3656, %v3655
        %v3900 = vpack.c.b16 %v3658, %v3657
        %v3901 = vpack.c.b16 %v3660, %v3659
        %v3902 = vpack.c.b16 %v3662, %v3661
        %v3903 = vpack.c.b16 %v3664, %v3663
        %v3904 = vpack.c.b16 %v3666, %v3665
        %v3905 = vpack.c.b16 %v3668, %v3667
        %v3906 = vpack.c.b16 %v3670, %v3669
        %v3907 = vpack.c.b16 %v3672, %v3671
        %v3908 = vpack.c.b16 %v3674, %v3673
        %v3909 = vpack.c.b16 %v3676, %v3675
        %v3910 = vpack.c.b16 %v3678, %v3677
        %v3911 = vpack.c.b16 %v3680, %v3679
        %v3912 = vpack.c.b16 %v3682, %v3681
        %v3913 = vpack.c.b16 %v3684, %v3683
        %v3914 = vpack.c.b16 %v3686, %v3685
        %v3915 = vpack.c.b16 %v3688, %v3687
        %v3916 = vpack.c.b16 %v3690, %v3689
        %v3917 = vpack.c.b16 %v3692, %v3691
        %v3918 = vpack.c.b16 %v3694, %v3693
        %v3919 = vpack.c.b16 %v3696, %v3695
        %v3920 = vpack.c.b16 %v3698, %v3697
        %v3921 = vpack.c.b16 %v3700, %v3699
        %v3922 = vpack.c.b16 %v3702, %v3701
        %v3923 = vpack.c.b16 %v3704, %v3703
        %v3924 = vpack.c.b16 %v3706, %v3705
        %v3925 = vpack.c.b16 %v3708, %v3707
        %v3926 = vpack.c.b16 %v3710, %v3709
        %v3927 = vpack.c.b16 %v3712, %v3711
        %v3928 = vpack.c.b16 %v3714, %v3713
        %v3929 = vpack.c.b16 %v3716, %v3715
        %v3930 = vpack.c.b16 %v3718, %v3717
        %v3931 = vpack.c.b16 %v3720, %v3719
        %v3932 = vpack.c.b16 %v3722, %v3721
        %v3933 = vpack.c.b16 %v3724, %v3723
        %v3934 = vpack.c.b16 %v3726, %v3725
        %v3935 = vpack.c.b16 %v3728, %v3727
        %v3936 = vpack.c.b16 %v3730, %v3729
        %v3937 = vpack.c.b16 %v3732, %v3731
        %v3938 = vpack.c.b16 %v3734, %v3733
        %v3939 = vpack.c.b16 %v3736, %v3735
        %v3940 = vpack.c.b16 %v3738, %v3737
        %v3941 = vpack.c.b16 %v3740, %v3739
        %v3942 = vpack.c.b16 %v3742, %v3741
        %v3943 = vpack.c.b16 %v3744, %v3743
        %v3944 = vpack.c.b16 %v3746, %v3745
        %v3945 = vpack.c.b16 %v3748, %v3747
        %v3946 = vpack.c.b16 %v3750, %v3749
        %v3947 = vpack.c.b16 %v3752, %v3751
        %v3948 = vpack.c.b16 %v3754, %v3753
        %v3949 = vpack.c.b16 %v3756, %v3755
        %v3950 = vpack.c.b16 %v3758, %v3757
        %v3951 = vpack.c.b16 %v3760, %v3759
        %v3952 = vpack.c.b16 %v3762, %v3761
        %v3953 = vpack.c.b16 %v3764, %v3763
        %v3954 = vpack.c.b16 %v3766, %v3765
        %v3955 = vpack.c.b16 %v3768, %v3767
        %v3956 = vpack.c.b16 %v3770, %v3769
        %v3957 = vpack.c.b16 %v3772, %v3771
        %v3958 = vpack.c.b16 %v3774, %v3773
        %v3959 = vpack.c.b16 %v3776, %v3775
        %v3960 = vpack.c.b16 %v3778, %v3777
        %v3961 = vpack.c.b16 %v3780, %v3779
        %v3962 = vpack.c.b16 %v3782, %v3781
        %v3963 = vpack.c.b16 %v3784, %v3783
        %v3964 = vpack.c.b16 %v3786, %v3785
        %v3965 = vpack.c.b16 %v3788, %v3787
        %v3966 = vpack.c.b16 %v3790, %v3789
        %v3967 = vpack.c.b16 %v3792, %v3791
        %v3968 = vpack.c.b16 %v3794, %v3793
        %v3969 = vpack.c.b16 %v3796, %v3795
        %v3970 = vpack.c.b16 %v3798, %v3797
        %v3971 = vpack.c.b16 %v3800, %v3799
        %v3972 = vpack.c.b16 %v3802, %v3801
        %v3973 = vpack.c.b16 %v3804, %v3803
        %v3974 = vpack.c.b16 %v3806, %v3805
        %v3975 = vpack.c.b16 %v3808, %v3807
        %v3976 = vpack.c.b16 %v3810, %v3809
        %v3977 = vpack.c.b16 %v3812, %v3811
        %v3978 = vpack.c.b16 %v3814, %v3813
        %v3979 = vpack.c.b16 %v3816, %v3815
        %v3980 = vpack.c.b16 %v3818, %v3817
        %v3981 = vpack.c.b16 %v3820, %v3819
        %v3982 = vpack.c.b16 %v3822, %v3821
        %v3983 = vpack.c.b16 %v3824, %v3823
        %v3984 = vpack.c.b16 %v3826, %v3825
        %v3985 = vpack.c.b16 %v3828, %v3827
        %v3986 = vpack.c.b16 %v3830, %v3829
        %v3987 = vpack.c.b16 %v3832, %v3831
        %v3988 = vpack.c.b16 %v3834, %v3833
        %v3989 = vpack.c.b16 %v3836, %v3835
        %v3990 = vpack.c.b16 %v3838, %v3837
        %v3991 = vpack.c.b16 %v3840, %v3839
        %v3992 = vpack.c.b16 %v3842, %v3841
        %v3993 = vpack.c.b16 %v3844, %v3843
        %v3994 = vpack.c.b16 %v3846, %v3845
        %v3995 = vpack.c.b16 %v3848, %v3847
        %v3996 = vpack.c.b16 %v3850, %v3849
        %v3997 = vpack.c.b16 %v3852, %v3851
        %v3998 = vpack.c.b16 %v3854, %v3853
        %v3999 = vpack.c.b16 %v3856, %v3855
        %v4000 = vpack.c.b16 %v3858, %v3857
        %v4001 = vpack.c.b16 %v3860, %v3859
        %v4002 = vpack.c.b16 %v3862, %v3861
        %v4003 = vpack.c.b16 %v3864, %v3863
        %v4004 = vpack.c.b16 %v3866, %v3865
        %v4005 = vpack.c.b16 %v3868, %v3867
        %v4006 = vpack.c.b16 %v3870, %v3869
        %v4007 = vpack.c.b16 %v3872, %v3871
        %v4008 = vpack.c.b16 %v3874, %v3873
        %v4009 = vpack.c.b16 %v3876, %v3875
        %v4010 = vpack.c.b16 %v3878, %v3877
        %v4011 = vpack.c.b16 %v3880, %v3879
        %v4012 = vpack.c.b16 %v3882, %v3881
        %v4013 = vpack.c.b16 %v3884, %v3883
        %v4014 = vpack.c.b16 %v3886, %v3885
        %4143 = vmatprep.subr.bf16.mxu0 0
        %4144 = vmatpush1.bf16.msra.mxu0 %v3887
        %4145 = vmatprep.subr.bf16.mxu0 0
        %4146 = vmatpush1.bf16.msra.mxu0 %v3888
        %4147 = vmatprep.subr.bf16.mxu0 0
        %4148 = vmatpush1.bf16.msra.mxu0 %v3889
        %4149 = vmatprep.subr.bf16.mxu0 0
        %4150 = vmatpush1.bf16.msra.mxu0 %v3890
        %4151 = vmatprep.subr.bf16.mxu0 0
        %4152 = vmatpush1.bf16.msra.mxu0 %v3891
        %4153 = vmatprep.subr.bf16.mxu0 0
        %4154 = vmatpush1.bf16.msra.mxu0 %v3892
        %4155 = vmatprep.subr.bf16.mxu0 0
        %4156 = vmatpush1.bf16.msra.mxu0 %v3893
        %4157 = vmatprep.subr.bf16.mxu0 0
        %4158 = vmatpush1.bf16.msra.mxu0 %v3894
        %4159 = vmatprep.subr.bf16.mxu0 0
        %4160 = vmatpush1.bf16.msra.mxu0 %v3895
        %4161 = vmatprep.subr.bf16.mxu0 0
        %4162 = vmatpush1.bf16.msra.mxu0 %v3896
        %4163 = vmatprep.subr.bf16.mxu0 0
        %4164 = vmatpush1.bf16.msra.mxu0 %v3897
        %4165 = vmatprep.subr.bf16.mxu0 0
        %4166 = vmatpush1.bf16.msra.mxu0 %v3898
        %4167 = vmatprep.subr.bf16.mxu0 0
        %4168 = vmatpush1.bf16.msra.mxu0 %v3899
        %4169 = vmatprep.subr.bf16.mxu0 0
        %4170 = vmatpush1.bf16.msra.mxu0 %v3900
        %4171 = vmatprep.subr.bf16.mxu0 0
        %4172 = vmatpush1.bf16.msra.mxu0 %v3901
        %4173 = vmatprep.subr.bf16.mxu0 0
        %4174 = vmatpush1.bf16.msra.mxu0 %v3902
        %4175 = vmatprep.mubr.bf16.mxu0 %v3097
        %4176 = vmatmul.mubr.bf16.gmra.mrb[0].mxu0 %v3096
        %v4177 = vpop.f32.mrb[0].mxu0
        %v4178 = vadd.f32 %v3373, %v4177
        %v4179 = vpop.f32.mrb[0].mxu0
        %v4180 = vpop.f32.mrb[0].mxu0
        %v4181 = vpop.f32.mrb[0].mxu0
        %4182 = vdwg.mxu0
        %4183 = vmatprep.subr.bf16.mxu0 0
        %4184 = vmatpush1.bf16.msra.mxu0 %v3903
        %4185 = vmatprep.subr.bf16.mxu0 0
        %4186 = vmatpush1.bf16.msra.mxu0 %v3904
        %4187 = vmatprep.subr.bf16.mxu0 0
        %4188 = vmatpush1.bf16.msra.mxu0 %v3905
        %4189 = vmatprep.subr.bf16.mxu0 0
        %4190 = vmatpush1.bf16.msra.mxu0 %v3906
        %4191 = vmatprep.subr.bf16.mxu0 0
        %4192 = vmatpush1.bf16.msra.mxu0 %v3907
        %4193 = vmatprep.subr.bf16.mxu0 0
        %4194 = vmatpush1.bf16.msra.mxu0 %v3908
        %4195 = vmatprep.subr.bf16.mxu0 0
        %4196 = vmatpush1.bf16.msra.mxu0 %v3909
        %4197 = vmatprep.subr.bf16.mxu0 0
        %4198 = vmatpush1.bf16.msra.mxu0 %v3910
        %4199 = vmatprep.subr.bf16.mxu0 0
        %4200 = vmatpush1.bf16.msra.mxu0 %v3911
        %4201 = vmatprep.subr.bf16.mxu0 0
        %4202 = vmatpush1.bf16.msra.mxu0 %v3912
        %4203 = vmatprep.subr.bf16.mxu0 0
        %4204 = vmatpush1.bf16.msra.mxu0 %v3913
        %4205 = vmatprep.subr.bf16.mxu0 0
        %4206 = vmatpush1.bf16.msra.mxu0 %v3914
        %4207 = vmatprep.subr.bf16.mxu0 0
        %4208 = vmatpush1.bf16.msra.mxu0 %v3915
        %4209 = vmatprep.subr.bf16.mxu0 0
        %4210 = vmatpush1.bf16.msra.mxu0 %v3916
        %4211 = vmatprep.subr.bf16.mxu0 0
        %4212 = vmatpush1.bf16.msra.mxu0 %v3917
        %4213 = vmatprep.subr.bf16.mxu0 0
        %4214 = vmatpush1.bf16.msra.mxu0 %v3918
        %4215 = vmatprep.mubr.bf16.mxu0 %v3099
        %4216 = vmatmul.mubr.bf16.gmra.mrb[0].mxu0 %v3098
        %v4217 = vpop.f32.mrb[0].mxu0
        %v4218 = vadd.f32 %v4178, %v4217
        %v4219 = vpop.f32.mrb[0].mxu0
        %v4220 = vpop.f32.mrb[0].mxu0
        %v4221 = vpop.f32.mrb[0].mxu0
        %4222 = vdwg.mxu0
        %4223 = vmatprep.subr.bf16.mxu0 0
        %4224 = vmatpush1.bf16.msra.mxu0 %v3919
        %4225 = vmatprep.subr.bf16.mxu0 0
        %4226 = vmatpush1.bf16.msra.mxu0 %v3920
        %4227 = vmatprep.subr.bf16.mxu0 0
        %4228 = vmatpush1.bf16.msra.mxu0 %v3921
        %4229 = vmatprep.subr.bf16.mxu0 0
        %4230 = vmatpush1.bf16.msra.mxu0 %v3922
        %4231 = vmatprep.subr.bf16.mxu0 0
        %4232 = vmatpush1.bf16.msra.mxu0 %v3923
        %4233 = vmatprep.subr.bf16.mxu0 0
        %4234 = vmatpush1.bf16.msra.mxu0 %v3924
        %4235 = vmatprep.subr.bf16.mxu0 0
        %4236 = vmatpush1.bf16.msra.mxu0 %v3925
        %4237 = vmatprep.subr.bf16.mxu0 0
        %4238 = vmatpush1.bf16.msra.mxu0 %v3926
        %4239 = vmatprep.subr.bf16.mxu0 0
        %4240 = vmatpush1.bf16.msra.mxu0 %v3927
        %4241 = vmatprep.subr.bf16.mxu0 0
        %4242 = vmatpush1.bf16.msra.mxu0 %v3928
        %4243 = vmatprep.subr.bf16.mxu0 0
        %4244 = vmatpush1.bf16.msra.mxu0 %v3929
        %4245 = vmatprep.subr.bf16.mxu0 0
        %4246 = vmatpush1.bf16.msra.mxu0 %v3930
        %4247 = vmatprep.subr.bf16.mxu0 0
        %4248 = vmatpush1.bf16.msra.mxu0 %v3931
        %4249 = vmatprep.subr.bf16.mxu0 0
        %4250 = vmatpush1.bf16.msra.mxu0 %v3932
        %4251 = vmatprep.subr.bf16.mxu0 0
        %4252 = vmatpush1.bf16.msra.mxu0 %v3933
        %4253 = vmatprep.subr.bf16.mxu0 0
        %4254 = vmatpush1.bf16.msra.mxu0 %v3934
        %4255 = vmatprep.mubr.bf16.mxu0 %v3101
        %4256 = vmatmul.mubr.bf16.gmra.mrb[0].mxu0 %v3100
        %v4257 = vpop.f32.mrb[0].mxu0
        %v4258 = vadd.f32 %v4218, %v4257
        %v4259 = vpop.f32.mrb[0].mxu0
        %v4260 = vpop.f32.mrb[0].mxu0
        %v4261 = vpop.f32.mrb[0].mxu0
        %4262 = vdwg.mxu0
        %4263 = vmatprep.subr.bf16.mxu0 0
        %4264 = vmatpush1.bf16.msra.mxu0 %v3935
        %4265 = vmatprep.subr.bf16.mxu0 0
        %4266 = vmatpush1.bf16.msra.mxu0 %v3936
        %4267 = vmatprep.subr.bf16.mxu0 0
        %4268 = vmatpush1.bf16.msra.mxu0 %v3937
        %4269 = vmatprep.subr.bf16.mxu0 0
        %4270 = vmatpush1.bf16.msra.mxu0 %v3938
        %4271 = vmatprep.subr.bf16.mxu0 0
        %4272 = vmatpush1.bf16.msra.mxu0 %v3939
        %4273 = vmatprep.subr.bf16.mxu0 0
        %4274 = vmatpush1.bf16.msra.mxu0 %v3940
        %4275 = vmatprep.subr.bf16.mxu0 0
        %4276 = vmatpush1.bf16.msra.mxu0 %v3941
        %4277 = vmatprep.subr.bf16.mxu0 0
        %4278 = vmatpush1.bf16.msra.mxu0 %v3942
        %4279 = vmatprep.subr.bf16.mxu0 0
        %4280 = vmatpush1.bf16.msra.mxu0 %v3943
        %4281 = vmatprep.subr.bf16.mxu0 0
        %4282 = vmatpush1.bf16.msra.mxu0 %v3944
        %4283 = vmatprep.subr.bf16.mxu0 0
        %4284 = vmatpush1.bf16.msra.mxu0 %v3945
        %4285 = vmatprep.subr.bf16.mxu0 0
        %4286 = vmatpush1.bf16.msra.mxu0 %v3946
        %4287 = vmatprep.subr.bf16.mxu0 0
        %4288 = vmatpush1.bf16.msra.mxu0 %v3947
        %4289 = vmatprep.subr.bf16.mxu0 0
        %4290 = vmatpush1.bf16.msra.mxu0 %v3948
        %4291 = vmatprep.subr.bf16.mxu0 0
        %4292 = vmatpush1.bf16.msra.mxu0 %v3949
        %4293 = vmatprep.subr.bf16.mxu0 0
        %4294 = vmatpush1.bf16.msra.mxu0 %v3950
        %4295 = vmatprep.mubr.bf16.mxu0 %v3103
        %4296 = vmatmul.mubr.bf16.gmra.mrb[0].mxu0 %v3102
        %v4297 = vpop.f32.mrb[0].mxu0
        %v4298 = vadd.f32 %v4258, %v4297
        %v4299 = vpop.f32.mrb[0].mxu0
        %v4300 = vpop.f32.mrb[0].mxu0
        %v4301 = vpop.f32.mrb[0].mxu0
        %4302 = vdwg.mxu0
        %4303 = vmatprep.subr.bf16.mxu0 0
        %4304 = vmatpush1.bf16.msra.mxu0 %v3951
        %4305 = vmatprep.subr.bf16.mxu0 0
        %4306 = vmatpush1.bf16.msra.mxu0 %v3952
        %4307 = vmatprep.subr.bf16.mxu0 0
        %4308 = vmatpush1.bf16.msra.mxu0 %v3953
        %4309 = vmatprep.subr.bf16.mxu0 0
        %4310 = vmatpush1.bf16.msra.mxu0 %v3954
        %4311 = vmatprep.subr.bf16.mxu0 0
        %4312 = vmatpush1.bf16.msra.mxu0 %v3955
        %4313 = vmatprep.subr.bf16.mxu0 0
        %4314 = vmatpush1.bf16.msra.mxu0 %v3956
        %4315 = vmatprep.subr.bf16.mxu0 0
        %4316 = vmatpush1.bf16.msra.mxu0 %v3957
        %4317 = vmatprep.subr.bf16.mxu0 0
        %4318 = vmatpush1.bf16.msra.mxu0 %v3958
        %4319 = vmatprep.subr.bf16.mxu0 0
        %4320 = vmatpush1.bf16.msra.mxu0 %v3959
        %4321 = vmatprep.subr.bf16.mxu0 0
        %4322 = vmatpush1.bf16.msra.mxu0 %v3960
        %4323 = vmatprep.subr.bf16.mxu0 0
        %4324 = vmatpush1.bf16.msra.mxu0 %v3961
        %4325 = vmatprep.subr.bf16.mxu0 0
        %4326 = vmatpush1.bf16.msra.mxu0 %v3962
        %4327 = vmatprep.subr.bf16.mxu0 0
        %4328 = vmatpush1.bf16.msra.mxu0 %v3963
        %4329 = vmatprep.subr.bf16.mxu0 0
        %4330 = vmatpush1.bf16.msra.mxu0 %v3964
        %4331 = vmatprep.subr.bf16.mxu0 0
        %4332 = vmatpush1.bf16.msra.mxu0 %v3965
        %4333 = vmatprep.subr.bf16.mxu0 0
        %4334 = vmatpush1.bf16.msra.mxu0 %v3966
        %4335 = vmatprep.mubr.bf16.mxu0 %v3105
        %4336 = vmatmul.mubr.bf16.gmra.mrb[0].mxu0 %v3104
        %v4337 = vpop.f32.mrb[0].mxu0
        %v4338 = vadd.f32 %v4298, %v4337
        %v4339 = vpop.f32.mrb[0].mxu0
        %v4340 = vpop.f32.mrb[0].mxu0
        %v4341 = vpop.f32.mrb[0].mxu0
        %4342 = vdwg.mxu0
        %4343 = vmatprep.subr.bf16.mxu0 0
        %4344 = vmatpush1.bf16.msra.mxu0 %v3967
        %4345 = vmatprep.subr.bf16.mxu0 0
        %4346 = vmatpush1.bf16.msra.mxu0 %v3968
        %4347 = vmatprep.subr.bf16.mxu0 0
        %4348 = vmatpush1.bf16.msra.mxu0 %v3969
        %4349 = vmatprep.subr.bf16.mxu0 0
        %4350 = vmatpush1.bf16.msra.mxu0 %v3970
        %4351 = vmatprep.subr.bf16.mxu0 0
        %4352 = vmatpush1.bf16.msra.mxu0 %v3971
        %4353 = vmatprep.subr.bf16.mxu0 0
        %4354 = vmatpush1.bf16.msra.mxu0 %v3972
        %4355 = vmatprep.subr.bf16.mxu0 0
        %4356 = vmatpush1.bf16.msra.mxu0 %v3973
        %4357 = vmatprep.subr.bf16.mxu0 0
        %4358 = vmatpush1.bf16.msra.mxu0 %v3974
        %4359 = vmatprep.subr.bf16.mxu0 0
        %4360 = vmatpush1.bf16.msra.mxu0 %v3975
        %4361 = vmatprep.subr.bf16.mxu0 0
        %4362 = vmatpush1.bf16.msra.mxu0 %v3976
        %4363 = vmatprep.subr.bf16.mxu0 0
        %4364 = vmatpush1.bf16.msra.mxu0 %v3977
        %4365 = vmatprep.subr.bf16.mxu0 0
        %4366 = vmatpush1.bf16.msra.mxu0 %v3978
        %4367 = vmatprep.subr.bf16.mxu0 0
        %4368 = vmatpush1.bf16.msra.mxu0 %v3979
        %4369 = vmatprep.subr.bf16.mxu0 0
        %4370 = vmatpush1.bf16.msra.mxu0 %v3980
        %4371 = vmatprep.subr.bf16.mxu0 0
        %4372 = vmatpush1.bf16.msra.mxu0 %v3981
        %4373 = vmatprep.subr.bf16.mxu0 0
        %4374 = vmatpush1.bf16.msra.mxu0 %v3982
        %4375 = vmatprep.mubr.bf16.mxu0 %v3107
        %4376 = vmatmul.mubr.bf16.gmra.mrb[0].mxu0 %v3106
        %v4377 = vpop.f32.mrb[0].mxu0
        %v4378 = vadd.f32 %v4338, %v4377
        %v4379 = vpop.f32.mrb[0].mxu0
        %v4380 = vpop.f32.mrb[0].mxu0
        %v4381 = vpop.f32.mrb[0].mxu0
        %4382 = vdwg.mxu0
        %4383 = vmatprep.subr.bf16.mxu0 0
        %4384 = vmatpush1.bf16.msra.mxu0 %v3983
        %4385 = vmatprep.subr.bf16.mxu0 0
        %4386 = vmatpush1.bf16.msra.mxu0 %v3984
        %4387 = vmatprep.subr.bf16.mxu0 0
        %4388 = vmatpush1.bf16.msra.mxu0 %v3985
        %4389 = vmatprep.subr.bf16.mxu0 0
        %4390 = vmatpush1.bf16.msra.mxu0 %v3986
        %4391 = vmatprep.subr.bf16.mxu0 0
        %4392 = vmatpush1.bf16.msra.mxu0 %v3987
        %4393 = vmatprep.subr.bf16.mxu0 0
        %4394 = vmatpush1.bf16.msra.mxu0 %v3988
        %4395 = vmatprep.subr.bf16.mxu0 0
        %4396 = vmatpush1.bf16.msra.mxu0 %v3989
        %4397 = vmatprep.subr.bf16.mxu0 0
        %4398 = vmatpush1.bf16.msra.mxu0 %v3990
        %4399 = vmatprep.subr.bf16.mxu0 0
        %4400 = vmatpush1.bf16.msra.mxu0 %v3991
        %4401 = vmatprep.subr.bf16.mxu0 0
        %4402 = vmatpush1.bf16.msra.mxu0 %v3992
        %4403 = vmatprep.subr.bf16.mxu0 0
        %4404 = vmatpush1.bf16.msra.mxu0 %v3993
        %4405 = vmatprep.subr.bf16.mxu0 0
        %4406 = vmatpush1.bf16.msra.mxu0 %v3994
        %4407 = vmatprep.subr.bf16.mxu0 0
        %4408 = vmatpush1.bf16.msra.mxu0 %v3995
        %4409 = vmatprep.subr.bf16.mxu0 0
        %4410 = vmatpush1.bf16.msra.mxu0 %v3996
        %4411 = vmatprep.subr.bf16.mxu0 0
        %4412 = vmatpush1.bf16.msra.mxu0 %v3997
        %4413 = vmatprep.subr.bf16.mxu0 0
        %4414 = vmatpush1.bf16.msra.mxu0 %v3998
        %4415 = vmatprep.mubr.bf16.mxu0 %v3109
        %4416 = vmatmul.mubr.bf16.gmra.mrb[0].mxu0 %v3108
        %v4417 = vpop.f32.mrb[0].mxu0
        %v4418 = vadd.f32 %v4378, %v4417
        %v4419 = vpop.f32.mrb[0].mxu0
        %v4420 = vpop.f32.mrb[0].mxu0
        %v4421 = vpop.f32.mrb[0].mxu0
        %4422 = vdwg.mxu0
        %4423 = vmatprep.subr.bf16.mxu0 0
        %4424 = vmatpush1.bf16.msra.mxu0 %v3999
        %4425 = vmatprep.subr.bf16.mxu0 0
        %4426 = vmatpush1.bf16.msra.mxu0 %v4000
        %4427 = vmatprep.subr.bf16.mxu0 0
        %4428 = vmatpush1.bf16.msra.mxu0 %v4001
        %4429 = vmatprep.subr.bf16.mxu0 0
        %4430 = vmatpush1.bf16.msra.mxu0 %v4002
        %4431 = vmatprep.subr.bf16.mxu0 0
        %4432 = vmatpush1.bf16.msra.mxu0 %v4003
        %4433 = vmatprep.subr.bf16.mxu0 0
        %4434 = vmatpush1.bf16.msra.mxu0 %v4004
        %4435 = vmatprep.subr.bf16.mxu0 0
        %4436 = vmatpush1.bf16.msra.mxu0 %v4005
        %4437 = vmatprep.subr.bf16.mxu0 0
        %4438 = vmatpush1.bf16.msra.mxu0 %v4006
        %4439 = vmatprep.subr.bf16.mxu0 0
        %4440 = vmatpush1.bf16.msra.mxu0 %v4007
        %4441 = vmatprep.subr.bf16.mxu0 0
        %4442 = vmatpush1.bf16.msra.mxu0 %v4008
        %4443 = vmatprep.subr.bf16.mxu0 0
        %4444 = vmatpush1.bf16.msra.mxu0 %v4009
        %4445 = vmatprep.subr.bf16.mxu0 0
        %4446 = vmatpush1.bf16.msra.mxu0 %v4010
        %4447 = vmatprep.subr.bf16.mxu0 0
        %4448 = vmatpush1.bf16.msra.mxu0 %v4011
        %4449 = vmatprep.subr.bf16.mxu0 0
        %4450 = vmatpush1.bf16.msra.mxu0 %v4012
        %4451 = vmatprep.subr.bf16.mxu0 0
        %4452 = vmatpush1.bf16.msra.mxu0 %v4013
        %4453 = vmatprep.subr.bf16.mxu0 0
        %4454 = vmatpush1.bf16.msra.mxu0 %v4014
        %4455 = vmatprep.mubr.bf16.mxu0 %v3111
        %4456 = vmatmul.mubr.bf16.gmra.mrb[0].mxu0 %v3110
        %v4457 = vpop.f32.mrb[0].mxu0
        %v4458 = vadd.f32 %v4418, %v4457
        %v4459 = vpop.f32.mrb[0].mxu0
        %v4460 = vpop.f32.mrb[0].mxu0
        %v4461 = vpop.f32.mrb[0].mxu0
        %4462 = vdwg.mxu0
        %v4463 = vadd.f32 %v1834, %v4458
        %v4464 = vld [vmem:[%s11] sm:$0x1]
        %v4465 = vld [vmem:[%s12] sm:$0x1]
        %4466 = vadd.xlane.f32.xlu0 %v4463
        %v4467 = vpop.xlane.xlu0 %4466
        %v4468 = vmul.f32 %v4467, %v1811
        %v4469 = vsub.f32 %v4463, %v4468
        %v4470 = vmul.f32 %v4469, %v4469
        %4471 = vadd.xlane.f32.xlu0 %v4470
        %v4472 = vpop.xlane.xlu0 %4471
        %v4473 = vmul.f32 %v4472, %v1811
        %v4474 = vadd.f32 %v4473, 1e-05
        %v4475 = vrsqrt.pop %v4474
        %v4476 = vmul.f32 %v4469, %v4475
        %v4478 = vlaneseq
        %v4479 = vshrl.u32 %v4478, 7
        %v4480 = vsub.s32 0, %v4479
        %v4481 = vrot.slane %v4464, %v4480
        %v4483 = vmul.f32 %v4476, %v4481
        %v4485 = vlaneseq
        %v4486 = vshrl.u32 %v4485, 7
        %v4487 = vsub.s32 0, %v4486
        %v4488 = vrot.slane %v4465, %v4487
        %v4490 = vadd.f32 %v4483, %v4488
        %v4491 = vpack.c.bf16 %v4490, %v4490
        %s4492 = scalar_lea.vmem [#allocation2], 192
        %v4493 = vld [vmem:[%s4492] sm:$0xff]
        %v4494 = vld [vmem:[%s4492 + $0x8] sm:$0xf]
        %v4495 = vld [vmem:[%s4492 + $0xc] sm:$0xff]
        %v4496 = vld [vmem:[%s4492 + $0x14] sm:$0xf]
        %v4497 = vld [vmem:[%s4492 + $0x18] sm:$0xff]
        %v4498 = vld [vmem:[%s4492 + $0x20] sm:$0xf]
        %v4499 = vld [vmem:[%s4492 + $0x24] sm:$0xff]
        %v4500 = vld [vmem:[%s4492 + $0x2c] sm:$0xf]
        %v4501 = vld [vmem:[%s4492 + $0x30] sm:$0xff]
        %v4502 = vld [vmem:[%s4492 + $0x38] sm:$0xf]
        %v4503 = vld [vmem:[%s4492 + $0x3c] sm:$0xff]
        %v4504 = vld [vmem:[%s4492 + $0x44] sm:$0xf]
        %v4505 = vld [vmem:[%s4492 + $0x48] sm:$0xff]
        %v4506 = vld [vmem:[%s4492 + $0x50] sm:$0xf]
        %v4507 = vld [vmem:[%s4492 + $0x54] sm:$0xff]
        %v4508 = vld [vmem:[%s4492 + $0x5c] sm:$0xf]
        %v4509 = vld [vmem:[%s4492 + $0x60] sm:$0xff]
        %v4510 = vld [vmem:[%s4492 + $0x68] sm:$0xf]
        %v4511 = vld [vmem:[%s4492 + $0x6c] sm:$0xff]
        %v4512 = vld [vmem:[%s4492 + $0x74] sm:$0xf]
        %v4513 = vld [vmem:[%s4492 + $0x78] sm:$0xff]
        %v4514 = vld [vmem:[%s4492 + $0x80] sm:$0xf]
        %v4515 = vld [vmem:[%s4492 + $0x84] sm:$0xff]
        %v4516 = vld [vmem:[%s4492 + $0x8c] sm:$0xf]
        %v4517 = vld [vmem:[%s4492 + $0x90] sm:$0xff]
        %v4518 = vld [vmem:[%s4492 + $0x98] sm:$0xf]
        %v4519 = vld [vmem:[%s4492 + $0x9c] sm:$0xff]
        %v4520 = vld [vmem:[%s4492 + $0xa4] sm:$0xf]
        %v4521 = vld [vmem:[%s4492 + $0xa8] sm:$0xff]
        %v4522 = vld [vmem:[%s4492 + $0xb0] sm:$0xf]
        %v4523 = vld [vmem:[%s4492 + $0xb4] sm:$0xff]
        %v4524 = vld [vmem:[%s4492 + $0xbc] sm:$0xf]
        %s4525 = scalar_lea.vmem %s2, 3
        %v4526 = vld [vmem:[%s4525] sm:$0x7]
        %v4528 = vlaneseq
        %v4529 = vshrl.u32 %v4528, 7
        %v4530 = vsub.s32 0, %v4529
        %v4531 = vrot.slane %v4526, %v4530
        %v4532 = vlaneseq
        %v4533 = vshrl.u32 %v4532, 7
        %v4534 = vsub.s32 1, %v4533
        %v4535 = vrot.slane %v4526, %v4534
        %v4536 = vlaneseq
        %v4537 = vshrl.u32 %v4536, 7
        %v4538 = vsub.s32 2, %v4537
        %v4539 = vrot.slane %v4526, %v4538
        %v4575 = vunpack.c.l.b16 %v4493
        %v4576 = vunpack.c.h.b16 %v4493
        %v4577 = vunpack.c.l.b16 %v4494
        %v4578 = vunpack.c.l.b16 %v4495
        %v4579 = vunpack.c.h.b16 %v4495
        %v4580 = vunpack.c.l.b16 %v4496
        %v4581 = vunpack.c.l.b16 %v4497
        %v4582 = vunpack.c.h.b16 %v4497
        %v4583 = vunpack.c.l.b16 %v4498
        %v4584 = vunpack.c.l.b16 %v4499
        %v4585 = vunpack.c.h.b16 %v4499
        %v4586 = vunpack.c.l.b16 %v4500
        %v4587 = vunpack.c.l.b16 %v4501
        %v4588 = vunpack.c.h.b16 %v4501
        %v4589 = vunpack.c.l.b16 %v4502
        %v4590 = vunpack.c.l.b16 %v4503
        %v4591 = vunpack.c.h.b16 %v4503
        %v4592 = vunpack.c.l.b16 %v4504
        %v4593 = vunpack.c.l.b16 %v4505
        %v4594 = vunpack.c.h.b16 %v4505
        %v4595 = vunpack.c.l.b16 %v4506
        %v4596 = vunpack.c.l.b16 %v4507
        %v4597 = vunpack.c.h.b16 %v4507
        %v4598 = vunpack.c.l.b16 %v4508
        %v4599 = vunpack.c.l.b16 %v4509
        %v4600 = vunpack.c.h.b16 %v4509
        %v4601 = vunpack.c.l.b16 %v4510
        %v4602 = vunpack.c.l.b16 %v4511
        %v4603 = vunpack.c.h.b16 %v4511
        %v4604 = vunpack.c.l.b16 %v4512
        %v4605 = vunpack.c.l.b16 %v4513
        %v4606 = vunpack.c.h.b16 %v4513
        %v4607 = vunpack.c.l.b16 %v4514
        %v4608 = vunpack.c.l.b16 %v4515
        %v4609 = vunpack.c.h.b16 %v4515
        %v4610 = vunpack.c.l.b16 %v4516
        %v4611 = vunpack.c.l.b16 %v4517
        %v4612 = vunpack.c.h.b16 %v4517
        %v4613 = vunpack.c.l.b16 %v4518
        %v4614 = vunpack.c.l.b16 %v4519
        %v4615 = vunpack.c.h.b16 %v4519
        %v4616 = vunpack.c.l.b16 %v4520
        %v4617 = vunpack.c.l.b16 %v4521
        %v4618 = vunpack.c.h.b16 %v4521
        %v4619 = vunpack.c.l.b16 %v4522
        %v4620 = vunpack.c.l.b16 %v4523
        %v4621 = vunpack.c.h.b16 %v4523
        %v4622 = vunpack.c.l.b16 %v4524
        %v4623 = vpack.c.b16 %v4578, %v4575
        %v4624 = vpack.c.b16 %v4579, %v4576
        %v4625 = vpack.c.b16 %v4580, %v4577
        %v4626 = vpack.c.b16 %v4584, %v4581
        %v4627 = vpack.c.b16 %v4585, %v4582
        %v4628 = vpack.c.b16 %v4586, %v4583
        %v4629 = vpack.c.b16 %v4590, %v4587
        %v4630 = vpack.c.b16 %v4591, %v4588
        %v4631 = vpack.c.b16 %v4592, %v4589
        %v4632 = vpack.c.b16 %v4596, %v4593
        %v4633 = vpack.c.b16 %v4597, %v4594
        %v4634 = vpack.c.b16 %v4598, %v4595
        %v4635 = vpack.c.b16 %v4602, %v4599
        %v4636 = vpack.c.b16 %v4603, %v4600
        %v4637 = vpack.c.b16 %v4604, %v4601
        %v4638 = vpack.c.b16 %v4608, %v4605
        %v4639 = vpack.c.b16 %v4609, %v4606
        %v4640 = vpack.c.b16 %v4610, %v4607
        %v4641 = vpack.c.b16 %v4614, %v4611
        %v4642 = vpack.c.b16 %v4615, %v4612
        %v4643 = vpack.c.b16 %v4616, %v4613
        %v4644 = vpack.c.b16 %v4620, %v4617
        %v4645 = vpack.c.b16 %v4621, %v4618
        %v4646 = vpack.c.b16 %v4622, %v4619
        %4671 = vmatprep.subr.bf16.mxu0 %v4624
        %4672 = vmatpush1.bf16.msra.mxu0 %v4623
        %4673 = vmatprep.subr.bf16.mxu0 %v4627
        %4674 = vmatpush1.bf16.msra.mxu0 %v4626
        %4675 = vmatprep.subr.bf16.mxu0 %v4630
        %4676 = vmatpush1.bf16.msra.mxu0 %v4629
        %4677 = vmatprep.subr.bf16.mxu0 %v4633
        %4678 = vmatpush1.bf16.msra.mxu0 %v4632
        %4679 = vmatprep.subr.bf16.mxu0 %v4636
        %4680 = vmatpush1.bf16.msra.mxu0 %v4635
        %4681 = vmatprep.subr.bf16.mxu0 %v4639
        %4682 = vmatpush1.bf16.msra.mxu0 %v4638
        %4683 = vmatprep.subr.bf16.mxu0 %v4642
        %4684 = vmatpush1.bf16.msra.mxu0 %v4641
        %4685 = vmatprep.subr.bf16.mxu0 %v4645
        %4686 = vmatpush1.bf16.msra.mxu0 %v4644
        %4687 = vmatprep.subr.bf16.mxu0 0
        %4688 = vmatpush1.bf16.msra.mxu0 0
        %4689 = vmatprep.subr.bf16.mxu0 0
        %4690 = vmatpush1.bf16.msra.mxu0 0
        %4691 = vmatprep.subr.bf16.mxu0 0
        %4692 = vmatpush1.bf16.msra.mxu0 0
        %4693 = vmatprep.subr.bf16.mxu0 0
        %4694 = vmatpush1.bf16.msra.mxu0 0
        %4695 = vmatprep.subr.bf16.mxu0 0
        %4696 = vmatpush1.bf16.msra.mxu0 0
        %4697 = vmatprep.subr.bf16.mxu0 0
        %4698 = vmatpush1.bf16.msra.mxu0 0
        %4699 = vmatprep.subr.bf16.mxu0 0
        %4700 = vmatpush1.bf16.msra.mxu0 0
        %4701 = vmatprep.subr.bf16.mxu0 0
        %4702 = vmatpush1.bf16.msra.mxu0 0
        %4703 = vmatprep.mubr.bf16.mxu0 0
        %4704 = vmatmul.mubr.bf16.gmra.mrb[0].mxu0 %v4491
        %v4705 = vpop.f32.mrb[0].mxu0
        %v4706 = vadd.f32 %v4531, %v4705
        %v4707 = vpop.f32.mrb[0].mxu0
        %v4708 = vadd.f32 %v4535, %v4707
        %v4709 = vpop.f32.mrb[0].mxu0
        %v4710 = vpop.f32.mrb[0].mxu0
        %4711 = vdwg.mxu0
        %4712 = vmatprep.subr.bf16.mxu0 0
        %4713 = vmatpush1.bf16.msra.mxu0 %v4625
        %4714 = vmatprep.subr.bf16.mxu0 0
        %4715 = vmatpush1.bf16.msra.mxu0 %v4628
        %4716 = vmatprep.subr.bf16.mxu0 0
        %4717 = vmatpush1.bf16.msra.mxu0 %v4631
        %4718 = vmatprep.subr.bf16.mxu0 0
        %4719 = vmatpush1.bf16.msra.mxu0 %v4634
        %4720 = vmatprep.subr.bf16.mxu0 0
        %4721 = vmatpush1.bf16.msra.mxu0 %v4637
        %4722 = vmatprep.subr.bf16.mxu0 0
        %4723 = vmatpush1.bf16.msra.mxu0 %v4640
        %4724 = vmatprep.subr.bf16.mxu0 0
        %4725 = vmatpush1.bf16.msra.mxu0 %v4643
        %4726 = vmatprep.subr.bf16.mxu0 0
        %4727 = vmatpush1.bf16.msra.mxu0 %v4646
        %4728 = vmatprep.subr.bf16.mxu0 0
        %4729 = vmatpush1.bf16.msra.mxu0 0
        %4730 = vmatprep.subr.bf16.mxu0 0
        %4731 = vmatpush1.bf16.msra.mxu0 0
        %4732 = vmatprep.subr.bf16.mxu0 0
        %4733 = vmatpush1.bf16.msra.mxu0 0
        %4734 = vmatprep.subr.bf16.mxu0 0
        %4735 = vmatpush1.bf16.msra.mxu0 0
        %4736 = vmatprep.subr.bf16.mxu0 0
        %4737 = vmatpush1.bf16.msra.mxu0 0
        %4738 = vmatprep.subr.bf16.mxu0 0
        %4739 = vmatpush1.bf16.msra.mxu0 0
        %4740 = vmatprep.subr.bf16.mxu0 0
        %4741 = vmatpush1.bf16.msra.mxu0 0
        %4742 = vmatprep.subr.bf16.mxu0 0
        %4743 = vmatpush1.bf16.msra.mxu0 0
        %4744 = vmatprep.mubr.bf16.mxu0 0
        %4745 = vmatmul.mubr.bf16.gmra.mrb[0].mxu0 %v4491
        %v4746 = vpop.f32.mrb[0].mxu0
        %v4747 = vadd.f32 %v4539, %v4746
        %v4748 = vpop.f32.mrb[0].mxu0
        %v4749 = vpop.f32.mrb[0].mxu0
        %v4750 = vpop.f32.mrb[0].mxu0
        %4751 = vdwg.mxu0
        %v4752 = vpack.c.bf16 %v4706, %v4706
        %v4753 = vpack.c.bf16 %v4708, %v4708
        %v4754 = vpack.c.bf16 %v4747, %v4747
        %v4756 = vsel %vm773, %v4752, 0
        %v4759 = vsel %vm773, %v4753, 0
        %4761 = vmatprep.subr.bf16.mxu0 0
        %4762 = vmatpush1.bf16.xpose.msra.mxu0 %v4759
        %4763 = vmatprep.subr.bf16.mxu0 0
        %4764 = vmatpush1.bf16.xpose.msra.mxu0 0
        %4765 = vmatprep.subr.bf16.mxu0 0
        %4766 = vmatpush1.bf16.xpose.msra.mxu0 0
        %4767 = vmatprep.subr.bf16.mxu0 0
        %4768 = vmatpush1.bf16.xpose.msra.mxu0 0
        %4769 = vmatprep.subr.bf16.mxu0 0
        %4770 = vmatpush1.bf16.xpose.msra.mxu0 0
        %4771 = vmatprep.subr.bf16.mxu0 0
        %4772 = vmatpush1.bf16.xpose.msra.mxu0 0
        %4773 = vmatprep.subr.bf16.mxu0 0
        %4774 = vmatpush1.bf16.xpose.msra.mxu0 0
        %4775 = vmatprep.subr.bf16.mxu0 0
        %4776 = vmatpush1.bf16.xpose.msra.mxu0 0
        %4777 = vmatprep.subr.bf16.mxu0 0
        %4778 = vmatpush1.bf16.xpose.msra.mxu0 0
        %4779 = vmatprep.subr.bf16.mxu0 0
        %4780 = vmatpush1.bf16.xpose.msra.mxu0 0
        %4781 = vmatprep.subr.bf16.mxu0 0
        %4782 = vmatpush1.bf16.xpose.msra.mxu0 0
        %4783 = vmatprep.subr.bf16.mxu0 0
        %4784 = vmatpush1.bf16.xpose.msra.mxu0 0
        %4785 = vmatprep.subr.bf16.mxu0 0
        %4786 = vmatpush1.bf16.xpose.msra.mxu0 0
        %4787 = vmatprep.subr.bf16.mxu0 0
        %4788 = vmatpush1.bf16.xpose.msra.mxu0 0
        %4789 = vmatprep.subr.bf16.mxu0 0
        %4790 = vmatpush1.bf16.xpose.msra.mxu0 0
        %4791 = vmatprep.subr.bf16.mxu0 0
        %4792 = vmatpush1.bf16.xpose.msra.mxu0 0
        %4793 = vmatprep.mubr.bf16.mxu0 0
        %4794 = vmatmul.mubr.bf16.gmra.mrb[0].mxu0 %v4756
        %v4795 = vpop.f32.mrb[0].mxu0
        %v4796 = vadd.f32 0.0, %v4795
        %v4797 = vpop.f32.mrb[0].mxu0
        %v4798 = vpop.f32.mrb[0].mxu0
        %v4799 = vpop.f32.mrb[0].mxu0
        %4800 = vdwg.mxu0
        %v4801 = vsel %vm820, %v4796, -inf
        %4802 = vmax.xlane.f32.xlu0 %v4801
        %v4803 = vpop.xlane.xlu0 %4802
        %v4804 = vsub.f32 %v4796, %v4803
        %v4805 = vmul.f32 %v4804, 1.442695
        %v4806 = vpow.pop %v4805
        %v4807 = vsel %vm820, %v4806, 0.0
        %4808 = vadd.xlane.f32.xlu0 %v4807
        %v4809 = vpop.xlane.xlu0 %4808
        %v4810 = vrcp.pop %v4809
        %v4811 = vmul.f32 %v4806, %v4810
        %v4812 = vpack.c.bf16 %v4811, %v4811
        %v4814 = vsel %vm820, %v4812, 0
        %v4817 = vsel %vm836, %v4754, 0
        %4819 = vmatprep.subr.bf16.mxu0 0
        %4820 = vmatpush1.bf16.msra.mxu0 %v4817
        %4821 = vmatprep.subr.bf16.mxu0 0
        %4822 = vmatpush1.bf16.msra.mxu0 0
        %4823 = vmatprep.subr.bf16.mxu0 0
        %4824 = vmatpush1.bf16.msra.mxu0 0
        %4825 = vmatprep.subr.bf16.mxu0 0
        %4826 = vmatpush1.bf16.msra.mxu0 0
        %4827 = vmatprep.subr.bf16.mxu0 0
        %4828 = vmatpush1.bf16.msra.mxu0 0
        %4829 = vmatprep.subr.bf16.mxu0 0
        %4830 = vmatpush1.bf16.msra.mxu0 0
        %4831 = vmatprep.subr.bf16.mxu0 0
        %4832 = vmatpush1.bf16.msra.mxu0 0
        %4833 = vmatprep.subr.bf16.mxu0 0
        %4834 = vmatpush1.bf16.msra.mxu0 0
        %4835 = vmatprep.subr.bf16.mxu0 0
        %4836 = vmatpush1.bf16.msra.mxu0 0
        %4837 = vmatprep.subr.bf16.mxu0 0
        %4838 = vmatpush1.bf16.msra.mxu0 0
        %4839 = vmatprep.subr.bf16.mxu0 0
        %4840 = vmatpush1.bf16.msra.mxu0 0
        %4841 = vmatprep.subr.bf16.mxu0 0
        %4842 = vmatpush1.bf16.msra.mxu0 0
        %4843 = vmatprep.subr.bf16.mxu0 0
        %4844 = vmatpush1.bf16.msra.mxu0 0
        %4845 = vmatprep.subr.bf16.mxu0 0
        %4846 = vmatpush1.bf16.msra.mxu0 0
        %4847 = vmatprep.subr.bf16.mxu0 0
        %4848 = vmatpush1.bf16.msra.mxu0 0
        %4849 = vmatprep.subr.bf16.mxu0 0
        %4850 = vmatpush1.bf16.msra.mxu0 0
        %4851 = vmatprep.mubr.bf16.mxu0 0
        %4852 = vmatmul.mubr.bf16.gmra.mrb[0].mxu0 %v4814
        %v4853 = vpop.f32.mrb[0].mxu0
        %v4854 = vadd.f32 0.0, %v4853
        %v4855 = vpop.f32.mrb[0].mxu0
        %v4856 = vpop.f32.mrb[0].mxu0
        %v4857 = vpop.f32.mrb[0].mxu0
        %4858 = vdwg.mxu0
        %4860 = vrot.lane.b32.xlu0 %v4752, 112
        %v4861 = vpop.permute.xlu0 %4860
        %4863 = vrot.lane.b32.xlu0 %v4753, 112
        %v4864 = vpop.permute.xlu0 %4863
        %v4866 = vsel %vm773, %v4861, 0
        %v4869 = vsel %vm773, %v4864, 0
        %4871 = vmatprep.subr.bf16.mxu0 0
        %4872 = vmatpush1.bf16.xpose.msra.mxu0 %v4869
        %4873 = vmatprep.subr.bf16.mxu0 0
        %4874 = vmatpush1.bf16.xpose.msra.mxu0 0
        %4875 = vmatprep.subr.bf16.mxu0 0
        %4876 = vmatpush1.bf16.xpose.msra.mxu0 0
        %4877 = vmatprep.subr.bf16.mxu0 0
        %4878 = vmatpush1.bf16.xpose.msra.mxu0 0
        %4879 = vmatprep.subr.bf16.mxu0 0
        %4880 = vmatpush1.bf16.xpose.msra.mxu0 0
        %4881 = vmatprep.subr.bf16.mxu0 0
        %4882 = vmatpush1.bf16.xpose.msra.mxu0 0
        %4883 = vmatprep.subr.bf16.mxu0 0
        %4884 = vmatpush1.bf16.xpose.msra.mxu0 0
        %4885 = vmatprep.subr.bf16.mxu0 0
        %4886 = vmatpush1.bf16.xpose.msra.mxu0 0
        %4887 = vmatprep.subr.bf16.mxu0 0
        %4888 = vmatpush1.bf16.xpose.msra.mxu0 0
        %4889 = vmatprep.subr.bf16.mxu0 0
        %4890 = vmatpush1.bf16.xpose.msra.mxu0 0
        %4891 = vmatprep.subr.bf16.mxu0 0
        %4892 = vmatpush1.bf16.xpose.msra.mxu0 0
        %4893 = vmatprep.subr.bf16.mxu0 0
        %4894 = vmatpush1.bf16.xpose.msra.mxu0 0
        %4895 = vmatprep.subr.bf16.mxu0 0
        %4896 = vmatpush1.bf16.xpose.msra.mxu0 0
        %4897 = vmatprep.subr.bf16.mxu0 0
        %4898 = vmatpush1.bf16.xpose.msra.mxu0 0
        %4899 = vmatprep.subr.bf16.mxu0 0
        %4900 = vmatpush1.bf16.xpose.msra.mxu0 0
        %4901 = vmatprep.subr.bf16.mxu0 0
        %4902 = vmatpush1.bf16.xpose.msra.mxu0 0
        %4903 = vmatprep.mubr.bf16.mxu0 0
        %4904 = vmatmul.mubr.bf16.gmra.mrb[0].mxu0 %v4866
        %v4905 = vpop.f32.mrb[0].mxu0
        %v4906 = vadd.f32 0.0, %v4905
        %v4907 = vpop.f32.mrb[0].mxu0
        %v4908 = vpop.f32.mrb[0].mxu0
        %v4909 = vpop.f32.mrb[0].mxu0
        %4910 = vdwg.mxu0
        %v4911 = vsel %vm820, %v4906, -inf
        %4912 = vmax.xlane.f32.xlu0 %v4911
        %v4913 = vpop.xlane.xlu0 %4912
        %v4914 = vsub.f32 %v4906, %v4913
        %v4915 = vmul.f32 %v4914, 1.442695
        %v4916 = vpow.pop %v4915
        %v4917 = vsel %vm820, %v4916, 0.0
        %4918 = vadd.xlane.f32.xlu0 %v4917
        %v4919 = vpop.xlane.xlu0 %4918
        %v4920 = vrcp.pop %v4919
        %v4921 = vmul.f32 %v4916, %v4920
        %v4922 = vpack.c.bf16 %v4921, %v4921
        %4924 = vrot.lane.b32.xlu0 %v4754, 112
        %v4925 = vpop.permute.xlu0 %4924
        %v4927 = vsel %vm820, %v4922, 0
        %v4930 = vsel %vm836, %v4925, 0
        %4932 = vmatprep.subr.bf16.mxu0 0
        %4933 = vmatpush1.bf16.msra.mxu0 %v4930
        %4934 = vmatprep.subr.bf16.mxu0 0
        %4935 = vmatpush1.bf16.msra.mxu0 0
        %4936 = vmatprep.subr.bf16.mxu0 0
        %4937 = vmatpush1.bf16.msra.mxu0 0
        %4938 = vmatprep.subr.bf16.mxu0 0
        %4939 = vmatpush1.bf16.msra.mxu0 0
        %4940 = vmatprep.subr.bf16.mxu0 0
        %4941 = vmatpush1.bf16.msra.mxu0 0
        %4942 = vmatprep.subr.bf16.mxu0 0
        %4943 = vmatpush1.bf16.msra.mxu0 0
        %4944 = vmatprep.subr.bf16.mxu0 0
        %4945 = vmatpush1.bf16.msra.mxu0 0
        %4946 = vmatprep.subr.bf16.mxu0 0
        %4947 = vmatpush1.bf16.msra.mxu0 0
        %4948 = vmatprep.subr.bf16.mxu0 0
        %4949 = vmatpush1.bf16.msra.mxu0 0
        %4950 = vmatprep.subr.bf16.mxu0 0
        %4951 = vmatpush1.bf16.msra.mxu0 0
        %4952 = vmatprep.subr.bf16.mxu0 0
        %4953 = vmatpush1.bf16.msra.mxu0 0
        %4954 = vmatprep.subr.bf16.mxu0 0
        %4955 = vmatpush1.bf16.msra.mxu0 0
        %4956 = vmatprep.subr.bf16.mxu0 0
        %4957 = vmatpush1.bf16.msra.mxu0 0
        %4958 = vmatprep.subr.bf16.mxu0 0
        %4959 = vmatpush1.bf16.msra.mxu0 0
        %4960 = vmatprep.subr.bf16.mxu0 0
        %4961 = vmatpush1.bf16.msra.mxu0 0
        %4962 = vmatprep.subr.bf16.mxu0 0
        %4963 = vmatpush1.bf16.msra.mxu0 0
        %4964 = vmatprep.mubr.bf16.mxu0 0
        %4965 = vmatmul.mubr.bf16.gmra.mrb[0].mxu0 %v4927
        %v4966 = vpop.f32.mrb[0].mxu0
        %v4967 = vadd.f32 0.0, %v4966
        %v4968 = vpop.f32.mrb[0].mxu0
        %v4969 = vpop.f32.mrb[0].mxu0
        %v4970 = vpop.f32.mrb[0].mxu0
        %4971 = vdwg.mxu0
        %4972 = vrot.lane.b32.xlu0 %v4752, 96
        %v4973 = vpop.permute.xlu0 %4972
        %4974 = vrot.lane.b32.xlu0 %v4753, 96
        %v4975 = vpop.permute.xlu0 %4974
        %v4977 = vsel %vm773, %v4973, 0
        %v4980 = vsel %vm773, %v4975, 0
        %4982 = vmatprep.subr.bf16.mxu0 0
        %4983 = vmatpush1.bf16.xpose.msra.mxu0 %v4980
        %4984 = vmatprep.subr.bf16.mxu0 0
        %4985 = vmatpush1.bf16.xpose.msra.mxu0 0
        %4986 = vmatprep.subr.bf16.mxu0 0
        %4987 = vmatpush1.bf16.xpose.msra.mxu0 0
        %4988 = vmatprep.subr.bf16.mxu0 0
        %4989 = vmatpush1.bf16.xpose.msra.mxu0 0
        %4990 = vmatprep.subr.bf16.mxu0 0
        %4991 = vmatpush1.bf16.xpose.msra.mxu0 0
        %4992 = vmatprep.subr.bf16.mxu0 0
        %4993 = vmatpush1.bf16.xpose.msra.mxu0 0
        %4994 = vmatprep.subr.bf16.mxu0 0
        %4995 = vmatpush1.bf16.xpose.msra.mxu0 0
        %4996 = vmatprep.subr.bf16.mxu0 0
        %4997 = vmatpush1.bf16.xpose.msra.mxu0 0
        %4998 = vmatprep.subr.bf16.mxu0 0
        %4999 = vmatpush1.bf16.xpose.msra.mxu0 0
        %5000 = vmatprep.subr.bf16.mxu0 0
        %5001 = vmatpush1.bf16.xpose.msra.mxu0 0
        %5002 = vmatprep.subr.bf16.mxu0 0
        %5003 = vmatpush1.bf16.xpose.msra.mxu0 0
        %5004 = vmatprep.subr.bf16.mxu0 0
        %5005 = vmatpush1.bf16.xpose.msra.mxu0 0
        %5006 = vmatprep.subr.bf16.mxu0 0
        %5007 = vmatpush1.bf16.xpose.msra.mxu0 0
        %5008 = vmatprep.subr.bf16.mxu0 0
        %5009 = vmatpush1.bf16.xpose.msra.mxu0 0
        %5010 = vmatprep.subr.bf16.mxu0 0
        %5011 = vmatpush1.bf16.xpose.msra.mxu0 0
        %5012 = vmatprep.subr.bf16.mxu0 0
        %5013 = vmatpush1.bf16.xpose.msra.mxu0 0
        %5014 = vmatprep.mubr.bf16.mxu0 0
        %5015 = vmatmul.mubr.bf16.gmra.mrb[0].mxu0 %v4977
        %v5016 = vpop.f32.mrb[0].mxu0
        %v5017 = vadd.f32 0.0, %v5016
        %v5018 = vpop.f32.mrb[0].mxu0
        %v5019 = vpop.f32.mrb[0].mxu0
        %v5020 = vpop.f32.mrb[0].mxu0
        %5021 = vdwg.mxu0
        %v5022 = vsel %vm820, %v5017, -inf
        %5023 = vmax.xlane.f32.xlu0 %v5022
        %v5024 = vpop.xlane.xlu0 %5023
        %v5025 = vsub.f32 %v5017, %v5024
        %v5026 = vmul.f32 %v5025, 1.442695
        %v5027 = vpow.pop %v5026
        %v5028 = vsel %vm820, %v5027, 0.0
        %5029 = vadd.xlane.f32.xlu0 %v5028
        %v5030 = vpop.xlane.xlu0 %5029
        %v5031 = vrcp.pop %v5030
        %v5032 = vmul.f32 %v5027, %v5031
        %v5033 = vpack.c.bf16 %v5032, %v5032
        %5034 = vrot.lane.b32.xlu0 %v4754, 96
        %v5035 = vpop.permute.xlu0 %5034
        %v5037 = vsel %vm820, %v5033, 0
        %v5040 = vsel %vm836, %v5035, 0
        %5042 = vmatprep.subr.bf16.mxu0 0
        %5043 = vmatpush1.bf16.msra.mxu0 %v5040
        %5044 = vmatprep.subr.bf16.mxu0 0
        %5045 = vmatpush1.bf16.msra.mxu0 0
        %5046 = vmatprep.subr.bf16.mxu0 0
        %5047 = vmatpush1.bf16.msra.mxu0 0
        %5048 = vmatprep.subr.bf16.mxu0 0
        %5049 = vmatpush1.bf16.msra.mxu0 0
        %5050 = vmatprep.subr.bf16.mxu0 0
        %5051 = vmatpush1.bf16.msra.mxu0 0
        %5052 = vmatprep.subr.bf16.mxu0 0
        %5053 = vmatpush1.bf16.msra.mxu0 0
        %5054 = vmatprep.subr.bf16.mxu0 0
        %5055 = vmatpush1.bf16.msra.mxu0 0
        %5056 = vmatprep.subr.bf16.mxu0 0
        %5057 = vmatpush1.bf16.msra.mxu0 0
        %5058 = vmatprep.subr.bf16.mxu0 0
        %5059 = vmatpush1.bf16.msra.mxu0 0
        %5060 = vmatprep.subr.bf16.mxu0 0
        %5061 = vmatpush1.bf16.msra.mxu0 0
        %5062 = vmatprep.subr.bf16.mxu0 0
        %5063 = vmatpush1.bf16.msra.mxu0 0
        %5064 = vmatprep.subr.bf16.mxu0 0
        %5065 = vmatpush1.bf16.msra.mxu0 0
        %5066 = vmatprep.subr.bf16.mxu0 0
        %5067 = vmatpush1.bf16.msra.mxu0 0
        %5068 = vmatprep.subr.bf16.mxu0 0
        %5069 = vmatpush1.bf16.msra.mxu0 0
        %5070 = vmatprep.subr.bf16.mxu0 0
        %5071 = vmatpush1.bf16.msra.mxu0 0
        %5072 = vmatprep.subr.bf16.mxu0 0
        %5073 = vmatpush1.bf16.msra.mxu0 0
        %5074 = vmatprep.mubr.bf16.mxu0 0
        %5075 = vmatmul.mubr.bf16.gmra.mrb[0].mxu0 %v5037
        %v5076 = vpop.f32.mrb[0].mxu0
        %v5077 = vadd.f32 0.0, %v5076
        %v5078 = vpop.f32.mrb[0].mxu0
        %v5079 = vpop.f32.mrb[0].mxu0
        %v5080 = vpop.f32.mrb[0].mxu0
        %5081 = vdwg.mxu0
        %5082 = vrot.lane.b32.xlu0 %v4752, 80
        %v5083 = vpop.permute.xlu0 %5082
        %5084 = vrot.lane.b32.xlu0 %v4753, 80
        %v5085 = vpop.permute.xlu0 %5084
        %v5087 = vsel %vm773, %v5083, 0
        %v5090 = vsel %vm773, %v5085, 0
        %5092 = vmatprep.subr.bf16.mxu0 0
        %5093 = vmatpush1.bf16.xpose.msra.mxu0 %v5090
        %5094 = vmatprep.subr.bf16.mxu0 0
        %5095 = vmatpush1.bf16.xpose.msra.mxu0 0
        %5096 = vmatprep.subr.bf16.mxu0 0
        %5097 = vmatpush1.bf16.xpose.msra.mxu0 0
        %5098 = vmatprep.subr.bf16.mxu0 0
        %5099 = vmatpush1.bf16.xpose.msra.mxu0 0
        %5100 = vmatprep.subr.bf16.mxu0 0
        %5101 = vmatpush1.bf16.xpose.msra.mxu0 0
        %5102 = vmatprep.subr.bf16.mxu0 0
        %5103 = vmatpush1.bf16.xpose.msra.mxu0 0
        %5104 = vmatprep.subr.bf16.mxu0 0
        %5105 = vmatpush1.bf16.xpose.msra.mxu0 0
        %5106 = vmatprep.subr.bf16.mxu0 0
        %5107 = vmatpush1.bf16.xpose.msra.mxu0 0
        %5108 = vmatprep.subr.bf16.mxu0 0
        %5109 = vmatpush1.bf16.xpose.msra.mxu0 0
        %5110 = vmatprep.subr.bf16.mxu0 0
        %5111 = vmatpush1.bf16.xpose.msra.mxu0 0
        %5112 = vmatprep.subr.bf16.mxu0 0
        %5113 = vmatpush1.bf16.xpose.msra.mxu0 0
        %5114 = vmatprep.subr.bf16.mxu0 0
        %5115 = vmatpush1.bf16.xpose.msra.mxu0 0
        %5116 = vmatprep.subr.bf16.mxu0 0
        %5117 = vmatpush1.bf16.xpose.msra.mxu0 0
        %5118 = vmatprep.subr.bf16.mxu0 0
        %5119 = vmatpush1.bf16.xpose.msra.mxu0 0
        %5120 = vmatprep.subr.bf16.mxu0 0
        %5121 = vmatpush1.bf16.xpose.msra.mxu0 0
        %5122 = vmatprep.subr.bf16.mxu0 0
        %5123 = vmatpush1.bf16.xpose.msra.mxu0 0
        %5124 = vmatprep.mubr.bf16.mxu0 0
        %5125 = vmatmul.mubr.bf16.gmra.mrb[0].mxu0 %v5087
        %v5126 = vpop.f32.mrb[0].mxu0
        %v5127 = vadd.f32 0.0, %v5126
        %v5128 = vpop.f32.mrb[0].mxu0
        %v5129 = vpop.f32.mrb[0].mxu0
        %v5130 = vpop.f32.mrb[0].mxu0
        %5131 = vdwg.mxu0
        %v5132 = vsel %vm820, %v5127, -inf
        %5133 = vmax.xlane.f32.xlu0 %v5132
        %v5134 = vpop.xlane.xlu0 %5133
        %v5135 = vsub.f32 %v5127, %v5134
        %v5136 = vmul.f32 %v5135, 1.442695
        %v5137 = vpow.pop %v5136
        %v5138 = vsel %vm820, %v5137, 0.0
        %5139 = vadd.xlane.f32.xlu0 %v5138
        %v5140 = vpop.xlane.xlu0 %5139
        %v5141 = vrcp.pop %v5140
        %v5142 = vmul.f32 %v5137, %v5141
        %v5143 = vpack.c.bf16 %v5142, %v5142
        %5144 = vrot.lane.b32.xlu0 %v4754, 80
        %v5145 = vpop.permute.xlu0 %5144
        %v5147 = vsel %vm820, %v5143, 0
        %v5150 = vsel %vm836, %v5145, 0
        %5152 = vmatprep.subr.bf16.mxu0 0
        %5153 = vmatpush1.bf16.msra.mxu0 %v5150
        %5154 = vmatprep.subr.bf16.mxu0 0
        %5155 = vmatpush1.bf16.msra.mxu0 0
        %5156 = vmatprep.subr.bf16.mxu0 0
        %5157 = vmatpush1.bf16.msra.mxu0 0
        %5158 = vmatprep.subr.bf16.mxu0 0
        %5159 = vmatpush1.bf16.msra.mxu0 0
        %5160 = vmatprep.subr.bf16.mxu0 0
        %5161 = vmatpush1.bf16.msra.mxu0 0
        %5162 = vmatprep.subr.bf16.mxu0 0
        %5163 = vmatpush1.bf16.msra.mxu0 0
        %5164 = vmatprep.subr.bf16.mxu0 0
        %5165 = vmatpush1.bf16.msra.mxu0 0
        %5166 = vmatprep.subr.bf16.mxu0 0
        %5167 = vmatpush1.bf16.msra.mxu0 0
        %5168 = vmatprep.subr.bf16.mxu0 0
        %5169 = vmatpush1.bf16.msra.mxu0 0
        %5170 = vmatprep.subr.bf16.mxu0 0
        %5171 = vmatpush1.bf16.msra.mxu0 0
        %5172 = vmatprep.subr.bf16.mxu0 0
        %5173 = vmatpush1.bf16.msra.mxu0 0
        %5174 = vmatprep.subr.bf16.mxu0 0
        %5175 = vmatpush1.bf16.msra.mxu0 0
        %5176 = vmatprep.subr.bf16.mxu0 0
        %5177 = vmatpush1.bf16.msra.mxu0 0
        %5178 = vmatprep.subr.bf16.mxu0 0
        %5179 = vmatpush1.bf16.msra.mxu0 0
        %5180 = vmatprep.subr.bf16.mxu0 0
        %5181 = vmatpush1.bf16.msra.mxu0 0
        %5182 = vmatprep.subr.bf16.mxu0 0
        %5183 = vmatpush1.bf16.msra.mxu0 0
        %5184 = vmatprep.mubr.bf16.mxu0 0
        %5185 = vmatmul.mubr.bf16.gmra.mrb[0].mxu0 %v5147
        %v5186 = vpop.f32.mrb[0].mxu0
        %v5187 = vadd.f32 0.0, %v5186
        %v5188 = vpop.f32.mrb[0].mxu0
        %v5189 = vpop.f32.mrb[0].mxu0
        %v5190 = vpop.f32.mrb[0].mxu0
        %5191 = vdwg.mxu0
        %5192 = vrot.lane.b32.xlu0 %v4752, 64
        %v5193 = vpop.permute.xlu0 %5192
        %5194 = vrot.lane.b32.xlu0 %v4753, 64
        %v5195 = vpop.permute.xlu0 %5194
        %v5197 = vsel %vm773, %v5193, 0
        %v5200 = vsel %vm773, %v5195, 0
        %5202 = vmatprep.subr.bf16.mxu0 0
        %5203 = vmatpush1.bf16.xpose.msra.mxu0 %v5200
        %5204 = vmatprep.subr.bf16.mxu0 0
        %5205 = vmatpush1.bf16.xpose.msra.mxu0 0
        %5206 = vmatprep.subr.bf16.mxu0 0
        %5207 = vmatpush1.bf16.xpose.msra.mxu0 0
        %5208 = vmatprep.subr.bf16.mxu0 0
        %5209 = vmatpush1.bf16.xpose.msra.mxu0 0
        %5210 = vmatprep.subr.bf16.mxu0 0
        %5211 = vmatpush1.bf16.xpose.msra.mxu0 0
        %5212 = vmatprep.subr.bf16.mxu0 0
        %5213 = vmatpush1.bf16.xpose.msra.mxu0 0
        %5214 = vmatprep.subr.bf16.mxu0 0
        %5215 = vmatpush1.bf16.xpose.msra.mxu0 0
        %5216 = vmatprep.subr.bf16.mxu0 0
        %5217 = vmatpush1.bf16.xpose.msra.mxu0 0
        %5218 = vmatprep.subr.bf16.mxu0 0
        %5219 = vmatpush1.bf16.xpose.msra.mxu0 0
        %5220 = vmatprep.subr.bf16.mxu0 0
        %5221 = vmatpush1.bf16.xpose.msra.mxu0 0
        %5222 = vmatprep.subr.bf16.mxu0 0
        %5223 = vmatpush1.bf16.xpose.msra.mxu0 0
        %5224 = vmatprep.subr.bf16.mxu0 0
        %5225 = vmatpush1.bf16.xpose.msra.mxu0 0
        %5226 = vmatprep.subr.bf16.mxu0 0
        %5227 = vmatpush1.bf16.xpose.msra.mxu0 0
        %5228 = vmatprep.subr.bf16.mxu0 0
        %5229 = vmatpush1.bf16.xpose.msra.mxu0 0
        %5230 = vmatprep.subr.bf16.mxu0 0
        %5231 = vmatpush1.bf16.xpose.msra.mxu0 0
        %5232 = vmatprep.subr.bf16.mxu0 0
        %5233 = vmatpush1.bf16.xpose.msra.mxu0 0
        %5234 = vmatprep.mubr.bf16.mxu0 0
        %5235 = vmatmul.mubr.bf16.gmra.mrb[0].mxu0 %v5197
        %v5236 = vpop.f32.mrb[0].mxu0
        %v5237 = vadd.f32 0.0, %v5236
        %v5238 = vpop.f32.mrb[0].mxu0
        %v5239 = vpop.f32.mrb[0].mxu0
        %v5240 = vpop.f32.mrb[0].mxu0
        %5241 = vdwg.mxu0
        %v5242 = vsel %vm820, %v5237, -inf
        %5243 = vmax.xlane.f32.xlu0 %v5242
        %v5244 = vpop.xlane.xlu0 %5243
        %v5245 = vsub.f32 %v5237, %v5244
        %v5246 = vmul.f32 %v5245, 1.442695
        %v5247 = vpow.pop %v5246
        %v5248 = vsel %vm820, %v5247, 0.0
        %5249 = vadd.xlane.f32.xlu0 %v5248
        %v5250 = vpop.xlane.xlu0 %5249
        %v5251 = vrcp.pop %v5250
        %v5252 = vmul.f32 %v5247, %v5251
        %v5253 = vpack.c.bf16 %v5252, %v5252
        %5254 = vrot.lane.b32.xlu0 %v4754, 64
        %v5255 = vpop.permute.xlu0 %5254
        %v5257 = vsel %vm820, %v5253, 0
        %v5260 = vsel %vm836, %v5255, 0
        %5262 = vmatprep.subr.bf16.mxu0 0
        %5263 = vmatpush1.bf16.msra.mxu0 %v5260
        %5264 = vmatprep.subr.bf16.mxu0 0
        %5265 = vmatpush1.bf16.msra.mxu0 0
        %5266 = vmatprep.subr.bf16.mxu0 0
        %5267 = vmatpush1.bf16.msra.mxu0 0
        %5268 = vmatprep.subr.bf16.mxu0 0
        %5269 = vmatpush1.bf16.msra.mxu0 0
        %5270 = vmatprep.subr.bf16.mxu0 0
        %5271 = vmatpush1.bf16.msra.mxu0 0
        %5272 = vmatprep.subr.bf16.mxu0 0
        %5273 = vmatpush1.bf16.msra.mxu0 0
        %5274 = vmatprep.subr.bf16.mxu0 0
        %5275 = vmatpush1.bf16.msra.mxu0 0
        %5276 = vmatprep.subr.bf16.mxu0 0
        %5277 = vmatpush1.bf16.msra.mxu0 0
        %5278 = vmatprep.subr.bf16.mxu0 0
        %5279 = vmatpush1.bf16.msra.mxu0 0
        %5280 = vmatprep.subr.bf16.mxu0 0
        %5281 = vmatpush1.bf16.msra.mxu0 0
        %5282 = vmatprep.subr.bf16.mxu0 0
        %5283 = vmatpush1.bf16.msra.mxu0 0
        %5284 = vmatprep.subr.bf16.mxu0 0
        %5285 = vmatpush1.bf16.msra.mxu0 0
        %5286 = vmatprep.subr.bf16.mxu0 0
        %5287 = vmatpush1.bf16.msra.mxu0 0
        %5288 = vmatprep.subr.bf16.mxu0 0
        %5289 = vmatpush1.bf16.msra.mxu0 0
        %5290 = vmatprep.subr.bf16.mxu0 0
        %5291 = vmatpush1.bf16.msra.mxu0 0
        %5292 = vmatprep.subr.bf16.mxu0 0
        %5293 = vmatpush1.bf16.msra.mxu0 0
        %5294 = vmatprep.mubr.bf16.mxu0 0
        %5295 = vmatmul.mubr.bf16.gmra.mrb[0].mxu0 %v5257
        %v5296 = vpop.f32.mrb[0].mxu0
        %v5297 = vadd.f32 0.0, %v5296
        %v5298 = vpop.f32.mrb[0].mxu0
        %v5299 = vpop.f32.mrb[0].mxu0
        %v5300 = vpop.f32.mrb[0].mxu0
        %5301 = vdwg.mxu0
        %5302 = vrot.lane.b32.xlu0 %v4752, 48
        %v5303 = vpop.permute.xlu0 %5302
        %5304 = vrot.lane.b32.xlu0 %v4753, 48
        %v5305 = vpop.permute.xlu0 %5304
        %v5307 = vsel %vm773, %v5303, 0
        %v5310 = vsel %vm773, %v5305, 0
        %5312 = vmatprep.subr.bf16.mxu0 0
        %5313 = vmatpush1.bf16.xpose.msra.mxu0 %v5310
        %5314 = vmatprep.subr.bf16.mxu0 0
        %5315 = vmatpush1.bf16.xpose.msra.mxu0 0
        %5316 = vmatprep.subr.bf16.mxu0 0
        %5317 = vmatpush1.bf16.xpose.msra.mxu0 0
        %5318 = vmatprep.subr.bf16.mxu0 0
        %5319 = vmatpush1.bf16.xpose.msra.mxu0 0
        %5320 = vmatprep.subr.bf16.mxu0 0
        %5321 = vmatpush1.bf16.xpose.msra.mxu0 0
        %5322 = vmatprep.subr.bf16.mxu0 0
        %5323 = vmatpush1.bf16.xpose.msra.mxu0 0
        %5324 = vmatprep.subr.bf16.mxu0 0
        %5325 = vmatpush1.bf16.xpose.msra.mxu0 0
        %5326 = vmatprep.subr.bf16.mxu0 0
        %5327 = vmatpush1.bf16.xpose.msra.mxu0 0
        %5328 = vmatprep.subr.bf16.mxu0 0
        %5329 = vmatpush1.bf16.xpose.msra.mxu0 0
        %5330 = vmatprep.subr.bf16.mxu0 0
        %5331 = vmatpush1.bf16.xpose.msra.mxu0 0
        %5332 = vmatprep.subr.bf16.mxu0 0
        %5333 = vmatpush1.bf16.xpose.msra.mxu0 0
        %5334 = vmatprep.subr.bf16.mxu0 0
        %5335 = vmatpush1.bf16.xpose.msra.mxu0 0
        %5336 = vmatprep.subr.bf16.mxu0 0
        %5337 = vmatpush1.bf16.xpose.msra.mxu0 0
        %5338 = vmatprep.subr.bf16.mxu0 0
        %5339 = vmatpush1.bf16.xpose.msra.mxu0 0
        %5340 = vmatprep.subr.bf16.mxu0 0
        %5341 = vmatpush1.bf16.xpose.msra.mxu0 0
        %5342 = vmatprep.subr.bf16.mxu0 0
        %5343 = vmatpush1.bf16.xpose.msra.mxu0 0
        %5344 = vmatprep.mubr.bf16.mxu0 0
        %5345 = vmatmul.mubr.bf16.gmra.mrb[0].mxu0 %v5307
        %v5346 = vpop.f32.mrb[0].mxu0
        %v5347 = vadd.f32 0.0, %v5346
        %v5348 = vpop.f32.mrb[0].mxu0
        %v5349 = vpop.f32.mrb[0].mxu0
        %v5350 = vpop.f32.mrb[0].mxu0
        %5351 = vdwg.mxu0
        %v5352 = vsel %vm820, %v5347, -inf
        %5353 = vmax.xlane.f32.xlu0 %v5352
        %v5354 = vpop.xlane.xlu0 %5353
        %v5355 = vsub.f32 %v5347, %v5354
        %v5356 = vmul.f32 %v5355, 1.442695
        %v5357 = vpow.pop %v5356
        %v5358 = vsel %vm820, %v5357, 0.0
        %5359 = vadd.xlane.f32.xlu0 %v5358
        %v5360 = vpop.xlane.xlu0 %5359
        %v5361 = vrcp.pop %v5360
        %v5362 = vmul.f32 %v5357, %v5361
        %v5363 = vpack.c.bf16 %v5362, %v5362
        %5364 = vrot.lane.b32.xlu0 %v4754, 48
        %v5365 = vpop.permute.xlu0 %5364
        %v5367 = vsel %vm820, %v5363, 0
        %v5370 = vsel %vm836, %v5365, 0
        %5372 = vmatprep.subr.bf16.mxu0 0
        %5373 = vmatpush1.bf16.msra.mxu0 %v5370
        %5374 = vmatprep.subr.bf16.mxu0 0
        %5375 = vmatpush1.bf16.msra.mxu0 0
        %5376 = vmatprep.subr.bf16.mxu0 0
        %5377 = vmatpush1.bf16.msra.mxu0 0
        %5378 = vmatprep.subr.bf16.mxu0 0
        %5379 = vmatpush1.bf16.msra.mxu0 0
        %5380 = vmatprep.subr.bf16.mxu0 0
        %5381 = vmatpush1.bf16.msra.mxu0 0
        %5382 = vmatprep.subr.bf16.mxu0 0
        %5383 = vmatpush1.bf16.msra.mxu0 0
        %5384 = vmatprep.subr.bf16.mxu0 0
        %5385 = vmatpush1.bf16.msra.mxu0 0
        %5386 = vmatprep.subr.bf16.mxu0 0
        %5387 = vmatpush1.bf16.msra.mxu0 0
        %5388 = vmatprep.subr.bf16.mxu0 0
        %5389 = vmatpush1.bf16.msra.mxu0 0
        %5390 = vmatprep.subr.bf16.mxu0 0
        %5391 = vmatpush1.bf16.msra.mxu0 0
        %5392 = vmatprep.subr.bf16.mxu0 0
        %5393 = vmatpush1.bf16.msra.mxu0 0
        %5394 = vmatprep.subr.bf16.mxu0 0
        %5395 = vmatpush1.bf16.msra.mxu0 0
        %5396 = vmatprep.subr.bf16.mxu0 0
        %5397 = vmatpush1.bf16.msra.mxu0 0
        %5398 = vmatprep.subr.bf16.mxu0 0
        %5399 = vmatpush1.bf16.msra.mxu0 0
        %5400 = vmatprep.subr.bf16.mxu0 0
        %5401 = vmatpush1.bf16.msra.mxu0 0
        %5402 = vmatprep.subr.bf16.mxu0 0
        %5403 = vmatpush1.bf16.msra.mxu0 0
        %5404 = vmatprep.mubr.bf16.mxu0 0
        %5405 = vmatmul.mubr.bf16.gmra.mrb[0].mxu0 %v5367
        %v5406 = vpop.f32.mrb[0].mxu0
        %v5407 = vadd.f32 0.0, %v5406
        %v5408 = vpop.f32.mrb[0].mxu0
        %v5409 = vpop.f32.mrb[0].mxu0
        %v5410 = vpop.f32.mrb[0].mxu0
        %5411 = vdwg.mxu0
        %5412 = vrot.lane.b32.xlu0 %v4752, 32
        %v5413 = vpop.permute.xlu0 %5412
        %5414 = vrot.lane.b32.xlu0 %v4753, 32
        %v5415 = vpop.permute.xlu0 %5414
        %v5417 = vsel %vm773, %v5413, 0
        %v5420 = vsel %vm773, %v5415, 0
        %5422 = vmatprep.subr.bf16.mxu0 0
        %5423 = vmatpush1.bf16.xpose.msra.mxu0 %v5420
        %5424 = vmatprep.subr.bf16.mxu0 0
        %5425 = vmatpush1.bf16.xpose.msra.mxu0 0
        %5426 = vmatprep.subr.bf16.mxu0 0
        %5427 = vmatpush1.bf16.xpose.msra.mxu0 0
        %5428 = vmatprep.subr.bf16.mxu0 0
        %5429 = vmatpush1.bf16.xpose.msra.mxu0 0
        %5430 = vmatprep.subr.bf16.mxu0 0
        %5431 = vmatpush1.bf16.xpose.msra.mxu0 0
        %5432 = vmatprep.subr.bf16.mxu0 0
        %5433 = vmatpush1.bf16.xpose.msra.mxu0 0
        %5434 = vmatprep.subr.bf16.mxu0 0
        %5435 = vmatpush1.bf16.xpose.msra.mxu0 0
        %5436 = vmatprep.subr.bf16.mxu0 0
        %5437 = vmatpush1.bf16.xpose.msra.mxu0 0
        %5438 = vmatprep.subr.bf16.mxu0 0
        %5439 = vmatpush1.bf16.xpose.msra.mxu0 0
        %5440 = vmatprep.subr.bf16.mxu0 0
        %5441 = vmatpush1.bf16.xpose.msra.mxu0 0
        %5442 = vmatprep.subr.bf16.mxu0 0
        %5443 = vmatpush1.bf16.xpose.msra.mxu0 0
        %5444 = vmatprep.subr.bf16.mxu0 0
        %5445 = vmatpush1.bf16.xpose.msra.mxu0 0
        %5446 = vmatprep.subr.bf16.mxu0 0
        %5447 = vmatpush1.bf16.xpose.msra.mxu0 0
        %5448 = vmatprep.subr.bf16.mxu0 0
        %5449 = vmatpush1.bf16.xpose.msra.mxu0 0
        %5450 = vmatprep.subr.bf16.mxu0 0
        %5451 = vmatpush1.bf16.xpose.msra.mxu0 0
        %5452 = vmatprep.subr.bf16.mxu0 0
        %5453 = vmatpush1.bf16.xpose.msra.mxu0 0
        %5454 = vmatprep.mubr.bf16.mxu0 0
        %5455 = vmatmul.mubr.bf16.gmra.mrb[0].mxu0 %v5417
        %v5456 = vpop.f32.mrb[0].mxu0
        %v5457 = vadd.f32 0.0, %v5456
        %v5458 = vpop.f32.mrb[0].mxu0
        %v5459 = vpop.f32.mrb[0].mxu0
        %v5460 = vpop.f32.mrb[0].mxu0
        %5461 = vdwg.mxu0
        %v5462 = vsel %vm820, %v5457, -inf
        %5463 = vmax.xlane.f32.xlu0 %v5462
        %v5464 = vpop.xlane.xlu0 %5463
        %v5465 = vsub.f32 %v5457, %v5464
        %v5466 = vmul.f32 %v5465, 1.442695
        %v5467 = vpow.pop %v5466
        %v5468 = vsel %vm820, %v5467, 0.0
        %5469 = vadd.xlane.f32.xlu0 %v5468
        %v5470 = vpop.xlane.xlu0 %5469
        %v5471 = vrcp.pop %v5470
        %v5472 = vmul.f32 %v5467, %v5471
        %v5473 = vpack.c.bf16 %v5472, %v5472
        %5474 = vrot.lane.b32.xlu0 %v4754, 32
        %v5475 = vpop.permute.xlu0 %5474
        %v5477 = vsel %vm820, %v5473, 0
        %v5480 = vsel %vm836, %v5475, 0
        %5482 = vmatprep.subr.bf16.mxu0 0
        %5483 = vmatpush1.bf16.msra.mxu0 %v5480
        %5484 = vmatprep.subr.bf16.mxu0 0
        %5485 = vmatpush1.bf16.msra.mxu0 0
        %5486 = vmatprep.subr.bf16.mxu0 0
        %5487 = vmatpush1.bf16.msra.mxu0 0
        %5488 = vmatprep.subr.bf16.mxu0 0
        %5489 = vmatpush1.bf16.msra.mxu0 0
        %5490 = vmatprep.subr.bf16.mxu0 0
        %5491 = vmatpush1.bf16.msra.mxu0 0
        %5492 = vmatprep.subr.bf16.mxu0 0
        %5493 = vmatpush1.bf16.msra.mxu0 0
        %5494 = vmatprep.subr.bf16.mxu0 0
        %5495 = vmatpush1.bf16.msra.mxu0 0
        %5496 = vmatprep.subr.bf16.mxu0 0
        %5497 = vmatpush1.bf16.msra.mxu0 0
        %5498 = vmatprep.subr.bf16.mxu0 0
        %5499 = vmatpush1.bf16.msra.mxu0 0
        %5500 = vmatprep.subr.bf16.mxu0 0
        %5501 = vmatpush1.bf16.msra.mxu0 0
        %5502 = vmatprep.subr.bf16.mxu0 0
        %5503 = vmatpush1.bf16.msra.mxu0 0
        %5504 = vmatprep.subr.bf16.mxu0 0
        %5505 = vmatpush1.bf16.msra.mxu0 0
        %5506 = vmatprep.subr.bf16.mxu0 0
        %5507 = vmatpush1.bf16.msra.mxu0 0
        %5508 = vmatprep.subr.bf16.mxu0 0
        %5509 = vmatpush1.bf16.msra.mxu0 0
        %5510 = vmatprep.subr.bf16.mxu0 0
        %5511 = vmatpush1.bf16.msra.mxu0 0
        %5512 = vmatprep.subr.bf16.mxu0 0
        %5513 = vmatpush1.bf16.msra.mxu0 0
        %5514 = vmatprep.mubr.bf16.mxu0 0
        %5515 = vmatmul.mubr.bf16.gmra.mrb[0].mxu0 %v5477
        %v5516 = vpop.f32.mrb[0].mxu0
        %v5517 = vadd.f32 0.0, %v5516
        %v5518 = vpop.f32.mrb[0].mxu0
        %v5519 = vpop.f32.mrb[0].mxu0
        %v5520 = vpop.f32.mrb[0].mxu0
        %5521 = vdwg.mxu0
        %5522 = vrot.lane.b32.xlu0 %v4752, 16
        %v5523 = vpop.permute.xlu0 %5522
        %5524 = vrot.lane.b32.xlu0 %v4753, 16
        %v5525 = vpop.permute.xlu0 %5524
        %v5527 = vsel %vm773, %v5523, 0
        %v5530 = vsel %vm773, %v5525, 0
        %5532 = vmatprep.subr.bf16.mxu0 0
        %5533 = vmatpush1.bf16.xpose.msra.mxu0 %v5530
        %5534 = vmatprep.subr.bf16.mxu0 0
        %5535 = vmatpush1.bf16.xpose.msra.mxu0 0
        %5536 = vmatprep.subr.bf16.mxu0 0
        %5537 = vmatpush1.bf16.xpose.msra.mxu0 0
        %5538 = vmatprep.subr.bf16.mxu0 0
        %5539 = vmatpush1.bf16.xpose.msra.mxu0 0
        %5540 = vmatprep.subr.bf16.mxu0 0
        %5541 = vmatpush1.bf16.xpose.msra.mxu0 0
        %5542 = vmatprep.subr.bf16.mxu0 0
        %5543 = vmatpush1.bf16.xpose.msra.mxu0 0
        %5544 = vmatprep.subr.bf16.mxu0 0
        %5545 = vmatpush1.bf16.xpose.msra.mxu0 0
        %5546 = vmatprep.subr.bf16.mxu0 0
        %5547 = vmatpush1.bf16.xpose.msra.mxu0 0
        %5548 = vmatprep.subr.bf16.mxu0 0
        %5549 = vmatpush1.bf16.xpose.msra.mxu0 0
        %5550 = vmatprep.subr.bf16.mxu0 0
        %5551 = vmatpush1.bf16.xpose.msra.mxu0 0
        %5552 = vmatprep.subr.bf16.mxu0 0
        %5553 = vmatpush1.bf16.xpose.msra.mxu0 0
        %5554 = vmatprep.subr.bf16.mxu0 0
        %5555 = vmatpush1.bf16.xpose.msra.mxu0 0
        %5556 = vmatprep.subr.bf16.mxu0 0
        %5557 = vmatpush1.bf16.xpose.msra.mxu0 0
        %5558 = vmatprep.subr.bf16.mxu0 0
        %5559 = vmatpush1.bf16.xpose.msra.mxu0 0
        %5560 = vmatprep.subr.bf16.mxu0 0
        %5561 = vmatpush1.bf16.xpose.msra.mxu0 0
        %5562 = vmatprep.subr.bf16.mxu0 0
        %5563 = vmatpush1.bf16.xpose.msra.mxu0 0
        %5564 = vmatprep.mubr.bf16.mxu0 0
        %5565 = vmatmul.mubr.bf16.gmra.mrb[0].mxu0 %v5527
        %v5566 = vpop.f32.mrb[0].mxu0
        %v5567 = vadd.f32 0.0, %v5566
        %v5568 = vpop.f32.mrb[0].mxu0
        %v5569 = vpop.f32.mrb[0].mxu0
        %v5570 = vpop.f32.mrb[0].mxu0
        %5571 = vdwg.mxu0
        %v5572 = vsel %vm820, %v5567, -inf
        %5573 = vmax.xlane.f32.xlu0 %v5572
        %v5574 = vpop.xlane.xlu0 %5573
        %v5575 = vsub.f32 %v5567, %v5574
        %v5576 = vmul.f32 %v5575, 1.442695
        %v5577 = vpow.pop %v5576
        %v5578 = vsel %vm820, %v5577, 0.0
        %5579 = vadd.xlane.f32.xlu0 %v5578
        %v5580 = vpop.xlane.xlu0 %5579
        %v5581 = vrcp.pop %v5580
        %v5582 = vmul.f32 %v5577, %v5581
        %v5583 = vpack.c.bf16 %v5582, %v5582
        %5584 = vrot.lane.b32.xlu0 %v4754, 16
        %v5585 = vpop.permute.xlu0 %5584
        %v5587 = vsel %vm820, %v5583, 0
        %v5590 = vsel %vm836, %v5585, 0
        %5592 = vmatprep.subr.bf16.mxu0 0
        %5593 = vmatpush1.bf16.msra.mxu0 %v5590
        %5594 = vmatprep.subr.bf16.mxu0 0
        %5595 = vmatpush1.bf16.msra.mxu0 0
        %5596 = vmatprep.subr.bf16.mxu0 0
        %5597 = vmatpush1.bf16.msra.mxu0 0
        %5598 = vmatprep.subr.bf16.mxu0 0
        %5599 = vmatpush1.bf16.msra.mxu0 0
        %5600 = vmatprep.subr.bf16.mxu0 0
        %5601 = vmatpush1.bf16.msra.mxu0 0
        %5602 = vmatprep.subr.bf16.mxu0 0
        %5603 = vmatpush1.bf16.msra.mxu0 0
        %5604 = vmatprep.subr.bf16.mxu0 0
        %5605 = vmatpush1.bf16.msra.mxu0 0
        %5606 = vmatprep.subr.bf16.mxu0 0
        %5607 = vmatpush1.bf16.msra.mxu0 0
        %5608 = vmatprep.subr.bf16.mxu0 0
        %5609 = vmatpush1.bf16.msra.mxu0 0
        %5610 = vmatprep.subr.bf16.mxu0 0
        %5611 = vmatpush1.bf16.msra.mxu0 0
        %5612 = vmatprep.subr.bf16.mxu0 0
        %5613 = vmatpush1.bf16.msra.mxu0 0
        %5614 = vmatprep.subr.bf16.mxu0 0
        %5615 = vmatpush1.bf16.msra.mxu0 0
        %5616 = vmatprep.subr.bf16.mxu0 0
        %5617 = vmatpush1.bf16.msra.mxu0 0
        %5618 = vmatprep.subr.bf16.mxu0 0
        %5619 = vmatpush1.bf16.msra.mxu0 0
        %5620 = vmatprep.subr.bf16.mxu0 0
        %5621 = vmatpush1.bf16.msra.mxu0 0
        %5622 = vmatprep.subr.bf16.mxu0 0
        %5623 = vmatpush1.bf16.msra.mxu0 0
        %5624 = vmatprep.mubr.bf16.mxu0 0
        %5625 = vmatmul.mubr.bf16.gmra.mrb[0].mxu0 %v5587
        %v5626 = vpop.f32.mrb[0].mxu0
        %v5627 = vadd.f32 0.0, %v5626
        %v5628 = vpop.f32.mrb[0].mxu0
        %v5629 = vpop.f32.mrb[0].mxu0
        %v5630 = vpop.f32.mrb[0].mxu0
        %5631 = vdwg.mxu0
        %5633 = vrot.lane.b32.xlu0 %v4967, 16
        %v5634 = vpop.permute.xlu0 %5633
        %5637 = vrot.lane.b32.xlu0 %v5077, 32
        %v5638 = vpop.permute.xlu0 %5637
        %5641 = vrot.lane.b32.xlu0 %v5187, 48
        %v5642 = vpop.permute.xlu0 %5641
        %5645 = vrot.lane.b32.xlu0 %v5297, 64
        %v5646 = vpop.permute.xlu0 %5645
        %5649 = vrot.lane.b32.xlu0 %v5407, 80
        %v5650 = vpop.permute.xlu0 %5649
        %5653 = vrot.lane.b32.xlu0 %v5517, 96
        %v5654 = vpop.permute.xlu0 %5653
        %5657 = vrot.lane.b32.xlu0 %v5627, 112
        %v5658 = vpop.permute.xlu0 %5657
        %v5660 = vsel %vm773, %v4854, %v5634
        %v5661 = vsel %vm1682, %v5660, %v5638
        %v5662 = vsel %vm1684, %v5661, %v5642
        %v5663 = vsel %vm1686, %v5662, %v5646
        %v5664 = vsel %vm1688, %v5663, %v5650
        %v5665 = vsel %vm1690, %v5664, %v5654
        %v5666 = vsel %vm1692, %v5665, %v5658
        %v5667 = vpack.c.bf16 %v5666, %v5666
        %s5668 = scalar_lea.vmem [#allocation4], 64
        %v5669 = vld [vmem:[%s5668] sm:$0xf]
        %v5670 = vld [vmem:[%s5668 + $0x4] sm:$0xf]
        %v5671 = vld [vmem:[%s5668 + $0x8] sm:$0xf]
        %v5672 = vld [vmem:[%s5668 + $0xc] sm:$0xf]
        %v5673 = vld [vmem:[%s5668 + $0x10] sm:$0xf]
        %v5674 = vld [vmem:[%s5668 + $0x14] sm:$0xf]
        %v5675 = vld [vmem:[%s5668 + $0x18] sm:$0xf]
        %v5676 = vld [vmem:[%s5668 + $0x1c] sm:$0xf]
        %v5677 = vld [vmem:[%s5668 + $0x20] sm:$0xf]
        %v5678 = vld [vmem:[%s5668 + $0x24] sm:$0xf]
        %v5679 = vld [vmem:[%s5668 + $0x28] sm:$0xf]
        %v5680 = vld [vmem:[%s5668 + $0x2c] sm:$0xf]
        %v5681 = vld [vmem:[%s5668 + $0x30] sm:$0xf]
        %v5682 = vld [vmem:[%s5668 + $0x34] sm:$0xf]
        %v5683 = vld [vmem:[%s5668 + $0x38] sm:$0xf]
        %v5684 = vld [vmem:[%s5668 + $0x3c] sm:$0xf]
        %s5685 = scalar_lea.vmem %s4, 1
        %v5686 = vld [vmem:[%s5685] sm:$0x1]
        %v5688 = vlaneseq
        %v5689 = vshrl.u32 %v5688, 7
        %v5690 = vsub.s32 0, %v5689
        %v5691 = vrot.slane %v5686, %v5690
        %v5709 = vunpack.c.l.b16 %v5669
        %v5710 = vunpack.c.l.b16 %v5670
        %v5711 = vunpack.c.l.b16 %v5671
        %v5712 = vunpack.c.l.b16 %v5672
        %v5713 = vunpack.c.l.b16 %v5673
        %v5714 = vunpack.c.l.b16 %v5674
        %v5715 = vunpack.c.l.b16 %v5675
        %v5716 = vunpack.c.l.b16 %v5676
        %v5717 = vunpack.c.l.b16 %v5677
        %v5718 = vunpack.c.l.b16 %v5678
        %v5719 = vunpack.c.l.b16 %v5679
        %v5720 = vunpack.c.l.b16 %v5680
        %v5721 = vunpack.c.l.b16 %v5681
        %v5722 = vunpack.c.l.b16 %v5682
        %v5723 = vunpack.c.l.b16 %v5683
        %v5724 = vunpack.c.l.b16 %v5684
        %v5725 = vpack.c.b16 %v5710, %v5709
        %v5726 = vpack.c.b16 %v5712, %v5711
        %v5727 = vpack.c.b16 %v5714, %v5713
        %v5728 = vpack.c.b16 %v5716, %v5715
        %v5729 = vpack.c.b16 %v5718, %v5717
        %v5730 = vpack.c.b16 %v5720, %v5719
        %v5731 = vpack.c.b16 %v5722, %v5721
        %v5732 = vpack.c.b16 %v5724, %v5723
        %5741 = vmatprep.subr.bf16.mxu0 0
        %5742 = vmatpush1.bf16.msra.mxu0 %v5725
        %5743 = vmatprep.subr.bf16.mxu0 0
        %5744 = vmatpush1.bf16.msra.mxu0 %v5726
        %5745 = vmatprep.subr.bf16.mxu0 0
        %5746 = vmatpush1.bf16.msra.mxu0 %v5727
        %5747 = vmatprep.subr.bf16.mxu0 0
        %5748 = vmatpush1.bf16.msra.mxu0 %v5728
        %5749 = vmatprep.subr.bf16.mxu0 0
        %5750 = vmatpush1.bf16.msra.mxu0 %v5729
        %5751 = vmatprep.subr.bf16.mxu0 0
        %5752 = vmatpush1.bf16.msra.mxu0 %v5730
        %5753 = vmatprep.subr.bf16.mxu0 0
        %5754 = vmatpush1.bf16.msra.mxu0 %v5731
        %5755 = vmatprep.subr.bf16.mxu0 0
        %5756 = vmatpush1.bf16.msra.mxu0 %v5732
        %5757 = vmatprep.subr.bf16.mxu0 0
        %5758 = vmatpush1.bf16.msra.mxu0 0
        %5759 = vmatprep.subr.bf16.mxu0 0
        %5760 = vmatpush1.bf16.msra.mxu0 0
        %5761 = vmatprep.subr.bf16.mxu0 0
        %5762 = vmatpush1.bf16.msra.mxu0 0
        %5763 = vmatprep.subr.bf16.mxu0 0
        %5764 = vmatpush1.bf16.msra.mxu0 0
        %5765 = vmatprep.subr.bf16.mxu0 0
        %5766 = vmatpush1.bf16.msra.mxu0 0
        %5767 = vmatprep.subr.bf16.mxu0 0
        %5768 = vmatpush1.bf16.msra.mxu0 0
        %5769 = vmatprep.subr.bf16.mxu0 0
        %5770 = vmatpush1.bf16.msra.mxu0 0
        %5771 = vmatprep.subr.bf16.mxu0 0
        %5772 = vmatpush1.bf16.msra.mxu0 0
        %5773 = vmatprep.mubr.bf16.mxu0 0
        %5774 = vmatmul.mubr.bf16.gmra.mrb[0].mxu0 %v5667
        %v5775 = vpop.f32.mrb[0].mxu0
        %v5776 = vadd.f32 %v5691, %v5775
        %v5777 = vpop.f32.mrb[0].mxu0
        %v5778 = vpop.f32.mrb[0].mxu0
        %v5779 = vpop.f32.mrb[0].mxu0
        %5780 = vdwg.mxu0
        %v5781 = vadd.f32 %v4490, %v5776
        %s5782 = scalar_lea.vmem %s5, 1
        %v5783 = vld [vmem:[%s5782] sm:$0x1]
        %s5784 = scalar_lea.vmem %s6, 1
        %v5785 = vld [vmem:[%s5784] sm:$0x1]
        %5786 = vadd.xlane.f32.xlu0 %v5781
        %v5787 = vpop.xlane.xlu0 %5786
        %v5788 = vmul.f32 %v5787, %v1811
        %v5789 = vsub.f32 %v5781, %v5788
        %v5790 = vmul.f32 %v5789, %v5789
        %5791 = vadd.xlane.f32.xlu0 %v5790
        %v5792 = vpop.xlane.xlu0 %5791
        %v5793 = vmul.f32 %v5792, %v1811
        %v5794 = vadd.f32 %v5793, 1e-05
        %v5795 = vrsqrt.pop %v5794
        %v5796 = vmul.f32 %v5789, %v5795
        %v5798 = vlaneseq
        %v5799 = vshrl.u32 %v5798, 7
        %v5800 = vsub.s32 0, %v5799
        %v5801 = vrot.slane %v5783, %v5800
        %v5803 = vmul.f32 %v5796, %v5801
        %v5805 = vlaneseq
        %v5806 = vshrl.u32 %v5805, 7
        %v5807 = vsub.s32 0, %v5806
        %v5808 = vrot.slane %v5785, %v5807
        %v5810 = vadd.f32 %v5803, %v5808
        %v5811 = vpack.c.bf16 %v5810, %v5810
        %s5812 = scalar_lea.vmem [#allocation6], 1024
        %v5813 = vld [vmem:[%s5812] sm:$0xff]
        %v5814 = vld [vmem:[%s5812 + $0x8] sm:$0xff]
        %v5815 = vld [vmem:[%s5812 + $0x10] sm:$0xff]
        %v5816 = vld [vmem:[%s5812 + $0x18] sm:$0xff]
        %v5817 = vld [vmem:[%s5812 + $0x20] sm:$0xff]
        %v5818 = vld [vmem:[%s5812 + $0x28] sm:$0xff]
        %v5819 = vld [vmem:[%s5812 + $0x30] sm:$0xff]
        %v5820 = vld [vmem:[%s5812 + $0x38] sm:$0xff]
        %v5821 = vld [vmem:[%s5812 + $0x40] sm:$0xff]
        %v5822 = vld [vmem:[%s5812 + $0x48] sm:$0xff]
        %v5823 = vld [vmem:[%s5812 + $0x50] sm:$0xff]
        %v5824 = vld [vmem:[%s5812 + $0x58] sm:$0xff]
        %v5825 = vld [vmem:[%s5812 + $0x60] sm:$0xff]
        %v5826 = vld [vmem:[%s5812 + $0x68] sm:$0xff]
        %v5827 = vld [vmem:[%s5812 + $0x70] sm:$0xff]
        %v5828 = vld [vmem:[%s5812 + $0x78] sm:$0xff]
        %v5829 = vld [vmem:[%s5812 + $0x80] sm:$0xff]
        %v5830 = vld [vmem:[%s5812 + $0x88] sm:$0xff]
        %v5831 = vld [vmem:[%s5812 + $0x90] sm:$0xff]
        %v5832 = vld [vmem:[%s5812 + $0x98] sm:$0xff]
        %v5833 = vld [vmem:[%s5812 + $0xa0] sm:$0xff]
        %v5834 = vld [vmem:[%s5812 + $0xa8] sm:$0xff]
        %v5835 = vld [vmem:[%s5812 + $0xb0] sm:$0xff]
        %v5836 = vld [vmem:[%s5812 + $0xb8] sm:$0xff]
        %v5837 = vld [vmem:[%s5812 + $0xc0] sm:$0xff]
        %v5838 = vld [vmem:[%s5812 + $0xc8] sm:$0xff]
        %v5839 = vld [vmem:[%s5812 + $0xd0] sm:$0xff]
        %v5840 = vld [vmem:[%s5812 + $0xd8] sm:$0xff]
        %v5841 = vld [vmem:[%s5812 + $0xe0] sm:$0xff]
        %v5842 = vld [vmem:[%s5812 + $0xe8] sm:$0xff]
        %v5843 = vld [vmem:[%s5812 + $0xf0] sm:$0xff]
        %v5844 = vld [vmem:[%s5812 + $0xf8] sm:$0xff]
        %v5845 = vld [vmem:[%s5812 + $0x100] sm:$0xff]
        %v5846 = vld [vmem:[%s5812 + $0x108] sm:$0xff]
        %v5847 = vld [vmem:[%s5812 + $0x110] sm:$0xff]
        %v5848 = vld [vmem:[%s5812 + $0x118] sm:$0xff]
        %v5849 = vld [vmem:[%s5812 + $0x120] sm:$0xff]
        %v5850 = vld [vmem:[%s5812 + $0x128] sm:$0xff]
        %v5851 = vld [vmem:[%s5812 + $0x130] sm:$0xff]
        %v5852 = vld [vmem:[%s5812 + $0x138] sm:$0xff]
        %v5853 = vld [vmem:[%s5812 + $0x140] sm:$0xff]
        %v5854 = vld [vmem:[%s5812 + $0x148] sm:$0xff]
        %v5855 = vld [vmem:[%s5812 + $0x150] sm:$0xff]
        %v5856 = vld [vmem:[%s5812 + $0x158] sm:$0xff]
        %v5857 = vld [vmem:[%s5812 + $0x160] sm:$0xff]
        %v5858 = vld [vmem:[%s5812 + $0x168] sm:$0xff]
        %v5859 = vld [vmem:[%s5812 + $0x170] sm:$0xff]
        %v5860 = vld [vmem:[%s5812 + $0x178] sm:$0xff]
        %v5861 = vld [vmem:[%s5812 + $0x180] sm:$0xff]
        %v5862 = vld [vmem:[%s5812 + $0x188] sm:$0xff]
        %v5863 = vld [vmem:[%s5812 + $0x190] sm:$0xff]
        %v5864 = vld [vmem:[%s5812 + $0x198] sm:$0xff]
        %v5865 = vld [vmem:[%s5812 + $0x1a0] sm:$0xff]
        %v5866 = vld [vmem:[%s5812 + $0x1a8] sm:$0xff]
        %v5867 = vld [vmem:[%s5812 + $0x1b0] sm:$0xff]
        %v5868 = vld [vmem:[%s5812 + $0x1b8] sm:$0xff]
        %v5869 = vld [vmem:[%s5812 + $0x1c0] sm:$0xff]
        %v5870 = vld [vmem:[%s5812 + $0x1c8] sm:$0xff]
        %v5871 = vld [vmem:[%s5812 + $0x1d0] sm:$0xff]
        %v5872 = vld [vmem:[%s5812 + $0x1d8] sm:$0xff]
        %v5873 = vld [vmem:[%s5812 + $0x1e0] sm:$0xff]
        %v5874 = vld [vmem:[%s5812 + $0x1e8] sm:$0xff]
        %v5875 = vld [vmem:[%s5812 + $0x1f0] sm:$0xff]
        %v5876 = vld [vmem:[%s5812 + $0x1f8] sm:$0xff]
        %v5877 = vld [vmem:[%s5812 + $0x200] sm:$0xff]
        %v5878 = vld [vmem:[%s5812 + $0x208] sm:$0xff]
        %v5879 = vld [vmem:[%s5812 + $0x210] sm:$0xff]
        %v5880 = vld [vmem:[%s5812 + $0x218] sm:$0xff]
        %v5881 = vld [vmem:[%s5812 + $0x220] sm:$0xff]
        %v5882 = vld [vmem:[%s5812 + $0x228] sm:$0xff]
        %v5883 = vld [vmem:[%s5812 + $0x230] sm:$0xff]
        %v5884 = vld [vmem:[%s5812 + $0x238] sm:$0xff]
        %v5885 = vld [vmem:[%s5812 + $0x240] sm:$0xff]
        %v5886 = vld [vmem:[%s5812 + $0x248] sm:$0xff]
        %v5887 = vld [vmem:[%s5812 + $0x250] sm:$0xff]
        %v5888 = vld [vmem:[%s5812 + $0x258] sm:$0xff]
        %v5889 = vld [vmem:[%s5812 + $0x260] sm:$0xff]
        %v5890 = vld [vmem:[%s5812 + $0x268] sm:$0xff]
        %v5891 = vld [vmem:[%s5812 + $0x270] sm:$0xff]
        %v5892 = vld [vmem:[%s5812 + $0x278] sm:$0xff]
        %v5893 = vld [vmem:[%s5812 + $0x280] sm:$0xff]
        %v5894 = vld [vmem:[%s5812 + $0x288] sm:$0xff]
        %v5895 = vld [vmem:[%s5812 + $0x290] sm:$0xff]
        %v5896 = vld [vmem:[%s5812 + $0x298] sm:$0xff]
        %v5897 = vld [vmem:[%s5812 + $0x2a0] sm:$0xff]
        %v5898 = vld [vmem:[%s5812 + $0x2a8] sm:$0xff]
        %v5899 = vld [vmem:[%s5812 + $0x2b0] sm:$0xff]
        %v5900 = vld [vmem:[%s5812 + $0x2b8] sm:$0xff]
        %v5901 = vld [vmem:[%s5812 + $0x2c0] sm:$0xff]
        %v5902 = vld [vmem:[%s5812 + $0x2c8] sm:$0xff]
        %v5903 = vld [vmem:[%s5812 + $0x2d0] sm:$0xff]
        %v5904 = vld [vmem:[%s5812 + $0x2d8] sm:$0xff]
        %v5905 = vld [vmem:[%s5812 + $0x2e0] sm:$0xff]
        %v5906 = vld [vmem:[%s5812 + $0x2e8] sm:$0xff]
        %v5907 = vld [vmem:[%s5812 + $0x2f0] sm:$0xff]
        %v5908 = vld [vmem:[%s5812 + $0x2f8] sm:$0xff]
        %v5909 = vld [vmem:[%s5812 + $0x300] sm:$0xff]
        %v5910 = vld [vmem:[%s5812 + $0x308] sm:$0xff]
        %v5911 = vld [vmem:[%s5812 + $0x310] sm:$0xff]
        %v5912 = vld [vmem:[%s5812 + $0x318] sm:$0xff]
        %v5913 = vld [vmem:[%s5812 + $0x320] sm:$0xff]
        %v5914 = vld [vmem:[%s5812 + $0x328] sm:$0xff]
        %v5915 = vld [vmem:[%s5812 + $0x330] sm:$0xff]
        %v5916 = vld [vmem:[%s5812 + $0x338] sm:$0xff]
        %v5917 = vld [vmem:[%s5812 + $0x340] sm:$0xff]
        %v5918 = vld [vmem:[%s5812 + $0x348] sm:$0xff]
        %v5919 = vld [vmem:[%s5812 + $0x350] sm:$0xff]
        %v5920 = vld [vmem:[%s5812 + $0x358] sm:$0xff]
        %v5921 = vld [vmem:[%s5812 + $0x360] sm:$0xff]
        %v5922 = vld [vmem:[%s5812 + $0x368] sm:$0xff]
        %v5923 = vld [vmem:[%s5812 + $0x370] sm:$0xff]
        %v5924 = vld [vmem:[%s5812 + $0x378] sm:$0xff]
        %v5925 = vld [vmem:[%s5812 + $0x380] sm:$0xff]
        %v5926 = vld [vmem:[%s5812 + $0x388] sm:$0xff]
        %v5927 = vld [vmem:[%s5812 + $0x390] sm:$0xff]
        %v5928 = vld [vmem:[%s5812 + $0x398] sm:$0xff]
        %v5929 = vld [vmem:[%s5812 + $0x3a0] sm:$0xff]
        %v5930 = vld [vmem:[%s5812 + $0x3a8] sm:$0xff]
        %v5931 = vld [vmem:[%s5812 + $0x3b0] sm:$0xff]
        %v5932 = vld [vmem:[%s5812 + $0x3b8] sm:$0xff]
        %v5933 = vld [vmem:[%s5812 + $0x3c0] sm:$0xff]
        %v5934 = vld [vmem:[%s5812 + $0x3c8] sm:$0xff]
        %v5935 = vld [vmem:[%s5812 + $0x3d0] sm:$0xff]
        %v5936 = vld [vmem:[%s5812 + $0x3d8] sm:$0xff]
        %v5937 = vld [vmem:[%s5812 + $0x3e0] sm:$0xff]
        %v5938 = vld [vmem:[%s5812 + $0x3e8] sm:$0xff]
        %v5939 = vld [vmem:[%s5812 + $0x3f0] sm:$0xff]
        %v5940 = vld [vmem:[%s5812 + $0x3f8] sm:$0xff]
        %s5941 = scalar_lea.vmem %s8, 16
        %v5942 = vld [vmem:[%s5941] sm:$0xff]
        %v5943 = vld [vmem:[%s5941 + $0x8] sm:$0xff]
        %v5946 = vlaneseq
        %v5947 = vshrl.u32 %v5946, 7
        %v5948 = vsub.s32 0, %v5947
        %v5949 = vrot.slane %v5942, %v5948
        %v5950 = vlaneseq
        %v5951 = vshrl.u32 %v5950, 7
        %v5952 = vsub.s32 1, %v5951
        %v5953 = vrot.slane %v5942, %v5952
        %v5954 = vlaneseq
        %v5955 = vshrl.u32 %v5954, 7
        %v5956 = vsub.s32 2, %v5955
        %v5957 = vrot.slane %v5942, %v5956
        %v5958 = vlaneseq
        %v5959 = vshrl.u32 %v5958, 7
        %v5960 = vsub.s32 3, %v5959
        %v5961 = vrot.slane %v5942, %v5960
        %v5962 = vlaneseq
        %v5963 = vshrl.u32 %v5962, 7
        %v5964 = vsub.s32 4, %v5963
        %v5965 = vrot.slane %v5942, %v5964
        %v5966 = vlaneseq
        %v5967 = vshrl.u32 %v5966, 7
        %v5968 = vsub.s32 5, %v5967
        %v5969 = vrot.slane %v5942, %v5968
        %v5970 = vlaneseq
        %v5971 = vshrl.u32 %v5970, 7
        %v5972 = vsub.s32 6, %v5971
        %v5973 = vrot.slane %v5942, %v5972
        %v5974 = vlaneseq
        %v5975 = vshrl.u32 %v5974, 7
        %v5976 = vsub.s32 7, %v5975
        %v5977 = vrot.slane %v5942, %v5976
        %v5978 = vlaneseq
        %v5979 = vshrl.u32 %v5978, 7
        %v5980 = vsub.s32 0, %v5979
        %v5981 = vrot.slane %v5943, %v5980
        %v5982 = vlaneseq
        %v5983 = vshrl.u32 %v5982, 7
        %v5984 = vsub.s32 1, %v5983
        %v5985 = vrot.slane %v5943, %v5984
        %v5986 = vlaneseq
        %v5987 = vshrl.u32 %v5986, 7
        %v5988 = vsub.s32 2, %v5987
        %v5989 = vrot.slane %v5943, %v5988
        %v5990 = vlaneseq
        %v5991 = vshrl.u32 %v5990, 7
        %v5992 = vsub.s32 3, %v5991
        %v5993 = vrot.slane %v5943, %v5992
        %v5994 = vlaneseq
        %v5995 = vshrl.u32 %v5994, 7
        %v5996 = vsub.s32 4, %v5995
        %v5997 = vrot.slane %v5943, %v5996
        %v5998 = vlaneseq
        %v5999 = vshrl.u32 %v5998, 7
        %v6000 = vsub.s32 5, %v5999
        %v6001 = vrot.slane %v5943, %v6000
        %v6002 = vlaneseq
        %v6003 = vshrl.u32 %v6002, 7
        %v6004 = vsub.s32 6, %v6003
        %v6005 = vrot.slane %v5943, %v6004
        %v6006 = vlaneseq
        %v6007 = vshrl.u32 %v6006, 7
        %v6008 = vsub.s32 7, %v6007
        %v6009 = vrot.slane %v5943, %v6008
        %v6154 = vunpack.c.l.b16 %v5813
        %v6155 = vunpack.c.h.b16 %v5813
        %v6156 = vunpack.c.l.b16 %v5814
        %v6157 = vunpack.c.h.b16 %v5814
        %v6158 = vunpack.c.l.b16 %v5815
        %v6159 = vunpack.c.h.b16 %v5815
        %v6160 = vunpack.c.l.b16 %v5816
        %v6161 = vunpack.c.h.b16 %v5816
        %v6162 = vunpack.c.l.b16 %v5817
        %v6163 = vunpack.c.h.b16 %v5817
        %v6164 = vunpack.c.l.b16 %v5818
        %v6165 = vunpack.c.h.b16 %v5818
        %v6166 = vunpack.c.l.b16 %v5819
        %v6167 = vunpack.c.h.b16 %v5819
        %v6168 = vunpack.c.l.b16 %v5820
        %v6169 = vunpack.c.h.b16 %v5820
        %v6170 = vunpack.c.l.b16 %v5821
        %v6171 = vunpack.c.h.b16 %v5821
        %v6172 = vunpack.c.l.b16 %v5822
        %v6173 = vunpack.c.h.b16 %v5822
        %v6174 = vunpack.c.l.b16 %v5823
        %v6175 = vunpack.c.h.b16 %v5823
        %v6176 = vunpack.c.l.b16 %v5824
        %v6177 = vunpack.c.h.b16 %v5824
        %v6178 = vunpack.c.l.b16 %v5825
        %v6179 = vunpack.c.h.b16 %v5825
        %v6180 = vunpack.c.l.b16 %v5826
        %v6181 = vunpack.c.h.b16 %v5826
        %v6182 = vunpack.c.l.b16 %v5827
        %v6183 = vunpack.c.h.b16 %v5827
        %v6184 = vunpack.c.l.b16 %v5828
        %v6185 = vunpack.c.h.b16 %v5828
        %v6186 = vunpack.c.l.b16 %v5829
        %v6187 = vunpack.c.h.b16 %v5829
        %v6188 = vunpack.c.l.b16 %v5830
        %v6189 = vunpack.c.h.b16 %v5830
        %v6190 = vunpack.c.l.b16 %v5831
        %v6191 = vunpack.c.h.b16 %v5831
        %v6192 = vunpack.c.l.b16 %v5832
        %v6193 = vunpack.c.h.b16 %v5832
        %v6194 = vunpack.c.l.b16 %v5833
        %v6195 = vunpack.c.h.b16 %v5833
        %v6196 = vunpack.c.l.b16 %v5834
        %v6197 = vunpack.c.h.b16 %v5834
        %v6198 = vunpack.c.l.b16 %v5835
        %v6199 = vunpack.c.h.b16 %v5835
        %v6200 = vunpack.c.l.b16 %v5836
        %v6201 = vunpack.c.h.b16 %v5836
        %v6202 = vunpack.c.l.b16 %v5837
        %v6203 = vunpack.c.h.b16 %v5837
        %v6204 = vunpack.c.l.b16 %v5838
        %v6205 = vunpack.c.h.b16 %v5838
        %v6206 = vunpack.c.l.b16 %v5839
        %v6207 = vunpack.c.h.b16 %v5839
        %v6208 = vunpack.c.l.b16 %v5840
        %v6209 = vunpack.c.h.b16 %v5840
        %v6210 = vunpack.c.l.b16 %v5841
        %v6211 = vunpack.c.h.b16 %v5841
        %v6212 = vunpack.c.l.b16 %v5842
        %v6213 = vunpack.c.h.b16 %v5842
        %v6214 = vunpack.c.l.b16 %v5843
        %v6215 = vunpack.c.h.b16 %v5843
        %v6216 = vunpack.c.l.b16 %v5844
        %v6217 = vunpack.c.h.b16 %v5844
        %v6218 = vunpack.c.l.b16 %v5845
        %v6219 = vunpack.c.h.b16 %v5845
        %v6220 = vunpack.c.l.b16 %v5846
        %v6221 = vunpack.c.h.b16 %v5846
        %v6222 = vunpack.c.l.b16 %v5847
        %v6223 = vunpack.c.h.b16 %v5847
        %v6224 = vunpack.c.l.b16 %v5848
        %v6225 = vunpack.c.h.b16 %v5848
        %v6226 = vunpack.c.l.b16 %v5849
        %v6227 = vunpack.c.h.b16 %v5849
        %v6228 = vunpack.c.l.b16 %v5850
        %v6229 = vunpack.c.h.b16 %v5850
        %v6230 = vunpack.c.l.b16 %v5851
        %v6231 = vunpack.c.h.b16 %v5851
        %v6232 = vunpack.c.l.b16 %v5852
        %v6233 = vunpack.c.h.b16 %v5852
        %v6234 = vunpack.c.l.b16 %v5853
        %v6235 = vunpack.c.h.b16 %v5853
        %v6236 = vunpack.c.l.b16 %v5854
        %v6237 = vunpack.c.h.b16 %v5854
        %v6238 = vunpack.c.l.b16 %v5855
        %v6239 = vunpack.c.h.b16 %v5855
        %v6240 = vunpack.c.l.b16 %v5856
        %v6241 = vunpack.c.h.b16 %v5856
        %v6242 = vunpack.c.l.b16 %v5857
        %v6243 = vunpack.c.h.b16 %v5857
        %v6244 = vunpack.c.l.b16 %v5858
        %v6245 = vunpack.c.h.b16 %v5858
        %v6246 = vunpack.c.l.b16 %v5859
        %v6247 = vunpack.c.h.b16 %v5859
        %v6248 = vunpack.c.l.b16 %v5860
        %v6249 = vunpack.c.h.b16 %v5860
        %v6250 = vunpack.c.l.b16 %v5861
        %v6251 = vunpack.c.h.b16 %v5861
        %v6252 = vunpack.c.l.b16 %v5862
        %v6253 = vunpack.c.h.b16 %v5862
        %v6254 = vunpack.c.l.b16 %v5863
        %v6255 = vunpack.c.h.b16 %v5863
        %v6256 = vunpack.c.l.b16 %v5864
        %v6257 = vunpack.c.h.b16 %v5864
        %v6258 = vunpack.c.l.b16 %v5865
        %v6259 = vunpack.c.h.b16 %v5865
        %v6260 = vunpack.c.l.b16 %v5866
        %v6261 = vunpack.c.h.b16 %v5866
        %v6262 = vunpack.c.l.b16 %v5867
        %v6263 = vunpack.c.h.b16 %v5867
        %v6264 = vunpack.c.l.b16 %v5868
        %v6265 = vunpack.c.h.b16 %v5868
        %v6266 = vunpack.c.l.b16 %v5869
        %v6267 = vunpack.c.h.b16 %v5869
        %v6268 = vunpack.c.l.b16 %v5870
        %v6269 = vunpack.c.h.b16 %v5870
        %v6270 = vunpack.c.l.b16 %v5871
        %v6271 = vunpack.c.h.b16 %v5871
        %v6272 = vunpack.c.l.b16 %v5872
        %v6273 = vunpack.c.h.b16 %v5872
        %v6274 = vunpack.c.l.b16 %v5873
        %v6275 = vunpack.c.h.b16 %v5873
        %v6276 = vunpack.c.l.b16 %v5874
        %v6277 = vunpack.c.h.b16 %v5874
        %v6278 = vunpack.c.l.b16 %v5875
        %v6279 = vunpack.c.h.b16 %v5875
        %v6280 = vunpack.c.l.b16 %v5876
        %v6281 = vunpack.c.h.b16 %v5876
        %v6282 = vunpack.c.l.b16 %v5877
        %v6283 = vunpack.c.h.b16 %v5877
        %v6284 = vunpack.c.l.b16 %v5878
        %v6285 = vunpack.c.h.b16 %v5878
        %v6286 = vunpack.c.l.b16 %v5879
        %v6287 = vunpack.c.h.b16 %v5879
        %v6288 = vunpack.c.l.b16 %v5880
        %v6289 = vunpack.c.h.b16 %v5880
        %v6290 = vunpack.c.l.b16 %v5881
        %v6291 = vunpack.c.h.b16 %v5881
        %v6292 = vunpack.c.l.b16 %v5882
        %v6293 = vunpack.c.h.b16 %v5882
        %v6294 = vunpack.c.l.b16 %v5883
        %v6295 = vunpack.c.h.b16 %v5883
        %v6296 = vunpack.c.l.b16 %v5884
        %v6297 = vunpack.c.h.b16 %v5884
        %v6298 = vunpack.c.l.b16 %v5885
        %v6299 = vunpack.c.h.b16 %v5885
        %v6300 = vunpack.c.l.b16 %v5886
        %v6301 = vunpack.c.h.b16 %v5886
        %v6302 = vunpack.c.l.b16 %v5887
        %v6303 = vunpack.c.h.b16 %v5887
        %v6304 = vunpack.c.l.b16 %v5888
        %v6305 = vunpack.c.h.b16 %v5888
        %v6306 = vunpack.c.l.b16 %v5889
        %v6307 = vunpack.c.h.b16 %v5889
        %v6308 = vunpack.c.l.b16 %v5890
        %v6309 = vunpack.c.h.b16 %v5890
        %v6310 = vunpack.c.l.b16 %v5891
        %v6311 = vunpack.c.h.b16 %v5891
        %v6312 = vunpack.c.l.b16 %v5892
        %v6313 = vunpack.c.h.b16 %v5892
        %v6314 = vunpack.c.l.b16 %v5893
        %v6315 = vunpack.c.h.b16 %v5893
        %v6316 = vunpack.c.l.b16 %v5894
        %v6317 = vunpack.c.h.b16 %v5894
        %v6318 = vunpack.c.l.b16 %v5895
        %v6319 = vunpack.c.h.b16 %v5895
        %v6320 = vunpack.c.l.b16 %v5896
        %v6321 = vunpack.c.h.b16 %v5896
        %v6322 = vunpack.c.l.b16 %v5897
        %v6323 = vunpack.c.h.b16 %v5897
        %v6324 = vunpack.c.l.b16 %v5898
        %v6325 = vunpack.c.h.b16 %v5898
        %v6326 = vunpack.c.l.b16 %v5899
        %v6327 = vunpack.c.h.b16 %v5899
        %v6328 = vunpack.c.l.b16 %v5900
        %v6329 = vunpack.c.h.b16 %v5900
        %v6330 = vunpack.c.l.b16 %v5901
        %v6331 = vunpack.c.h.b16 %v5901
        %v6332 = vunpack.c.l.b16 %v5902
        %v6333 = vunpack.c.h.b16 %v5902
        %v6334 = vunpack.c.l.b16 %v5903
        %v6335 = vunpack.c.h.b16 %v5903
        %v6336 = vunpack.c.l.b16 %v5904
        %v6337 = vunpack.c.h.b16 %v5904
        %v6338 = vunpack.c.l.b16 %v5905
        %v6339 = vunpack.c.h.b16 %v5905
        %v6340 = vunpack.c.l.b16 %v5906
        %v6341 = vunpack.c.h.b16 %v5906
        %v6342 = vunpack.c.l.b16 %v5907
        %v6343 = vunpack.c.h.b16 %v5907
        %v6344 = vunpack.c.l.b16 %v5908
        %v6345 = vunpack.c.h.b16 %v5908
        %v6346 = vunpack.c.l.b16 %v5909
        %v6347 = vunpack.c.h.b16 %v5909
        %v6348 = vunpack.c.l.b16 %v5910
        %v6349 = vunpack.c.h.b16 %v5910
        %v6350 = vunpack.c.l.b16 %v5911
        %v6351 = vunpack.c.h.b16 %v5911
        %v6352 = vunpack.c.l.b16 %v5912
        %v6353 = vunpack.c.h.b16 %v5912
        %v6354 = vunpack.c.l.b16 %v5913
        %v6355 = vunpack.c.h.b16 %v5913
        %v6356 = vunpack.c.l.b16 %v5914
        %v6357 = vunpack.c.h.b16 %v5914
        %v6358 = vunpack.c.l.b16 %v5915
        %v6359 = vunpack.c.h.b16 %v5915
        %v6360 = vunpack.c.l.b16 %v5916
        %v6361 = vunpack.c.h.b16 %v5916
        %v6362 = vunpack.c.l.b16 %v5917
        %v6363 = vunpack.c.h.b16 %v5917
        %v6364 = vunpack.c.l.b16 %v5918
        %v6365 = vunpack.c.h.b16 %v5918
        %v6366 = vunpack.c.l.b16 %v5919
        %v6367 = vunpack.c.h.b16 %v5919
        %v6368 = vunpack.c.l.b16 %v5920
        %v6369 = vunpack.c.h.b16 %v5920
        %v6370 = vunpack.c.l.b16 %v5921
        %v6371 = vunpack.c.h.b16 %v5921
        %v6372 = vunpack.c.l.b16 %v5922
        %v6373 = vunpack.c.h.b16 %v5922
        %v6374 = vunpack.c.l.b16 %v5923
        %v6375 = vunpack.c.h.b16 %v5923
        %v6376 = vunpack.c.l.b16 %v5924
        %v6377 = vunpack.c.h.b16 %v5924
        %v6378 = vunpack.c.l.b16 %v5925
        %v6379 = vunpack.c.h.b16 %v5925
        %v6380 = vunpack.c.l.b16 %v5926
        %v6381 = vunpack.c.h.b16 %v5926
        %v6382 = vunpack.c.l.b16 %v5927
        %v6383 = vunpack.c.h.b16 %v5927
        %v6384 = vunpack.c.l.b16 %v5928
        %v6385 = vunpack.c.h.b16 %v5928
        %v6386 = vunpack.c.l.b16 %v5929
        %v6387 = vunpack.c.h.b16 %v5929
        %v6388 = vunpack.c.l.b16 %v5930
        %v6389 = vunpack.c.h.b16 %v5930
        %v6390 = vunpack.c.l.b16 %v5931
        %v6391 = vunpack.c.h.b16 %v5931
        %v6392 = vunpack.c.l.b16 %v5932
        %v6393 = vunpack.c.h.b16 %v5932
        %v6394 = vunpack.c.l.b16 %v5933
        %v6395 = vunpack.c.h.b16 %v5933
        %v6396 = vunpack.c.l.b16 %v5934
        %v6397 = vunpack.c.h.b16 %v5934
        %v6398 = vunpack.c.l.b16 %v5935
        %v6399 = vunpack.c.h.b16 %v5935
        %v6400 = vunpack.c.l.b16 %v5936
        %v6401 = vunpack.c.h.b16 %v5936
        %v6402 = vunpack.c.l.b16 %v5937
        %v6403 = vunpack.c.h.b16 %v5937
        %v6404 = vunpack.c.l.b16 %v5938
        %v6405 = vunpack.c.h.b16 %v5938
        %v6406 = vunpack.c.l.b16 %v5939
        %v6407 = vunpack.c.h.b16 %v5939
        %v6408 = vunpack.c.l.b16 %v5940
        %v6409 = vunpack.c.h.b16 %v5940
        %v6410 = vpack.c.b16 %v6170, %v6154
        %v6411 = vpack.c.b16 %v6171, %v6155
        %v6412 = vpack.c.b16 %v6172, %v6156
        %v6413 = vpack.c.b16 %v6173, %v6157
        %v6414 = vpack.c.b16 %v6174, %v6158
        %v6415 = vpack.c.b16 %v6175, %v6159
        %v6416 = vpack.c.b16 %v6176, %v6160
        %v6417 = vpack.c.b16 %v6177, %v6161
        %v6418 = vpack.c.b16 %v6178, %v6162
        %v6419 = vpack.c.b16 %v6179, %v6163
        %v6420 = vpack.c.b16 %v6180, %v6164
        %v6421 = vpack.c.b16 %v6181, %v6165
        %v6422 = vpack.c.b16 %v6182, %v6166
        %v6423 = vpack.c.b16 %v6183, %v6167
        %v6424 = vpack.c.b16 %v6184, %v6168
        %v6425 = vpack.c.b16 %v6185, %v6169
        %v6426 = vpack.c.b16 %v6202, %v6186
        %v6427 = vpack.c.b16 %v6203, %v6187
        %v6428 = vpack.c.b16 %v6204, %v6188
        %v6429 = vpack.c.b16 %v6205, %v6189
        %v6430 = vpack.c.b16 %v6206, %v6190
        %v6431 = vpack.c.b16 %v6207, %v6191
        %v6432 = vpack.c.b16 %v6208, %v6192
        %v6433 = vpack.c.b16 %v6209, %v6193
        %v6434 = vpack.c.b16 %v6210, %v6194
        %v6435 = vpack.c.b16 %v6211, %v6195
        %v6436 = vpack.c.b16 %v6212, %v6196
        %v6437 = vpack.c.b16 %v6213, %v6197
        %v6438 = vpack.c.b16 %v6214, %v6198
        %v6439 = vpack.c.b16 %v6215, %v6199
        %v6440 = vpack.c.b16 %v6216, %v6200
        %v6441 = vpack.c.b16 %v6217, %v6201
        %v6442 = vpack.c.b16 %v6234, %v6218
        %v6443 = vpack.c.b16 %v6235, %v6219
        %v6444 = vpack.c.b16 %v6236, %v6220
        %v6445 = vpack.c.b16 %v6237, %v6221
        %v6446 = vpack.c.b16 %v6238, %v6222
        %v6447 = vpack.c.b16 %v6239, %v6223
        %v6448 = vpack.c.b16 %v6240, %v6224
        %v6449 = vpack.c.b16 %v6241, %v6225
        %v6450 = vpack.c.b16 %v6242, %v6226
        %v6451 = vpack.c.b16 %v6243, %v6227
        %v6452 = vpack.c.b16 %v6244, %v6228
        %v6453 = vpack.c.b16 %v6245, %v6229
        %v6454 = vpack.c.b16 %v6246, %v6230
        %v6455 = vpack.c.b16 %v6247, %v6231
        %v6456 = vpack.c.b16 %v6248, %v6232
        %v6457 = vpack.c.b16 %v6249, %v6233
        %v6458 = vpack.c.b16 %v6266, %v6250
        %v6459 = vpack.c.b16 %v6267, %v6251
        %v6460 = vpack.c.b16 %v6268, %v6252
        %v6461 = vpack.c.b16 %v6269, %v6253
        %v6462 = vpack.c.b16 %v6270, %v6254
        %v6463 = vpack.c.b16 %v6271, %v6255
        %v6464 = vpack.c.b16 %v6272, %v6256
        %v6465 = vpack.c.b16 %v6273, %v6257
        %v6466 = vpack.c.b16 %v6274, %v6258
        %v6467 = vpack.c.b16 %v6275, %v6259
        %v6468 = vpack.c.b16 %v6276, %v6260
        %v6469 = vpack.c.b16 %v6277, %v6261
        %v6470 = vpack.c.b16 %v6278, %v6262
        %v6471 = vpack.c.b16 %v6279, %v6263
        %v6472 = vpack.c.b16 %v6280, %v6264
        %v6473 = vpack.c.b16 %v6281, %v6265
        %v6474 = vpack.c.b16 %v6298, %v6282
        %v6475 = vpack.c.b16 %v6299, %v6283
        %v6476 = vpack.c.b16 %v6300, %v6284
        %v6477 = vpack.c.b16 %v6301, %v6285
        %v6478 = vpack.c.b16 %v6302, %v6286
        %v6479 = vpack.c.b16 %v6303, %v6287
        %v6480 = vpack.c.b16 %v6304, %v6288
        %v6481 = vpack.c.b16 %v6305, %v6289
        %v6482 = vpack.c.b16 %v6306, %v6290
        %v6483 = vpack.c.b16 %v6307, %v6291
        %v6484 = vpack.c.b16 %v6308, %v6292
        %v6485 = vpack.c.b16 %v6309, %v6293
        %v6486 = vpack.c.b16 %v6310, %v6294
        %v6487 = vpack.c.b16 %v6311, %v6295
        %v6488 = vpack.c.b16 %v6312, %v6296
        %v6489 = vpack.c.b16 %v6313, %v6297
        %v6490 = vpack.c.b16 %v6330, %v6314
        %v6491 = vpack.c.b16 %v6331, %v6315
        %v6492 = vpack.c.b16 %v6332, %v6316
        %v6493 = vpack.c.b16 %v6333, %v6317
        %v6494 = vpack.c.b16 %v6334, %v6318
        %v6495 = vpack.c.b16 %v6335, %v6319
        %v6496 = vpack.c.b16 %v6336, %v6320
        %v6497 = vpack.c.b16 %v6337, %v6321
        %v6498 = vpack.c.b16 %v6338, %v6322
        %v6499 = vpack.c.b16 %v6339, %v6323
        %v6500 = vpack.c.b16 %v6340, %v6324
        %v6501 = vpack.c.b16 %v6341, %v6325
        %v6502 = vpack.c.b16 %v6342, %v6326
        %v6503 = vpack.c.b16 %v6343, %v6327
        %v6504 = vpack.c.b16 %v6344, %v6328
        %v6505 = vpack.c.b16 %v6345, %v6329
        %v6506 = vpack.c.b16 %v6362, %v6346
        %v6507 = vpack.c.b16 %v6363, %v6347
        %v6508 = vpack.c.b16 %v6364, %v6348
        %v6509 = vpack.c.b16 %v6365, %v6349
        %v6510 = vpack.c.b16 %v6366, %v6350
        %v6511 = vpack.c.b16 %v6367, %v6351
        %v6512 = vpack.c.b16 %v6368, %v6352
        %v6513 = vpack.c.b16 %v6369, %v6353
        %v6514 = vpack.c.b16 %v6370, %v6354
        %v6515 = vpack.c.b16 %v6371, %v6355
        %v6516 = vpack.c.b16 %v6372, %v6356
        %v6517 = vpack.c.b16 %v6373, %v6357
        %v6518 = vpack.c.b16 %v6374, %v6358
        %v6519 = vpack.c.b16 %v6375, %v6359
        %v6520 = vpack.c.b16 %v6376, %v6360
        %v6521 = vpack.c.b16 %v6377, %v6361
        %v6522 = vpack.c.b16 %v6394, %v6378
        %v6523 = vpack.c.b16 %v6395, %v6379
        %v6524 = vpack.c.b16 %v6396, %v6380
        %v6525 = vpack.c.b16 %v6397, %v6381
        %v6526 = vpack.c.b16 %v6398, %v6382
        %v6527 = vpack.c.b16 %v6399, %v6383
        %v6528 = vpack.c.b16 %v6400, %v6384
        %v6529 = vpack.c.b16 %v6401, %v6385
        %v6530 = vpack.c.b16 %v6402, %v6386
        %v6531 = vpack.c.b16 %v6403, %v6387
        %v6532 = vpack.c.b16 %v6404, %v6388
        %v6533 = vpack.c.b16 %v6405, %v6389
        %v6534 = vpack.c.b16 %v6406, %v6390
        %v6535 = vpack.c.b16 %v6407, %v6391
        %v6536 = vpack.c.b16 %v6408, %v6392
        %v6537 = vpack.c.b16 %v6409, %v6393
        %6666 = vmatprep.subr.bf16.mxu0 %v6411
        %6667 = vmatpush1.bf16.msra.mxu0 %v6410
        %6668 = vmatprep.subr.bf16.mxu0 %v6427
        %6669 = vmatpush1.bf16.msra.mxu0 %v6426
        %6670 = vmatprep.subr.bf16.mxu0 %v6443
        %6671 = vmatpush1.bf16.msra.mxu0 %v6442
        %6672 = vmatprep.subr.bf16.mxu0 %v6459
        %6673 = vmatpush1.bf16.msra.mxu0 %v6458
        %6674 = vmatprep.subr.bf16.mxu0 %v6475
        %6675 = vmatpush1.bf16.msra.mxu0 %v6474
        %6676 = vmatprep.subr.bf16.mxu0 %v6491
        %6677 = vmatpush1.bf16.msra.mxu0 %v6490
        %6678 = vmatprep.subr.bf16.mxu0 %v6507
        %6679 = vmatpush1.bf16.msra.mxu0 %v6506
        %6680 = vmatprep.subr.bf16.mxu0 %v6523
        %6681 = vmatpush1.bf16.msra.mxu0 %v6522
        %6682 = vmatprep.subr.bf16.mxu0 0
        %6683 = vmatpush1.bf16.msra.mxu0 0
        %6684 = vmatprep.subr.bf16.mxu0 0
        %6685 = vmatpush1.bf16.msra.mxu0 0
        %6686 = vmatprep.subr.bf16.mxu0 0
        %6687 = vmatpush1.bf16.msra.mxu0 0
        %6688 = vmatprep.subr.bf16.mxu0 0
        %6689 = vmatpush1.bf16.msra.mxu0 0
        %6690 = vmatprep.subr.bf16.mxu0 0
        %6691 = vmatpush1.bf16.msra.mxu0 0
        %6692 = vmatprep.subr.bf16.mxu0 0
        %6693 = vmatpush1.bf16.msra.mxu0 0
        %6694 = vmatprep.subr.bf16.mxu0 0
        %6695 = vmatpush1.bf16.msra.mxu0 0
        %6696 = vmatprep.subr.bf16.mxu0 0
        %6697 = vmatpush1.bf16.msra.mxu0 0
        %6698 = vmatprep.mubr.bf16.mxu0 0
        %6699 = vmatmul.mubr.bf16.gmra.mrb[0].mxu0 %v5811
        %v6700 = vpop.f32.mrb[0].mxu0
        %v6701 = vadd.f32 %v5949, %v6700
        %v6702 = vpop.f32.mrb[0].mxu0
        %v6703 = vadd.f32 %v5953, %v6702
        %v6704 = vpop.f32.mrb[0].mxu0
        %v6705 = vpop.f32.mrb[0].mxu0
        %6706 = vdwg.mxu0
        %6707 = vmatprep.subr.bf16.mxu0 %v6413
        %6708 = vmatpush1.bf16.msra.mxu0 %v6412
        %6709 = vmatprep.subr.bf16.mxu0 %v6429
        %6710 = vmatpush1.bf16.msra.mxu0 %v6428
        %6711 = vmatprep.subr.bf16.mxu0 %v6445
        %6712 = vmatpush1.bf16.msra.mxu0 %v6444
        %6713 = vmatprep.subr.bf16.mxu0 %v6461
        %6714 = vmatpush1.bf16.msra.mxu0 %v6460
        %6715 = vmatprep.subr.bf16.mxu0 %v6477
        %6716 = vmatpush1.bf16.msra.mxu0 %v6476
        %6717 = vmatprep.subr.bf16.mxu0 %v6493
        %6718 = vmatpush1.bf16.msra.mxu0 %v6492
        %6719 = vmatprep.subr.bf16.mxu0 %v6509
        %6720 = vmatpush1.bf16.msra.mxu0 %v6508
        %6721 = vmatprep.subr.bf16.mxu0 %v6525
        %6722 = vmatpush1.bf16.msra.mxu0 %v6524
        %6723 = vmatprep.subr.bf16.mxu0 0
        %6724 = vmatpush1.bf16.msra.mxu0 0
        %6725 = vmatprep.subr.bf16.mxu0 0
        %6726 = vmatpush1.bf16.msra.mxu0 0
        %6727 = vmatprep.subr.bf16.mxu0 0
        %6728 = vmatpush1.bf16.msra.mxu0 0
        %6729 = vmatprep.subr.bf16.mxu0 0
        %6730 = vmatpush1.bf16.msra.mxu0 0
        %6731 = vmatprep.subr.bf16.mxu0 0
        %6732 = vmatpush1.bf16.msra.mxu0 0
        %6733 = vmatprep.subr.bf16.mxu0 0
        %6734 = vmatpush1.bf16.msra.mxu0 0
        %6735 = vmatprep.subr.bf16.mxu0 0
        %6736 = vmatpush1.bf16.msra.mxu0 0
        %6737 = vmatprep.subr.bf16.mxu0 0
        %6738 = vmatpush1.bf16.msra.mxu0 0
        %6739 = vmatprep.mubr.bf16.mxu0 0
        %6740 = vmatmul.mubr.bf16.gmra.mrb[0].mxu0 %v5811
        %v6741 = vpop.f32.mrb[0].mxu0
        %v6742 = vadd.f32 %v5957, %v6741
        %v6743 = vpop.f32.mrb[0].mxu0
        %v6744 = vadd.f32 %v5961, %v6743
        %v6745 = vpop.f32.mrb[0].mxu0
        %v6746 = vpop.f32.mrb[0].mxu0
        %6747 = vdwg.mxu0
        %6748 = vmatprep.subr.bf16.mxu0 %v6415
        %6749 = vmatpush1.bf16.msra.mxu0 %v6414
        %6750 = vmatprep.subr.bf16.mxu0 %v6431
        %6751 = vmatpush1.bf16.msra.mxu0 %v6430
        %6752 = vmatprep.subr.bf16.mxu0 %v6447
        %6753 = vmatpush1.bf16.msra.mxu0 %v6446
        %6754 = vmatprep.subr.bf16.mxu0 %v6463
        %6755 = vmatpush1.bf16.msra.mxu0 %v6462
        %6756 = vmatprep.subr.bf16.mxu0 %v6479
        %6757 = vmatpush1.bf16.msra.mxu0 %v6478
        %6758 = vmatprep.subr.bf16.mxu0 %v6495
        %6759 = vmatpush1.bf16.msra.mxu0 %v6494
        %6760 = vmatprep.subr.bf16.mxu0 %v6511
        %6761 = vmatpush1.bf16.msra.mxu0 %v6510
        %6762 = vmatprep.subr.bf16.mxu0 %v6527
        %6763 = vmatpush1.bf16.msra.mxu0 %v6526
        %6764 = vmatprep.subr.bf16.mxu0 0
        %6765 = vmatpush1.bf16.msra.mxu0 0
        %6766 = vmatprep.subr.bf16.mxu0 0
        %6767 = vmatpush1.bf16.msra.mxu0 0
        %6768 = vmatprep.subr.bf16.mxu0 0
        %6769 = vmatpush1.bf16.msra.mxu0 0
        %6770 = vmatprep.subr.bf16.mxu0 0
        %6771 = vmatpush1.bf16.msra.mxu0 0
        %6772 = vmatprep.subr.bf16.mxu0 0
        %6773 = vmatpush1.bf16.msra.mxu0 0
        %6774 = vmatprep.subr.bf16.mxu0 0
        %6775 = vmatpush1.bf16.msra.mxu0 0
        %6776 = vmatprep.subr.bf16.mxu0 0
        %6777 = vmatpush1.bf16.msra.mxu0 0
        %6778 = vmatprep.subr.bf16.mxu0 0
        %6779 = vmatpush1.bf16.msra.mxu0 0
        %6780 = vmatprep.mubr.bf16.mxu0 0
        %6781 = vmatmul.mubr.bf16.gmra.mrb[0].mxu0 %v5811
        %v6782 = vpop.f32.mrb[0].mxu0
        %v6783 = vadd.f32 %v5965, %v6782
        %v6784 = vpop.f32.mrb[0].mxu0
        %v6785 = vadd.f32 %v5969, %v6784
        %v6786 = vpop.f32.mrb[0].mxu0
        %v6787 = vpop.f32.mrb[0].mxu0
        %6788 = vdwg.mxu0
        %6789 = vmatprep.subr.bf16.mxu0 %v6417
        %6790 = vmatpush1.bf16.msra.mxu0 %v6416
        %6791 = vmatprep.subr.bf16.mxu0 %v6433
        %6792 = vmatpush1.bf16.msra.mxu0 %v6432
        %6793 = vmatprep.subr.bf16.mxu0 %v6449
        %6794 = vmatpush1.bf16.msra.mxu0 %v6448
        %6795 = vmatprep.subr.bf16.mxu0 %v6465
        %6796 = vmatpush1.bf16.msra.mxu0 %v6464
        %6797 = vmatprep.subr.bf16.mxu0 %v6481
        %6798 = vmatpush1.bf16.msra.mxu0 %v6480
        %6799 = vmatprep.subr.bf16.mxu0 %v6497
        %6800 = vmatpush1.bf16.msra.mxu0 %v6496
        %6801 = vmatprep.subr.bf16.mxu0 %v6513
        %6802 = vmatpush1.bf16.msra.mxu0 %v6512
        %6803 = vmatprep.subr.bf16.mxu0 %v6529
        %6804 = vmatpush1.bf16.msra.mxu0 %v6528
        %6805 = vmatprep.subr.bf16.mxu0 0
        %6806 = vmatpush1.bf16.msra.mxu0 0
        %6807 = vmatprep.subr.bf16.mxu0 0
        %6808 = vmatpush1.bf16.msra.mxu0 0
        %6809 = vmatprep.subr.bf16.mxu0 0
        %6810 = vmatpush1.bf16.msra.mxu0 0
        %6811 = vmatprep.subr.bf16.mxu0 0
        %6812 = vmatpush1.bf16.msra.mxu0 0
        %6813 = vmatprep.subr.bf16.mxu0 0
        %6814 = vmatpush1.bf16.msra.mxu0 0
        %6815 = vmatprep.subr.bf16.mxu0 0
        %6816 = vmatpush1.bf16.msra.mxu0 0
        %6817 = vmatprep.subr.bf16.mxu0 0
        %6818 = vmatpush1.bf16.msra.mxu0 0
        %6819 = vmatprep.subr.bf16.mxu0 0
        %6820 = vmatpush1.bf16.msra.mxu0 0
        %6821 = vmatprep.mubr.bf16.mxu0 0
        %6822 = vmatmul.mubr.bf16.gmra.mrb[0].mxu0 %v5811
        %v6823 = vpop.f32.mrb[0].mxu0
        %v6824 = vadd.f32 %v5973, %v6823
        %v6825 = vpop.f32.mrb[0].mxu0
        %v6826 = vadd.f32 %v5977, %v6825
        %v6827 = vpop.f32.mrb[0].mxu0
        %v6828 = vpop.f32.mrb[0].mxu0
        %6829 = vdwg.mxu0
        %6830 = vmatprep.subr.bf16.mxu0 %v6419
        %6831 = vmatpush1.bf16.msra.mxu0 %v6418
        %6832 = vmatprep.subr.bf16.mxu0 %v6435
        %6833 = vmatpush1.bf16.msra.mxu0 %v6434
        %6834 = vmatprep.subr.bf16.mxu0 %v6451
        %6835 = vmatpush1.bf16.msra.mxu0 %v6450
        %6836 = vmatprep.subr.bf16.mxu0 %v6467
        %6837 = vmatpush1.bf16.msra.mxu0 %v6466
        %6838 = vmatprep.subr.bf16.mxu0 %v6483
        %6839 = vmatpush1.bf16.msra.mxu0 %v6482
        %6840 = vmatprep.subr.bf16.mxu0 %v6499
        %6841 = vmatpush1.bf16.msra.mxu0 %v6498
        %6842 = vmatprep.subr.bf16.mxu0 %v6515
        %6843 = vmatpush1.bf16.msra.mxu0 %v6514
        %6844 = vmatprep.subr.bf16.mxu0 %v6531
        %6845 = vmatpush1.bf16.msra.mxu0 %v6530
        %6846 = vmatprep.subr.bf16.mxu0 0
        %6847 = vmatpush1.bf16.msra.mxu0 0
        %6848 = vmatprep.subr.bf16.mxu0 0
        %6849 = vmatpush1.bf16.msra.mxu0 0
        %6850 = vmatprep.subr.bf16.mxu0 0
        %6851 = vmatpush1.bf16.msra.mxu0 0
        %6852 = vmatprep.subr.bf16.mxu0 0
        %6853 = vmatpush1.bf16.msra.mxu0 0
        %6854 = vmatprep.subr.bf16.mxu0 0
        %6855 = vmatpush1.bf16.msra.mxu0 0
        %6856 = vmatprep.subr.bf16.mxu0 0
        %6857 = vmatpush1.bf16.msra.mxu0 0
        %6858 = vmatprep.subr.bf16.mxu0 0
        %6859 = vmatpush1.bf16.msra.mxu0 0
        %6860 = vmatprep.subr.bf16.mxu0 0
        %6861 = vmatpush1.bf16.msra.mxu0 0
        %6862 = vmatprep.mubr.bf16.mxu0 0
        %6863 = vmatmul.mubr.bf16.gmra.mrb[0].mxu0 %v5811
        %v6864 = vpop.f32.mrb[0].mxu0
        %v6865 = vadd.f32 %v5981, %v6864
        %v6866 = vpop.f32.mrb[0].mxu0
        %v6867 = vadd.f32 %v5985, %v6866
        %v6868 = vpop.f32.mrb[0].mxu0
        %v6869 = vpop.f32.mrb[0].mxu0
        %6870 = vdwg.mxu0
        %6871 = vmatprep.subr.bf16.mxu0 %v6421
        %6872 = vmatpush1.bf16.msra.mxu0 %v6420
        %6873 = vmatprep.subr.bf16.mxu0 %v6437
        %6874 = vmatpush1.bf16.msra.mxu0 %v6436
        %6875 = vmatprep.subr.bf16.mxu0 %v6453
        %6876 = vmatpush1.bf16.msra.mxu0 %v6452
        %6877 = vmatprep.subr.bf16.mxu0 %v6469
        %6878 = vmatpush1.bf16.msra.mxu0 %v6468
        %6879 = vmatprep.subr.bf16.mxu0 %v6485
        %6880 = vmatpush1.bf16.msra.mxu0 %v6484
        %6881 = vmatprep.subr.bf16.mxu0 %v6501
        %6882 = vmatpush1.bf16.msra.mxu0 %v6500
        %6883 = vmatprep.subr.bf16.mxu0 %v6517
        %6884 = vmatpush1.bf16.msra.mxu0 %v6516
        %6885 = vmatprep.subr.bf16.mxu0 %v6533
        %6886 = vmatpush1.bf16.msra.mxu0 %v6532
        %6887 = vmatprep.subr.bf16.mxu0 0
        %6888 = vmatpush1.bf16.msra.mxu0 0
        %6889 = vmatprep.subr.bf16.mxu0 0
        %6890 = vmatpush1.bf16.msra.mxu0 0
        %6891 = vmatprep.subr.bf16.mxu0 0
        %6892 = vmatpush1.bf16.msra.mxu0 0
        %6893 = vmatprep.subr.bf16.mxu0 0
        %6894 = vmatpush1.bf16.msra.mxu0 0
        %6895 = vmatprep.subr.bf16.mxu0 0
        %6896 = vmatpush1.bf16.msra.mxu0 0
        %6897 = vmatprep.subr.bf16.mxu0 0
        %6898 = vmatpush1.bf16.msra.mxu0 0
        %6899 = vmatprep.subr.bf16.mxu0 0
        %6900 = vmatpush1.bf16.msra.mxu0 0
        %6901 = vmatprep.subr.bf16.mxu0 0
        %6902 = vmatpush1.bf16.msra.mxu0 0
        %6903 = vmatprep.mubr.bf16.mxu0 0
        %6904 = vmatmul.mubr.bf16.gmra.mrb[0].mxu0 %v5811
        %v6905 = vpop.f32.mrb[0].mxu0
        %v6906 = vadd.f32 %v5989, %v6905
        %v6907 = vpop.f32.mrb[0].mxu0
        %v6908 = vadd.f32 %v5993, %v6907
        %v6909 = vpop.f32.mrb[0].mxu0
        %v6910 = vpop.f32.mrb[0].mxu0
        %6911 = vdwg.mxu0
        %6912 = vmatprep.subr.bf16.mxu0 %v6423
        %6913 = vmatpush1.bf16.msra.mxu0 %v6422
        %6914 = vmatprep.subr.bf16.mxu0 %v6439
        %6915 = vmatpush1.bf16.msra.mxu0 %v6438
        %6916 = vmatprep.subr.bf16.mxu0 %v6455
        %6917 = vmatpush1.bf16.msra.mxu0 %v6454
        %6918 = vmatprep.subr.bf16.mxu0 %v6471
        %6919 = vmatpush1.bf16.msra.mxu0 %v6470
        %6920 = vmatprep.subr.bf16.mxu0 %v6487
        %6921 = vmatpush1.bf16.msra.mxu0 %v6486
        %6922 = vmatprep.subr.bf16.mxu0 %v6503
        %6923 = vmatpush1.bf16.msra.mxu0 %v6502
        %6924 = vmatprep.subr.bf16.mxu0 %v6519
        %6925 = vmatpush1.bf16.msra.mxu0 %v6518
        %6926 = vmatprep.subr.bf16.mxu0 %v6535
        %6927 = vmatpush1.bf16.msra.mxu0 %v6534
        %6928 = vmatprep.subr.bf16.mxu0 0
        %6929 = vmatpush1.bf16.msra.mxu0 0
        %6930 = vmatprep.subr.bf16.mxu0 0
        %6931 = vmatpush1.bf16.msra.mxu0 0
        %6932 = vmatprep.subr.bf16.mxu0 0
        %6933 = vmatpush1.bf16.msra.mxu0 0
        %6934 = vmatprep.subr.bf16.mxu0 0
        %6935 = vmatpush1.bf16.msra.mxu0 0
        %6936 = vmatprep.subr.bf16.mxu0 0
        %6937 = vmatpush1.bf16.msra.mxu0 0
        %6938 = vmatprep.subr.bf16.mxu0 0
        %6939 = vmatpush1.bf16.msra.mxu0 0
        %6940 = vmatprep.subr.bf16.mxu0 0
        %6941 = vmatpush1.bf16.msra.mxu0 0
        %6942 = vmatprep.subr.bf16.mxu0 0
        %6943 = vmatpush1.bf16.msra.mxu0 0
        %6944 = vmatprep.mubr.bf16.mxu0 0
        %6945 = vmatmul.mubr.bf16.gmra.mrb[0].mxu0 %v5811
        %v6946 = vpop.f32.mrb[0].mxu0
        %v6947 = vadd.f32 %v5997, %v6946
        %v6948 = vpop.f32.mrb[0].mxu0
        %v6949 = vadd.f32 %v6001, %v6948
        %v6950 = vpop.f32.mrb[0].mxu0
        %v6951 = vpop.f32.mrb[0].mxu0
        %6952 = vdwg.mxu0
        %6953 = vmatprep.subr.bf16.mxu0 %v6425
        %6954 = vmatpush1.bf16.msra.mxu0 %v6424
        %6955 = vmatprep.subr.bf16.mxu0 %v6441
        %6956 = vmatpush1.bf16.msra.mxu0 %v6440
        %6957 = vmatprep.subr.bf16.mxu0 %v6457
        %6958 = vmatpush1.bf16.msra.mxu0 %v6456
        %6959 = vmatprep.subr.bf16.mxu0 %v6473
        %6960 = vmatpush1.bf16.msra.mxu0 %v6472
        %6961 = vmatprep.subr.bf16.mxu0 %v6489
        %6962 = vmatpush1.bf16.msra.mxu0 %v6488
        %6963 = vmatprep.subr.bf16.mxu0 %v6505
        %6964 = vmatpush1.bf16.msra.mxu0 %v6504
        %6965 = vmatprep.subr.bf16.mxu0 %v6521
        %6966 = vmatpush1.bf16.msra.mxu0 %v6520
        %6967 = vmatprep.subr.bf16.mxu0 %v6537
        %6968 = vmatpush1.bf16.msra.mxu0 %v6536
        %6969 = vmatprep.subr.bf16.mxu0 0
        %6970 = vmatpush1.bf16.msra.mxu0 0
        %6971 = vmatprep.subr.bf16.mxu0 0
        %6972 = vmatpush1.bf16.msra.mxu0 0
        %6973 = vmatprep.subr.bf16.mxu0 0
        %6974 = vmatpush1.bf16.msra.mxu0 0
        %6975 = vmatprep.subr.bf16.mxu0 0
        %6976 = vmatpush1.bf16.msra.mxu0 0
        %6977 = vmatprep.subr.bf16.mxu0 0
        %6978 = vmatpush1.bf16.msra.mxu0 0
        %6979 = vmatprep.subr.bf16.mxu0 0
        %6980 = vmatpush1.bf16.msra.mxu0 0
        %6981 = vmatprep.subr.bf16.mxu0 0
        %6982 = vmatpush1.bf16.msra.mxu0 0
        %6983 = vmatprep.subr.bf16.mxu0 0
        %6984 = vmatpush1.bf16.msra.mxu0 0
        %6985 = vmatprep.mubr.bf16.mxu0 0
        %6986 = vmatmul.mubr.bf16.gmra.mrb[0].mxu0 %v5811
        %v6987 = vpop.f32.mrb[0].mxu0
        %v6988 = vadd.f32 %v6005, %v6987
        %v6989 = vpop.f32.mrb[0].mxu0
        %v6990 = vadd.f32 %v6009, %v6989
        %v6991 = vpop.f32.mrb[0].mxu0
        %v6992 = vpop.f32.mrb[0].mxu0
        %6993 = vdwg.mxu0
        %v6994 = vmul.f32 %v6701, 0.5
        %v6995 = vmul.f32 %v6703, 0.5
        %v6996 = vmul.f32 %v6742, 0.5
        %v6997 = vmul.f32 %v6744, 0.5
        %v6998 = vmul.f32 %v6783, 0.5
        %v6999 = vmul.f32 %v6785, 0.5
        %v7000 = vmul.f32 %v6824, 0.5
        %v7001 = vmul.f32 %v6826, 0.5
        %v7002 = vmul.f32 %v6865, 0.5
        %v7003 = vmul.f32 %v6867, 0.5
        %v7004 = vmul.f32 %v6906, 0.5
        %v7005 = vmul.f32 %v6908, 0.5
        %v7006 = vmul.f32 %v6947, 0.5
        %v7007 = vmul.f32 %v6949, 0.5
        %v7008 = vmul.f32 %v6988, 0.5
        %v7009 = vmul.f32 %v6990, 0.5
        %v7010 = vmul.f32 %v6701, 0.70710677
        %v7011 = vmul.f32 %v6703, 0.70710677
        %v7012 = vmul.f32 %v6742, 0.70710677
        %v7013 = vmul.f32 %v6744, 0.70710677
        %v7014 = vmul.f32 %v6783, 0.70710677
        %v7015 = vmul.f32 %v6785, 0.70710677
        %v7016 = vmul.f32 %v6824, 0.70710677
        %v7017 = vmul.f32 %v6826, 0.70710677
        %v7018 = vmul.f32 %v6865, 0.70710677
        %v7019 = vmul.f32 %v6867, 0.70710677
        %v7020 = vmul.f32 %v6906, 0.70710677
        %v7021 = vmul.f32 %v6908, 0.70710677
        %v7022 = vmul.f32 %v6947, 0.70710677
        %v7023 = vmul.f32 %v6949, 0.70710677
        %v7024 = vmul.f32 %v6988, 0.70710677
        %v7025 = vmul.f32 %v6990, 0.70710677
        %v7026 = verf.f32.pop %v7010
        %v7027 = verf.f32.pop %v7011
        %v7028 = verf.f32.pop %v7012
        %v7029 = verf.f32.pop %v7013
        %v7030 = verf.f32.pop %v7014
        %v7031 = verf.f32.pop %v7015
        %v7032 = verf.f32.pop %v7016
        %v7033 = verf.f32.pop %v7017
        %v7034 = verf.f32.pop %v7018
        %v7035 = verf.f32.pop %v7019
        %v7036 = verf.f32.pop %v7020
        %v7037 = verf.f32.pop %v7021
        %v7038 = verf.f32.pop %v7022
        %v7039 = verf.f32.pop %v7023
        %v7040 = verf.f32.pop %v7024
        %v7041 = verf.f32.pop %v7025
        %v7042 = vadd.f32 %v7026, 1.0
        %v7043 = vadd.f32 %v7027, 1.0
        %v7044 = vadd.f32 %v7028, 1.0
        %v7045 = vadd.f32 %v7029, 1.0
        %v7046 = vadd.f32 %v7030, 1.0
        %v7047 = vadd.f32 %v7031, 1.0
        %v7048 = vadd.f32 %v7032, 1.0
        %v7049 = vadd.f32 %v7033, 1.0
        %v7050 = vadd.f32 %v7034, 1.0
        %v7051 = vadd.f32 %v7035, 1.0
        %v7052 = vadd.f32 %v7036, 1.0
        %v7053 = vadd.f32 %v7037, 1.0
        %v7054 = vadd.f32 %v7038, 1.0
        %v7055 = vadd.f32 %v7039, 1.0
        %v7056 = vadd.f32 %v7040, 1.0
        %v7057 = vadd.f32 %v7041, 1.0
        %v7058 = vmul.f32 %v6994, %v7042
        %v7059 = vmul.f32 %v6995, %v7043
        %v7060 = vmul.f32 %v6996, %v7044
        %v7061 = vmul.f32 %v6997, %v7045
        %v7062 = vmul.f32 %v6998, %v7046
        %v7063 = vmul.f32 %v6999, %v7047
        %v7064 = vmul.f32 %v7000, %v7048
        %v7065 = vmul.f32 %v7001, %v7049
        %v7066 = vmul.f32 %v7002, %v7050
        %v7067 = vmul.f32 %v7003, %v7051
        %v7068 = vmul.f32 %v7004, %v7052
        %v7069 = vmul.f32 %v7005, %v7053
        %v7070 = vmul.f32 %v7006, %v7054
        %v7071 = vmul.f32 %v7007, %v7055
        %v7072 = vmul.f32 %v7008, %v7056
        %v7073 = vmul.f32 %v7009, %v7057
        %v7074 = vpack.c.bf16 %v7058, %v7058
        %v7075 = vpack.c.bf16 %v7059, %v7059
        %v7076 = vpack.c.bf16 %v7060, %v7060
        %v7077 = vpack.c.bf16 %v7061, %v7061
        %v7078 = vpack.c.bf16 %v7062, %v7062
        %v7079 = vpack.c.bf16 %v7063, %v7063
        %v7080 = vpack.c.bf16 %v7064, %v7064
        %v7081 = vpack.c.bf16 %v7065, %v7065
        %v7082 = vpack.c.bf16 %v7066, %v7066
        %v7083 = vpack.c.bf16 %v7067, %v7067
        %v7084 = vpack.c.bf16 %v7068, %v7068
        %v7085 = vpack.c.bf16 %v7069, %v7069
        %v7086 = vpack.c.bf16 %v7070, %v7070
        %v7087 = vpack.c.bf16 %v7071, %v7071
        %v7088 = vpack.c.bf16 %v7072, %v7072
        %v7089 = vpack.c.bf16 %v7073, %v7073
        %s7090 = scalar_lea.vmem [#allocation7], 1024
        %v7091 = vld [vmem:[%s7090] sm:$0xf]
        %v7092 = vld [vmem:[%s7090 + $0x4] sm:$0xf]
        %v7093 = vld [vmem:[%s7090 + $0x8] sm:$0xf]
        %v7094 = vld [vmem:[%s7090 + $0xc] sm:$0xf]
        %v7095 = vld [vmem:[%s7090 + $0x10] sm:$0xf]
        %v7096 = vld [vmem:[%s7090 + $0x14] sm:$0xf]
        %v7097 = vld [vmem:[%s7090 + $0x18] sm:$0xf]
        %v7098 = vld [vmem:[%s7090 + $0x1c] sm:$0xf]
        %v7099 = vld [vmem:[%s7090 + $0x20] sm:$0xf]
        %v7100 = vld [vmem:[%s7090 + $0x24] sm:$0xf]
        %v7101 = vld [vmem:[%s7090 + $0x28] sm:$0xf]
        %v7102 = vld [vmem:[%s7090 + $0x2c] sm:$0xf]
        %v7103 = vld [vmem:[%s7090 + $0x30] sm:$0xf]
        %v7104 = vld [vmem:[%s7090 + $0x34] sm:$0xf]
        %v7105 = vld [vmem:[%s7090 + $0x38] sm:$0xf]
        %v7106 = vld [vmem:[%s7090 + $0x3c] sm:$0xf]
        %v7107 = vld [vmem:[%s7090 + $0x40] sm:$0xf]
        %v7108 = vld [vmem:[%s7090 + $0x44] sm:$0xf]
        %v7109 = vld [vmem:[%s7090 + $0x48] sm:$0xf]
        %v7110 = vld [vmem:[%s7090 + $0x4c] sm:$0xf]
        %v7111 = vld [vmem:[%s7090 + $0x50] sm:$0xf]
        %v7112 = vld [vmem:[%s7090 + $0x54] sm:$0xf]
        %v7113 = vld [vmem:[%s7090 + $0x58] sm:$0xf]
        %v7114 = vld [vmem:[%s7090 + $0x5c] sm:$0xf]
        %v7115 = vld [vmem:[%s7090 + $0x60] sm:$0xf]
        %v7116 = vld [vmem:[%s7090 + $0x64] sm:$0xf]
        %v7117 = vld [vmem:[%s7090 + $0x68] sm:$0xf]
        %v7118 = vld [vmem:[%s7090 + $0x6c] sm:$0xf]
        %v7119 = vld [vmem:[%s7090 + $0x70] sm:$0xf]
        %v7120 = vld [vmem:[%s7090 + $0x74] sm:$0xf]
        %v7121 = vld [vmem:[%s7090 + $0x78] sm:$0xf]
        %v7122 = vld [vmem:[%s7090 + $0x7c] sm:$0xf]
        %v7123 = vld [vmem:[%s7090 + $0x80] sm:$0xf]
        %v7124 = vld [vmem:[%s7090 + $0x84] sm:$0xf]
        %v7125 = vld [vmem:[%s7090 + $0x88] sm:$0xf]
        %v7126 = vld [vmem:[%s7090 + $0x8c] sm:$0xf]
        %v7127 = vld [vmem:[%s7090 + $0x90] sm:$0xf]
        %v7128 = vld [vmem:[%s7090 + $0x94] sm:$0xf]
        %v7129 = vld [vmem:[%s7090 + $0x98] sm:$0xf]
        %v7130 = vld [vmem:[%s7090 + $0x9c] sm:$0xf]
        %v7131 = vld [vmem:[%s7090 + $0xa0] sm:$0xf]
        %v7132 = vld [vmem:[%s7090 + $0xa4] sm:$0xf]
        %v7133 = vld [vmem:[%s7090 + $0xa8] sm:$0xf]
        %v7134 = vld [vmem:[%s7090 + $0xac] sm:$0xf]
        %v7135 = vld [vmem:[%s7090 + $0xb0] sm:$0xf]
        %v7136 = vld [vmem:[%s7090 + $0xb4] sm:$0xf]
        %v7137 = vld [vmem:[%s7090 + $0xb8] sm:$0xf]
        %v7138 = vld [vmem:[%s7090 + $0xbc] sm:$0xf]
        %v7139 = vld [vmem:[%s7090 + $0xc0] sm:$0xf]
        %v7140 = vld [vmem:[%s7090 + $0xc4] sm:$0xf]
        %v7141 = vld [vmem:[%s7090 + $0xc8] sm:$0xf]
        %v7142 = vld [vmem:[%s7090 + $0xcc] sm:$0xf]
        %v7143 = vld [vmem:[%s7090 + $0xd0] sm:$0xf]
        %v7144 = vld [vmem:[%s7090 + $0xd4] sm:$0xf]
        %v7145 = vld [vmem:[%s7090 + $0xd8] sm:$0xf]
        %v7146 = vld [vmem:[%s7090 + $0xdc] sm:$0xf]
        %v7147 = vld [vmem:[%s7090 + $0xe0] sm:$0xf]
        %v7148 = vld [vmem:[%s7090 + $0xe4] sm:$0xf]
        %v7149 = vld [vmem:[%s7090 + $0xe8] sm:$0xf]
        %v7150 = vld [vmem:[%s7090 + $0xec] sm:$0xf]
        %v7151 = vld [vmem:[%s7090 + $0xf0] sm:$0xf]
        %v7152 = vld [vmem:[%s7090 + $0xf4] sm:$0xf]
        %v7153 = vld [vmem:[%s7090 + $0xf8] sm:$0xf]
        %v7154 = vld [vmem:[%s7090 + $0xfc] sm:$0xf]
        %v7155 = vld [vmem:[%s7090 + $0x100] sm:$0xf]
        %v7156 = vld [vmem:[%s7090 + $0x104] sm:$0xf]
        %v7157 = vld [vmem:[%s7090 + $0x108] sm:$0xf]
        %v7158 = vld [vmem:[%s7090 + $0x10c] sm:$0xf]
        %v7159 = vld [vmem:[%s7090 + $0x110] sm:$0xf]
        %v7160 = vld [vmem:[%s7090 + $0x114] sm:$0xf]
        %v7161 = vld [vmem:[%s7090 + $0x118] sm:$0xf]
        %v7162 = vld [vmem:[%s7090 + $0x11c] sm:$0xf]
        %v7163 = vld [vmem:[%s7090 + $0x120] sm:$0xf]
        %v7164 = vld [vmem:[%s7090 + $0x124] sm:$0xf]
        %v7165 = vld [vmem:[%s7090 + $0x128] sm:$0xf]
        %v7166 = vld [vmem:[%s7090 + $0x12c] sm:$0xf]
        %v7167 = vld [vmem:[%s7090 + $0x130] sm:$0xf]
        %v7168 = vld [vmem:[%s7090 + $0x134] sm:$0xf]
        %v7169 = vld [vmem:[%s7090 + $0x138] sm:$0xf]
        %v7170 = vld [vmem:[%s7090 + $0x13c] sm:$0xf]
        %v7171 = vld [vmem:[%s7090 + $0x140] sm:$0xf]
        %v7172 = vld [vmem:[%s7090 + $0x144] sm:$0xf]
        %v7173 = vld [vmem:[%s7090 + $0x148] sm:$0xf]
        %v7174 = vld [vmem:[%s7090 + $0x14c] sm:$0xf]
        %v7175 = vld [vmem:[%s7090 + $0x150] sm:$0xf]
        %v7176 = vld [vmem:[%s7090 + $0x154] sm:$0xf]
        %v7177 = vld [vmem:[%s7090 + $0x158] sm:$0xf]
        %v7178 = vld [vmem:[%s7090 + $0x15c] sm:$0xf]
        %v7179 = vld [vmem:[%s7090 + $0x160] sm:$0xf]
        %v7180 = vld [vmem:[%s7090 + $0x164] sm:$0xf]
        %v7181 = vld [vmem:[%s7090 + $0x168] sm:$0xf]
        %v7182 = vld [vmem:[%s7090 + $0x16c] sm:$0xf]
        %v7183 = vld [vmem:[%s7090 + $0x170] sm:$0xf]
        %v7184 = vld [vmem:[%s7090 + $0x174] sm:$0xf]
        %v7185 = vld [vmem:[%s7090 + $0x178] sm:$0xf]
        %v7186 = vld [vmem:[%s7090 + $0x17c] sm:$0xf]
        %v7187 = vld [vmem:[%s7090 + $0x180] sm:$0xf]
        %v7188 = vld [vmem:[%s7090 + $0x184] sm:$0xf]
        %v7189 = vld [vmem:[%s7090 + $0x188] sm:$0xf]
        %v7190 = vld [vmem:[%s7090 + $0x18c] sm:$0xf]
        %v7191 = vld [vmem:[%s7090 + $0x190] sm:$0xf]
        %v7192 = vld [vmem:[%s7090 + $0x194] sm:$0xf]
        %v7193 = vld [vmem:[%s7090 + $0x198] sm:$0xf]
        %v7194 = vld [vmem:[%s7090 + $0x19c] sm:$0xf]
        %v7195 = vld [vmem:[%s7090 + $0x1a0] sm:$0xf]
        %v7196 = vld [vmem:[%s7090 + $0x1a4] sm:$0xf]
        %v7197 = vld [vmem:[%s7090 + $0x1a8] sm:$0xf]
        %v7198 = vld [vmem:[%s7090 + $0x1ac] sm:$0xf]
        %v7199 = vld [vmem:[%s7090 + $0x1b0] sm:$0xf]
        %v7200 = vld [vmem:[%s7090 + $0x1b4] sm:$0xf]
        %v7201 = vld [vmem:[%s7090 + $0x1b8] sm:$0xf]
        %v7202 = vld [vmem:[%s7090 + $0x1bc] sm:$0xf]
        %v7203 = vld [vmem:[%s7090 + $0x1c0] sm:$0xf]
        %v7204 = vld [vmem:[%s7090 + $0x1c4] sm:$0xf]
        %v7205 = vld [vmem:[%s7090 + $0x1c8] sm:$0xf]
        %v7206 = vld [vmem:[%s7090 + $0x1cc] sm:$0xf]
        %v7207 = vld [vmem:[%s7090 + $0x1d0] sm:$0xf]
        %v7208 = vld [vmem:[%s7090 + $0x1d4] sm:$0xf]
        %v7209 = vld [vmem:[%s7090 + $0x1d8] sm:$0xf]
        %v7210 = vld [vmem:[%s7090 + $0x1dc] sm:$0xf]
        %v7211 = vld [vmem:[%s7090 + $0x1e0] sm:$0xf]
        %v7212 = vld [vmem:[%s7090 + $0x1e4] sm:$0xf]
        %v7213 = vld [vmem:[%s7090 + $0x1e8] sm:$0xf]
        %v7214 = vld [vmem:[%s7090 + $0x1ec] sm:$0xf]
        %v7215 = vld [vmem:[%s7090 + $0x1f0] sm:$0xf]
        %v7216 = vld [vmem:[%s7090 + $0x1f4] sm:$0xf]
        %v7217 = vld [vmem:[%s7090 + $0x1f8] sm:$0xf]
        %v7218 = vld [vmem:[%s7090 + $0x1fc] sm:$0xf]
        %v7219 = vld [vmem:[%s7090 + $0x200] sm:$0xf]
        %v7220 = vld [vmem:[%s7090 + $0x204] sm:$0xf]
        %v7221 = vld [vmem:[%s7090 + $0x208] sm:$0xf]
        %v7222 = vld [vmem:[%s7090 + $0x20c] sm:$0xf]
        %v7223 = vld [vmem:[%s7090 + $0x210] sm:$0xf]
        %v7224 = vld [vmem:[%s7090 + $0x214] sm:$0xf]
        %v7225 = vld [vmem:[%s7090 + $0x218] sm:$0xf]
        %v7226 = vld [vmem:[%s7090 + $0x21c] sm:$0xf]
        %v7227 = vld [vmem:[%s7090 + $0x220] sm:$0xf]
        %v7228 = vld [vmem:[%s7090 + $0x224] sm:$0xf]
        %v7229 = vld [vmem:[%s7090 + $0x228] sm:$0xf]
        %v7230 = vld [vmem:[%s7090 + $0x22c] sm:$0xf]
        %v7231 = vld [vmem:[%s7090 + $0x230] sm:$0xf]
        %v7232 = vld [vmem:[%s7090 + $0x234] sm:$0xf]
        %v7233 = vld [vmem:[%s7090 + $0x238] sm:$0xf]
        %v7234 = vld [vmem:[%s7090 + $0x23c] sm:$0xf]
        %v7235 = vld [vmem:[%s7090 + $0x240] sm:$0xf]
        %v7236 = vld [vmem:[%s7090 + $0x244] sm:$0xf]
        %v7237 = vld [vmem:[%s7090 + $0x248] sm:$0xf]
        %v7238 = vld [vmem:[%s7090 + $0x24c] sm:$0xf]
        %v7239 = vld [vmem:[%s7090 + $0x250] sm:$0xf]
        %v7240 = vld [vmem:[%s7090 + $0x254] sm:$0xf]
        %v7241 = vld [vmem:[%s7090 + $0x258] sm:$0xf]
        %v7242 = vld [vmem:[%s7090 + $0x25c] sm:$0xf]
        %v7243 = vld [vmem:[%s7090 + $0x260] sm:$0xf]
        %v7244 = vld [vmem:[%s7090 + $0x264] sm:$0xf]
        %v7245 = vld [vmem:[%s7090 + $0x268] sm:$0xf]
        %v7246 = vld [vmem:[%s7090 + $0x26c] sm:$0xf]
        %v7247 = vld [vmem:[%s7090 + $0x270] sm:$0xf]
        %v7248 = vld [vmem:[%s7090 + $0x274] sm:$0xf]
        %v7249 = vld [vmem:[%s7090 + $0x278] sm:$0xf]
        %v7250 = vld [vmem:[%s7090 + $0x27c] sm:$0xf]
        %v7251 = vld [vmem:[%s7090 + $0x280] sm:$0xf]
        %v7252 = vld [vmem:[%s7090 + $0x284] sm:$0xf]
        %v7253 = vld [vmem:[%s7090 + $0x288] sm:$0xf]
        %v7254 = vld [vmem:[%s7090 + $0x28c] sm:$0xf]
        %v7255 = vld [vmem:[%s7090 + $0x290] sm:$0xf]
        %v7256 = vld [vmem:[%s7090 + $0x294] sm:$0xf]
        %v7257 = vld [vmem:[%s7090 + $0x298] sm:$0xf]
        %v7258 = vld [vmem:[%s7090 + $0x29c] sm:$0xf]
        %v7259 = vld [vmem:[%s7090 + $0x2a0] sm:$0xf]
        %v7260 = vld [vmem:[%s7090 + $0x2a4] sm:$0xf]
        %v7261 = vld [vmem:[%s7090 + $0x2a8] sm:$0xf]
        %v7262 = vld [vmem:[%s7090 + $0x2ac] sm:$0xf]
        %v7263 = vld [vmem:[%s7090 + $0x2b0] sm:$0xf]
        %v7264 = vld [vmem:[%s7090 + $0x2b4] sm:$0xf]
        %v7265 = vld [vmem:[%s7090 + $0x2b8] sm:$0xf]
        %v7266 = vld [vmem:[%s7090 + $0x2bc] sm:$0xf]
        %v7267 = vld [vmem:[%s7090 + $0x2c0] sm:$0xf]
        %v7268 = vld [vmem:[%s7090 + $0x2c4] sm:$0xf]
        %v7269 = vld [vmem:[%s7090 + $0x2c8] sm:$0xf]
        %v7270 = vld [vmem:[%s7090 + $0x2cc] sm:$0xf]
        %v7271 = vld [vmem:[%s7090 + $0x2d0] sm:$0xf]
        %v7272 = vld [vmem:[%s7090 + $0x2d4] sm:$0xf]
        %v7273 = vld [vmem:[%s7090 + $0x2d8] sm:$0xf]
        %v7274 = vld [vmem:[%s7090 + $0x2dc] sm:$0xf]
        %v7275 = vld [vmem:[%s7090 + $0x2e0] sm:$0xf]
        %v7276 = vld [vmem:[%s7090 + $0x2e4] sm:$0xf]
        %v7277 = vld [vmem:[%s7090 + $0x2e8] sm:$0xf]
        %v7278 = vld [vmem:[%s7090 + $0x2ec] sm:$0xf]
        %v7279 = vld [vmem:[%s7090 + $0x2f0] sm:$0xf]
        %v7280 = vld [vmem:[%s7090 + $0x2f4] sm:$0xf]
        %v7281 = vld [vmem:[%s7090 + $0x2f8] sm:$0xf]
        %v7282 = vld [vmem:[%s7090 + $0x2fc] sm:$0xf]
        %v7283 = vld [vmem:[%s7090 + $0x300] sm:$0xf]
        %v7284 = vld [vmem:[%s7090 + $0x304] sm:$0xf]
        %v7285 = vld [vmem:[%s7090 + $0x308] sm:$0xf]
        %v7286 = vld [vmem:[%s7090 + $0x30c] sm:$0xf]
        %v7287 = vld [vmem:[%s7090 + $0x310] sm:$0xf]
        %v7288 = vld [vmem:[%s7090 + $0x314] sm:$0xf]
        %v7289 = vld [vmem:[%s7090 + $0x318] sm:$0xf]
        %v7290 = vld [vmem:[%s7090 + $0x31c] sm:$0xf]
        %v7291 = vld [vmem:[%s7090 + $0x320] sm:$0xf]
        %v7292 = vld [vmem:[%s7090 + $0x324] sm:$0xf]
        %v7293 = vld [vmem:[%s7090 + $0x328] sm:$0xf]
        %v7294 = vld [vmem:[%s7090 + $0x32c] sm:$0xf]
        %v7295 = vld [vmem:[%s7090 + $0x330] sm:$0xf]
        %v7296 = vld [vmem:[%s7090 + $0x334] sm:$0xf]
        %v7297 = vld [vmem:[%s7090 + $0x338] sm:$0xf]
        %v7298 = vld [vmem:[%s7090 + $0x33c] sm:$0xf]
        %v7299 = vld [vmem:[%s7090 + $0x340] sm:$0xf]
        %v7300 = vld [vmem:[%s7090 + $0x344] sm:$0xf]
        %v7301 = vld [vmem:[%s7090 + $0x348] sm:$0xf]
        %v7302 = vld [vmem:[%s7090 + $0x34c] sm:$0xf]
        %v7303 = vld [vmem:[%s7090 + $0x350] sm:$0xf]
        %v7304 = vld [vmem:[%s7090 + $0x354] sm:$0xf]
        %v7305 = vld [vmem:[%s7090 + $0x358] sm:$0xf]
        %v7306 = vld [vmem:[%s7090 + $0x35c] sm:$0xf]
        %v7307 = vld [vmem:[%s7090 + $0x360] sm:$0xf]
        %v7308 = vld [vmem:[%s7090 + $0x364] sm:$0xf]
        %v7309 = vld [vmem:[%s7090 + $0x368] sm:$0xf]
        %v7310 = vld [vmem:[%s7090 + $0x36c] sm:$0xf]
        %v7311 = vld [vmem:[%s7090 + $0x370] sm:$0xf]
        %v7312 = vld [vmem:[%s7090 + $0x374] sm:$0xf]
        %v7313 = vld [vmem:[%s7090 + $0x378] sm:$0xf]
        %v7314 = vld [vmem:[%s7090 + $0x37c] sm:$0xf]
        %v7315 = vld [vmem:[%s7090 + $0x380] sm:$0xf]
        %v7316 = vld [vmem:[%s7090 + $0x384] sm:$0xf]
        %v7317 = vld [vmem:[%s7090 + $0x388] sm:$0xf]
        %v7318 = vld [vmem:[%s7090 + $0x38c] sm:$0xf]
        %v7319 = vld [vmem:[%s7090 + $0x390] sm:$0xf]
        %v7320 = vld [vmem:[%s7090 + $0x394] sm:$0xf]
        %v7321 = vld [vmem:[%s7090 + $0x398] sm:$0xf]
        %v7322 = vld [vmem:[%s7090 + $0x39c] sm:$0xf]
        %v7323 = vld [vmem:[%s7090 + $0x3a0] sm:$0xf]
        %v7324 = vld [vmem:[%s7090 + $0x3a4] sm:$0xf]
        %v7325 = vld [vmem:[%s7090 + $0x3a8] sm:$0xf]
        %v7326 = vld [vmem:[%s7090 + $0x3ac] sm:$0xf]
        %v7327 = vld [vmem:[%s7090 + $0x3b0] sm:$0xf]
        %v7328 = vld [vmem:[%s7090 + $0x3b4] sm:$0xf]
        %v7329 = vld [vmem:[%s7090 + $0x3b8] sm:$0xf]
        %v7330 = vld [vmem:[%s7090 + $0x3bc] sm:$0xf]
        %v7331 = vld [vmem:[%s7090 + $0x3c0] sm:$0xf]
        %v7332 = vld [vmem:[%s7090 + $0x3c4] sm:$0xf]
        %v7333 = vld [vmem:[%s7090 + $0x3c8] sm:$0xf]
        %v7334 = vld [vmem:[%s7090 + $0x3cc] sm:$0xf]
        %v7335 = vld [vmem:[%s7090 + $0x3d0] sm:$0xf]
        %v7336 = vld [vmem:[%s7090 + $0x3d4] sm:$0xf]
        %v7337 = vld [vmem:[%s7090 + $0x3d8] sm:$0xf]
        %v7338 = vld [vmem:[%s7090 + $0x3dc] sm:$0xf]
        %v7339 = vld [vmem:[%s7090 + $0x3e0] sm:$0xf]
        %v7340 = vld [vmem:[%s7090 + $0x3e4] sm:$0xf]
        %v7341 = vld [vmem:[%s7090 + $0x3e8] sm:$0xf]
        %v7342 = vld [vmem:[%s7090 + $0x3ec] sm:$0xf]
        %v7343 = vld [vmem:[%s7090 + $0x3f0] sm:$0xf]
        %v7344 = vld [vmem:[%s7090 + $0x3f4] sm:$0xf]
        %v7345 = vld [vmem:[%s7090 + $0x3f8] sm:$0xf]
        %v7346 = vld [vmem:[%s7090 + $0x3fc] sm:$0xf]
        %s7347 = scalar_lea.vmem [#allocation9], 1
        %v7348 = vld [vmem:[%s7347] sm:$0x1]
        %v7350 = vlaneseq
        %v7351 = vshrl.u32 %v7350, 7
        %v7352 = vsub.s32 0, %v7351
        %v7353 = vrot.slane %v7348, %v7352
        %v7611 = vunpack.c.l.b16 %v7091
        %v7612 = vunpack.c.l.b16 %v7092
        %v7613 = vunpack.c.l.b16 %v7093
        %v7614 = vunpack.c.l.b16 %v7094
        %v7615 = vunpack.c.l.b16 %v7095
        %v7616 = vunpack.c.l.b16 %v7096
        %v7617 = vunpack.c.l.b16 %v7097
        %v7618 = vunpack.c.l.b16 %v7098
        %v7619 = vunpack.c.l.b16 %v7099
        %v7620 = vunpack.c.l.b16 %v7100
        %v7621 = vunpack.c.l.b16 %v7101
        %v7622 = vunpack.c.l.b16 %v7102
        %v7623 = vunpack.c.l.b16 %v7103
        %v7624 = vunpack.c.l.b16 %v7104
        %v7625 = vunpack.c.l.b16 %v7105
        %v7626 = vunpack.c.l.b16 %v7106
        %v7627 = vunpack.c.l.b16 %v7107
        %v7628 = vunpack.c.l.b16 %v7108
        %v7629 = vunpack.c.l.b16 %v7109
        %v7630 = vunpack.c.l.b16 %v7110
        %v7631 = vunpack.c.l.b16 %v7111
        %v7632 = vunpack.c.l.b16 %v7112
        %v7633 = vunpack.c.l.b16 %v7113
        %v7634 = vunpack.c.l.b16 %v7114
        %v7635 = vunpack.c.l.b16 %v7115
        %v7636 = vunpack.c.l.b16 %v7116
        %v7637 = vunpack.c.l.b16 %v7117
        %v7638 = vunpack.c.l.b16 %v7118
        %v7639 = vunpack.c.l.b16 %v7119
        %v7640 = vunpack.c.l.b16 %v7120
        %v7641 = vunpack.c.l.b16 %v7121
        %v7642 = vunpack.c.l.b16 %v7122
        %v7643 = vunpack.c.l.b16 %v7123
        %v7644 = vunpack.c.l.b16 %v7124
        %v7645 = vunpack.c.l.b16 %v7125
        %v7646 = vunpack.c.l.b16 %v7126
        %v7647 = vunpack.c.l.b16 %v7127
        %v7648 = vunpack.c.l.b16 %v7128
        %v7649 = vunpack.c.l.b16 %v7129
        %v7650 = vunpack.c.l.b16 %v7130
        %v7651 = vunpack.c.l.b16 %v7131
        %v7652 = vunpack.c.l.b16 %v7132
        %v7653 = vunpack.c.l.b16 %v7133
        %v7654 = vunpack.c.l.b16 %v7134
        %v7655 = vunpack.c.l.b16 %v7135
        %v7656 = vunpack.c.l.b16 %v7136
        %v7657 = vunpack.c.l.b16 %v7137
        %v7658 = vunpack.c.l.b16 %v7138
        %v7659 = vunpack.c.l.b16 %v7139
        %v7660 = vunpack.c.l.b16 %v7140
        %v7661 = vunpack.c.l.b16 %v7141
        %v7662 = vunpack.c.l.b16 %v7142
        %v7663 = vunpack.c.l.b16 %v7143
        %v7664 = vunpack.c.l.b16 %v7144
        %v7665 = vunpack.c.l.b16 %v7145
        %v7666 = vunpack.c.l.b16 %v7146
        %v7667 = vunpack.c.l.b16 %v7147
        %v7668 = vunpack.c.l.b16 %v7148
        %v7669 = vunpack.c.l.b16 %v7149
        %v7670 = vunpack.c.l.b16 %v7150
        %v7671 = vunpack.c.l.b16 %v7151
        %v7672 = vunpack.c.l.b16 %v7152
        %v7673 = vunpack.c.l.b16 %v7153
        %v7674 = vunpack.c.l.b16 %v7154
        %v7675 = vunpack.c.l.b16 %v7155
        %v7676 = vunpack.c.l.b16 %v7156
        %v7677 = vunpack.c.l.b16 %v7157
        %v7678 = vunpack.c.l.b16 %v7158
        %v7679 = vunpack.c.l.b16 %v7159
        %v7680 = vunpack.c.l.b16 %v7160
        %v7681 = vunpack.c.l.b16 %v7161
        %v7682 = vunpack.c.l.b16 %v7162
        %v7683 = vunpack.c.l.b16 %v7163
        %v7684 = vunpack.c.l.b16 %v7164
        %v7685 = vunpack.c.l.b16 %v7165
        %v7686 = vunpack.c.l.b16 %v7166
        %v7687 = vunpack.c.l.b16 %v7167
        %v7688 = vunpack.c.l.b16 %v7168
        %v7689 = vunpack.c.l.b16 %v7169
        %v7690 = vunpack.c.l.b16 %v7170
        %v7691 = vunpack.c.l.b16 %v7171
        %v7692 = vunpack.c.l.b16 %v7172
        %v7693 = vunpack.c.l.b16 %v7173
        %v7694 = vunpack.c.l.b16 %v7174
        %v7695 = vunpack.c.l.b16 %v7175
        %v7696 = vunpack.c.l.b16 %v7176
        %v7697 = vunpack.c.l.b16 %v7177
        %v7698 = vunpack.c.l.b16 %v7178
        %v7699 = vunpack.c.l.b16 %v7179
        %v7700 = vunpack.c.l.b16 %v7180
        %v7701 = vunpack.c.l.b16 %v7181
        %v7702 = vunpack.c.l.b16 %v7182
        %v7703 = vunpack.c.l.b16 %v7183
        %v7704 = vunpack.c.l.b16 %v7184
        %v7705 = vunpack.c.l.b16 %v7185
        %v7706 = vunpack.c.l.b16 %v7186
        %v7707 = vunpack.c.l.b16 %v7187
        %v7708 = vunpack.c.l.b16 %v7188
        %v7709 = vunpack.c.l.b16 %v7189
        %v7710 = vunpack.c.l.b16 %v7190
        %v7711 = vunpack.c.l.b16 %v7191
        %v7712 = vunpack.c.l.b16 %v7192
        %v7713 = vunpack.c.l.b16 %v7193
        %v7714 = vunpack.c.l.b16 %v7194
        %v7715 = vunpack.c.l.b16 %v7195
        %v7716 = vunpack.c.l.b16 %v7196
        %v7717 = vunpack.c.l.b16 %v7197
        %v7718 = vunpack.c.l.b16 %v7198
        %v7719 = vunpack.c.l.b16 %v7199
        %v7720 = vunpack.c.l.b16 %v7200
        %v7721 = vunpack.c.l.b16 %v7201
        %v7722 = vunpack.c.l.b16 %v7202
        %v7723 = vunpack.c.l.b16 %v7203
        %v7724 = vunpack.c.l.b16 %v7204
        %v7725 = vunpack.c.l.b16 %v7205
        %v7726 = vunpack.c.l.b16 %v7206
        %v7727 = vunpack.c.l.b16 %v7207
        %v7728 = vunpack.c.l.b16 %v7208
        %v7729 = vunpack.c.l.b16 %v7209
        %v7730 = vunpack.c.l.b16 %v7210
        %v7731 = vunpack.c.l.b16 %v7211
        %v7732 = vunpack.c.l.b16 %v7212
        %v7733 = vunpack.c.l.b16 %v7213
        %v7734 = vunpack.c.l.b16 %v7214
        %v7735 = vunpack.c.l.b16 %v7215
        %v7736 = vunpack.c.l.b16 %v7216
        %v7737 = vunpack.c.l.b16 %v7217
        %v7738 = vunpack.c.l.b16 %v7218
        %v7739 = vunpack.c.l.b16 %v7219
        %v7740 = vunpack.c.l.b16 %v7220
        %v7741 = vunpack.c.l.b16 %v7221
        %v7742 = vunpack.c.l.b16 %v7222
        %v7743 = vunpack.c.l.b16 %v7223
        %v7744 = vunpack.c.l.b16 %v7224
        %v7745 = vunpack.c.l.b16 %v7225
        %v7746 = vunpack.c.l.b16 %v7226
        %v7747 = vunpack.c.l.b16 %v7227
        %v7748 = vunpack.c.l.b16 %v7228
        %v7749 = vunpack.c.l.b16 %v7229
        %v7750 = vunpack.c.l.b16 %v7230
        %v7751 = vunpack.c.l.b16 %v7231
        %v7752 = vunpack.c.l.b16 %v7232
        %v7753 = vunpack.c.l.b16 %v7233
        %v7754 = vunpack.c.l.b16 %v7234
        %v7755 = vunpack.c.l.b16 %v7235
        %v7756 = vunpack.c.l.b16 %v7236
        %v7757 = vunpack.c.l.b16 %v7237
        %v7758 = vunpack.c.l.b16 %v7238
        %v7759 = vunpack.c.l.b16 %v7239
        %v7760 = vunpack.c.l.b16 %v7240
        %v7761 = vunpack.c.l.b16 %v7241
        %v7762 = vunpack.c.l.b16 %v7242
        %v7763 = vunpack.c.l.b16 %v7243
        %v7764 = vunpack.c.l.b16 %v7244
        %v7765 = vunpack.c.l.b16 %v7245
        %v7766 = vunpack.c.l.b16 %v7246
        %v7767 = vunpack.c.l.b16 %v7247
        %v7768 = vunpack.c.l.b16 %v7248
        %v7769 = vunpack.c.l.b16 %v7249
        %v7770 = vunpack.c.l.b16 %v7250
        %v7771 = vunpack.c.l.b16 %v7251
        %v7772 = vunpack.c.l.b16 %v7252
        %v7773 = vunpack.c.l.b16 %v7253
        %v7774 = vunpack.c.l.b16 %v7254
        %v7775 = vunpack.c.l.b16 %v7255
        %v7776 = vunpack.c.l.b16 %v7256
        %v7777 = vunpack.c.l.b16 %v7257
        %v7778 = vunpack.c.l.b16 %v7258
        %v7779 = vunpack.c.l.b16 %v7259
        %v7780 = vunpack.c.l.b16 %v7260
        %v7781 = vunpack.c.l.b16 %v7261
        %v7782 = vunpack.c.l.b16 %v7262
        %v7783 = vunpack.c.l.b16 %v7263
        %v7784 = vunpack.c.l.b16 %v7264
        %v7785 = vunpack.c.l.b16 %v7265
        %v7786 = vunpack.c.l.b16 %v7266
        %v7787 = vunpack.c.l.b16 %v7267
        %v7788 = vunpack.c.l.b16 %v7268
        %v7789 = vunpack.c.l.b16 %v7269
        %v7790 = vunpack.c.l.b16 %v7270
        %v7791 = vunpack.c.l.b16 %v7271
        %v7792 = vunpack.c.l.b16 %v7272
        %v7793 = vunpack.c.l.b16 %v7273
        %v7794 = vunpack.c.l.b16 %v7274
        %v7795 = vunpack.c.l.b16 %v7275
        %v7796 = vunpack.c.l.b16 %v7276
        %v7797 = vunpack.c.l.b16 %v7277
        %v7798 = vunpack.c.l.b16 %v7278
        %v7799 = vunpack.c.l.b16 %v7279
        %v7800 = vunpack.c.l.b16 %v7280
        %v7801 = vunpack.c.l.b16 %v7281
        %v7802 = vunpack.c.l.b16 %v7282
        %v7803 = vunpack.c.l.b16 %v7283
        %v7804 = vunpack.c.l.b16 %v7284
        %v7805 = vunpack.c.l.b16 %v7285
        %v7806 = vunpack.c.l.b16 %v7286
        %v7807 = vunpack.c.l.b16 %v7287
        %v7808 = vunpack.c.l.b16 %v7288
        %v7809 = vunpack.c.l.b16 %v7289
        %v7810 = vunpack.c.l.b16 %v7290
        %v7811 = vunpack.c.l.b16 %v7291
        %v7812 = vunpack.c.l.b16 %v7292
        %v7813 = vunpack.c.l.b16 %v7293
        %v7814 = vunpack.c.l.b16 %v7294
        %v7815 = vunpack.c.l.b16 %v7295
        %v7816 = vunpack.c.l.b16 %v7296
        %v7817 = vunpack.c.l.b16 %v7297
        %v7818 = vunpack.c.l.b16 %v7298
        %v7819 = vunpack.c.l.b16 %v7299
        %v7820 = vunpack.c.l.b16 %v7300
        %v7821 = vunpack.c.l.b16 %v7301
        %v7822 = vunpack.c.l.b16 %v7302
        %v7823 = vunpack.c.l.b16 %v7303
        %v7824 = vunpack.c.l.b16 %v7304
        %v7825 = vunpack.c.l.b16 %v7305
        %v7826 = vunpack.c.l.b16 %v7306
        %v7827 = vunpack.c.l.b16 %v7307
        %v7828 = vunpack.c.l.b16 %v7308
        %v7829 = vunpack.c.l.b16 %v7309
        %v7830 = vunpack.c.l.b16 %v7310
        %v7831 = vunpack.c.l.b16 %v7311
        %v7832 = vunpack.c.l.b16 %v7312
        %v7833 = vunpack.c.l.b16 %v7313
        %v7834 = vunpack.c.l.b16 %v7314
        %v7835 = vunpack.c.l.b16 %v7315
        %v7836 = vunpack.c.l.b16 %v7316
        %v7837 = vunpack.c.l.b16 %v7317
        %v7838 = vunpack.c.l.b16 %v7318
        %v7839 = vunpack.c.l.b16 %v7319
        %v7840 = vunpack.c.l.b16 %v7320
        %v7841 = vunpack.c.l.b16 %v7321
        %v7842 = vunpack.c.l.b16 %v7322
        %v7843 = vunpack.c.l.b16 %v7323
        %v7844 = vunpack.c.l.b16 %v7324
        %v7845 = vunpack.c.l.b16 %v7325
        %v7846 = vunpack.c.l.b16 %v7326
        %v7847 = vunpack.c.l.b16 %v7327
        %v7848 = vunpack.c.l.b16 %v7328
        %v7849 = vunpack.c.l.b16 %v7329
        %v7850 = vunpack.c.l.b16 %v7330
        %v7851 = vunpack.c.l.b16 %v7331
        %v7852 = vunpack.c.l.b16 %v7332
        %v7853 = vunpack.c.l.b16 %v7333
        %v7854 = vunpack.c.l.b16 %v7334
        %v7855 = vunpack.c.l.b16 %v7335
        %v7856 = vunpack.c.l.b16 %v7336
        %v7857 = vunpack.c.l.b16 %v7337
        %v7858 = vunpack.c.l.b16 %v7338
        %v7859 = vunpack.c.l.b16 %v7339
        %v7860 = vunpack.c.l.b16 %v7340
        %v7861 = vunpack.c.l.b16 %v7341
        %v7862 = vunpack.c.l.b16 %v7342
        %v7863 = vunpack.c.l.b16 %v7343
        %v7864 = vunpack.c.l.b16 %v7344
        %v7865 = vunpack.c.l.b16 %v7345
        %v7866 = vunpack.c.l.b16 %v7346
        %v7867 = vpack.c.b16 %v7612, %v7611
        %v7868 = vpack.c.b16 %v7614, %v7613
        %v7869 = vpack.c.b16 %v7616, %v7615
        %v7870 = vpack.c.b16 %v7618, %v7617
        %v7871 = vpack.c.b16 %v7620, %v7619
        %v7872 = vpack.c.b16 %v7622, %v7621
        %v7873 = vpack.c.b16 %v7624, %v7623
        %v7874 = vpack.c.b16 %v7626, %v7625
        %v7875 = vpack.c.b16 %v7628, %v7627
        %v7876 = vpack.c.b16 %v7630, %v7629
        %v7877 = vpack.c.b16 %v7632, %v7631
        %v7878 = vpack.c.b16 %v7634, %v7633
        %v7879 = vpack.c.b16 %v7636, %v7635
        %v7880 = vpack.c.b16 %v7638, %v7637
        %v7881 = vpack.c.b16 %v7640, %v7639
        %v7882 = vpack.c.b16 %v7642, %v7641
        %v7883 = vpack.c.b16 %v7644, %v7643
        %v7884 = vpack.c.b16 %v7646, %v7645
        %v7885 = vpack.c.b16 %v7648, %v7647
        %v7886 = vpack.c.b16 %v7650, %v7649
        %v7887 = vpack.c.b16 %v7652, %v7651
        %v7888 = vpack.c.b16 %v7654, %v7653
        %v7889 = vpack.c.b16 %v7656, %v7655
        %v7890 = vpack.c.b16 %v7658, %v7657
        %v7891 = vpack.c.b16 %v7660, %v7659
        %v7892 = vpack.c.b16 %v7662, %v7661
        %v7893 = vpack.c.b16 %v7664, %v7663
        %v7894 = vpack.c.b16 %v7666, %v7665
        %v7895 = vpack.c.b16 %v7668, %v7667
        %v7896 = vpack.c.b16 %v7670, %v7669
        %v7897 = vpack.c.b16 %v7672, %v7671
        %v7898 = vpack.c.b16 %v7674, %v7673
        %v7899 = vpack.c.b16 %v7676, %v7675
        %v7900 = vpack.c.b16 %v7678, %v7677
        %v7901 = vpack.c.b16 %v7680, %v7679
        %v7902 = vpack.c.b16 %v7682, %v7681
        %v7903 = vpack.c.b16 %v7684, %v7683
        %v7904 = vpack.c.b16 %v7686, %v7685
        %v7905 = vpack.c.b16 %v7688, %v7687
        %v7906 = vpack.c.b16 %v7690, %v7689
        %v7907 = vpack.c.b16 %v7692, %v7691
        %v7908 = vpack.c.b16 %v7694, %v7693
        %v7909 = vpack.c.b16 %v7696, %v7695
        %v7910 = vpack.c.b16 %v7698, %v7697
        %v7911 = vpack.c.b16 %v7700, %v7699
        %v7912 = vpack.c.b16 %v7702, %v7701
        %v7913 = vpack.c.b16 %v7704, %v7703
        %v7914 = vpack.c.b16 %v7706, %v7705
        %v7915 = vpack.c.b16 %v7708, %v7707
        %v7916 = vpack.c.b16 %v7710, %v7709
        %v7917 = vpack.c.b16 %v7712, %v7711
        %v7918 = vpack.c.b16 %v7714, %v7713
        %v7919 = vpack.c.b16 %v7716, %v7715
        %v7920 = vpack.c.b16 %v7718, %v7717
        %v7921 = vpack.c.b16 %v7720, %v7719
        %v7922 = vpack.c.b16 %v7722, %v7721
        %v7923 = vpack.c.b16 %v7724, %v7723
        %v7924 = vpack.c.b16 %v7726, %v7725
        %v7925 = vpack.c.b16 %v7728, %v7727
        %v7926 = vpack.c.b16 %v7730, %v7729
        %v7927 = vpack.c.b16 %v7732, %v7731
        %v7928 = vpack.c.b16 %v7734, %v7733
        %v7929 = vpack.c.b16 %v7736, %v7735
        %v7930 = vpack.c.b16 %v7738, %v7737
        %v7931 = vpack.c.b16 %v7740, %v7739
        %v7932 = vpack.c.b16 %v7742, %v7741
        %v7933 = vpack.c.b16 %v7744, %v7743
        %v7934 = vpack.c.b16 %v7746, %v7745
        %v7935 = vpack.c.b16 %v7748, %v7747
        %v7936 = vpack.c.b16 %v7750, %v7749
        %v7937 = vpack.c.b16 %v7752, %v7751
        %v7938 = vpack.c.b16 %v7754, %v7753
        %v7939 = vpack.c.b16 %v7756, %v7755
        %v7940 = vpack.c.b16 %v7758, %v7757
        %v7941 = vpack.c.b16 %v7760, %v7759
        %v7942 = vpack.c.b16 %v7762, %v7761
        %v7943 = vpack.c.b16 %v7764, %v7763
        %v7944 = vpack.c.b16 %v7766, %v7765
        %v7945 = vpack.c.b16 %v7768, %v7767
        %v7946 = vpack.c.b16 %v7770, %v7769
        %v7947 = vpack.c.b16 %v7772, %v7771
        %v7948 = vpack.c.b16 %v7774, %v7773
        %v7949 = vpack.c.b16 %v7776, %v7775
        %v7950 = vpack.c.b16 %v7778, %v7777
        %v7951 = vpack.c.b16 %v7780, %v7779
        %v7952 = vpack.c.b16 %v7782, %v7781
        %v7953 = vpack.c.b16 %v7784, %v7783
        %v7954 = vpack.c.b16 %v7786, %v7785
        %v7955 = vpack.c.b16 %v7788, %v7787
        %v7956 = vpack.c.b16 %v7790, %v7789
        %v7957 = vpack.c.b16 %v7792, %v7791
        %v7958 = vpack.c.b16 %v7794, %v7793
        %v7959 = vpack.c.b16 %v7796, %v7795
        %v7960 = vpack.c.b16 %v7798, %v7797
        %v7961 = vpack.c.b16 %v7800, %v7799
        %v7962 = vpack.c.b16 %v7802, %v7801
        %v7963 = vpack.c.b16 %v7804, %v7803
        %v7964 = vpack.c.b16 %v7806, %v7805
        %v7965 = vpack.c.b16 %v7808, %v7807
        %v7966 = vpack.c.b16 %v7810, %v7809
        %v7967 = vpack.c.b16 %v7812, %v7811
        %v7968 = vpack.c.b16 %v7814, %v7813
        %v7969 = vpack.c.b16 %v7816, %v7815
        %v7970 = vpack.c.b16 %v7818, %v7817
        %v7971 = vpack.c.b16 %v7820, %v7819
        %v7972 = vpack.c.b16 %v7822, %v7821
        %v7973 = vpack.c.b16 %v7824, %v7823
        %v7974 = vpack.c.b16 %v7826, %v7825
        %v7975 = vpack.c.b16 %v7828, %v7827
        %v7976 = vpack.c.b16 %v7830, %v7829
        %v7977 = vpack.c.b16 %v7832, %v7831
        %v7978 = vpack.c.b16 %v7834, %v7833
        %v7979 = vpack.c.b16 %v7836, %v7835
        %v7980 = vpack.c.b16 %v7838, %v7837
        %v7981 = vpack.c.b16 %v7840, %v7839
        %v7982 = vpack.c.b16 %v7842, %v7841
        %v7983 = vpack.c.b16 %v7844, %v7843
        %v7984 = vpack.c.b16 %v7846, %v7845
        %v7985 = vpack.c.b16 %v7848, %v7847
        %v7986 = vpack.c.b16 %v7850, %v7849
        %v7987 = vpack.c.b16 %v7852, %v7851
        %v7988 = vpack.c.b16 %v7854, %v7853
        %v7989 = vpack.c.b16 %v7856, %v7855
        %v7990 = vpack.c.b16 %v7858, %v7857
        %v7991 = vpack.c.b16 %v7860, %v7859
        %v7992 = vpack.c.b16 %v7862, %v7861
        %v7993 = vpack.c.b16 %v7864, %v7863
        %v7994 = vpack.c.b16 %v7866, %v7865
        %8123 = vmatprep.subr.bf16.mxu0 0
        %8124 = vmatpush1.bf16.msra.mxu0 %v7867
        %8125 = vmatprep.subr.bf16.mxu0 0
        %8126 = vmatpush1.bf16.msra.mxu0 %v7868
        %8127 = vmatprep.subr.bf16.mxu0 0
        %8128 = vmatpush1.bf16.msra.mxu0 %v7869
        %8129 = vmatprep.subr.bf16.mxu0 0
        %8130 = vmatpush1.bf16.msra.mxu0 %v7870
        %8131 = vmatprep.subr.bf16.mxu0 0
        %8132 = vmatpush1.bf16.msra.mxu0 %v7871
        %8133 = vmatprep.subr.bf16.mxu0 0
        %8134 = vmatpush1.bf16.msra.mxu0 %v7872
        %8135 = vmatprep.subr.bf16.mxu0 0
        %8136 = vmatpush1.bf16.msra.mxu0 %v7873
        %8137 = vmatprep.subr.bf16.mxu0 0
        %8138 = vmatpush1.bf16.msra.mxu0 %v7874
        %8139 = vmatprep.subr.bf16.mxu0 0
        %8140 = vmatpush1.bf16.msra.mxu0 %v7875
        %8141 = vmatprep.subr.bf16.mxu0 0
        %8142 = vmatpush1.bf16.msra.mxu0 %v7876
        %8143 = vmatprep.subr.bf16.mxu0 0
        %8144 = vmatpush1.bf16.msra.mxu0 %v7877
        %8145 = vmatprep.subr.bf16.mxu0 0
        %8146 = vmatpush1.bf16.msra.mxu0 %v7878
        %8147 = vmatprep.subr.bf16.mxu0 0
        %8148 = vmatpush1.bf16.msra.mxu0 %v7879
        %8149 = vmatprep.subr.bf16.mxu0 0
        %8150 = vmatpush1.bf16.msra.mxu0 %v7880
        %8151 = vmatprep.subr.bf16.mxu0 0
        %8152 = vmatpush1.bf16.msra.mxu0 %v7881
        %8153 = vmatprep.subr.bf16.mxu0 0
        %8154 = vmatpush1.bf16.msra.mxu0 %v7882
        %8155 = vmatprep.mubr.bf16.mxu0 %v7075
        %8156 = vmatmul.mubr.bf16.gmra.mrb[0].mxu0 %v7074
        %v8157 = vpop.f32.mrb[0].mxu0
        %v8158 = vadd.f32 %v7353, %v8157
        %v8159 = vpop.f32.mrb[0].mxu0
        %v8160 = vpop.f32.mrb[0].mxu0
        %v8161 = vpop.f32.mrb[0].mxu0
        %8162 = vdwg.mxu0
        %8163 = vmatprep.subr.bf16.mxu0 0
        %8164 = vmatpush1.bf16.msra.mxu0 %v7883
        %8165 = vmatprep.subr.bf16.mxu0 0
        %8166 = vmatpush1.bf16.msra.mxu0 %v7884
        %8167 = vmatprep.subr.bf16.mxu0 0
        %8168 = vmatpush1.bf16.msra.mxu0 %v7885
        %8169 = vmatprep.subr.bf16.mxu0 0
        %8170 = vmatpush1.bf16.msra.mxu0 %v7886
        %8171 = vmatprep.subr.bf16.mxu0 0
        %8172 = vmatpush1.bf16.msra.mxu0 %v7887
        %8173 = vmatprep.subr.bf16.mxu0 0
        %8174 = vmatpush1.bf16.msra.mxu0 %v7888
        %8175 = vmatprep.subr.bf16.mxu0 0
        %8176 = vmatpush1.bf16.msra.mxu0 %v7889
        %8177 = vmatprep.subr.bf16.mxu0 0
        %8178 = vmatpush1.bf16.msra.mxu0 %v7890
        %8179 = vmatprep.subr.bf16.mxu0 0
        %8180 = vmatpush1.bf16.msra.mxu0 %v7891
        %8181 = vmatprep.subr.bf16.mxu0 0
        %8182 = vmatpush1.bf16.msra.mxu0 %v7892
        %8183 = vmatprep.subr.bf16.mxu0 0
        %8184 = vmatpush1.bf16.msra.mxu0 %v7893
        %8185 = vmatprep.subr.bf16.mxu0 0
        %8186 = vmatpush1.bf16.msra.mxu0 %v7894
        %8187 = vmatprep.subr.bf16.mxu0 0
        %8188 = vmatpush1.bf16.msra.mxu0 %v7895
        %8189 = vmatprep.subr.bf16.mxu0 0
        %8190 = vmatpush1.bf16.msra.mxu0 %v7896
        %8191 = vmatprep.subr.bf16.mxu0 0
        %8192 = vmatpush1.bf16.msra.mxu0 %v7897
        %8193 = vmatprep.subr.bf16.mxu0 0
        %8194 = vmatpush1.bf16.msra.mxu0 %v7898
        %8195 = vmatprep.mubr.bf16.mxu0 %v7077
        %8196 = vmatmul.mubr.bf16.gmra.mrb[0].mxu0 %v7076
        %v8197 = vpop.f32.mrb[0].mxu0
        %v8198 = vadd.f32 %v8158, %v8197
        %v8199 = vpop.f32.mrb[0].mxu0
        %v8200 = vpop.f32.mrb[0].mxu0
        %v8201 = vpop.f32.mrb[0].mxu0
        %8202 = vdwg.mxu0
        %8203 = vmatprep.subr.bf16.mxu0 0
        %8204 = vmatpush1.bf16.msra.mxu0 %v7899
        %8205 = vmatprep.subr.bf16.mxu0 0
        %8206 = vmatpush1.bf16.msra.mxu0 %v7900
        %8207 = vmatprep.subr.bf16.mxu0 0
        %8208 = vmatpush1.bf16.msra.mxu0 %v7901
        %8209 = vmatprep.subr.bf16.mxu0 0
        %8210 = vmatpush1.bf16.msra.mxu0 %v7902
        %8211 = vmatprep.subr.bf16.mxu0 0
        %8212 = vmatpush1.bf16.msra.mxu0 %v7903
        %8213 = vmatprep.subr.bf16.mxu0 0
        %8214 = vmatpush1.bf16.msra.mxu0 %v7904
        %8215 = vmatprep.subr.bf16.mxu0 0
        %8216 = vmatpush1.bf16.msra.mxu0 %v7905
        %8217 = vmatprep.subr.bf16.mxu0 0
        %8218 = vmatpush1.bf16.msra.mxu0 %v7906
        %8219 = vmatprep.subr.bf16.mxu0 0
        %8220 = vmatpush1.bf16.msra.mxu0 %v7907
        %8221 = vmatprep.subr.bf16.mxu0 0
        %8222 = vmatpush1.bf16.msra.mxu0 %v7908
        %8223 = vmatprep.subr.bf16.mxu0 0
        %8224 = vmatpush1.bf16.msra.mxu0 %v7909
        %8225 = vmatprep.subr.bf16.mxu0 0
        %8226 = vmatpush1.bf16.msra.mxu0 %v7910
        %8227 = vmatprep.subr.bf16.mxu0 0
        %8228 = vmatpush1.bf16.msra.mxu0 %v7911
        %8229 = vmatprep.subr.bf16.mxu0 0
        %8230 = vmatpush1.bf16.msra.mxu0 %v7912
        %8231 = vmatprep.subr.bf16.mxu0 0
        %8232 = vmatpush1.bf16.msra.mxu0 %v7913
        %8233 = vmatprep.subr.bf16.mxu0 0
        %8234 = vmatpush1.bf16.msra.mxu0 %v7914
        %8235 = vmatprep.mubr.bf16.mxu0 %v7079
        %8236 = vmatmul.mubr.bf16.gmra.mrb[0].mxu0 %v7078
        %v8237 = vpop.f32.mrb[0].mxu0
        %v8238 = vadd.f32 %v8198, %v8237
        %v8239 = vpop.f32.mrb[0].mxu0
        %v8240 = vpop.f32.mrb[0].mxu0
        %v8241 = vpop.f32.mrb[0].mxu0
        %8242 = vdwg.mxu0
        %8243 = vmatprep.subr.bf16.mxu0 0
        %8244 = vmatpush1.bf16.msra.mxu0 %v7915
        %8245 = vmatprep.subr.bf16.mxu0 0
        %8246 = vmatpush1.bf16.msra.mxu0 %v7916
        %8247 = vmatprep.subr.bf16.mxu0 0
        %8248 = vmatpush1.bf16.msra.mxu0 %v7917
        %8249 = vmatprep.subr.bf16.mxu0 0
        %8250 = vmatpush1.bf16.msra.mxu0 %v7918
        %8251 = vmatprep.subr.bf16.mxu0 0
        %8252 = vmatpush1.bf16.msra.mxu0 %v7919
        %8253 = vmatprep.subr.bf16.mxu0 0
        %8254 = vmatpush1.bf16.msra.mxu0 %v7920
        %8255 = vmatprep.subr.bf16.mxu0 0
        %8256 = vmatpush1.bf16.msra.mxu0 %v7921
        %8257 = vmatprep.subr.bf16.mxu0 0
        %8258 = vmatpush1.bf16.msra.mxu0 %v7922
        %8259 = vmatprep.subr.bf16.mxu0 0
        %8260 = vmatpush1.bf16.msra.mxu0 %v7923
        %8261 = vmatprep.subr.bf16.mxu0 0
        %8262 = vmatpush1.bf16.msra.mxu0 %v7924
        %8263 = vmatprep.subr.bf16.mxu0 0
        %8264 = vmatpush1.bf16.msra.mxu0 %v7925
        %8265 = vmatprep.subr.bf16.mxu0 0
        %8266 = vmatpush1.bf16.msra.mxu0 %v7926
        %8267 = vmatprep.subr.bf16.mxu0 0
        %8268 = vmatpush1.bf16.msra.mxu0 %v7927
        %8269 = vmatprep.subr.bf16.mxu0 0
        %8270 = vmatpush1.bf16.msra.mxu0 %v7928
        %8271 = vmatprep.subr.bf16.mxu0 0
        %8272 = vmatpush1.bf16.msra.mxu0 %v7929
        %8273 = vmatprep.subr.bf16.mxu0 0
        %8274 = vmatpush1.bf16.msra.mxu0 %v7930
        %8275 = vmatprep.mubr.bf16.mxu0 %v7081
        %8276 = vmatmul.mubr.bf16.gmra.mrb[0].mxu0 %v7080
        %v8277 = vpop.f32.mrb[0].mxu0
        %v8278 = vadd.f32 %v8238, %v8277
        %v8279 = vpop.f32.mrb[0].mxu0
        %v8280 = vpop.f32.mrb[0].mxu0
        %v8281 = vpop.f32.mrb[0].mxu0
        %8282 = vdwg.mxu0
        %8283 = vmatprep.subr.bf16.mxu0 0
        %8284 = vmatpush1.bf16.msra.mxu0 %v7931
        %8285 = vmatprep.subr.bf16.mxu0 0
        %8286 = vmatpush1.bf16.msra.mxu0 %v7932
        %8287 = vmatprep.subr.bf16.mxu0 0
        %8288 = vmatpush1.bf16.msra.mxu0 %v7933
        %8289 = vmatprep.subr.bf16.mxu0 0
        %8290 = vmatpush1.bf16.msra.mxu0 %v7934
        %8291 = vmatprep.subr.bf16.mxu0 0
        %8292 = vmatpush1.bf16.msra.mxu0 %v7935
        %8293 = vmatprep.subr.bf16.mxu0 0
        %8294 = vmatpush1.bf16.msra.mxu0 %v7936
        %8295 = vmatprep.subr.bf16.mxu0 0
        %8296 = vmatpush1.bf16.msra.mxu0 %v7937
        %8297 = vmatprep.subr.bf16.mxu0 0
        %8298 = vmatpush1.bf16.msra.mxu0 %v7938
        %8299 = vmatprep.subr.bf16.mxu0 0
        %8300 = vmatpush1.bf16.msra.mxu0 %v7939
        %8301 = vmatprep.subr.bf16.mxu0 0
        %8302 = vmatpush1.bf16.msra.mxu0 %v7940
        %8303 = vmatprep.subr.bf16.mxu0 0
        %8304 = vmatpush1.bf16.msra.mxu0 %v7941
        %8305 = vmatprep.subr.bf16.mxu0 0
        %8306 = vmatpush1.bf16.msra.mxu0 %v7942
        %8307 = vmatprep.subr.bf16.mxu0 0
        %8308 = vmatpush1.bf16.msra.mxu0 %v7943
        %8309 = vmatprep.subr.bf16.mxu0 0
        %8310 = vmatpush1.bf16.msra.mxu0 %v7944
        %8311 = vmatprep.subr.bf16.mxu0 0
        %8312 = vmatpush1.bf16.msra.mxu0 %v7945
        %8313 = vmatprep.subr.bf16.mxu0 0
        %8314 = vmatpush1.bf16.msra.mxu0 %v7946
        %8315 = vmatprep.mubr.bf16.mxu0 %v7083
        %8316 = vmatmul.mubr.bf16.gmra.mrb[0].mxu0 %v7082
        %v8317 = vpop.f32.mrb[0].mxu0
        %v8318 = vadd.f32 %v8278, %v8317
        %v8319 = vpop.f32.mrb[0].mxu0
        %v8320 = vpop.f32.mrb[0].mxu0
        %v8321 = vpop.f32.mrb[0].mxu0
        %8322 = vdwg.mxu0
        %8323 = vmatprep.subr.bf16.mxu0 0
        %8324 = vmatpush1.bf16.msra.mxu0 %v7947
        %8325 = vmatprep.subr.bf16.mxu0 0
        %8326 = vmatpush1.bf16.msra.mxu0 %v7948
        %8327 = vmatprep.subr.bf16.mxu0 0
        %8328 = vmatpush1.bf16.msra.mxu0 %v7949
        %8329 = vmatprep.subr.bf16.mxu0 0
        %8330 = vmatpush1.bf16.msra.mxu0 %v7950
        %8331 = vmatprep.subr.bf16.mxu0 0
        %8332 = vmatpush1.bf16.msra.mxu0 %v7951
        %8333 = vmatprep.subr.bf16.mxu0 0
        %8334 = vmatpush1.bf16.msra.mxu0 %v7952
        %8335 = vmatprep.subr.bf16.mxu0 0
        %8336 = vmatpush1.bf16.msra.mxu0 %v7953
        %8337 = vmatprep.subr.bf16.mxu0 0
        %8338 = vmatpush1.bf16.msra.mxu0 %v7954
        %8339 = vmatprep.subr.bf16.mxu0 0
        %8340 = vmatpush1.bf16.msra.mxu0 %v7955
        %8341 = vmatprep.subr.bf16.mxu0 0
        %8342 = vmatpush1.bf16.msra.mxu0 %v7956
        %8343 = vmatprep.subr.bf16.mxu0 0
        %8344 = vmatpush1.bf16.msra.mxu0 %v7957
        %8345 = vmatprep.subr.bf16.mxu0 0
        %8346 = vmatpush1.bf16.msra.mxu0 %v7958
        %8347 = vmatprep.subr.bf16.mxu0 0
        %8348 = vmatpush1.bf16.msra.mxu0 %v7959
        %8349 = vmatprep.subr.bf16.mxu0 0
        %8350 = vmatpush1.bf16.msra.mxu0 %v7960
        %8351 = vmatprep.subr.bf16.mxu0 0
        %8352 = vmatpush1.bf16.msra.mxu0 %v7961
        %8353 = vmatprep.subr.bf16.mxu0 0
        %8354 = vmatpush1.bf16.msra.mxu0 %v7962
        %8355 = vmatprep.mubr.bf16.mxu0 %v7085
        %8356 = vmatmul.mubr.bf16.gmra.mrb[0].mxu0 %v7084
        %v8357 = vpop.f32.mrb[0].mxu0
        %v8358 = vadd.f32 %v8318, %v8357
        %v8359 = vpop.f32.mrb[0].mxu0
        %v8360 = vpop.f32.mrb[0].mxu0
        %v8361 = vpop.f32.mrb[0].mxu0
        %8362 = vdwg.mxu0
        %8363 = vmatprep.subr.bf16.mxu0 0
        %8364 = vmatpush1.bf16.msra.mxu0 %v7963
        %8365 = vmatprep.subr.bf16.mxu0 0
        %8366 = vmatpush1.bf16.msra.mxu0 %v7964
        %8367 = vmatprep.subr.bf16.mxu0 0
        %8368 = vmatpush1.bf16.msra.mxu0 %v7965
        %8369 = vmatprep.subr.bf16.mxu0 0
        %8370 = vmatpush1.bf16.msra.mxu0 %v7966
        %8371 = vmatprep.subr.bf16.mxu0 0
        %8372 = vmatpush1.bf16.msra.mxu0 %v7967
        %8373 = vmatprep.subr.bf16.mxu0 0
        %8374 = vmatpush1.bf16.msra.mxu0 %v7968
        %8375 = vmatprep.subr.bf16.mxu0 0
        %8376 = vmatpush1.bf16.msra.mxu0 %v7969
        %8377 = vmatprep.subr.bf16.mxu0 0
        %8378 = vmatpush1.bf16.msra.mxu0 %v7970
        %8379 = vmatprep.subr.bf16.mxu0 0
        %8380 = vmatpush1.bf16.msra.mxu0 %v7971
        %8381 = vmatprep.subr.bf16.mxu0 0
        %8382 = vmatpush1.bf16.msra.mxu0 %v7972
        %8383 = vmatprep.subr.bf16.mxu0 0
        %8384 = vmatpush1.bf16.msra.mxu0 %v7973
        %8385 = vmatprep.subr.bf16.mxu0 0
        %8386 = vmatpush1.bf16.msra.mxu0 %v7974
        %8387 = vmatprep.subr.bf16.mxu0 0
        %8388 = vmatpush1.bf16.msra.mxu0 %v7975
        %8389 = vmatprep.subr.bf16.mxu0 0
        %8390 = vmatpush1.bf16.msra.mxu0 %v7976
        %8391 = vmatprep.subr.bf16.mxu0 0
        %8392 = vmatpush1.bf16.msra.mxu0 %v7977
        %8393 = vmatprep.subr.bf16.mxu0 0
        %8394 = vmatpush1.bf16.msra.mxu0 %v7978
        %8395 = vmatprep.mubr.bf16.mxu0 %v7087
        %8396 = vmatmul.mubr.bf16.gmra.mrb[0].mxu0 %v7086
        %v8397 = vpop.f32.mrb[0].mxu0
        %v8398 = vadd.f32 %v8358, %v8397
        %v8399 = vpop.f32.mrb[0].mxu0
        %v8400 = vpop.f32.mrb[0].mxu0
        %v8401 = vpop.f32.mrb[0].mxu0
        %8402 = vdwg.mxu0
        %8403 = vmatprep.subr.bf16.mxu0 0
        %8404 = vmatpush1.bf16.msra.mxu0 %v7979
        %8405 = vmatprep.subr.bf16.mxu0 0
        %8406 = vmatpush1.bf16.msra.mxu0 %v7980
        %8407 = vmatprep.subr.bf16.mxu0 0
        %8408 = vmatpush1.bf16.msra.mxu0 %v7981
        %8409 = vmatprep.subr.bf16.mxu0 0
        %8410 = vmatpush1.bf16.msra.mxu0 %v7982
        %8411 = vmatprep.subr.bf16.mxu0 0
        %8412 = vmatpush1.bf16.msra.mxu0 %v7983
        %8413 = vmatprep.subr.bf16.mxu0 0
        %8414 = vmatpush1.bf16.msra.mxu0 %v7984
        %8415 = vmatprep.subr.bf16.mxu0 0
        %8416 = vmatpush1.bf16.msra.mxu0 %v7985
        %8417 = vmatprep.subr.bf16.mxu0 0
        %8418 = vmatpush1.bf16.msra.mxu0 %v7986
        %8419 = vmatprep.subr.bf16.mxu0 0
        %8420 = vmatpush1.bf16.msra.mxu0 %v7987
        %8421 = vmatprep.subr.bf16.mxu0 0
        %8422 = vmatpush1.bf16.msra.mxu0 %v7988
        %8423 = vmatprep.subr.bf16.mxu0 0
        %8424 = vmatpush1.bf16.msra.mxu0 %v7989
        %8425 = vmatprep.subr.bf16.mxu0 0
        %8426 = vmatpush1.bf16.msra.mxu0 %v7990
        %8427 = vmatprep.subr.bf16.mxu0 0
        %8428 = vmatpush1.bf16.msra.mxu0 %v7991
        %8429 = vmatprep.subr.bf16.mxu0 0
        %8430 = vmatpush1.bf16.msra.mxu0 %v7992
        %8431 = vmatprep.subr.bf16.mxu0 0
        %8432 = vmatpush1.bf16.msra.mxu0 %v7993
        %8433 = vmatprep.subr.bf16.mxu0 0
        %8434 = vmatpush1.bf16.msra.mxu0 %v7994
        %8435 = vmatprep.mubr.bf16.mxu0 %v7089
        %8436 = vmatmul.mubr.bf16.gmra.mrb[0].mxu0 %v7088
        %v8437 = vpop.f32.mrb[0].mxu0
        %v8438 = vadd.f32 %v8398, %v8437
        %v8439 = vpop.f32.mrb[0].mxu0
        %v8440 = vpop.f32.mrb[0].mxu0
        %v8441 = vpop.f32.mrb[0].mxu0
        %8442 = vdwg.mxu0
        %v8443 = vadd.f32 %v5810, %v8438
        %s8444 = scalar_lea.vmem %s11, 1
        %v8445 = vld [vmem:[%s8444] sm:$0x1]
        %s8446 = scalar_lea.vmem %s12, 1
        %v8447 = vld [vmem:[%s8446] sm:$0x1]
        %8448 = vadd.xlane.f32.xlu0 %v8443
        %v8449 = vpop.xlane.xlu0 %8448
        %v8450 = vmul.f32 %v8449, %v1811
        %v8451 = vsub.f32 %v8443, %v8450
        %v8452 = vmul.f32 %v8451, %v8451
        %8453 = vadd.xlane.f32.xlu0 %v8452
        %v8454 = vpop.xlane.xlu0 %8453
        %v8455 = vmul.f32 %v8454, %v1811
        %v8456 = vadd.f32 %v8455, 1e-05
        %v8457 = vrsqrt.pop %v8456
        %v8458 = vmul.f32 %v8451, %v8457
        %v8460 = vlaneseq
        %v8461 = vshrl.u32 %v8460, 7
        %v8462 = vsub.s32 0, %v8461
        %v8463 = vrot.slane %v8445, %v8462
        %v8465 = vmul.f32 %v8458, %v8463
        %v8467 = vlaneseq
        %v8468 = vshrl.u32 %v8467, 7
        %v8469 = vsub.s32 0, %v8468
        %v8470 = vrot.slane %v8447, %v8469
        %v8472 = vadd.f32 %v8465, %v8470
        %8473 = vst [vmem:[%s508] sm:$0xff] %v8472
        %p8474 = scmp.lt.s32.totalorder %s27, 1
        %s8475 = scalar_select %p8474, %s27, 1
        %s8476 = smul.addr %s8475, 8
        %s8477 = scalar_lea.vmem %s13, %s8476
        // Predicated region
        $region93: #{transformer_forward.1} parent=71 // pred_check
          %p8478 = pneg %p323
        $region94: #{transformer_forward.1} parent=71 // pred_check_branch
          %8480 = sbr.rel (%p8478) target = $region96
        $region95: #{transformer_forward.1} parent=71 // pred_region
          _
        $region96: #{transformer_forward.1} parent=71 // pred_fallthru
          _
      $region72: #{transformer_forward.1} parent=5 // pred_fallthru
        _
      %p8481 = scmp.le.s32.totalorder 2, %s22
      // Predicated region
      $region97: #{transformer_forward.1} parent=5 // pred_check
        %p8482 = pneg %p8481
      $region98: #{transformer_forward.1} parent=5 // pred_check_branch
        %8484 = sbr.rel (%p8482) target = $region100
      $region99: #{transformer_forward.1} parent=5 // pred_region
        %s8485 = ssub.s32 %s22, 2
        // Predicated region
        $region101: #{transformer_forward.1} parent=99 // pred_check
          %p8486 = pneg %p329
        $region102: #{transformer_forward.1} parent=99 // pred_check_branch
          %8488 = sbr.rel (%p8486) target = $region104
        $region103: #{transformer_forward.1} parent=99 // pred_region
          %p8489 = scmp.lt.s32.totalorder %s28, 1
          %s8490 = scalar_select %p8489, %s28, 1
          %s8491 = smul.addr %s8490, 8
          %s8492 = scalar_lea.vmem %s13, %s8491
        $region104: #{transformer_forward.1} parent=99 // pred_fallthru
          _
      $region100: #{transformer_forward.1} parent=5 // pred_fallthru
        _
    $region6: #{transformer_forward.1} parent=1 // loop_footer
      %s26 = sadd.s32 1, %s22
    $region7: #{transformer_forward.1} parent=1 // loop_footer_branch
      %21 = sbr.rel target = $region3
    $region8: #{transformer_forward.1} parent=1 // loop_exit
      _
    %8493 = vsyncpa [#allocation3], 1
    %s8494 = scalar_lea.sflag [#allocation3], 1
    %8495 = vsyncpa %s8494, 1
    %8496 = vsyncpa [#allocation5], 1
    %8497 = vsyncpa [#allocation8], 1

</llo_original>
